<compile_context>
chip_gen: v7x
topology: tpu7x:2x2x1
jax: 0.10.0
libtpu: 0.0.40
codegen_flags: <defaults>
</compile_context>

<pallas_src>
import math
import numpy as np

import jax
import jax.numpy as jnp
from jax import lax
from jax.experimental import pallas as pl
from jax.experimental.pallas import tpu as pltpu


def _round_up(x: int, m: int) -> int:
    return ((x + m - 1) // m) * m


def _gaussian_1d(window_size: int, sigma: float) -> np.ndarray:
    """Same construction as SSIM.gaussian: normalized 1D gaussian."""
    g = np.array(
        [math.exp(-((x - window_size // 2) ** 2) / (2.0 * sigma ** 2))
         for x in range(window_size)],
        dtype=np.float64)
    g = g / g.sum()
    return g.astype(np.float32)


def _band_matrix(n_valid: int, n_pad: int, g1d: np.ndarray) -> np.ndarray:
    """(n_pad, n_pad) banded matrix reproducing zero-padded 'same' 1D conv.

    Only the top-left (n_valid, n_valid) block carries the band, so any output
    index >= n_valid is exactly zero (keeps lane/sublane padding exactly zero
    through the blur).  X @ B contracts X's length-n_pad axis with B's rows.
    """
    ws = g1d.shape[0]
    pad = ws // 2
    m = np.zeros((n_pad, n_pad), dtype=np.float32)
    for j in range(n_valid):
        for dj in range(ws):
            i = j + dj - pad
            if 0 <= i < n_valid:
                m[i, j] = float(g1d[dj])
    return m


def _make_ssim_kernel(BN: int, C: int, H: int, W: int, Hp: int, Wp: int):
    C1 = 0.01 ** 2
    C2 = 0.03 ** 2
    S = BN * C * Hp          # rows per blurred plane in the flat 2-D layout

    def blur(planes, bw, bh):
        """Separable Gaussian blur of stacked planes, all on the MXU.

        planes: (P*S, Wp) with rows ordered (plane, image, channel, h).
        """
        rows = planes.shape[0]
        g = rows // Hp
        # W pass: one lane-dense matmul, M = P*S.
        t = jnp.dot(planes, bw, preferred_element_type=jnp.float32)
        # H pass as ONE large matmul: move H onto the contracting minor dim
        # with two minor-dim (XLU) transposes instead of P*BN*C tiny matmuls.
        t = t.reshape(g, Hp, Wp)
        t = jnp.swapaxes(t, 1, 2).reshape(g * Wp, Hp)
        t = jnp.dot(t, bh, preferred_element_type=jnp.float32)
        t = jnp.swapaxes(t.reshape(g, Wp, Hp), 1, 2).reshape(rows, Wp)
        return t

    def kernel(x_ref, y_ref, bw_ref, bh_ref, out_ref):
        bw = bw_ref[...]                                  # (Wp, Wp)
        bh = bh_ref[...]                                  # (Hp, Hp)
        x = x_ref[...].astype(jnp.float32).reshape(S, Wp)
        y = y_ref[...].astype(jnp.float32).reshape(S, Wp)

        # Phase A: blur [x; y] -> mu terms.
        mu = blur(jnp.concatenate([x, y], axis=0), bw, bh)   # (2S, Wp)
        mu1 = mu[:S]
        mu2 = mu[S:]
        mu1_sq = mu1 * mu1
        mu2_sq = mu2 * mu2
        mu1_mu2 = mu1 * mu2

        # Phase B: blur the three product planes -> sigma terms.
        sig = blur(jnp.concatenate([x * x, y * y, x * y], axis=0), bw, bh)
        sigma1_sq = sig[0 * S:1 * S] - mu1_sq
        sigma2_sq = sig[1 * S:2 * S] - mu2_sq
        sigma12 = sig[2 * S:3 * S] - mu1_mu2

        num = (2.0 * mu1_mu2 + C1) * (2.0 * sigma12 + C2)
        den = (mu1_sq + mu2_sq + C1) * (sigma1_sq + sigma2_sq + C2)
        # EUP reciprocal instead of a VALU divide in the VPU-heavy epilogue.
        ssim_map = num * pl.reciprocal(den, approx=True)      # (S, Wp)

        # Mask the lane/sublane padding: there every blurred quantity is
        # exactly 0, so ssim would be C1*C2/(C1*C2)=1 and bias the mean.
        need_w = Wp != W
        need_h = Hp != H
        if need_w and need_h:
            col = lax.broadcasted_iota(jnp.int32, (S, Wp), 1)
            row = lax.broadcasted_iota(jnp.int32, (S, Wp), 0)
            valid = (col < W) & ((row % Hp) < H)
            ssim_map = jnp.where(valid, ssim_map, 0.0)
        elif need_w:
            col = lax.broadcasted_iota(jnp.int32, (S, Wp), 1)
            ssim_map = jnp.where(col < W, ssim_map, 0.0)
        elif need_h:
            row = lax.broadcasted_iota(jnp.int32, (S, Wp), 0)
            ssim_map = jnp.where((row % Hp) < H, ssim_map, 0.0)

        # Per-image partial sums, lane-dense (BN, Wp) store.
        out_ref[0] = jnp.sum(ssim_map.reshape(BN, C * Hp, Wp), axis=1)

    return kernel


def ssim_pallas(img1: jax.Array, img2: jax.Array,
                window_size: int = 11, sigma: float = 1.5,
                size_average: bool = True) -> jax.Array:
    N, C, H, W = img1.shape
    assert img2.shape == img1.shape

    # Lane/sublane-dense padding (layout plumbing in the wrapper).
    Hp = _round_up(H, 8)
    Wp = _round_up(W, 128)
    if (Hp, Wp) != (H, W):
        pad = [(0, 0), (0, 0), (0, Hp - H), (0, Wp - W)]
        img1p = jnp.pad(img1, pad)
        img2p = jnp.pad(img2, pad)
    else:
        img1p, img2p = img1, img2

    g1d = _gaussian_1d(window_size, sigma)
    bw = jnp.asarray(_band_matrix(W, Wp, g1d))    # (Wp, Wp)
    bh = jnp.asarray(_band_matrix(H, Hp, g1d))    # (Hp, Hp)

    # Batch BN images per grid step, subject to a VMEM working-set budget
    # (~18 live plane-sized f32 temporaries per step, conservatively).
    plane_bytes = C * Hp * Wp * 4
    budget = 12 * 1024 * 1024
    BN = 1
    for cand in range(N, 0, -1):
        if N % cand == 0 and cand * plane_bytes * 18 <= budget:
            BN = cand
            break
    steps = N // BN

    kernel = _make_ssim_kernel(BN, C, H, W, Hp, Wp)

    partials = pl.pallas_call(
        kernel,
        out_shape=jax.ShapeDtypeStruct((steps, BN, Wp), jnp.float32),
        grid=(steps,),
        in_specs=[
            pl.BlockSpec((BN, C, Hp, Wp), lambda n: (n, 0, 0, 0)),
            pl.BlockSpec((BN, C, Hp, Wp), lambda n: (n, 0, 0, 0)),
            # Constant band matrices: single-buffered (no wasted 2x VMEM).
            pl.BlockSpec((Wp, Wp), lambda n: (0, 0),
                         pipeline_mode=pl.Buffered(1)),
            pl.BlockSpec((Hp, Hp), lambda n: (0, 0),
                         pipeline_mode=pl.Buffered(1)),
        ],
        out_specs=pl.BlockSpec((1, BN, Wp), lambda n: (n, 0, 0)),
        compiler_params=pltpu.CompilerParams(
            dimension_semantics=("parallel",),      # disjoint outputs per step
            vmem_limit_bytes=64 * 1024 * 1024,      # v5e default is only 16 MiB
        ),
    )(img1p, img2p, bw, bh)

    per_image = partials.reshape(N, Wp).sum(axis=1) / float(C * H * W)   # (N,)
    if size_average:
        return jnp.mean(per_image)          # == ssim_map.mean()
    return per_image                        # == ssim_map.mean(1).mean(1).mean(1)


def _ssim_reference(img1: jax.Array, img2: jax.Array,
                    window_size: int = 11, sigma: float = 1.5) -> jax.Array:
    """Pure-JAX reference mirroring the PyTorch module (for validation)."""
    N, C, H, W = img1.shape
    pad = window_size // 2
    g = jnp.asarray(_gaussian_1d(window_size, sigma))
    w2d = jnp.outer(g, g)
    win = jnp.broadcast_to(w2d[None, None], (C, 1, window_size, window_size))

    def conv(x):
        return jax.lax.conv_general_dilated(
            x, win, window_strides=(1, 1),
            padding=[(pad, pad), (pad, pad)],
            dimension_numbers=("NCHW", "OIHW", "NCHW"),
            feature_group_count=C)

    mu1 = conv(img1)
    mu2 = conv(img2)
    mu1_sq = mu1 ** 2
    mu2_sq = mu2 ** 2
    mu1_mu2 = mu1 * mu2
    sigma1_sq = conv(img1 * img1) - mu1_sq
    sigma2_sq = conv(img2 * img2) - mu2_sq
    sigma12 = conv(img1 * img2) - mu1_mu2
    C1 = 0.01 ** 2
    C2 = 0.03 ** 2
    ssim_map = ((2 * mu1_mu2 + C1) * (2 * sigma12 + C2) /
                ((mu1_sq + mu2_sq + C1) * (sigma1_sq + sigma2_sq + C2)))
    return ssim_map.mean()


if __name__ == "__main__":
    key = jax.random.PRNGKey(0)
    k1, k2 = jax.random.split(key)
    N, C, H, W = 2, 4, 16, 16
    img1 = jax.random.uniform(k1, (N, C, H, W), dtype=jnp.float32)
    img2 = jax.random.uniform(k2, (N, C, H, W), dtype=jnp.float32)

    result = jax.block_until_ready(ssim_pallas(img1, img2))
    ref = jax.block_until_ready(_ssim_reference(img1, img2))

    assert jnp.isfinite(result), "non-finite SSIM from kernel"
    assert abs(float(result) - float(ref)) < 1e-4, (float(result), float(ref))

    print("KERNEL_OK")
</pallas_src>

<mosaic_0001>
module attributes {stable_mosaic.version = 11 : i64} {
  func.func @kernel(%arg0: i32, %arg1: memref<2x4x16x128xf32, #tpu.memory_space<vmem>>, %arg2: memref<2x4x16x128xf32, #tpu.memory_space<vmem>>, %arg3: memref<128x128xf32, #tpu.memory_space<vmem>>, %arg4: memref<16x16xf32, #tpu.memory_space<vmem>>, %arg5: memref<1x2x128xf32, #tpu.memory_space<vmem>>) attributes {dimension_semantics = [#tpu.dimension_semantics<parallel>], iteration_bounds = array<i64: 1>, scalar_prefetch = 0 : i64, scratch_operands = 0 : i64, tpu.core_type = #tpu.core_type<tc>, window_params = [{transform_indices = @transform_0, window_bounds = array<i64: 2, 4, 16, 128>}, {transform_indices = @transform_1, window_bounds = array<i64: 2, 4, 16, 128>}, {pipeline_mode = #tpu.pipeline_mode<synchronous>, transform_indices = @transform_2, window_bounds = array<i64: 128, 128>}, {pipeline_mode = #tpu.pipeline_mode<synchronous>, transform_indices = @transform_3, window_bounds = array<i64: 16, 16>}, {transform_indices = @transform_4, window_bounds = array<i64: 1, 2, 128>}]} {
    %c0 = arith.constant 0 : index
    %c0_0 = arith.constant 0 : index
    %0 = vector.load %arg3[%c0, %c0_0] : memref<128x128xf32, #tpu.memory_space<vmem>>, vector<128x128xf32>
    %c0_1 = arith.constant 0 : index
    %c0_2 = arith.constant 0 : index
    %1 = vector.load %arg4[%c0_1, %c0_2] : memref<16x16xf32, #tpu.memory_space<vmem>>, vector<16x16xf32>
    %c0_3 = arith.constant 0 : index
    %c0_4 = arith.constant 0 : index
    %c0_5 = arith.constant 0 : index
    %c0_6 = arith.constant 0 : index
    %2 = vector.load %arg1[%c0_3, %c0_4, %c0_5, %c0_6] : memref<2x4x16x128xf32, #tpu.memory_space<vmem>>, vector<2x4x16x128xf32>
    %3 = vector.shape_cast %2 : vector<2x4x16x128xf32> to vector<128x128xf32>
    %c0_7 = arith.constant 0 : index
    %c0_8 = arith.constant 0 : index
    %c0_9 = arith.constant 0 : index
    %c0_10 = arith.constant 0 : index
    %4 = vector.load %arg2[%c0_7, %c0_8, %c0_9, %c0_10] : memref<2x4x16x128xf32, #tpu.memory_space<vmem>>, vector<2x4x16x128xf32>
    %5 = vector.shape_cast %4 : vector<2x4x16x128xf32> to vector<128x128xf32>
    %6 = tpu.concatenate %3, %5 in 0 : vector<128x128xf32>, vector<128x128xf32> -> vector<256x128xf32>
    %cst = arith.constant dense<0.000000e+00> : vector<256x128xf32>
    %7 = tpu.matmul %6, %0, %cst {dimension_numbers = #tpu.dot_dimension_numbers<[1], [0], [0], [1], [0, 0, 1, 1], [], []>} : vector<256x128xf32>, vector<128x128xf32>, vector<256x128xf32> -> vector<256x128xf32>
    %8 = vector.shape_cast %7 : vector<256x128xf32> to vector<16x16x128xf32>
    %9 = tpu.transpose %8, [0, 2, 1] : vector<16x16x128xf32> -> vector<16x128x16xf32>
    %10 = vector.shape_cast %9 : vector<16x128x16xf32> to vector<2048x16xf32>
    %cst_11 = arith.constant dense<0.000000e+00> : vector<2048x16xf32>
    %11 = tpu.matmul %10, %1, %cst_11 {dimension_numbers = #tpu.dot_dimension_numbers<[1], [0], [0], [1], [0, 0, 1, 1], [], []>} : vector<2048x16xf32>, vector<16x16xf32>, vector<2048x16xf32> -> vector<2048x16xf32>
    %12 = vector.shape_cast %11 : vector<2048x16xf32> to vector<16x128x16xf32>
    %13 = tpu.transpose %12, [0, 2, 1] : vector<16x128x16xf32> -> vector<16x16x128xf32>
    %14 = vector.shape_cast %13 : vector<16x16x128xf32> to vector<256x128xf32>
    %15 = vector.extract_strided_slice %14 {offsets = [0, 0], sizes = [128, 128], strides = [1, 1]} : vector<256x128xf32> to vector<128x128xf32>
    %16 = vector.extract_strided_slice %14 {offsets = [128, 0], sizes = [128, 128], strides = [1, 1]} : vector<256x128xf32> to vector<128x128xf32>
    %17 = arith.mulf %15, %15 : vector<128x128xf32>
    %18 = arith.mulf %16, %16 : vector<128x128xf32>
    %19 = arith.mulf %15, %16 : vector<128x128xf32>
    %20 = arith.mulf %3, %3 : vector<128x128xf32>
    %21 = arith.mulf %5, %5 : vector<128x128xf32>
    %22 = arith.mulf %3, %5 : vector<128x128xf32>
    %23 = tpu.concatenate %20, %21, %22 in 0 : vector<128x128xf32>, vector<128x128xf32>, vector<128x128xf32> -> vector<384x128xf32>
    %cst_12 = arith.constant dense<0.000000e+00> : vector<384x128xf32>
    %24 = tpu.matmul %23, %0, %cst_12 {dimension_numbers = #tpu.dot_dimension_numbers<[1], [0], [0], [1], [0, 0, 1, 1], [], []>} : vector<384x128xf32>, vector<128x128xf32>, vector<384x128xf32> -> vector<384x128xf32>
    %25 = vector.shape_cast %24 : vector<384x128xf32> to vector<24x16x128xf32>
    %26 = tpu.transpose %25, [0, 2, 1] : vector<24x16x128xf32> -> vector<24x128x16xf32>
    %27 = vector.shape_cast %26 : vector<24x128x16xf32> to vector<3072x16xf32>
    %cst_13 = arith.constant dense<0.000000e+00> : vector<3072x16xf32>
    %28 = tpu.matmul %27, %1, %cst_13 {dimension_numbers = #tpu.dot_dimension_numbers<[1], [0], [0], [1], [0, 0, 1, 1], [], []>} : vector<3072x16xf32>, vector<16x16xf32>, vector<3072x16xf32> -> vector<3072x16xf32>
    %29 = vector.shape_cast %28 : vector<3072x16xf32> to vector<24x128x16xf32>
    %30 = tpu.transpose %29, [0, 2, 1] : vector<24x128x16xf32> -> vector<24x16x128xf32>
    %31 = vector.shape_cast %30 : vector<24x16x128xf32> to vector<384x128xf32>
    %32 = vector.extract_strided_slice %31 {offsets = [0, 0], sizes = [128, 128], strides = [1, 1]} : vector<384x128xf32> to vector<128x128xf32>
    %33 = arith.subf %32, %17 : vector<128x128xf32>
    %34 = vector.extract_strided_slice %31 {offsets = [128, 0], sizes = [128, 128], strides = [1, 1]} : vector<384x128xf32> to vector<128x128xf32>
    %35 = arith.subf %34, %18 : vector<128x128xf32>
    %36 = vector.extract_strided_slice %31 {offsets = [256, 0], sizes = [128, 128], strides = [1, 1]} : vector<384x128xf32> to vector<128x128xf32>
    %37 = arith.subf %36, %19 : vector<128x128xf32>
    %cst_14 = arith.constant 2.000000e+00 : f32
    %38 = vector.broadcast %cst_14 : f32 to vector<128x128xf32>
    %39 = arith.mulf %38, %19 : vector<128x128xf32>
    %cst_15 = arith.constant 9.99999974E-5 : f32
    %40 = vector.broadcast %cst_15 : f32 to vector<128x128xf32>
    %41 = arith.addf %39, %40 : vector<128x128xf32>
    %cst_16 = arith.constant 2.000000e+00 : f32
    %42 = vector.broadcast %cst_16 : f32 to vector<128x128xf32>
    %43 = arith.mulf %42, %37 : vector<128x128xf32>
    %cst_17 = arith.constant 8.99999984E-4 : f32
    %44 = vector.broadcast %cst_17 : f32 to vector<128x128xf32>
    %45 = arith.addf %43, %44 : vector<128x128xf32>
    %46 = arith.mulf %41, %45 : vector<128x128xf32>
    %47 = arith.addf %17, %18 : vector<128x128xf32>
    %cst_18 = arith.constant 9.99999974E-5 : f32
    %48 = vector.broadcast %cst_18 : f32 to vector<128x128xf32>
    %49 = arith.addf %47, %48 : vector<128x128xf32>
    %50 = arith.addf %33, %35 : vector<128x128xf32>
    %cst_19 = arith.constant 8.99999984E-4 : f32
    %51 = vector.broadcast %cst_19 : f32 to vector<128x128xf32>
    %52 = arith.addf %50, %51 : vector<128x128xf32>
    %53 = arith.mulf %49, %52 : vector<128x128xf32>
    %54 = tpu.reciprocal %53 {approx = true} : vector<128x128xf32> -> vector<128x128xf32>
    %55 = arith.mulf %46, %54 : vector<128x128xf32>
    %56 = tpu.iota {dimensions = array<i32: 1>} : vector<128x128xi32>
    %c16_i32 = arith.constant 16 : i32
    %57 = vector.broadcast %c16_i32 : i32 to vector<128x128xi32>
    %58 = arith.cmpi slt, %56, %57 : vector<128x128xi32>
    %cst_20 = arith.constant 0.000000e+00 : f32
    %59 = vector.broadcast %cst_20 : f32 to vector<128x128xf32>
    %60 = arith.select %58, %55, %59 : vector<128x128xi1>, vector<128x128xf32>
    %61 = vector.shape_cast %60 : vector<128x128xf32> to vector<2x64x128xf32>
    %cst_21 = arith.constant dense<0.000000e+00> : vector<2x128xf32>
    %62 = vector.multi_reduction <add>, %61, %cst_21 [1] : vector<2x64x128xf32> to vector<2x128xf32>
    %c0_22 = arith.constant 0 : index
    %c0_23 = arith.constant 0 : index
    %c0_24 = arith.constant 0 : index
    %63 = vector.load %arg5[%c0_22, %c0_23, %c0_24] : memref<1x2x128xf32, #tpu.memory_space<vmem>>, vector<1x2x128xf32>
    %64 = vector.shape_cast %63 : vector<1x2x128xf32> to vector<2x128xf32>
    %65 = vector.shape_cast %62 : vector<2x128xf32> to vector<1x2x128xf32>
    tpu.vector_store %arg5[%c0_22, %c0_23, %c0_24], %65 {strides = array<i32>} : memref<1x2x128xf32, #tpu.memory_space<vmem>>, vector<1x2x128xf32>,
    return
  }
  func.func @transform_0(%arg0: i32) -> (i32, i32, i32, i32) {
    %c0_i32 = arith.constant 0 : i32
    %c0_i32_0 = arith.constant 0 : i32
    %c0_i32_1 = arith.constant 0 : i32
    %c0_i32_2 = arith.constant 0 : i32
    return %arg0, %c0_i32, %c0_i32_0, %c0_i32_1 : i32, i32, i32, i32
  }
  func.func @transform_1(%arg0: i32) -> (i32, i32, i32, i32) {
    %c0_i32 = arith.constant 0 : i32
    %c0_i32_0 = arith.constant 0 : i32
    %c0_i32_1 = arith.constant 0 : i32
    %c0_i32_2 = arith.constant 0 : i32
    return %arg0, %c0_i32, %c0_i32_0, %c0_i32_1 : i32, i32, i32, i32
  }
  func.func @transform_2(%arg0: i32) -> (i32, i32) {
    %c0_i32 = arith.constant 0 : i32
    %c0_i32_0 = arith.constant 0 : i32
    %c0_i32_1 = arith.constant 0 : i32
    return %c0_i32, %c0_i32_0 : i32, i32
  }
  func.func @transform_3(%arg0: i32) -> (i32, i32) {
    %c0_i32 = arith.constant 0 : i32
    %c0_i32_0 = arith.constant 0 : i32
    %c0_i32_1 = arith.constant 0 : i32
    return %c0_i32, %c0_i32_0 : i32, i32
  }
  func.func @transform_4(%arg0: i32) -> (i32, i32, i32) {
    %c0_i32 = arith.constant 0 : i32
    %c0_i32_0 = arith.constant 0 : i32
    %c0_i32_1 = arith.constant 0 : i32
    return %arg0, %c0_i32, %c0_i32_0 : i32, i32, i32
  }
}

</mosaic_0001>

<llo_original>
// kernel: tpu_custom_call.1
$region0: #{tpu_custom_call.1}
  #allocation0 [shape = 'u32[]', space=smem, size = 0x4, offset = 0x4, fixed_abs, tag = 'smem constant byte address 0x4 - core index']
  #allocation1 [shape = 'u32[144,128]{1,0:T(1,128)}', space=vmem, size = 0x12000, scoped, tag = 'internal scratch']
  %s0 = inlined_call_operand.hbm [shape: f32[2,4,16,128], index: 0, kind: input, shape index: {}]
  %s1 = inlined_call_operand.hbm [shape: f32[2,4,16,128], index: 1, kind: input, shape index: {}]
  %s2 = inlined_call_operand.hbm [shape: f32[128,128], index: 2, kind: input, shape index: {}]
  %s3 = inlined_call_operand.hbm [shape: f32[16,16], index: 3, kind: input, shape index: {}]
  %s4 = inlined_call_operand.hbm [shape: f32[1,2,128], index: 4, kind: output, shape index: {}]
  %s5 = sld [smem:[#allocation0]]
  $region42: #{tpu_custom_call.1} parent=0
    _
  %s7 = ssub.s32 1, %s5
  %s8 = scalar_select 0, %s7, %s5
  $region1: #{tpu_custom_call.1} parent=0
    #allocation2 [shape = 'u8[65536]{0}', space=vmem, size = 0x10000, scoped, tag = 'input window, operand 0, single buffered']
    #allocation3 [shape = 's32[1]{0}', space=sflag, size = 0x4, scoped, tag = 'scoped memory for tpu_custom_call.1']
    #allocation4 [shape = 's32[1]{0}', space=sflag, size = 0x4, scoped, tag = 'scoped memory for tpu_custom_call.1']
    #allocation5 [shape = 'u8[65536]{0}', space=vmem, size = 0x10000, scoped, tag = 'input window, operand 1, single buffered']
    #allocation6 [shape = 's32[1]{0}', space=sflag, size = 0x4, scoped, tag = 'scoped memory for tpu_custom_call.1']
    #allocation7 [shape = 'u8[65536]{0}', space=vmem, size = 0x10000, scoped, tag = 'input window, operand 2, single buffered']
    #allocation8 [shape = 'u8[8192]{0}', space=vmem, size = 0x2000, scoped, tag = 'input window, operand 3, single buffered']
    #allocation9 [shape = 's32[1]{0}', space=sflag, size = 0x4, scoped, tag = 'scoped memory for tpu_custom_call.1']
    #allocation10 [shape = 'u8[1024]{0}', space=vmem, size = 0x400, scoped, tag = 'output window, operand 0, single buffered']
    %9 = vsyncpa [#allocation3], 0
    %10 = vsyncpa [#allocation6], 0
    %11 = vsyncpa [#allocation9], 0
    %12 = vsyncpa [#allocation4], 0
    // Predicated region
    $region2: #{tpu_custom_call.1} parent=1 // pred_check
      _
    $region3: #{tpu_custom_call.1} parent=1 // pred_check_branch
      %14 = sbr.rel (0) target = $region5
    $region4: #{tpu_custom_call.1} parent=1 // pred_region
      %s16 = ssub.s32 2048, 2048
      %17 = vsyncadd [#allocation3], %s16
      %s18 = sshll.u32 [#allocation2], 4
      %s19 = int_to_ptr.vmem [resolvable:$true] %s18
      %24 = dma.hbm_to_vmem [thread:$0]  %s0, 2048, %s19, [#allocation3], 128, 128, 8
    $region5: #{tpu_custom_call.1} parent=1 // pred_fallthru
      _
    // Predicated region
    $region6: #{tpu_custom_call.1} parent=1 // pred_check
      _
    $region7: #{tpu_custom_call.1} parent=1 // pred_check_branch
      %26 = sbr.rel (0) target = $region9
    $region8: #{tpu_custom_call.1} parent=1 // pred_region
      %s28 = ssub.s32 2048, 2048
      %29 = vsyncadd [#allocation6], %s28
      %s30 = sshll.u32 [#allocation5], 4
      %s31 = int_to_ptr.vmem [resolvable:$true] %s30
      %36 = dma.hbm_to_vmem [thread:$0]  %s1, 2048, %s31, [#allocation6], 128, 128, 8
    $region9: #{tpu_custom_call.1} parent=1 // pred_fallthru
      _
    // Predicated region
    $region10: #{tpu_custom_call.1} parent=1 // pred_check
      _
    $region11: #{tpu_custom_call.1} parent=1 // pred_check_branch
      %38 = sbr.rel (0) target = $region13
    $region12: #{tpu_custom_call.1} parent=1 // pred_region
      %s40 = ssub.s32 2048, 2048
      %41 = vsyncadd [#allocation6], %s40
      %s42 = sshll.u32 [#allocation7], 4
      %s43 = int_to_ptr.vmem [resolvable:$true] %s42
      %48 = dma.hbm_to_vmem [thread:$0]  %s2, 2048, %s43, [#allocation6], 128, 128, 8
    $region13: #{tpu_custom_call.1} parent=1 // pred_fallthru
      _
    // Predicated region
    $region14: #{tpu_custom_call.1} parent=1 // pred_check
      _
    $region15: #{tpu_custom_call.1} parent=1 // pred_check_branch
      %50 = sbr.rel (0) target = $region17
    $region16: #{tpu_custom_call.1} parent=1 // pred_region
      %s52 = ssub.s32 256, 256
      %53 = vsyncadd [#allocation9], %s52
      %s54 = sshll.u32 [#allocation8], 4
      %s55 = int_to_ptr.vmem [resolvable:$true] %s54
      %60 = dma.hbm_to_vmem [thread:$0]  %s3, 256, %s55, [#allocation9], 128, 128, 8
    $region17: #{tpu_custom_call.1} parent=1 // pred_fallthru
      _
    // Predicated region
    $region18: #{tpu_custom_call.1} parent=1 // pred_check
      _
    $region19: #{tpu_custom_call.1} parent=1 // pred_check_branch
      %62 = sbr.rel (0) target = $region21
    $region20: #{tpu_custom_call.1} parent=1 // pred_region
      %63 = dma.done [#allocation3], 2048
    $region21: #{tpu_custom_call.1} parent=1 // pred_fallthru
      _
    // Predicated region
    $region22: #{tpu_custom_call.1} parent=1 // pred_check
      _
    $region23: #{tpu_custom_call.1} parent=1 // pred_check_branch
      %65 = sbr.rel (0) target = $region25
    $region24: #{tpu_custom_call.1} parent=1 // pred_region
      %66 = dma.done [#allocation6], 2048
    $region25: #{tpu_custom_call.1} parent=1 // pred_fallthru
      _
    // Predicated region
    $region26: #{tpu_custom_call.1} parent=1 // pred_check
      _
    $region27: #{tpu_custom_call.1} parent=1 // pred_check_branch
      %68 = sbr.rel (0) target = $region29
    $region28: #{tpu_custom_call.1} parent=1 // pred_region
      %69 = dma.done [#allocation6], 2048
    $region29: #{tpu_custom_call.1} parent=1 // pred_fallthru
      _
    // Predicated region
    $region30: #{tpu_custom_call.1} parent=1 // pred_check
      _
    $region31: #{tpu_custom_call.1} parent=1 // pred_check_branch
      %71 = sbr.rel (0) target = $region33
    $region32: #{tpu_custom_call.1} parent=1 // pred_region
      %72 = dma.done [#allocation9], 256
    $region33: #{tpu_custom_call.1} parent=1 // pred_fallthru
      _
    %v73 = vld [vmem:[#allocation7] sm:$0xff]
    %v74 = vld [vmem:[#allocation7 + $0x8] sm:$0xff]
    %v75 = vld [vmem:[#allocation7 + $0x10] sm:$0xff]
    %v76 = vld [vmem:[#allocation7 + $0x18] sm:$0xff]
    %v77 = vld [vmem:[#allocation7 + $0x20] sm:$0xff]
    %v78 = vld [vmem:[#allocation7 + $0x28] sm:$0xff]
    %v79 = vld [vmem:[#allocation7 + $0x30] sm:$0xff]
    %v80 = vld [vmem:[#allocation7 + $0x38] sm:$0xff]
    %v81 = vld [vmem:[#allocation7 + $0x40] sm:$0xff]
    %v82 = vld [vmem:[#allocation7 + $0x48] sm:$0xff]
    %v83 = vld [vmem:[#allocation7 + $0x50] sm:$0xff]
    %v84 = vld [vmem:[#allocation7 + $0x58] sm:$0xff]
    %v85 = vld [vmem:[#allocation7 + $0x60] sm:$0xff]
    %v86 = vld [vmem:[#allocation7 + $0x68] sm:$0xff]
    %v87 = vld [vmem:[#allocation7 + $0x70] sm:$0xff]
    %v88 = vld [vmem:[#allocation7 + $0x78] sm:$0xff]
    %v89 = vld [vmem:[#allocation8] sm:$0xff]
    %v90 = vld [vmem:[#allocation8 + $0x8] sm:$0xff]
    %v91 = vld [vmem:[#allocation2] sm:$0xff]
    %v92 = vld [vmem:[#allocation2 + $0x8] sm:$0xff]
    %v93 = vld [vmem:[#allocation2 + $0x10] sm:$0xff]
    %v94 = vld [vmem:[#allocation2 + $0x18] sm:$0xff]
    %v95 = vld [vmem:[#allocation2 + $0x20] sm:$0xff]
    %v96 = vld [vmem:[#allocation2 + $0x28] sm:$0xff]
    %v97 = vld [vmem:[#allocation2 + $0x30] sm:$0xff]
    %v98 = vld [vmem:[#allocation2 + $0x38] sm:$0xff]
    %v99 = vld [vmem:[#allocation2 + $0x40] sm:$0xff]
    %v100 = vld [vmem:[#allocation2 + $0x48] sm:$0xff]
    %v101 = vld [vmem:[#allocation2 + $0x50] sm:$0xff]
    %v102 = vld [vmem:[#allocation2 + $0x58] sm:$0xff]
    %v103 = vld [vmem:[#allocation2 + $0x60] sm:$0xff]
    %v104 = vld [vmem:[#allocation2 + $0x68] sm:$0xff]
    %v105 = vld [vmem:[#allocation2 + $0x70] sm:$0xff]
    %v106 = vld [vmem:[#allocation2 + $0x78] sm:$0xff]
    %v107 = vld [vmem:[#allocation5] sm:$0xff]
    %v108 = vld [vmem:[#allocation5 + $0x8] sm:$0xff]
    %v109 = vld [vmem:[#allocation5 + $0x10] sm:$0xff]
    %v110 = vld [vmem:[#allocation5 + $0x18] sm:$0xff]
    %v111 = vld [vmem:[#allocation5 + $0x20] sm:$0xff]
    %v112 = vld [vmem:[#allocation5 + $0x28] sm:$0xff]
    %v113 = vld [vmem:[#allocation5 + $0x30] sm:$0xff]
    %v114 = vld [vmem:[#allocation5 + $0x38] sm:$0xff]
    %v115 = vld [vmem:[#allocation5 + $0x40] sm:$0xff]
    %v116 = vld [vmem:[#allocation5 + $0x48] sm:$0xff]
    %v117 = vld [vmem:[#allocation5 + $0x50] sm:$0xff]
    %v118 = vld [vmem:[#allocation5 + $0x58] sm:$0xff]
    %v119 = vld [vmem:[#allocation5 + $0x60] sm:$0xff]
    %v120 = vld [vmem:[#allocation5 + $0x68] sm:$0xff]
    %v121 = vld [vmem:[#allocation5 + $0x70] sm:$0xff]
    %v122 = vld [vmem:[#allocation5 + $0x78] sm:$0xff]
    %123 = vmatprep.subr.mxu0 0.0
    %124 = vmatpush1.msra.mxu0 %v73
    %125 = vmatprep.subr.mxu0 0.0
    %126 = vmatpush1.msra.mxu0 %v74
    %127 = vmatprep.subr.mxu0 0.0
    %128 = vmatpush1.msra.mxu0 %v75
    %129 = vmatprep.subr.mxu0 0.0
    %130 = vmatpush1.msra.mxu0 %v76
    %131 = vmatprep.subr.mxu0 0.0
    %132 = vmatpush1.msra.mxu0 %v77
    %133 = vmatprep.subr.mxu0 0.0
    %134 = vmatpush1.msra.mxu0 %v78
    %135 = vmatprep.subr.mxu0 0.0
    %136 = vmatpush1.msra.mxu0 %v79
    %137 = vmatprep.subr.mxu0 0.0
    %138 = vmatpush1.msra.mxu0 %v80
    %139 = vmatprep.subr.mxu0 0.0
    %140 = vmatpush1.msra.mxu0 %v81
    %141 = vmatprep.subr.mxu0 0.0
    %142 = vmatpush1.msra.mxu0 %v82
    %143 = vmatprep.subr.mxu0 0.0
    %144 = vmatpush1.msra.mxu0 %v83
    %145 = vmatprep.subr.mxu0 0.0
    %146 = vmatpush1.msra.mxu0 %v84
    %147 = vmatprep.subr.mxu0 0.0
    %148 = vmatpush1.msra.mxu0 %v85
    %149 = vmatprep.subr.mxu0 0.0
    %150 = vmatpush1.msra.mxu0 %v86
    %151 = vmatprep.subr.mxu0 0.0
    %152 = vmatpush1.msra.mxu0 %v87
    %153 = vmatprep.subr.mxu0 0.0
    %154 = vmatpush1.msra.mxu0 %v88
    %155 = vmatprep.subr.mxu0 0.0
    %156 = vmatpush1.msra.mxu0 0.0
    %157 = vmatprep.subr.mxu0 0.0
    %158 = vmatpush1.msra.mxu0 0.0
    %159 = vmatprep.subr.mxu0 0.0
    %160 = vmatpush1.msra.mxu0 0.0
    %161 = vmatprep.subr.mxu0 0.0
    %162 = vmatpush1.msra.mxu0 0.0
    %163 = vmatprep.subr.mxu0 0.0
    %164 = vmatpush1.msra.mxu0 0.0
    %165 = vmatprep.subr.mxu0 0.0
    %166 = vmatpush1.msra.mxu0 0.0
    %167 = vmatprep.subr.mxu0 0.0
    %168 = vmatpush1.msra.mxu0 0.0
    %169 = vmatprep.subr.mxu0 0.0
    %170 = vmatpush1.msra.mxu0 0.0
    %171 = vmatprep.subr.mxu0 0.0
    %172 = vmatpush1.msra.mxu0 0.0
    %173 = vmatprep.subr.mxu0 0.0
    %174 = vmatpush1.msra.mxu0 0.0
    %175 = vmatprep.subr.mxu0 0.0
    %176 = vmatpush1.msra.mxu0 0.0
    %177 = vmatprep.subr.mxu0 0.0
    %178 = vmatpush1.msra.mxu0 0.0
    %179 = vmatprep.subr.mxu0 0.0
    %180 = vmatpush1.msra.mxu0 0.0
    %181 = vmatprep.subr.mxu0 0.0
    %182 = vmatpush1.msra.mxu0 0.0
    %183 = vmatprep.subr.mxu0 0.0
    %184 = vmatpush1.msra.mxu0 0.0
    %185 = vmatprep.subr.mxu0 0.0
    %186 = vmatpush1.msra.mxu0 0.0
    %187 = vmatprep.mubr.f32.mxu0 0.0
    %188 = vmatmul.mubr.f32.gmra.mrb[0].mxu0 %v91
    %v189 = vpop.f32.mrb[0].mxu0
    %v190 = vadd.f32 0.0, %v189
    %v191 = vpop.f32.mrb[0].mxu0
    %192 = vmatprep.mubr.f32.mxu0 0.0
    %193 = vmatmul.mubr.f32.gmra.mrb[0].mxu0 %v92
    %v194 = vpop.f32.mrb[0].mxu0
    %v195 = vadd.f32 0.0, %v194
    %v196 = vpop.f32.mrb[0].mxu0
    %197 = vmatprep.mubr.f32.mxu0 0.0
    %198 = vmatmul.mubr.f32.gmra.mrb[0].mxu0 %v93
    %v199 = vpop.f32.mrb[0].mxu0
    %v200 = vadd.f32 0.0, %v199
    %v201 = vpop.f32.mrb[0].mxu0
    %202 = vmatprep.mubr.f32.mxu0 0.0
    %203 = vmatmul.mubr.f32.gmra.mrb[0].mxu0 %v94
    %v204 = vpop.f32.mrb[0].mxu0
    %v205 = vadd.f32 0.0, %v204
    %v206 = vpop.f32.mrb[0].mxu0
    %207 = vmatprep.mubr.f32.mxu0 0.0
    %208 = vmatmul.mubr.f32.gmra.mrb[0].mxu0 %v95
    %v209 = vpop.f32.mrb[0].mxu0
    %v210 = vadd.f32 0.0, %v209
    %v211 = vpop.f32.mrb[0].mxu0
    %212 = vmatprep.mubr.f32.mxu0 0.0
    %213 = vmatmul.mubr.f32.gmra.mrb[0].mxu0 %v96
    %v214 = vpop.f32.mrb[0].mxu0
    %v215 = vadd.f32 0.0, %v214
    %v216 = vpop.f32.mrb[0].mxu0
    %217 = vmatprep.mubr.f32.mxu0 0.0
    %218 = vmatmul.mubr.f32.gmra.mrb[0].mxu0 %v97
    %v219 = vpop.f32.mrb[0].mxu0
    %v220 = vadd.f32 0.0, %v219
    %v221 = vpop.f32.mrb[0].mxu0
    %222 = vmatprep.mubr.f32.mxu0 0.0
    %223 = vmatmul.mubr.f32.gmra.mrb[0].mxu0 %v98
    %v224 = vpop.f32.mrb[0].mxu0
    %v225 = vadd.f32 0.0, %v224
    %v226 = vpop.f32.mrb[0].mxu0
    %227 = vmatprep.mubr.f32.mxu0 0.0
    %228 = vmatmul.mubr.f32.gmra.mrb[0].mxu0 %v99
    %v229 = vpop.f32.mrb[0].mxu0
    %v230 = vadd.f32 0.0, %v229
    %v231 = vpop.f32.mrb[0].mxu0
    %232 = vmatprep.mubr.f32.mxu0 0.0
    %233 = vmatmul.mubr.f32.gmra.mrb[0].mxu0 %v100
    %v234 = vpop.f32.mrb[0].mxu0
    %v235 = vadd.f32 0.0, %v234
    %v236 = vpop.f32.mrb[0].mxu0
    %237 = vmatprep.mubr.f32.mxu0 0.0
    %238 = vmatmul.mubr.f32.gmra.mrb[0].mxu0 %v101
    %v239 = vpop.f32.mrb[0].mxu0
    %v240 = vadd.f32 0.0, %v239
    %v241 = vpop.f32.mrb[0].mxu0
    %242 = vmatprep.mubr.f32.mxu0 0.0
    %243 = vmatmul.mubr.f32.gmra.mrb[0].mxu0 %v102
    %v244 = vpop.f32.mrb[0].mxu0
    %v245 = vadd.f32 0.0, %v244
    %v246 = vpop.f32.mrb[0].mxu0
    %247 = vmatprep.mubr.f32.mxu0 0.0
    %248 = vmatmul.mubr.f32.gmra.mrb[0].mxu0 %v103
    %v249 = vpop.f32.mrb[0].mxu0
    %v250 = vadd.f32 0.0, %v249
    %v251 = vpop.f32.mrb[0].mxu0
    %252 = vmatprep.mubr.f32.mxu0 0.0
    %253 = vmatmul.mubr.f32.gmra.mrb[0].mxu0 %v104
    %v254 = vpop.f32.mrb[0].mxu0
    %v255 = vadd.f32 0.0, %v254
    %v256 = vpop.f32.mrb[0].mxu0
    %257 = vmatprep.mubr.f32.mxu0 0.0
    %258 = vmatmul.mubr.f32.gmra.mrb[0].mxu0 %v105
    %v259 = vpop.f32.mrb[0].mxu0
    %v260 = vadd.f32 0.0, %v259
    %v261 = vpop.f32.mrb[0].mxu0
    %262 = vmatprep.mubr.f32.mxu0 0.0
    %263 = vmatmul.mubr.f32.gmra.mrb[0].mxu0 %v106
    %v264 = vpop.f32.mrb[0].mxu0
    %v265 = vadd.f32 0.0, %v264
    %v266 = vpop.f32.mrb[0].mxu0
    %267 = vmatprep.mubr.f32.mxu0 0.0
    %268 = vmatmul.mubr.f32.gmra.mrb[0].mxu0 %v107
    %v269 = vpop.f32.mrb[0].mxu0
    %v270 = vadd.f32 0.0, %v269
    %v271 = vpop.f32.mrb[0].mxu0
    %272 = vmatprep.mubr.f32.mxu0 0.0
    %273 = vmatmul.mubr.f32.gmra.mrb[0].mxu0 %v108
    %v274 = vpop.f32.mrb[0].mxu0
    %v275 = vadd.f32 0.0, %v274
    %v276 = vpop.f32.mrb[0].mxu0
    %277 = vmatprep.mubr.f32.mxu0 0.0
    %278 = vmatmul.mubr.f32.gmra.mrb[0].mxu0 %v109
    %v279 = vpop.f32.mrb[0].mxu0
    %v280 = vadd.f32 0.0, %v279
    %v281 = vpop.f32.mrb[0].mxu0
    %282 = vmatprep.mubr.f32.mxu0 0.0
    %283 = vmatmul.mubr.f32.gmra.mrb[0].mxu0 %v110
    %v284 = vpop.f32.mrb[0].mxu0
    %v285 = vadd.f32 0.0, %v284
    %v286 = vpop.f32.mrb[0].mxu0
    %287 = vmatprep.mubr.f32.mxu0 0.0
    %288 = vmatmul.mubr.f32.gmra.mrb[0].mxu0 %v111
    %v289 = vpop.f32.mrb[0].mxu0
    %v290 = vadd.f32 0.0, %v289
    %v291 = vpop.f32.mrb[0].mxu0
    %292 = vmatprep.mubr.f32.mxu0 0.0
    %293 = vmatmul.mubr.f32.gmra.mrb[0].mxu0 %v112
    %v294 = vpop.f32.mrb[0].mxu0
    %v295 = vadd.f32 0.0, %v294
    %v296 = vpop.f32.mrb[0].mxu0
    %297 = vmatprep.mubr.f32.mxu0 0.0
    %298 = vmatmul.mubr.f32.gmra.mrb[0].mxu0 %v113
    %v299 = vpop.f32.mrb[0].mxu0
    %v300 = vadd.f32 0.0, %v299
    %v301 = vpop.f32.mrb[0].mxu0
    %302 = vmatprep.mubr.f32.mxu0 0.0
    %303 = vmatmul.mubr.f32.gmra.mrb[0].mxu0 %v114
    %v304 = vpop.f32.mrb[0].mxu0
    %v305 = vadd.f32 0.0, %v304
    %v306 = vpop.f32.mrb[0].mxu0
    %307 = vmatprep.mubr.f32.mxu0 0.0
    %308 = vmatmul.mubr.f32.gmra.mrb[0].mxu0 %v115
    %v309 = vpop.f32.mrb[0].mxu0
    %v310 = vadd.f32 0.0, %v309
    %v311 = vpop.f32.mrb[0].mxu0
    %312 = vmatprep.mubr.f32.mxu0 0.0
    %313 = vmatmul.mubr.f32.gmra.mrb[0].mxu0 %v116
    %v314 = vpop.f32.mrb[0].mxu0
    %v315 = vadd.f32 0.0, %v314
    %v316 = vpop.f32.mrb[0].mxu0
    %317 = vmatprep.mubr.f32.mxu0 0.0
    %318 = vmatmul.mubr.f32.gmra.mrb[0].mxu0 %v117
    %v319 = vpop.f32.mrb[0].mxu0
    %v320 = vadd.f32 0.0, %v319
    %v321 = vpop.f32.mrb[0].mxu0
    %322 = vmatprep.mubr.f32.mxu0 0.0
    %323 = vmatmul.mubr.f32.gmra.mrb[0].mxu0 %v118
    %v324 = vpop.f32.mrb[0].mxu0
    %v325 = vadd.f32 0.0, %v324
    %v326 = vpop.f32.mrb[0].mxu0
    %327 = vmatprep.mubr.f32.mxu0 0.0
    %328 = vmatmul.mubr.f32.gmra.mrb[0].mxu0 %v119
    %v329 = vpop.f32.mrb[0].mxu0
    %v330 = vadd.f32 0.0, %v329
    %v331 = vpop.f32.mrb[0].mxu0
    %332 = vmatprep.mubr.f32.mxu0 0.0
    %333 = vmatmul.mubr.f32.gmra.mrb[0].mxu0 %v120
    %v334 = vpop.f32.mrb[0].mxu0
    %v335 = vadd.f32 0.0, %v334
    %v336 = vpop.f32.mrb[0].mxu0
    %337 = vmatprep.mubr.f32.mxu0 0.0
    %338 = vmatmul.mubr.f32.gmra.mrb[0].mxu0 %v121
    %v339 = vpop.f32.mrb[0].mxu0
    %v340 = vadd.f32 0.0, %v339
    %v341 = vpop.f32.mrb[0].mxu0
    %342 = vmatprep.mubr.f32.mxu0 0.0
    %343 = vmatmul.mubr.f32.gmra.mrb[0].mxu0 %v122
    %v344 = vpop.f32.mrb[0].mxu0
    %v345 = vadd.f32 0.0, %v344
    %v346 = vpop.f32.mrb[0].mxu0
    %347 = vdwg.mxu0
    %348 = vxpose.xlu0.b32.start [1/16] %v190, 128
    %349 = vxpose.xlu0.b32.cont [2/16] %v195, 128
    %350 = vxpose.xlu0.b32.cont [3/16] 0.0, 128
    %351 = vxpose.xlu0.b32.cont [4/16] 0.0, 128
    %352 = vxpose.xlu0.b32.cont [5/16] 0.0, 128
    %353 = vxpose.xlu0.b32.cont [6/16] 0.0, 128
    %354 = vxpose.xlu0.b32.cont [7/16] 0.0, 128
    %355 = vxpose.xlu0.b32.cont [8/16] 0.0, 128
    %356 = vxpose.xlu0.b32.cont [9/16] 0.0, 128
    %357 = vxpose.xlu0.b32.cont [10/16] 0.0, 128
    %358 = vxpose.xlu0.b32.cont [11/16] 0.0, 128
    %359 = vxpose.xlu0.b32.cont [12/16] 0.0, 128
    %360 = vxpose.xlu0.b32.cont [13/16] 0.0, 128
    %361 = vxpose.xlu0.b32.cont [14/16] 0.0, 128
    %362 = vxpose.xlu0.b32.cont [15/16] 0.0, 128
    %363 = vxpose.xlu0.b32.end [16/16] 0.0, 128
    %v364 = vpop.trf.xlu0
    %v365 = vpop.trf.xlu0
    %v366 = vpop.trf.xlu0
    %v367 = vpop.trf.xlu0
    %v368 = vpop.trf.xlu0
    %v369 = vpop.trf.xlu0
    %v370 = vpop.trf.xlu0
    %v371 = vpop.trf.xlu0
    %v372 = vpop.trf.xlu0
    %v373 = vpop.trf.xlu0
    %v374 = vpop.trf.xlu0
    %v375 = vpop.trf.xlu0
    %v376 = vpop.trf.xlu0
    %v377 = vpop.trf.xlu0
    %v378 = vpop.trf.xlu0
    %v379 = vpop.trf.xlu0
    %380 = vxpose.xlu0.b32.start [1/16] %v200, 128
    %381 = vxpose.xlu0.b32.cont [2/16] %v205, 128
    %382 = vxpose.xlu0.b32.cont [3/16] 0.0, 128
    %383 = vxpose.xlu0.b32.cont [4/16] 0.0, 128
    %384 = vxpose.xlu0.b32.cont [5/16] 0.0, 128
    %385 = vxpose.xlu0.b32.cont [6/16] 0.0, 128
    %386 = vxpose.xlu0.b32.cont [7/16] 0.0, 128
    %387 = vxpose.xlu0.b32.cont [8/16] 0.0, 128
    %388 = vxpose.xlu0.b32.cont [9/16] 0.0, 128
    %389 = vxpose.xlu0.b32.cont [10/16] 0.0, 128
    %390 = vxpose.xlu0.b32.cont [11/16] 0.0, 128
    %391 = vxpose.xlu0.b32.cont [12/16] 0.0, 128
    %392 = vxpose.xlu0.b32.cont [13/16] 0.0, 128
    %393 = vxpose.xlu0.b32.cont [14/16] 0.0, 128
    %394 = vxpose.xlu0.b32.cont [15/16] 0.0, 128
    %395 = vxpose.xlu0.b32.end [16/16] 0.0, 128
    %v396 = vpop.trf.xlu0
    %v397 = vpop.trf.xlu0
    %v398 = vpop.trf.xlu0
    %v399 = vpop.trf.xlu0
    %v400 = vpop.trf.xlu0
    %v401 = vpop.trf.xlu0
    %v402 = vpop.trf.xlu0
    %v403 = vpop.trf.xlu0
    %v404 = vpop.trf.xlu0
    %v405 = vpop.trf.xlu0
    %v406 = vpop.trf.xlu0
    %v407 = vpop.trf.xlu0
    %v408 = vpop.trf.xlu0
    %v409 = vpop.trf.xlu0
    %v410 = vpop.trf.xlu0
    %v411 = vpop.trf.xlu0
    %412 = vxpose.xlu0.b32.start [1/16] %v210, 128
    %413 = vxpose.xlu0.b32.cont [2/16] %v215, 128
    %414 = vxpose.xlu0.b32.cont [3/16] 0.0, 128
    %415 = vxpose.xlu0.b32.cont [4/16] 0.0, 128
    %416 = vxpose.xlu0.b32.cont [5/16] 0.0, 128
    %417 = vxpose.xlu0.b32.cont [6/16] 0.0, 128
    %418 = vxpose.xlu0.b32.cont [7/16] 0.0, 128
    %419 = vxpose.xlu0.b32.cont [8/16] 0.0, 128
    %420 = vxpose.xlu0.b32.cont [9/16] 0.0, 128
    %421 = vxpose.xlu0.b32.cont [10/16] 0.0, 128
    %422 = vxpose.xlu0.b32.cont [11/16] 0.0, 128
    %423 = vxpose.xlu0.b32.cont [12/16] 0.0, 128
    %424 = vxpose.xlu0.b32.cont [13/16] 0.0, 128
    %425 = vxpose.xlu0.b32.cont [14/16] 0.0, 128
    %426 = vxpose.xlu0.b32.cont [15/16] 0.0, 128
    %427 = vxpose.xlu0.b32.end [16/16] 0.0, 128
    %v428 = vpop.trf.xlu0
    %v429 = vpop.trf.xlu0
    %v430 = vpop.trf.xlu0
    %v431 = vpop.trf.xlu0
    %v432 = vpop.trf.xlu0
    %v433 = vpop.trf.xlu0
    %v434 = vpop.trf.xlu0
    %v435 = vpop.trf.xlu0
    %v436 = vpop.trf.xlu0
    %v437 = vpop.trf.xlu0
    %v438 = vpop.trf.xlu0
    %v439 = vpop.trf.xlu0
    %v440 = vpop.trf.xlu0
    %v441 = vpop.trf.xlu0
    %v442 = vpop.trf.xlu0
    %v443 = vpop.trf.xlu0
    %444 = vxpose.xlu0.b32.start [1/16] %v220, 128
    %445 = vxpose.xlu0.b32.cont [2/16] %v225, 128
    %446 = vxpose.xlu0.b32.cont [3/16] 0.0, 128
    %447 = vxpose.xlu0.b32.cont [4/16] 0.0, 128
    %448 = vxpose.xlu0.b32.cont [5/16] 0.0, 128
    %449 = vxpose.xlu0.b32.cont [6/16] 0.0, 128
    %450 = vxpose.xlu0.b32.cont [7/16] 0.0, 128
    %451 = vxpose.xlu0.b32.cont [8/16] 0.0, 128
    %452 = vxpose.xlu0.b32.cont [9/16] 0.0, 128
    %453 = vxpose.xlu0.b32.cont [10/16] 0.0, 128
    %454 = vxpose.xlu0.b32.cont [11/16] 0.0, 128
    %455 = vxpose.xlu0.b32.cont [12/16] 0.0, 128
    %456 = vxpose.xlu0.b32.cont [13/16] 0.0, 128
    %457 = vxpose.xlu0.b32.cont [14/16] 0.0, 128
    %458 = vxpose.xlu0.b32.cont [15/16] 0.0, 128
    %459 = vxpose.xlu0.b32.end [16/16] 0.0, 128
    %v460 = vpop.trf.xlu0
    %v461 = vpop.trf.xlu0
    %v462 = vpop.trf.xlu0
    %v463 = vpop.trf.xlu0
    %v464 = vpop.trf.xlu0
    %v465 = vpop.trf.xlu0
    %v466 = vpop.trf.xlu0
    %v467 = vpop.trf.xlu0
    %v468 = vpop.trf.xlu0
    %v469 = vpop.trf.xlu0
    %v470 = vpop.trf.xlu0
    %v471 = vpop.trf.xlu0
    %v472 = vpop.trf.xlu0
    %v473 = vpop.trf.xlu0
    %v474 = vpop.trf.xlu0
    %v475 = vpop.trf.xlu0
    %476 = vxpose.xlu0.b32.start [1/16] %v230, 128
    %477 = vxpose.xlu0.b32.cont [2/16] %v235, 128
    %478 = vxpose.xlu0.b32.cont [3/16] 0.0, 128
    %479 = vxpose.xlu0.b32.cont [4/16] 0.0, 128
    %480 = vxpose.xlu0.b32.cont [5/16] 0.0, 128
    %481 = vxpose.xlu0.b32.cont [6/16] 0.0, 128
    %482 = vxpose.xlu0.b32.cont [7/16] 0.0, 128
    %483 = vxpose.xlu0.b32.cont [8/16] 0.0, 128
    %484 = vxpose.xlu0.b32.cont [9/16] 0.0, 128
    %485 = vxpose.xlu0.b32.cont [10/16] 0.0, 128
    %486 = vxpose.xlu0.b32.cont [11/16] 0.0, 128
    %487 = vxpose.xlu0.b32.cont [12/16] 0.0, 128
    %488 = vxpose.xlu0.b32.cont [13/16] 0.0, 128
    %489 = vxpose.xlu0.b32.cont [14/16] 0.0, 128
    %490 = vxpose.xlu0.b32.cont [15/16] 0.0, 128
    %491 = vxpose.xlu0.b32.end [16/16] 0.0, 128
    %v492 = vpop.trf.xlu0
    %v493 = vpop.trf.xlu0
    %v494 = vpop.trf.xlu0
    %v495 = vpop.trf.xlu0
    %v496 = vpop.trf.xlu0
    %v497 = vpop.trf.xlu0
    %v498 = vpop.trf.xlu0
    %v499 = vpop.trf.xlu0
    %v500 = vpop.trf.xlu0
    %v501 = vpop.trf.xlu0
    %v502 = vpop.trf.xlu0
    %v503 = vpop.trf.xlu0
    %v504 = vpop.trf.xlu0
    %v505 = vpop.trf.xlu0
    %v506 = vpop.trf.xlu0
    %v507 = vpop.trf.xlu0
    %508 = vxpose.xlu0.b32.start [1/16] %v240, 128
    %509 = vxpose.xlu0.b32.cont [2/16] %v245, 128
    %510 = vxpose.xlu0.b32.cont [3/16] 0.0, 128
    %511 = vxpose.xlu0.b32.cont [4/16] 0.0, 128
    %512 = vxpose.xlu0.b32.cont [5/16] 0.0, 128
    %513 = vxpose.xlu0.b32.cont [6/16] 0.0, 128
    %514 = vxpose.xlu0.b32.cont [7/16] 0.0, 128
    %515 = vxpose.xlu0.b32.cont [8/16] 0.0, 128
    %516 = vxpose.xlu0.b32.cont [9/16] 0.0, 128
    %517 = vxpose.xlu0.b32.cont [10/16] 0.0, 128
    %518 = vxpose.xlu0.b32.cont [11/16] 0.0, 128
    %519 = vxpose.xlu0.b32.cont [12/16] 0.0, 128
    %520 = vxpose.xlu0.b32.cont [13/16] 0.0, 128
    %521 = vxpose.xlu0.b32.cont [14/16] 0.0, 128
    %522 = vxpose.xlu0.b32.cont [15/16] 0.0, 128
    %523 = vxpose.xlu0.b32.end [16/16] 0.0, 128
    %v524 = vpop.trf.xlu0
    %v525 = vpop.trf.xlu0
    %v526 = vpop.trf.xlu0
    %v527 = vpop.trf.xlu0
    %v528 = vpop.trf.xlu0
    %v529 = vpop.trf.xlu0
    %v530 = vpop.trf.xlu0
    %v531 = vpop.trf.xlu0
    %v532 = vpop.trf.xlu0
    %v533 = vpop.trf.xlu0
    %v534 = vpop.trf.xlu0
    %v535 = vpop.trf.xlu0
    %v536 = vpop.trf.xlu0
    %v537 = vpop.trf.xlu0
    %v538 = vpop.trf.xlu0
    %v539 = vpop.trf.xlu0
    %540 = vxpose.xlu0.b32.start [1/16] %v250, 128
    %541 = vxpose.xlu0.b32.cont [2/16] %v255, 128
    %542 = vxpose.xlu0.b32.cont [3/16] 0.0, 128
    %543 = vxpose.xlu0.b32.cont [4/16] 0.0, 128
    %544 = vxpose.xlu0.b32.cont [5/16] 0.0, 128
    %545 = vxpose.xlu0.b32.cont [6/16] 0.0, 128
    %546 = vxpose.xlu0.b32.cont [7/16] 0.0, 128
    %547 = vxpose.xlu0.b32.cont [8/16] 0.0, 128
    %548 = vxpose.xlu0.b32.cont [9/16] 0.0, 128
    %549 = vxpose.xlu0.b32.cont [10/16] 0.0, 128
    %550 = vxpose.xlu0.b32.cont [11/16] 0.0, 128
    %551 = vxpose.xlu0.b32.cont [12/16] 0.0, 128
    %552 = vxpose.xlu0.b32.cont [13/16] 0.0, 128
    %553 = vxpose.xlu0.b32.cont [14/16] 0.0, 128
    %554 = vxpose.xlu0.b32.cont [15/16] 0.0, 128
    %555 = vxpose.xlu0.b32.end [16/16] 0.0, 128
    %v556 = vpop.trf.xlu0
    %v557 = vpop.trf.xlu0
    %v558 = vpop.trf.xlu0
    %v559 = vpop.trf.xlu0
    %v560 = vpop.trf.xlu0
    %v561 = vpop.trf.xlu0
    %v562 = vpop.trf.xlu0
    %v563 = vpop.trf.xlu0
    %v564 = vpop.trf.xlu0
    %v565 = vpop.trf.xlu0
    %v566 = vpop.trf.xlu0
    %v567 = vpop.trf.xlu0
    %v568 = vpop.trf.xlu0
    %v569 = vpop.trf.xlu0
    %v570 = vpop.trf.xlu0
    %v571 = vpop.trf.xlu0
    %572 = vxpose.xlu0.b32.start [1/16] %v260, 128
    %573 = vxpose.xlu0.b32.cont [2/16] %v265, 128
    %574 = vxpose.xlu0.b32.cont [3/16] 0.0, 128
    %575 = vxpose.xlu0.b32.cont [4/16] 0.0, 128
    %576 = vxpose.xlu0.b32.cont [5/16] 0.0, 128
    %577 = vxpose.xlu0.b32.cont [6/16] 0.0, 128
    %578 = vxpose.xlu0.b32.cont [7/16] 0.0, 128
    %579 = vxpose.xlu0.b32.cont [8/16] 0.0, 128
    %580 = vxpose.xlu0.b32.cont [9/16] 0.0, 128
    %581 = vxpose.xlu0.b32.cont [10/16] 0.0, 128
    %582 = vxpose.xlu0.b32.cont [11/16] 0.0, 128
    %583 = vxpose.xlu0.b32.cont [12/16] 0.0, 128
    %584 = vxpose.xlu0.b32.cont [13/16] 0.0, 128
    %585 = vxpose.xlu0.b32.cont [14/16] 0.0, 128
    %586 = vxpose.xlu0.b32.cont [15/16] 0.0, 128
    %587 = vxpose.xlu0.b32.end [16/16] 0.0, 128
    %v588 = vpop.trf.xlu0
    %v589 = vpop.trf.xlu0
    %v590 = vpop.trf.xlu0
    %v591 = vpop.trf.xlu0
    %v592 = vpop.trf.xlu0
    %v593 = vpop.trf.xlu0
    %v594 = vpop.trf.xlu0
    %v595 = vpop.trf.xlu0
    %v596 = vpop.trf.xlu0
    %v597 = vpop.trf.xlu0
    %v598 = vpop.trf.xlu0
    %v599 = vpop.trf.xlu0
    %v600 = vpop.trf.xlu0
    %v601 = vpop.trf.xlu0
    %v602 = vpop.trf.xlu0
    %v603 = vpop.trf.xlu0
    %604 = vxpose.xlu0.b32.start [1/16] %v270, 128
    %605 = vxpose.xlu0.b32.cont [2/16] %v275, 128
    %606 = vxpose.xlu0.b32.cont [3/16] 0.0, 128
    %607 = vxpose.xlu0.b32.cont [4/16] 0.0, 128
    %608 = vxpose.xlu0.b32.cont [5/16] 0.0, 128
    %609 = vxpose.xlu0.b32.cont [6/16] 0.0, 128
    %610 = vxpose.xlu0.b32.cont [7/16] 0.0, 128
    %611 = vxpose.xlu0.b32.cont [8/16] 0.0, 128
    %612 = vxpose.xlu0.b32.cont [9/16] 0.0, 128
    %613 = vxpose.xlu0.b32.cont [10/16] 0.0, 128
    %614 = vxpose.xlu0.b32.cont [11/16] 0.0, 128
    %615 = vxpose.xlu0.b32.cont [12/16] 0.0, 128
    %616 = vxpose.xlu0.b32.cont [13/16] 0.0, 128
    %617 = vxpose.xlu0.b32.cont [14/16] 0.0, 128
    %618 = vxpose.xlu0.b32.cont [15/16] 0.0, 128
    %619 = vxpose.xlu0.b32.end [16/16] 0.0, 128
    %v620 = vpop.trf.xlu0
    %v621 = vpop.trf.xlu0
    %v622 = vpop.trf.xlu0
    %v623 = vpop.trf.xlu0
    %v624 = vpop.trf.xlu0
    %v625 = vpop.trf.xlu0
    %v626 = vpop.trf.xlu0
    %v627 = vpop.trf.xlu0
    %v628 = vpop.trf.xlu0
    %v629 = vpop.trf.xlu0
    %v630 = vpop.trf.xlu0
    %v631 = vpop.trf.xlu0
    %v632 = vpop.trf.xlu0
    %v633 = vpop.trf.xlu0
    %v634 = vpop.trf.xlu0
    %v635 = vpop.trf.xlu0
    %636 = vxpose.xlu0.b32.start [1/16] %v280, 128
    %637 = vxpose.xlu0.b32.cont [2/16] %v285, 128
    %638 = vxpose.xlu0.b32.cont [3/16] 0.0, 128
    %639 = vxpose.xlu0.b32.cont [4/16] 0.0, 128
    %640 = vxpose.xlu0.b32.cont [5/16] 0.0, 128
    %641 = vxpose.xlu0.b32.cont [6/16] 0.0, 128
    %642 = vxpose.xlu0.b32.cont [7/16] 0.0, 128
    %643 = vxpose.xlu0.b32.cont [8/16] 0.0, 128
    %644 = vxpose.xlu0.b32.cont [9/16] 0.0, 128
    %645 = vxpose.xlu0.b32.cont [10/16] 0.0, 128
    %646 = vxpose.xlu0.b32.cont [11/16] 0.0, 128
    %647 = vxpose.xlu0.b32.cont [12/16] 0.0, 128
    %648 = vxpose.xlu0.b32.cont [13/16] 0.0, 128
    %649 = vxpose.xlu0.b32.cont [14/16] 0.0, 128
    %650 = vxpose.xlu0.b32.cont [15/16] 0.0, 128
    %651 = vxpose.xlu0.b32.end [16/16] 0.0, 128
    %v652 = vpop.trf.xlu0
    %v653 = vpop.trf.xlu0
    %v654 = vpop.trf.xlu0
    %v655 = vpop.trf.xlu0
    %v656 = vpop.trf.xlu0
    %v657 = vpop.trf.xlu0
    %v658 = vpop.trf.xlu0
    %v659 = vpop.trf.xlu0
    %v660 = vpop.trf.xlu0
    %v661 = vpop.trf.xlu0
    %v662 = vpop.trf.xlu0
    %v663 = vpop.trf.xlu0
    %v664 = vpop.trf.xlu0
    %v665 = vpop.trf.xlu0
    %v666 = vpop.trf.xlu0
    %v667 = vpop.trf.xlu0
    %668 = vxpose.xlu0.b32.start [1/16] %v290, 128
    %669 = vxpose.xlu0.b32.cont [2/16] %v295, 128
    %670 = vxpose.xlu0.b32.cont [3/16] 0.0, 128
    %671 = vxpose.xlu0.b32.cont [4/16] 0.0, 128
    %672 = vxpose.xlu0.b32.cont [5/16] 0.0, 128
    %673 = vxpose.xlu0.b32.cont [6/16] 0.0, 128
    %674 = vxpose.xlu0.b32.cont [7/16] 0.0, 128
    %675 = vxpose.xlu0.b32.cont [8/16] 0.0, 128
    %676 = vxpose.xlu0.b32.cont [9/16] 0.0, 128
    %677 = vxpose.xlu0.b32.cont [10/16] 0.0, 128
    %678 = vxpose.xlu0.b32.cont [11/16] 0.0, 128
    %679 = vxpose.xlu0.b32.cont [12/16] 0.0, 128
    %680 = vxpose.xlu0.b32.cont [13/16] 0.0, 128
    %681 = vxpose.xlu0.b32.cont [14/16] 0.0, 128
    %682 = vxpose.xlu0.b32.cont [15/16] 0.0, 128
    %683 = vxpose.xlu0.b32.end [16/16] 0.0, 128
    %v684 = vpop.trf.xlu0
    %v685 = vpop.trf.xlu0
    %v686 = vpop.trf.xlu0
    %v687 = vpop.trf.xlu0
    %v688 = vpop.trf.xlu0
    %v689 = vpop.trf.xlu0
    %v690 = vpop.trf.xlu0
    %v691 = vpop.trf.xlu0
    %v692 = vpop.trf.xlu0
    %v693 = vpop.trf.xlu0
    %v694 = vpop.trf.xlu0
    %v695 = vpop.trf.xlu0
    %v696 = vpop.trf.xlu0
    %v697 = vpop.trf.xlu0
    %v698 = vpop.trf.xlu0
    %v699 = vpop.trf.xlu0
    %700 = vxpose.xlu0.b32.start [1/16] %v300, 128
    %701 = vxpose.xlu0.b32.cont [2/16] %v305, 128
    %702 = vxpose.xlu0.b32.cont [3/16] 0.0, 128
    %703 = vxpose.xlu0.b32.cont [4/16] 0.0, 128
    %704 = vxpose.xlu0.b32.cont [5/16] 0.0, 128
    %705 = vxpose.xlu0.b32.cont [6/16] 0.0, 128
    %706 = vxpose.xlu0.b32.cont [7/16] 0.0, 128
    %707 = vxpose.xlu0.b32.cont [8/16] 0.0, 128
    %708 = vxpose.xlu0.b32.cont [9/16] 0.0, 128
    %709 = vxpose.xlu0.b32.cont [10/16] 0.0, 128
    %710 = vxpose.xlu0.b32.cont [11/16] 0.0, 128
    %711 = vxpose.xlu0.b32.cont [12/16] 0.0, 128
    %712 = vxpose.xlu0.b32.cont [13/16] 0.0, 128
    %713 = vxpose.xlu0.b32.cont [14/16] 0.0, 128
    %714 = vxpose.xlu0.b32.cont [15/16] 0.0, 128
    %715 = vxpose.xlu0.b32.end [16/16] 0.0, 128
    %v716 = vpop.trf.xlu0
    %v717 = vpop.trf.xlu0
    %v718 = vpop.trf.xlu0
    %v719 = vpop.trf.xlu0
    %v720 = vpop.trf.xlu0
    %v721 = vpop.trf.xlu0
    %v722 = vpop.trf.xlu0
    %v723 = vpop.trf.xlu0
    %v724 = vpop.trf.xlu0
    %v725 = vpop.trf.xlu0
    %v726 = vpop.trf.xlu0
    %v727 = vpop.trf.xlu0
    %v728 = vpop.trf.xlu0
    %v729 = vpop.trf.xlu0
    %v730 = vpop.trf.xlu0
    %v731 = vpop.trf.xlu0
    %732 = vxpose.xlu0.b32.start [1/16] %v310, 128
    %733 = vxpose.xlu0.b32.cont [2/16] %v315, 128
    %734 = vxpose.xlu0.b32.cont [3/16] 0.0, 128
    %735 = vxpose.xlu0.b32.cont [4/16] 0.0, 128
    %736 = vxpose.xlu0.b32.cont [5/16] 0.0, 128
    %737 = vxpose.xlu0.b32.cont [6/16] 0.0, 128
    %738 = vxpose.xlu0.b32.cont [7/16] 0.0, 128
    %739 = vxpose.xlu0.b32.cont [8/16] 0.0, 128
    %740 = vxpose.xlu0.b32.cont [9/16] 0.0, 128
    %741 = vxpose.xlu0.b32.cont [10/16] 0.0, 128
    %742 = vxpose.xlu0.b32.cont [11/16] 0.0, 128
    %743 = vxpose.xlu0.b32.cont [12/16] 0.0, 128
    %744 = vxpose.xlu0.b32.cont [13/16] 0.0, 128
    %745 = vxpose.xlu0.b32.cont [14/16] 0.0, 128
    %746 = vxpose.xlu0.b32.cont [15/16] 0.0, 128
    %747 = vxpose.xlu0.b32.end [16/16] 0.0, 128
    %v748 = vpop.trf.xlu0
    %v749 = vpop.trf.xlu0
    %v750 = vpop.trf.xlu0
    %v751 = vpop.trf.xlu0
    %v752 = vpop.trf.xlu0
    %v753 = vpop.trf.xlu0
    %v754 = vpop.trf.xlu0
    %v755 = vpop.trf.xlu0
    %v756 = vpop.trf.xlu0
    %v757 = vpop.trf.xlu0
    %v758 = vpop.trf.xlu0
    %v759 = vpop.trf.xlu0
    %v760 = vpop.trf.xlu0
    %v761 = vpop.trf.xlu0
    %v762 = vpop.trf.xlu0
    %v763 = vpop.trf.xlu0
    %764 = vxpose.xlu0.b32.start [1/16] %v320, 128
    %765 = vxpose.xlu0.b32.cont [2/16] %v325, 128
    %766 = vxpose.xlu0.b32.cont [3/16] 0.0, 128
    %767 = vxpose.xlu0.b32.cont [4/16] 0.0, 128
    %768 = vxpose.xlu0.b32.cont [5/16] 0.0, 128
    %769 = vxpose.xlu0.b32.cont [6/16] 0.0, 128
    %770 = vxpose.xlu0.b32.cont [7/16] 0.0, 128
    %771 = vxpose.xlu0.b32.cont [8/16] 0.0, 128
    %772 = vxpose.xlu0.b32.cont [9/16] 0.0, 128
    %773 = vxpose.xlu0.b32.cont [10/16] 0.0, 128
    %774 = vxpose.xlu0.b32.cont [11/16] 0.0, 128
    %775 = vxpose.xlu0.b32.cont [12/16] 0.0, 128
    %776 = vxpose.xlu0.b32.cont [13/16] 0.0, 128
    %777 = vxpose.xlu0.b32.cont [14/16] 0.0, 128
    %778 = vxpose.xlu0.b32.cont [15/16] 0.0, 128
    %779 = vxpose.xlu0.b32.end [16/16] 0.0, 128
    %v780 = vpop.trf.xlu0
    %v781 = vpop.trf.xlu0
    %v782 = vpop.trf.xlu0
    %v783 = vpop.trf.xlu0
    %v784 = vpop.trf.xlu0
    %v785 = vpop.trf.xlu0
    %v786 = vpop.trf.xlu0
    %v787 = vpop.trf.xlu0
    %v788 = vpop.trf.xlu0
    %v789 = vpop.trf.xlu0
    %v790 = vpop.trf.xlu0
    %v791 = vpop.trf.xlu0
    %v792 = vpop.trf.xlu0
    %v793 = vpop.trf.xlu0
    %v794 = vpop.trf.xlu0
    %v795 = vpop.trf.xlu0
    %796 = vxpose.xlu0.b32.start [1/16] %v330, 128
    %797 = vxpose.xlu0.b32.cont [2/16] %v335, 128
    %798 = vxpose.xlu0.b32.cont [3/16] 0.0, 128
    %799 = vxpose.xlu0.b32.cont [4/16] 0.0, 128
    %800 = vxpose.xlu0.b32.cont [5/16] 0.0, 128
    %801 = vxpose.xlu0.b32.cont [6/16] 0.0, 128
    %802 = vxpose.xlu0.b32.cont [7/16] 0.0, 128
    %803 = vxpose.xlu0.b32.cont [8/16] 0.0, 128
    %804 = vxpose.xlu0.b32.cont [9/16] 0.0, 128
    %805 = vxpose.xlu0.b32.cont [10/16] 0.0, 128
    %806 = vxpose.xlu0.b32.cont [11/16] 0.0, 128
    %807 = vxpose.xlu0.b32.cont [12/16] 0.0, 128
    %808 = vxpose.xlu0.b32.cont [13/16] 0.0, 128
    %809 = vxpose.xlu0.b32.cont [14/16] 0.0, 128
    %810 = vxpose.xlu0.b32.cont [15/16] 0.0, 128
    %811 = vxpose.xlu0.b32.end [16/16] 0.0, 128
    %v812 = vpop.trf.xlu0
    %v813 = vpop.trf.xlu0
    %v814 = vpop.trf.xlu0
    %v815 = vpop.trf.xlu0
    %v816 = vpop.trf.xlu0
    %v817 = vpop.trf.xlu0
    %v818 = vpop.trf.xlu0
    %v819 = vpop.trf.xlu0
    %v820 = vpop.trf.xlu0
    %v821 = vpop.trf.xlu0
    %v822 = vpop.trf.xlu0
    %v823 = vpop.trf.xlu0
    %v824 = vpop.trf.xlu0
    %v825 = vpop.trf.xlu0
    %v826 = vpop.trf.xlu0
    %v827 = vpop.trf.xlu0
    %828 = vxpose.xlu0.b32.start [1/16] %v340, 128
    %829 = vxpose.xlu0.b32.cont [2/16] %v345, 128
    %830 = vxpose.xlu0.b32.cont [3/16] 0.0, 128
    %831 = vxpose.xlu0.b32.cont [4/16] 0.0, 128
    %832 = vxpose.xlu0.b32.cont [5/16] 0.0, 128
    %833 = vxpose.xlu0.b32.cont [6/16] 0.0, 128
    %834 = vxpose.xlu0.b32.cont [7/16] 0.0, 128
    %835 = vxpose.xlu0.b32.cont [8/16] 0.0, 128
    %836 = vxpose.xlu0.b32.cont [9/16] 0.0, 128
    %837 = vxpose.xlu0.b32.cont [10/16] 0.0, 128
    %838 = vxpose.xlu0.b32.cont [11/16] 0.0, 128
    %839 = vxpose.xlu0.b32.cont [12/16] 0.0, 128
    %840 = vxpose.xlu0.b32.cont [13/16] 0.0, 128
    %841 = vxpose.xlu0.b32.cont [14/16] 0.0, 128
    %842 = vxpose.xlu0.b32.cont [15/16] 0.0, 128
    %843 = vxpose.xlu0.b32.end [16/16] 0.0, 128
    %v844 = vpop.trf.xlu0
    %v845 = vpop.trf.xlu0
    %v846 = vpop.trf.xlu0
    %v847 = vpop.trf.xlu0
    %v848 = vpop.trf.xlu0
    %v849 = vpop.trf.xlu0
    %v850 = vpop.trf.xlu0
    %v851 = vpop.trf.xlu0
    %v852 = vpop.trf.xlu0
    %v853 = vpop.trf.xlu0
    %v854 = vpop.trf.xlu0
    %v855 = vpop.trf.xlu0
    %v856 = vpop.trf.xlu0
    %v857 = vpop.trf.xlu0
    %v858 = vpop.trf.xlu0
    %v859 = vpop.trf.xlu0
    %vm860 = vcmask 130048
    %v862 = vsel %vm860, %v364, 0
    %v865 = vsel %vm860, %v365, 0
    %v868 = vsel %vm860, %v366, 0
    %v871 = vsel %vm860, %v367, 0
    %v874 = vsel %vm860, %v368, 0
    %v877 = vsel %vm860, %v369, 0
    %v880 = vsel %vm860, %v370, 0
    %v883 = vsel %vm860, %v371, 0
    %v886 = vsel %vm860, %v372, 0
    %v889 = vsel %vm860, %v373, 0
    %v892 = vsel %vm860, %v374, 0
    %v895 = vsel %vm860, %v375, 0
    %v898 = vsel %vm860, %v376, 0
    %v901 = vsel %vm860, %v377, 0
    %v904 = vsel %vm860, %v378, 0
    %v907 = vsel %vm860, %v379, 0
    %v910 = vsel %vm860, %v396, 0
    %v913 = vsel %vm860, %v397, 0
    %v916 = vsel %vm860, %v398, 0
    %v919 = vsel %vm860, %v399, 0
    %v922 = vsel %vm860, %v400, 0
    %v925 = vsel %vm860, %v401, 0
    %v928 = vsel %vm860, %v402, 0
    %v931 = vsel %vm860, %v403, 0
    %v934 = vsel %vm860, %v404, 0
    %v937 = vsel %vm860, %v405, 0
    %v940 = vsel %vm860, %v406, 0
    %v943 = vsel %vm860, %v407, 0
    %v946 = vsel %vm860, %v408, 0
    %v949 = vsel %vm860, %v409, 0
    %v952 = vsel %vm860, %v410, 0
    %v955 = vsel %vm860, %v411, 0
    %v958 = vsel %vm860, %v428, 0
    %v961 = vsel %vm860, %v429, 0
    %v964 = vsel %vm860, %v430, 0
    %v967 = vsel %vm860, %v431, 0
    %v970 = vsel %vm860, %v432, 0
    %v973 = vsel %vm860, %v433, 0
    %v976 = vsel %vm860, %v434, 0
    %v979 = vsel %vm860, %v435, 0
    %v982 = vsel %vm860, %v436, 0
    %v985 = vsel %vm860, %v437, 0
    %v988 = vsel %vm860, %v438, 0
    %v991 = vsel %vm860, %v439, 0
    %v994 = vsel %vm860, %v440, 0
    %v997 = vsel %vm860, %v441, 0
    %v1000 = vsel %vm860, %v442, 0
    %v1003 = vsel %vm860, %v443, 0
    %v1006 = vsel %vm860, %v460, 0
    %v1009 = vsel %vm860, %v461, 0
    %v1012 = vsel %vm860, %v462, 0
    %v1015 = vsel %vm860, %v463, 0
    %v1018 = vsel %vm860, %v464, 0
    %v1021 = vsel %vm860, %v465, 0
    %v1024 = vsel %vm860, %v466, 0
    %v1027 = vsel %vm860, %v467, 0
    %v1030 = vsel %vm860, %v468, 0
    %v1033 = vsel %vm860, %v469, 0
    %v1036 = vsel %vm860, %v470, 0
    %v1039 = vsel %vm860, %v471, 0
    %v1042 = vsel %vm860, %v472, 0
    %v1045 = vsel %vm860, %v473, 0
    %v1048 = vsel %vm860, %v474, 0
    %v1051 = vsel %vm860, %v475, 0
    %v1054 = vsel %vm860, %v492, 0
    %v1057 = vsel %vm860, %v493, 0
    %v1060 = vsel %vm860, %v494, 0
    %v1063 = vsel %vm860, %v495, 0
    %v1066 = vsel %vm860, %v496, 0
    %v1069 = vsel %vm860, %v497, 0
    %v1072 = vsel %vm860, %v498, 0
    %v1075 = vsel %vm860, %v499, 0
    %v1078 = vsel %vm860, %v500, 0
    %v1081 = vsel %vm860, %v501, 0
    %v1084 = vsel %vm860, %v502, 0
    %v1087 = vsel %vm860, %v503, 0
    %v1090 = vsel %vm860, %v504, 0
    %v1093 = vsel %vm860, %v505, 0
    %v1096 = vsel %vm860, %v506, 0
    %v1099 = vsel %vm860, %v507, 0
    %v1102 = vsel %vm860, %v524, 0
    %v1105 = vsel %vm860, %v525, 0
    %v1108 = vsel %vm860, %v526, 0
    %v1111 = vsel %vm860, %v527, 0
    %v1114 = vsel %vm860, %v528, 0
    %v1117 = vsel %vm860, %v529, 0
    %v1120 = vsel %vm860, %v530, 0
    %v1123 = vsel %vm860, %v531, 0
    %v1126 = vsel %vm860, %v532, 0
    %v1129 = vsel %vm860, %v533, 0
    %v1132 = vsel %vm860, %v534, 0
    %v1135 = vsel %vm860, %v535, 0
    %v1138 = vsel %vm860, %v536, 0
    %v1141 = vsel %vm860, %v537, 0
    %v1144 = vsel %vm860, %v538, 0
    %v1147 = vsel %vm860, %v539, 0
    %v1150 = vsel %vm860, %v556, 0
    %v1153 = vsel %vm860, %v557, 0
    %v1156 = vsel %vm860, %v558, 0
    %v1159 = vsel %vm860, %v559, 0
    %v1162 = vsel %vm860, %v560, 0
    %v1165 = vsel %vm860, %v561, 0
    %v1168 = vsel %vm860, %v562, 0
    %v1171 = vsel %vm860, %v563, 0
    %v1174 = vsel %vm860, %v564, 0
    %v1177 = vsel %vm860, %v565, 0
    %v1180 = vsel %vm860, %v566, 0
    %v1183 = vsel %vm860, %v567, 0
    %v1186 = vsel %vm860, %v568, 0
    %v1189 = vsel %vm860, %v569, 0
    %v1192 = vsel %vm860, %v570, 0
    %v1195 = vsel %vm860, %v571, 0
    %v1198 = vsel %vm860, %v588, 0
    %v1201 = vsel %vm860, %v589, 0
    %v1204 = vsel %vm860, %v590, 0
    %v1207 = vsel %vm860, %v591, 0
    %v1210 = vsel %vm860, %v592, 0
    %v1213 = vsel %vm860, %v593, 0
    %v1216 = vsel %vm860, %v594, 0
    %v1219 = vsel %vm860, %v595, 0
    %v1222 = vsel %vm860, %v596, 0
    %v1225 = vsel %vm860, %v597, 0
    %v1228 = vsel %vm860, %v598, 0
    %v1231 = vsel %vm860, %v599, 0
    %v1234 = vsel %vm860, %v600, 0
    %v1237 = vsel %vm860, %v601, 0
    %v1240 = vsel %vm860, %v602, 0
    %v1243 = vsel %vm860, %v603, 0
    %v1246 = vsel %vm860, %v620, 0
    %v1249 = vsel %vm860, %v621, 0
    %v1252 = vsel %vm860, %v622, 0
    %v1255 = vsel %vm860, %v623, 0
    %v1258 = vsel %vm860, %v624, 0
    %v1261 = vsel %vm860, %v625, 0
    %v1264 = vsel %vm860, %v626, 0
    %v1267 = vsel %vm860, %v627, 0
    %v1270 = vsel %vm860, %v628, 0
    %v1273 = vsel %vm860, %v629, 0
    %v1276 = vsel %vm860, %v630, 0
    %v1279 = vsel %vm860, %v631, 0
    %v1282 = vsel %vm860, %v632, 0
    %v1285 = vsel %vm860, %v633, 0
    %v1288 = vsel %vm860, %v634, 0
    %v1291 = vsel %vm860, %v635, 0
    %v1294 = vsel %vm860, %v652, 0
    %v1297 = vsel %vm860, %v653, 0
    %v1300 = vsel %vm860, %v654, 0
    %v1303 = vsel %vm860, %v655, 0
    %v1306 = vsel %vm860, %v656, 0
    %v1309 = vsel %vm860, %v657, 0
    %v1312 = vsel %vm860, %v658, 0
    %v1315 = vsel %vm860, %v659, 0
    %v1318 = vsel %vm860, %v660, 0
    %v1321 = vsel %vm860, %v661, 0
    %v1324 = vsel %vm860, %v662, 0
    %v1327 = vsel %vm860, %v663, 0
    %v1330 = vsel %vm860, %v664, 0
    %v1333 = vsel %vm860, %v665, 0
    %v1336 = vsel %vm860, %v666, 0
    %v1339 = vsel %vm860, %v667, 0
    %v1342 = vsel %vm860, %v684, 0
    %v1345 = vsel %vm860, %v685, 0
    %v1348 = vsel %vm860, %v686, 0
    %v1351 = vsel %vm860, %v687, 0
    %v1354 = vsel %vm860, %v688, 0
    %v1357 = vsel %vm860, %v689, 0
    %v1360 = vsel %vm860, %v690, 0
    %v1363 = vsel %vm860, %v691, 0
    %v1366 = vsel %vm860, %v692, 0
    %v1369 = vsel %vm860, %v693, 0
    %v1372 = vsel %vm860, %v694, 0
    %v1375 = vsel %vm860, %v695, 0
    %v1378 = vsel %vm860, %v696, 0
    %v1381 = vsel %vm860, %v697, 0
    %v1384 = vsel %vm860, %v698, 0
    %v1387 = vsel %vm860, %v699, 0
    %v1390 = vsel %vm860, %v716, 0
    %v1393 = vsel %vm860, %v717, 0
    %v1396 = vsel %vm860, %v718, 0
    %v1399 = vsel %vm860, %v719, 0
    %v1402 = vsel %vm860, %v720, 0
    %v1405 = vsel %vm860, %v721, 0
    %v1408 = vsel %vm860, %v722, 0
    %v1411 = vsel %vm860, %v723, 0
    %v1414 = vsel %vm860, %v724, 0
    %v1417 = vsel %vm860, %v725, 0
    %v1420 = vsel %vm860, %v726, 0
    %v1423 = vsel %vm860, %v727, 0
    %v1426 = vsel %vm860, %v728, 0
    %v1429 = vsel %vm860, %v729, 0
    %v1432 = vsel %vm860, %v730, 0
    %v1435 = vsel %vm860, %v731, 0
    %v1438 = vsel %vm860, %v748, 0
    %v1441 = vsel %vm860, %v749, 0
    %v1444 = vsel %vm860, %v750, 0
    %v1447 = vsel %vm860, %v751, 0
    %v1450 = vsel %vm860, %v752, 0
    %v1453 = vsel %vm860, %v753, 0
    %v1456 = vsel %vm860, %v754, 0
    %v1459 = vsel %vm860, %v755, 0
    %v1462 = vsel %vm860, %v756, 0
    %v1465 = vsel %vm860, %v757, 0
    %v1468 = vsel %vm860, %v758, 0
    %v1471 = vsel %vm860, %v759, 0
    %v1474 = vsel %vm860, %v760, 0
    %v1477 = vsel %vm860, %v761, 0
    %v1480 = vsel %vm860, %v762, 0
    %v1483 = vsel %vm860, %v763, 0
    %v1486 = vsel %vm860, %v780, 0
    %v1489 = vsel %vm860, %v781, 0
    %v1492 = vsel %vm860, %v782, 0
    %v1495 = vsel %vm860, %v783, 0
    %v1498 = vsel %vm860, %v784, 0
    %v1501 = vsel %vm860, %v785, 0
    %v1504 = vsel %vm860, %v786, 0
    %v1507 = vsel %vm860, %v787, 0
    %v1510 = vsel %vm860, %v788, 0
    %v1513 = vsel %vm860, %v789, 0
    %v1516 = vsel %vm860, %v790, 0
    %v1519 = vsel %vm860, %v791, 0
    %v1522 = vsel %vm860, %v792, 0
    %v1525 = vsel %vm860, %v793, 0
    %v1528 = vsel %vm860, %v794, 0
    %v1531 = vsel %vm860, %v795, 0
    %v1534 = vsel %vm860, %v812, 0
    %v1537 = vsel %vm860, %v813, 0
    %v1540 = vsel %vm860, %v814, 0
    %v1543 = vsel %vm860, %v815, 0
    %v1546 = vsel %vm860, %v816, 0
    %v1549 = vsel %vm860, %v817, 0
    %v1552 = vsel %vm860, %v818, 0
    %v1555 = vsel %vm860, %v819, 0
    %v1558 = vsel %vm860, %v820, 0
    %v1561 = vsel %vm860, %v821, 0
    %v1564 = vsel %vm860, %v822, 0
    %v1567 = vsel %vm860, %v823, 0
    %v1570 = vsel %vm860, %v824, 0
    %v1573 = vsel %vm860, %v825, 0
    %v1576 = vsel %vm860, %v826, 0
    %v1579 = vsel %vm860, %v827, 0
    %v1582 = vsel %vm860, %v844, 0
    %v1585 = vsel %vm860, %v845, 0
    %v1588 = vsel %vm860, %v846, 0
    %v1591 = vsel %vm860, %v847, 0
    %v1594 = vsel %vm860, %v848, 0
    %v1597 = vsel %vm860, %v849, 0
    %v1600 = vsel %vm860, %v850, 0
    %v1603 = vsel %vm860, %v851, 0
    %v1606 = vsel %vm860, %v852, 0
    %v1609 = vsel %vm860, %v853, 0
    %v1612 = vsel %vm860, %v854, 0
    %v1615 = vsel %vm860, %v855, 0
    %v1618 = vsel %vm860, %v856, 0
    %v1621 = vsel %vm860, %v857, 0
    %v1624 = vsel %vm860, %v858, 0
    %v1627 = vsel %vm860, %v859, 0
    %1629 = vmatprep.subr.mxu0 0.0
    %1630 = vmatpush1.msra.mxu0 %v89
    %1631 = vmatprep.subr.mxu0 0.0
    %1632 = vmatpush1.msra.mxu0 %v90
    %1633 = vmatprep.subr.mxu0 0.0
    %1634 = vmatpush1.msra.mxu0 0.0
    %1635 = vmatprep.subr.mxu0 0.0
    %1636 = vmatpush1.msra.mxu0 0.0
    %1637 = vmatprep.subr.mxu0 0.0
    %1638 = vmatpush1.msra.mxu0 0.0
    %1639 = vmatprep.subr.mxu0 0.0
    %1640 = vmatpush1.msra.mxu0 0.0
    %1641 = vmatprep.subr.mxu0 0.0
    %1642 = vmatpush1.msra.mxu0 0.0
    %1643 = vmatprep.subr.mxu0 0.0
    %1644 = vmatpush1.msra.mxu0 0.0
    %1645 = vmatprep.subr.mxu0 0.0
    %1646 = vmatpush1.msra.mxu0 0.0
    %1647 = vmatprep.subr.mxu0 0.0
    %1648 = vmatpush1.msra.mxu0 0.0
    %1649 = vmatprep.subr.mxu0 0.0
    %1650 = vmatpush1.msra.mxu0 0.0
    %1651 = vmatprep.subr.mxu0 0.0
    %1652 = vmatpush1.msra.mxu0 0.0
    %1653 = vmatprep.subr.mxu0 0.0
    %1654 = vmatpush1.msra.mxu0 0.0
    %1655 = vmatprep.subr.mxu0 0.0
    %1656 = vmatpush1.msra.mxu0 0.0
    %1657 = vmatprep.subr.mxu0 0.0
    %1658 = vmatpush1.msra.mxu0 0.0
    %1659 = vmatprep.subr.mxu0 0.0
    %1660 = vmatpush1.msra.mxu0 0.0
    %1661 = vmatprep.subr.mxu0 0.0
    %1662 = vmatpush1.msra.mxu0 0.0
    %1663 = vmatprep.subr.mxu0 0.0
    %1664 = vmatpush1.msra.mxu0 0.0
    %1665 = vmatprep.subr.mxu0 0.0
    %1666 = vmatpush1.msra.mxu0 0.0
    %1667 = vmatprep.subr.mxu0 0.0
    %1668 = vmatpush1.msra.mxu0 0.0
    %1669 = vmatprep.subr.mxu0 0.0
    %1670 = vmatpush1.msra.mxu0 0.0
    %1671 = vmatprep.subr.mxu0 0.0
    %1672 = vmatpush1.msra.mxu0 0.0
    %1673 = vmatprep.subr.mxu0 0.0
    %1674 = vmatpush1.msra.mxu0 0.0
    %1675 = vmatprep.subr.mxu0 0.0
    %1676 = vmatpush1.msra.mxu0 0.0
    %1677 = vmatprep.subr.mxu0 0.0
    %1678 = vmatpush1.msra.mxu0 0.0
    %1679 = vmatprep.subr.mxu0 0.0
    %1680 = vmatpush1.msra.mxu0 0.0
    %1681 = vmatprep.subr.mxu0 0.0
    %1682 = vmatpush1.msra.mxu0 0.0
    %1683 = vmatprep.subr.mxu0 0.0
    %1684 = vmatpush1.msra.mxu0 0.0
    %1685 = vmatprep.subr.mxu0 0.0
    %1686 = vmatpush1.msra.mxu0 0.0
    %1687 = vmatprep.subr.mxu0 0.0
    %1688 = vmatpush1.msra.mxu0 0.0
    %1689 = vmatprep.subr.mxu0 0.0
    %1690 = vmatpush1.msra.mxu0 0.0
    %1691 = vmatprep.subr.mxu0 0.0
    %1692 = vmatpush1.msra.mxu0 0.0
    %1693 = vmatprep.mubr.f32.mxu0 0.0
    %1694 = vmatmul.mubr.f32.gmra.mrb[0].mxu0 %v862
    %v1695 = vpop.f32.mrb[0].mxu0
    %v1696 = vadd.f32 0.0, %v1695
    %v1697 = vpop.f32.mrb[0].mxu0
    %1698 = vmatprep.mubr.f32.mxu0 0.0
    %1699 = vmatmul.mubr.f32.gmra.mrb[0].mxu0 %v865
    %v1700 = vpop.f32.mrb[0].mxu0
    %v1701 = vadd.f32 0.0, %v1700
    %v1702 = vpop.f32.mrb[0].mxu0
    %1703 = vmatprep.mubr.f32.mxu0 0.0
    %1704 = vmatmul.mubr.f32.gmra.mrb[0].mxu0 %v868
    %v1705 = vpop.f32.mrb[0].mxu0
    %v1706 = vadd.f32 0.0, %v1705
    %v1707 = vpop.f32.mrb[0].mxu0
    %1708 = vmatprep.mubr.f32.mxu0 0.0
    %1709 = vmatmul.mubr.f32.gmra.mrb[0].mxu0 %v871
    %v1710 = vpop.f32.mrb[0].mxu0
    %v1711 = vadd.f32 0.0, %v1710
    %v1712 = vpop.f32.mrb[0].mxu0
    %1713 = vmatprep.mubr.f32.mxu0 0.0
    %1714 = vmatmul.mubr.f32.gmra.mrb[0].mxu0 %v874
    %v1715 = vpop.f32.mrb[0].mxu0
    %v1716 = vadd.f32 0.0, %v1715
    %v1717 = vpop.f32.mrb[0].mxu0
    %1718 = vmatprep.mubr.f32.mxu0 0.0
    %1719 = vmatmul.mubr.f32.gmra.mrb[0].mxu0 %v877
    %v1720 = vpop.f32.mrb[0].mxu0
    %v1721 = vadd.f32 0.0, %v1720
    %v1722 = vpop.f32.mrb[0].mxu0
    %1723 = vmatprep.mubr.f32.mxu0 0.0
    %1724 = vmatmul.mubr.f32.gmra.mrb[0].mxu0 %v880
    %v1725 = vpop.f32.mrb[0].mxu0
    %v1726 = vadd.f32 0.0, %v1725
    %v1727 = vpop.f32.mrb[0].mxu0
    %1728 = vmatprep.mubr.f32.mxu0 0.0
    %1729 = vmatmul.mubr.f32.gmra.mrb[0].mxu0 %v883
    %v1730 = vpop.f32.mrb[0].mxu0
    %v1731 = vadd.f32 0.0, %v1730
    %v1732 = vpop.f32.mrb[0].mxu0
    %1733 = vmatprep.mubr.f32.mxu0 0.0
    %1734 = vmatmul.mubr.f32.gmra.mrb[0].mxu0 %v886
    %v1735 = vpop.f32.mrb[0].mxu0
    %v1736 = vadd.f32 0.0, %v1735
    %v1737 = vpop.f32.mrb[0].mxu0
    %1738 = vmatprep.mubr.f32.mxu0 0.0
    %1739 = vmatmul.mubr.f32.gmra.mrb[0].mxu0 %v889
    %v1740 = vpop.f32.mrb[0].mxu0
    %v1741 = vadd.f32 0.0, %v1740
    %v1742 = vpop.f32.mrb[0].mxu0
    %1743 = vmatprep.mubr.f32.mxu0 0.0
    %1744 = vmatmul.mubr.f32.gmra.mrb[0].mxu0 %v892
    %v1745 = vpop.f32.mrb[0].mxu0
    %v1746 = vadd.f32 0.0, %v1745
    %v1747 = vpop.f32.mrb[0].mxu0
    %1748 = vmatprep.mubr.f32.mxu0 0.0
    %1749 = vmatmul.mubr.f32.gmra.mrb[0].mxu0 %v895
    %v1750 = vpop.f32.mrb[0].mxu0
    %v1751 = vadd.f32 0.0, %v1750
    %v1752 = vpop.f32.mrb[0].mxu0
    %1753 = vmatprep.mubr.f32.mxu0 0.0
    %1754 = vmatmul.mubr.f32.gmra.mrb[0].mxu0 %v898
    %v1755 = vpop.f32.mrb[0].mxu0
    %v1756 = vadd.f32 0.0, %v1755
    %v1757 = vpop.f32.mrb[0].mxu0
    %1758 = vmatprep.mubr.f32.mxu0 0.0
    %1759 = vmatmul.mubr.f32.gmra.mrb[0].mxu0 %v901
    %v1760 = vpop.f32.mrb[0].mxu0
    %v1761 = vadd.f32 0.0, %v1760
    %v1762 = vpop.f32.mrb[0].mxu0
    %1763 = vmatprep.mubr.f32.mxu0 0.0
    %1764 = vmatmul.mubr.f32.gmra.mrb[0].mxu0 %v904
    %v1765 = vpop.f32.mrb[0].mxu0
    %v1766 = vadd.f32 0.0, %v1765
    %v1767 = vpop.f32.mrb[0].mxu0
    %1768 = vmatprep.mubr.f32.mxu0 0.0
    %1769 = vmatmul.mubr.f32.gmra.mrb[0].mxu0 %v907
    %v1770 = vpop.f32.mrb[0].mxu0
    %v1771 = vadd.f32 0.0, %v1770
    %v1772 = vpop.f32.mrb[0].mxu0
    %1773 = vmatprep.mubr.f32.mxu0 0.0
    %1774 = vmatmul.mubr.f32.gmra.mrb[0].mxu0 %v910
    %v1775 = vpop.f32.mrb[0].mxu0
    %v1776 = vadd.f32 0.0, %v1775
    %v1777 = vpop.f32.mrb[0].mxu0
    %1778 = vmatprep.mubr.f32.mxu0 0.0
    %1779 = vmatmul.mubr.f32.gmra.mrb[0].mxu0 %v913
    %v1780 = vpop.f32.mrb[0].mxu0
    %v1781 = vadd.f32 0.0, %v1780
    %v1782 = vpop.f32.mrb[0].mxu0
    %1783 = vmatprep.mubr.f32.mxu0 0.0
    %1784 = vmatmul.mubr.f32.gmra.mrb[0].mxu0 %v916
    %v1785 = vpop.f32.mrb[0].mxu0
    %v1786 = vadd.f32 0.0, %v1785
    %v1787 = vpop.f32.mrb[0].mxu0
    %1788 = vmatprep.mubr.f32.mxu0 0.0
    %1789 = vmatmul.mubr.f32.gmra.mrb[0].mxu0 %v919
    %v1790 = vpop.f32.mrb[0].mxu0
    %v1791 = vadd.f32 0.0, %v1790
    %v1792 = vpop.f32.mrb[0].mxu0
    %1793 = vmatprep.mubr.f32.mxu0 0.0
    %1794 = vmatmul.mubr.f32.gmra.mrb[0].mxu0 %v922
    %v1795 = vpop.f32.mrb[0].mxu0
    %v1796 = vadd.f32 0.0, %v1795
    %v1797 = vpop.f32.mrb[0].mxu0
    %1798 = vmatprep.mubr.f32.mxu0 0.0
    %1799 = vmatmul.mubr.f32.gmra.mrb[0].mxu0 %v925
    %v1800 = vpop.f32.mrb[0].mxu0
    %v1801 = vadd.f32 0.0, %v1800
    %v1802 = vpop.f32.mrb[0].mxu0
    %1803 = vmatprep.mubr.f32.mxu0 0.0
    %1804 = vmatmul.mubr.f32.gmra.mrb[0].mxu0 %v928
    %v1805 = vpop.f32.mrb[0].mxu0
    %v1806 = vadd.f32 0.0, %v1805
    %v1807 = vpop.f32.mrb[0].mxu0
    %1808 = vmatprep.mubr.f32.mxu0 0.0
    %1809 = vmatmul.mubr.f32.gmra.mrb[0].mxu0 %v931
    %v1810 = vpop.f32.mrb[0].mxu0
    %v1811 = vadd.f32 0.0, %v1810
    %v1812 = vpop.f32.mrb[0].mxu0
    %1813 = vmatprep.mubr.f32.mxu0 0.0
    %1814 = vmatmul.mubr.f32.gmra.mrb[0].mxu0 %v934
    %v1815 = vpop.f32.mrb[0].mxu0
    %v1816 = vadd.f32 0.0, %v1815
    %v1817 = vpop.f32.mrb[0].mxu0
    %1818 = vmatprep.mubr.f32.mxu0 0.0
    %1819 = vmatmul.mubr.f32.gmra.mrb[0].mxu0 %v937
    %v1820 = vpop.f32.mrb[0].mxu0
    %v1821 = vadd.f32 0.0, %v1820
    %v1822 = vpop.f32.mrb[0].mxu0
    %1823 = vmatprep.mubr.f32.mxu0 0.0
    %1824 = vmatmul.mubr.f32.gmra.mrb[0].mxu0 %v940
    %v1825 = vpop.f32.mrb[0].mxu0
    %v1826 = vadd.f32 0.0, %v1825
    %v1827 = vpop.f32.mrb[0].mxu0
    %1828 = vmatprep.mubr.f32.mxu0 0.0
    %1829 = vmatmul.mubr.f32.gmra.mrb[0].mxu0 %v943
    %v1830 = vpop.f32.mrb[0].mxu0
    %v1831 = vadd.f32 0.0, %v1830
    %v1832 = vpop.f32.mrb[0].mxu0
    %1833 = vmatprep.mubr.f32.mxu0 0.0
    %1834 = vmatmul.mubr.f32.gmra.mrb[0].mxu0 %v946
    %v1835 = vpop.f32.mrb[0].mxu0
    %v1836 = vadd.f32 0.0, %v1835
    %v1837 = vpop.f32.mrb[0].mxu0
    %1838 = vmatprep.mubr.f32.mxu0 0.0
    %1839 = vmatmul.mubr.f32.gmra.mrb[0].mxu0 %v949
    %v1840 = vpop.f32.mrb[0].mxu0
    %v1841 = vadd.f32 0.0, %v1840
    %v1842 = vpop.f32.mrb[0].mxu0
    %1843 = vmatprep.mubr.f32.mxu0 0.0
    %1844 = vmatmul.mubr.f32.gmra.mrb[0].mxu0 %v952
    %v1845 = vpop.f32.mrb[0].mxu0
    %v1846 = vadd.f32 0.0, %v1845
    %v1847 = vpop.f32.mrb[0].mxu0
    %1848 = vmatprep.mubr.f32.mxu0 0.0
    %1849 = vmatmul.mubr.f32.gmra.mrb[0].mxu0 %v955
    %v1850 = vpop.f32.mrb[0].mxu0
    %v1851 = vadd.f32 0.0, %v1850
    %v1852 = vpop.f32.mrb[0].mxu0
    %1853 = vmatprep.mubr.f32.mxu0 0.0
    %1854 = vmatmul.mubr.f32.gmra.mrb[0].mxu0 %v958
    %v1855 = vpop.f32.mrb[0].mxu0
    %v1856 = vadd.f32 0.0, %v1855
    %v1857 = vpop.f32.mrb[0].mxu0
    %1858 = vmatprep.mubr.f32.mxu0 0.0
    %1859 = vmatmul.mubr.f32.gmra.mrb[0].mxu0 %v961
    %v1860 = vpop.f32.mrb[0].mxu0
    %v1861 = vadd.f32 0.0, %v1860
    %v1862 = vpop.f32.mrb[0].mxu0
    %1863 = vmatprep.mubr.f32.mxu0 0.0
    %1864 = vmatmul.mubr.f32.gmra.mrb[0].mxu0 %v964
    %v1865 = vpop.f32.mrb[0].mxu0
    %v1866 = vadd.f32 0.0, %v1865
    %v1867 = vpop.f32.mrb[0].mxu0
    %1868 = vmatprep.mubr.f32.mxu0 0.0
    %1869 = vmatmul.mubr.f32.gmra.mrb[0].mxu0 %v967
    %v1870 = vpop.f32.mrb[0].mxu0
    %v1871 = vadd.f32 0.0, %v1870
    %v1872 = vpop.f32.mrb[0].mxu0
    %1873 = vmatprep.mubr.f32.mxu0 0.0
    %1874 = vmatmul.mubr.f32.gmra.mrb[0].mxu0 %v970
    %v1875 = vpop.f32.mrb[0].mxu0
    %v1876 = vadd.f32 0.0, %v1875
    %v1877 = vpop.f32.mrb[0].mxu0
    %1878 = vmatprep.mubr.f32.mxu0 0.0
    %1879 = vmatmul.mubr.f32.gmra.mrb[0].mxu0 %v973
    %v1880 = vpop.f32.mrb[0].mxu0
    %v1881 = vadd.f32 0.0, %v1880
    %v1882 = vpop.f32.mrb[0].mxu0
    %1883 = vmatprep.mubr.f32.mxu0 0.0
    %1884 = vmatmul.mubr.f32.gmra.mrb[0].mxu0 %v976
    %v1885 = vpop.f32.mrb[0].mxu0
    %v1886 = vadd.f32 0.0, %v1885
    %v1887 = vpop.f32.mrb[0].mxu0
    %1888 = vmatprep.mubr.f32.mxu0 0.0
    %1889 = vmatmul.mubr.f32.gmra.mrb[0].mxu0 %v979
    %v1890 = vpop.f32.mrb[0].mxu0
    %v1891 = vadd.f32 0.0, %v1890
    %v1892 = vpop.f32.mrb[0].mxu0
    %1893 = vmatprep.mubr.f32.mxu0 0.0
    %1894 = vmatmul.mubr.f32.gmra.mrb[0].mxu0 %v982
    %v1895 = vpop.f32.mrb[0].mxu0
    %v1896 = vadd.f32 0.0, %v1895
    %v1897 = vpop.f32.mrb[0].mxu0
    %1898 = vmatprep.mubr.f32.mxu0 0.0
    %1899 = vmatmul.mubr.f32.gmra.mrb[0].mxu0 %v985
    %v1900 = vpop.f32.mrb[0].mxu0
    %v1901 = vadd.f32 0.0, %v1900
    %v1902 = vpop.f32.mrb[0].mxu0
    %1903 = vmatprep.mubr.f32.mxu0 0.0
    %1904 = vmatmul.mubr.f32.gmra.mrb[0].mxu0 %v988
    %v1905 = vpop.f32.mrb[0].mxu0
    %v1906 = vadd.f32 0.0, %v1905
    %v1907 = vpop.f32.mrb[0].mxu0
    %1908 = vmatprep.mubr.f32.mxu0 0.0
    %1909 = vmatmul.mubr.f32.gmra.mrb[0].mxu0 %v991
    %v1910 = vpop.f32.mrb[0].mxu0
    %v1911 = vadd.f32 0.0, %v1910
    %v1912 = vpop.f32.mrb[0].mxu0
    %1913 = vmatprep.mubr.f32.mxu0 0.0
    %1914 = vmatmul.mubr.f32.gmra.mrb[0].mxu0 %v994
    %v1915 = vpop.f32.mrb[0].mxu0
    %v1916 = vadd.f32 0.0, %v1915
    %v1917 = vpop.f32.mrb[0].mxu0
    %1918 = vmatprep.mubr.f32.mxu0 0.0
    %1919 = vmatmul.mubr.f32.gmra.mrb[0].mxu0 %v997
    %v1920 = vpop.f32.mrb[0].mxu0
    %v1921 = vadd.f32 0.0, %v1920
    %v1922 = vpop.f32.mrb[0].mxu0
    %1923 = vmatprep.mubr.f32.mxu0 0.0
    %1924 = vmatmul.mubr.f32.gmra.mrb[0].mxu0 %v1000
    %v1925 = vpop.f32.mrb[0].mxu0
    %v1926 = vadd.f32 0.0, %v1925
    %v1927 = vpop.f32.mrb[0].mxu0
    %1928 = vmatprep.mubr.f32.mxu0 0.0
    %1929 = vmatmul.mubr.f32.gmra.mrb[0].mxu0 %v1003
    %v1930 = vpop.f32.mrb[0].mxu0
    %v1931 = vadd.f32 0.0, %v1930
    %v1932 = vpop.f32.mrb[0].mxu0
    %1933 = vmatprep.mubr.f32.mxu0 0.0
    %1934 = vmatmul.mubr.f32.gmra.mrb[0].mxu0 %v1006
    %v1935 = vpop.f32.mrb[0].mxu0
    %v1936 = vadd.f32 0.0, %v1935
    %v1937 = vpop.f32.mrb[0].mxu0
    %1938 = vmatprep.mubr.f32.mxu0 0.0
    %1939 = vmatmul.mubr.f32.gmra.mrb[0].mxu0 %v1009
    %v1940 = vpop.f32.mrb[0].mxu0
    %v1941 = vadd.f32 0.0, %v1940
    %v1942 = vpop.f32.mrb[0].mxu0
    %1943 = vmatprep.mubr.f32.mxu0 0.0
    %1944 = vmatmul.mubr.f32.gmra.mrb[0].mxu0 %v1012
    %v1945 = vpop.f32.mrb[0].mxu0
    %v1946 = vadd.f32 0.0, %v1945
    %v1947 = vpop.f32.mrb[0].mxu0
    %1948 = vmatprep.mubr.f32.mxu0 0.0
    %1949 = vmatmul.mubr.f32.gmra.mrb[0].mxu0 %v1015
    %v1950 = vpop.f32.mrb[0].mxu0
    %v1951 = vadd.f32 0.0, %v1950
    %v1952 = vpop.f32.mrb[0].mxu0
    %1953 = vmatprep.mubr.f32.mxu0 0.0
    %1954 = vmatmul.mubr.f32.gmra.mrb[0].mxu0 %v1018
    %v1955 = vpop.f32.mrb[0].mxu0
    %v1956 = vadd.f32 0.0, %v1955
    %v1957 = vpop.f32.mrb[0].mxu0
    %1958 = vmatprep.mubr.f32.mxu0 0.0
    %1959 = vmatmul.mubr.f32.gmra.mrb[0].mxu0 %v1021
    %v1960 = vpop.f32.mrb[0].mxu0
    %v1961 = vadd.f32 0.0, %v1960
    %v1962 = vpop.f32.mrb[0].mxu0
    %1963 = vmatprep.mubr.f32.mxu0 0.0
    %1964 = vmatmul.mubr.f32.gmra.mrb[0].mxu0 %v1024
    %v1965 = vpop.f32.mrb[0].mxu0
    %v1966 = vadd.f32 0.0, %v1965
    %v1967 = vpop.f32.mrb[0].mxu0
    %1968 = vmatprep.mubr.f32.mxu0 0.0
    %1969 = vmatmul.mubr.f32.gmra.mrb[0].mxu0 %v1027
    %v1970 = vpop.f32.mrb[0].mxu0
    %v1971 = vadd.f32 0.0, %v1970
    %v1972 = vpop.f32.mrb[0].mxu0
    %1973 = vmatprep.mubr.f32.mxu0 0.0
    %1974 = vmatmul.mubr.f32.gmra.mrb[0].mxu0 %v1030
    %v1975 = vpop.f32.mrb[0].mxu0
    %v1976 = vadd.f32 0.0, %v1975
    %v1977 = vpop.f32.mrb[0].mxu0
    %1978 = vmatprep.mubr.f32.mxu0 0.0
    %1979 = vmatmul.mubr.f32.gmra.mrb[0].mxu0 %v1033
    %v1980 = vpop.f32.mrb[0].mxu0
    %v1981 = vadd.f32 0.0, %v1980
    %v1982 = vpop.f32.mrb[0].mxu0
    %1983 = vmatprep.mubr.f32.mxu0 0.0
    %1984 = vmatmul.mubr.f32.gmra.mrb[0].mxu0 %v1036
    %v1985 = vpop.f32.mrb[0].mxu0
    %v1986 = vadd.f32 0.0, %v1985
    %v1987 = vpop.f32.mrb[0].mxu0
    %1988 = vmatprep.mubr.f32.mxu0 0.0
    %1989 = vmatmul.mubr.f32.gmra.mrb[0].mxu0 %v1039
    %v1990 = vpop.f32.mrb[0].mxu0
    %v1991 = vadd.f32 0.0, %v1990
    %v1992 = vpop.f32.mrb[0].mxu0
    %1993 = vmatprep.mubr.f32.mxu0 0.0
    %1994 = vmatmul.mubr.f32.gmra.mrb[0].mxu0 %v1042
    %v1995 = vpop.f32.mrb[0].mxu0
    %v1996 = vadd.f32 0.0, %v1995
    %v1997 = vpop.f32.mrb[0].mxu0
    %1998 = vmatprep.mubr.f32.mxu0 0.0
    %1999 = vmatmul.mubr.f32.gmra.mrb[0].mxu0 %v1045
    %v2000 = vpop.f32.mrb[0].mxu0
    %v2001 = vadd.f32 0.0, %v2000
    %v2002 = vpop.f32.mrb[0].mxu0
    %2003 = vmatprep.mubr.f32.mxu0 0.0
    %2004 = vmatmul.mubr.f32.gmra.mrb[0].mxu0 %v1048
    %v2005 = vpop.f32.mrb[0].mxu0
    %v2006 = vadd.f32 0.0, %v2005
    %v2007 = vpop.f32.mrb[0].mxu0
    %2008 = vmatprep.mubr.f32.mxu0 0.0
    %2009 = vmatmul.mubr.f32.gmra.mrb[0].mxu0 %v1051
    %v2010 = vpop.f32.mrb[0].mxu0
    %v2011 = vadd.f32 0.0, %v2010
    %v2012 = vpop.f32.mrb[0].mxu0
    %2013 = vmatprep.mubr.f32.mxu0 0.0
    %2014 = vmatmul.mubr.f32.gmra.mrb[0].mxu0 %v1054
    %v2015 = vpop.f32.mrb[0].mxu0
    %v2016 = vadd.f32 0.0, %v2015
    %v2017 = vpop.f32.mrb[0].mxu0
    %2018 = vmatprep.mubr.f32.mxu0 0.0
    %2019 = vmatmul.mubr.f32.gmra.mrb[0].mxu0 %v1057
    %v2020 = vpop.f32.mrb[0].mxu0
    %v2021 = vadd.f32 0.0, %v2020
    %v2022 = vpop.f32.mrb[0].mxu0
    %2023 = vmatprep.mubr.f32.mxu0 0.0
    %2024 = vmatmul.mubr.f32.gmra.mrb[0].mxu0 %v1060
    %v2025 = vpop.f32.mrb[0].mxu0
    %v2026 = vadd.f32 0.0, %v2025
    %v2027 = vpop.f32.mrb[0].mxu0
    %2028 = vmatprep.mubr.f32.mxu0 0.0
    %2029 = vmatmul.mubr.f32.gmra.mrb[0].mxu0 %v1063
    %v2030 = vpop.f32.mrb[0].mxu0
    %v2031 = vadd.f32 0.0, %v2030
    %v2032 = vpop.f32.mrb[0].mxu0
    %2033 = vmatprep.mubr.f32.mxu0 0.0
    %2034 = vmatmul.mubr.f32.gmra.mrb[0].mxu0 %v1066
    %v2035 = vpop.f32.mrb[0].mxu0
    %v2036 = vadd.f32 0.0, %v2035
    %v2037 = vpop.f32.mrb[0].mxu0
    %2038 = vmatprep.mubr.f32.mxu0 0.0
    %2039 = vmatmul.mubr.f32.gmra.mrb[0].mxu0 %v1069
    %v2040 = vpop.f32.mrb[0].mxu0
    %v2041 = vadd.f32 0.0, %v2040
    %v2042 = vpop.f32.mrb[0].mxu0
    %2043 = vmatprep.mubr.f32.mxu0 0.0
    %2044 = vmatmul.mubr.f32.gmra.mrb[0].mxu0 %v1072
    %v2045 = vpop.f32.mrb[0].mxu0
    %v2046 = vadd.f32 0.0, %v2045
    %v2047 = vpop.f32.mrb[0].mxu0
    %2048 = vmatprep.mubr.f32.mxu0 0.0
    %2049 = vmatmul.mubr.f32.gmra.mrb[0].mxu0 %v1075
    %v2050 = vpop.f32.mrb[0].mxu0
    %v2051 = vadd.f32 0.0, %v2050
    %v2052 = vpop.f32.mrb[0].mxu0
    %2053 = vmatprep.mubr.f32.mxu0 0.0
    %2054 = vmatmul.mubr.f32.gmra.mrb[0].mxu0 %v1078
    %v2055 = vpop.f32.mrb[0].mxu0
    %v2056 = vadd.f32 0.0, %v2055
    %v2057 = vpop.f32.mrb[0].mxu0
    %2058 = vmatprep.mubr.f32.mxu0 0.0
    %2059 = vmatmul.mubr.f32.gmra.mrb[0].mxu0 %v1081
    %v2060 = vpop.f32.mrb[0].mxu0
    %v2061 = vadd.f32 0.0, %v2060
    %v2062 = vpop.f32.mrb[0].mxu0
    %2063 = vmatprep.mubr.f32.mxu0 0.0
    %2064 = vmatmul.mubr.f32.gmra.mrb[0].mxu0 %v1084
    %v2065 = vpop.f32.mrb[0].mxu0
    %v2066 = vadd.f32 0.0, %v2065
    %v2067 = vpop.f32.mrb[0].mxu0
    %2068 = vmatprep.mubr.f32.mxu0 0.0
    %2069 = vmatmul.mubr.f32.gmra.mrb[0].mxu0 %v1087
    %v2070 = vpop.f32.mrb[0].mxu0
    %v2071 = vadd.f32 0.0, %v2070
    %v2072 = vpop.f32.mrb[0].mxu0
    %2073 = vmatprep.mubr.f32.mxu0 0.0
    %2074 = vmatmul.mubr.f32.gmra.mrb[0].mxu0 %v1090
    %v2075 = vpop.f32.mrb[0].mxu0
    %v2076 = vadd.f32 0.0, %v2075
    %v2077 = vpop.f32.mrb[0].mxu0
    %2078 = vmatprep.mubr.f32.mxu0 0.0
    %2079 = vmatmul.mubr.f32.gmra.mrb[0].mxu0 %v1093
    %v2080 = vpop.f32.mrb[0].mxu0
    %v2081 = vadd.f32 0.0, %v2080
    %v2082 = vpop.f32.mrb[0].mxu0
    %2083 = vmatprep.mubr.f32.mxu0 0.0
    %2084 = vmatmul.mubr.f32.gmra.mrb[0].mxu0 %v1096
    %v2085 = vpop.f32.mrb[0].mxu0
    %v2086 = vadd.f32 0.0, %v2085
    %v2087 = vpop.f32.mrb[0].mxu0
    %2088 = vmatprep.mubr.f32.mxu0 0.0
    %2089 = vmatmul.mubr.f32.gmra.mrb[0].mxu0 %v1099
    %v2090 = vpop.f32.mrb[0].mxu0
    %v2091 = vadd.f32 0.0, %v2090
    %v2092 = vpop.f32.mrb[0].mxu0
    %2093 = vmatprep.mubr.f32.mxu0 0.0
    %2094 = vmatmul.mubr.f32.gmra.mrb[0].mxu0 %v1102
    %v2095 = vpop.f32.mrb[0].mxu0
    %v2096 = vadd.f32 0.0, %v2095
    %v2097 = vpop.f32.mrb[0].mxu0
    %2098 = vmatprep.mubr.f32.mxu0 0.0
    %2099 = vmatmul.mubr.f32.gmra.mrb[0].mxu0 %v1105
    %v2100 = vpop.f32.mrb[0].mxu0
    %v2101 = vadd.f32 0.0, %v2100
    %v2102 = vpop.f32.mrb[0].mxu0
    %2103 = vmatprep.mubr.f32.mxu0 0.0
    %2104 = vmatmul.mubr.f32.gmra.mrb[0].mxu0 %v1108
    %v2105 = vpop.f32.mrb[0].mxu0
    %v2106 = vadd.f32 0.0, %v2105
    %v2107 = vpop.f32.mrb[0].mxu0
    %2108 = vmatprep.mubr.f32.mxu0 0.0
    %2109 = vmatmul.mubr.f32.gmra.mrb[0].mxu0 %v1111
    %v2110 = vpop.f32.mrb[0].mxu0
    %v2111 = vadd.f32 0.0, %v2110
    %v2112 = vpop.f32.mrb[0].mxu0
    %2113 = vmatprep.mubr.f32.mxu0 0.0
    %2114 = vmatmul.mubr.f32.gmra.mrb[0].mxu0 %v1114
    %v2115 = vpop.f32.mrb[0].mxu0
    %v2116 = vadd.f32 0.0, %v2115
    %v2117 = vpop.f32.mrb[0].mxu0
    %2118 = vmatprep.mubr.f32.mxu0 0.0
    %2119 = vmatmul.mubr.f32.gmra.mrb[0].mxu0 %v1117
    %v2120 = vpop.f32.mrb[0].mxu0
    %v2121 = vadd.f32 0.0, %v2120
    %v2122 = vpop.f32.mrb[0].mxu0
    %2123 = vmatprep.mubr.f32.mxu0 0.0
    %2124 = vmatmul.mubr.f32.gmra.mrb[0].mxu0 %v1120
    %v2125 = vpop.f32.mrb[0].mxu0
    %v2126 = vadd.f32 0.0, %v2125
    %v2127 = vpop.f32.mrb[0].mxu0
    %2128 = vmatprep.mubr.f32.mxu0 0.0
    %2129 = vmatmul.mubr.f32.gmra.mrb[0].mxu0 %v1123
    %v2130 = vpop.f32.mrb[0].mxu0
    %v2131 = vadd.f32 0.0, %v2130
    %v2132 = vpop.f32.mrb[0].mxu0
    %2133 = vmatprep.mubr.f32.mxu0 0.0
    %2134 = vmatmul.mubr.f32.gmra.mrb[0].mxu0 %v1126
    %v2135 = vpop.f32.mrb[0].mxu0
    %v2136 = vadd.f32 0.0, %v2135
    %v2137 = vpop.f32.mrb[0].mxu0
    %2138 = vmatprep.mubr.f32.mxu0 0.0
    %2139 = vmatmul.mubr.f32.gmra.mrb[0].mxu0 %v1129
    %v2140 = vpop.f32.mrb[0].mxu0
    %v2141 = vadd.f32 0.0, %v2140
    %v2142 = vpop.f32.mrb[0].mxu0
    %2143 = vmatprep.mubr.f32.mxu0 0.0
    %2144 = vmatmul.mubr.f32.gmra.mrb[0].mxu0 %v1132
    %v2145 = vpop.f32.mrb[0].mxu0
    %v2146 = vadd.f32 0.0, %v2145
    %v2147 = vpop.f32.mrb[0].mxu0
    %2148 = vmatprep.mubr.f32.mxu0 0.0
    %2149 = vmatmul.mubr.f32.gmra.mrb[0].mxu0 %v1135
    %v2150 = vpop.f32.mrb[0].mxu0
    %v2151 = vadd.f32 0.0, %v2150
    %v2152 = vpop.f32.mrb[0].mxu0
    %2153 = vmatprep.mubr.f32.mxu0 0.0
    %2154 = vmatmul.mubr.f32.gmra.mrb[0].mxu0 %v1138
    %v2155 = vpop.f32.mrb[0].mxu0
    %v2156 = vadd.f32 0.0, %v2155
    %v2157 = vpop.f32.mrb[0].mxu0
    %2158 = vmatprep.mubr.f32.mxu0 0.0
    %2159 = vmatmul.mubr.f32.gmra.mrb[0].mxu0 %v1141
    %v2160 = vpop.f32.mrb[0].mxu0
    %v2161 = vadd.f32 0.0, %v2160
    %v2162 = vpop.f32.mrb[0].mxu0
    %2163 = vmatprep.mubr.f32.mxu0 0.0
    %2164 = vmatmul.mubr.f32.gmra.mrb[0].mxu0 %v1144
    %v2165 = vpop.f32.mrb[0].mxu0
    %v2166 = vadd.f32 0.0, %v2165
    %v2167 = vpop.f32.mrb[0].mxu0
    %2168 = vmatprep.mubr.f32.mxu0 0.0
    %2169 = vmatmul.mubr.f32.gmra.mrb[0].mxu0 %v1147
    %v2170 = vpop.f32.mrb[0].mxu0
    %v2171 = vadd.f32 0.0, %v2170
    %v2172 = vpop.f32.mrb[0].mxu0
    %2173 = vmatprep.mubr.f32.mxu0 0.0
    %2174 = vmatmul.mubr.f32.gmra.mrb[0].mxu0 %v1150
    %v2175 = vpop.f32.mrb[0].mxu0
    %v2176 = vadd.f32 0.0, %v2175
    %v2177 = vpop.f32.mrb[0].mxu0
    %2178 = vmatprep.mubr.f32.mxu0 0.0
    %2179 = vmatmul.mubr.f32.gmra.mrb[0].mxu0 %v1153
    %v2180 = vpop.f32.mrb[0].mxu0
    %v2181 = vadd.f32 0.0, %v2180
    %v2182 = vpop.f32.mrb[0].mxu0
    %2183 = vmatprep.mubr.f32.mxu0 0.0
    %2184 = vmatmul.mubr.f32.gmra.mrb[0].mxu0 %v1156
    %v2185 = vpop.f32.mrb[0].mxu0
    %v2186 = vadd.f32 0.0, %v2185
    %v2187 = vpop.f32.mrb[0].mxu0
    %2188 = vmatprep.mubr.f32.mxu0 0.0
    %2189 = vmatmul.mubr.f32.gmra.mrb[0].mxu0 %v1159
    %v2190 = vpop.f32.mrb[0].mxu0
    %v2191 = vadd.f32 0.0, %v2190
    %v2192 = vpop.f32.mrb[0].mxu0
    %2193 = vmatprep.mubr.f32.mxu0 0.0
    %2194 = vmatmul.mubr.f32.gmra.mrb[0].mxu0 %v1162
    %v2195 = vpop.f32.mrb[0].mxu0
    %v2196 = vadd.f32 0.0, %v2195
    %v2197 = vpop.f32.mrb[0].mxu0
    %2198 = vmatprep.mubr.f32.mxu0 0.0
    %2199 = vmatmul.mubr.f32.gmra.mrb[0].mxu0 %v1165
    %v2200 = vpop.f32.mrb[0].mxu0
    %v2201 = vadd.f32 0.0, %v2200
    %v2202 = vpop.f32.mrb[0].mxu0
    %2203 = vmatprep.mubr.f32.mxu0 0.0
    %2204 = vmatmul.mubr.f32.gmra.mrb[0].mxu0 %v1168
    %v2205 = vpop.f32.mrb[0].mxu0
    %v2206 = vadd.f32 0.0, %v2205
    %v2207 = vpop.f32.mrb[0].mxu0
    %2208 = vmatprep.mubr.f32.mxu0 0.0
    %2209 = vmatmul.mubr.f32.gmra.mrb[0].mxu0 %v1171
    %v2210 = vpop.f32.mrb[0].mxu0
    %v2211 = vadd.f32 0.0, %v2210
    %v2212 = vpop.f32.mrb[0].mxu0
    %2213 = vmatprep.mubr.f32.mxu0 0.0
    %2214 = vmatmul.mubr.f32.gmra.mrb[0].mxu0 %v1174
    %v2215 = vpop.f32.mrb[0].mxu0
    %v2216 = vadd.f32 0.0, %v2215
    %v2217 = vpop.f32.mrb[0].mxu0
    %2218 = vmatprep.mubr.f32.mxu0 0.0
    %2219 = vmatmul.mubr.f32.gmra.mrb[0].mxu0 %v1177
    %v2220 = vpop.f32.mrb[0].mxu0
    %v2221 = vadd.f32 0.0, %v2220
    %v2222 = vpop.f32.mrb[0].mxu0
    %2223 = vmatprep.mubr.f32.mxu0 0.0
    %2224 = vmatmul.mubr.f32.gmra.mrb[0].mxu0 %v1180
    %v2225 = vpop.f32.mrb[0].mxu0
    %v2226 = vadd.f32 0.0, %v2225
    %v2227 = vpop.f32.mrb[0].mxu0
    %2228 = vmatprep.mubr.f32.mxu0 0.0
    %2229 = vmatmul.mubr.f32.gmra.mrb[0].mxu0 %v1183
    %v2230 = vpop.f32.mrb[0].mxu0
    %v2231 = vadd.f32 0.0, %v2230
    %v2232 = vpop.f32.mrb[0].mxu0
    %2233 = vmatprep.mubr.f32.mxu0 0.0
    %2234 = vmatmul.mubr.f32.gmra.mrb[0].mxu0 %v1186
    %v2235 = vpop.f32.mrb[0].mxu0
    %v2236 = vadd.f32 0.0, %v2235
    %v2237 = vpop.f32.mrb[0].mxu0
    %2238 = vmatprep.mubr.f32.mxu0 0.0
    %2239 = vmatmul.mubr.f32.gmra.mrb[0].mxu0 %v1189
    %v2240 = vpop.f32.mrb[0].mxu0
    %v2241 = vadd.f32 0.0, %v2240
    %v2242 = vpop.f32.mrb[0].mxu0
    %2243 = vmatprep.mubr.f32.mxu0 0.0
    %2244 = vmatmul.mubr.f32.gmra.mrb[0].mxu0 %v1192
    %v2245 = vpop.f32.mrb[0].mxu0
    %v2246 = vadd.f32 0.0, %v2245
    %v2247 = vpop.f32.mrb[0].mxu0
    %2248 = vmatprep.mubr.f32.mxu0 0.0
    %2249 = vmatmul.mubr.f32.gmra.mrb[0].mxu0 %v1195
    %v2250 = vpop.f32.mrb[0].mxu0
    %v2251 = vadd.f32 0.0, %v2250
    %v2252 = vpop.f32.mrb[0].mxu0
    %2253 = vmatprep.mubr.f32.mxu0 0.0
    %2254 = vmatmul.mubr.f32.gmra.mrb[0].mxu0 %v1198
    %v2255 = vpop.f32.mrb[0].mxu0
    %v2256 = vadd.f32 0.0, %v2255
    %v2257 = vpop.f32.mrb[0].mxu0
    %2258 = vmatprep.mubr.f32.mxu0 0.0
    %2259 = vmatmul.mubr.f32.gmra.mrb[0].mxu0 %v1201
    %v2260 = vpop.f32.mrb[0].mxu0
    %v2261 = vadd.f32 0.0, %v2260
    %v2262 = vpop.f32.mrb[0].mxu0
    %2263 = vmatprep.mubr.f32.mxu0 0.0
    %2264 = vmatmul.mubr.f32.gmra.mrb[0].mxu0 %v1204
    %v2265 = vpop.f32.mrb[0].mxu0
    %v2266 = vadd.f32 0.0, %v2265
    %v2267 = vpop.f32.mrb[0].mxu0
    %2268 = vmatprep.mubr.f32.mxu0 0.0
    %2269 = vmatmul.mubr.f32.gmra.mrb[0].mxu0 %v1207
    %v2270 = vpop.f32.mrb[0].mxu0
    %v2271 = vadd.f32 0.0, %v2270
    %v2272 = vpop.f32.mrb[0].mxu0
    %2273 = vmatprep.mubr.f32.mxu0 0.0
    %2274 = vmatmul.mubr.f32.gmra.mrb[0].mxu0 %v1210
    %v2275 = vpop.f32.mrb[0].mxu0
    %v2276 = vadd.f32 0.0, %v2275
    %v2277 = vpop.f32.mrb[0].mxu0
    %2278 = vmatprep.mubr.f32.mxu0 0.0
    %2279 = vmatmul.mubr.f32.gmra.mrb[0].mxu0 %v1213
    %v2280 = vpop.f32.mrb[0].mxu0
    %v2281 = vadd.f32 0.0, %v2280
    %v2282 = vpop.f32.mrb[0].mxu0
    %2283 = vmatprep.mubr.f32.mxu0 0.0
    %2284 = vmatmul.mubr.f32.gmra.mrb[0].mxu0 %v1216
    %v2285 = vpop.f32.mrb[0].mxu0
    %v2286 = vadd.f32 0.0, %v2285
    %v2287 = vpop.f32.mrb[0].mxu0
    %2288 = vmatprep.mubr.f32.mxu0 0.0
    %2289 = vmatmul.mubr.f32.gmra.mrb[0].mxu0 %v1219
    %v2290 = vpop.f32.mrb[0].mxu0
    %v2291 = vadd.f32 0.0, %v2290
    %v2292 = vpop.f32.mrb[0].mxu0
    %2293 = vmatprep.mubr.f32.mxu0 0.0
    %2294 = vmatmul.mubr.f32.gmra.mrb[0].mxu0 %v1222
    %v2295 = vpop.f32.mrb[0].mxu0
    %v2296 = vadd.f32 0.0, %v2295
    %v2297 = vpop.f32.mrb[0].mxu0
    %2298 = vmatprep.mubr.f32.mxu0 0.0
    %2299 = vmatmul.mubr.f32.gmra.mrb[0].mxu0 %v1225
    %v2300 = vpop.f32.mrb[0].mxu0
    %v2301 = vadd.f32 0.0, %v2300
    %v2302 = vpop.f32.mrb[0].mxu0
    %2303 = vmatprep.mubr.f32.mxu0 0.0
    %2304 = vmatmul.mubr.f32.gmra.mrb[0].mxu0 %v1228
    %v2305 = vpop.f32.mrb[0].mxu0
    %v2306 = vadd.f32 0.0, %v2305
    %v2307 = vpop.f32.mrb[0].mxu0
    %2308 = vmatprep.mubr.f32.mxu0 0.0
    %2309 = vmatmul.mubr.f32.gmra.mrb[0].mxu0 %v1231
    %v2310 = vpop.f32.mrb[0].mxu0
    %v2311 = vadd.f32 0.0, %v2310
    %v2312 = vpop.f32.mrb[0].mxu0
    %2313 = vmatprep.mubr.f32.mxu0 0.0
    %2314 = vmatmul.mubr.f32.gmra.mrb[0].mxu0 %v1234
    %v2315 = vpop.f32.mrb[0].mxu0
    %v2316 = vadd.f32 0.0, %v2315
    %v2317 = vpop.f32.mrb[0].mxu0
    %2318 = vmatprep.mubr.f32.mxu0 0.0
    %2319 = vmatmul.mubr.f32.gmra.mrb[0].mxu0 %v1237
    %v2320 = vpop.f32.mrb[0].mxu0
    %v2321 = vadd.f32 0.0, %v2320
    %v2322 = vpop.f32.mrb[0].mxu0
    %2323 = vmatprep.mubr.f32.mxu0 0.0
    %2324 = vmatmul.mubr.f32.gmra.mrb[0].mxu0 %v1240
    %v2325 = vpop.f32.mrb[0].mxu0
    %v2326 = vadd.f32 0.0, %v2325
    %v2327 = vpop.f32.mrb[0].mxu0
    %2328 = vmatprep.mubr.f32.mxu0 0.0
    %2329 = vmatmul.mubr.f32.gmra.mrb[0].mxu0 %v1243
    %v2330 = vpop.f32.mrb[0].mxu0
    %v2331 = vadd.f32 0.0, %v2330
    %v2332 = vpop.f32.mrb[0].mxu0
    %2333 = vmatprep.mubr.f32.mxu0 0.0
    %2334 = vmatmul.mubr.f32.gmra.mrb[0].mxu0 %v1246
    %v2335 = vpop.f32.mrb[0].mxu0
    %v2336 = vadd.f32 0.0, %v2335
    %v2337 = vpop.f32.mrb[0].mxu0
    %2338 = vmatprep.mubr.f32.mxu0 0.0
    %2339 = vmatmul.mubr.f32.gmra.mrb[0].mxu0 %v1249
    %v2340 = vpop.f32.mrb[0].mxu0
    %v2341 = vadd.f32 0.0, %v2340
    %v2342 = vpop.f32.mrb[0].mxu0
    %2343 = vmatprep.mubr.f32.mxu0 0.0
    %2344 = vmatmul.mubr.f32.gmra.mrb[0].mxu0 %v1252
    %v2345 = vpop.f32.mrb[0].mxu0
    %v2346 = vadd.f32 0.0, %v2345
    %v2347 = vpop.f32.mrb[0].mxu0
    %2348 = vmatprep.mubr.f32.mxu0 0.0
    %2349 = vmatmul.mubr.f32.gmra.mrb[0].mxu0 %v1255
    %v2350 = vpop.f32.mrb[0].mxu0
    %v2351 = vadd.f32 0.0, %v2350
    %v2352 = vpop.f32.mrb[0].mxu0
    %2353 = vmatprep.mubr.f32.mxu0 0.0
    %2354 = vmatmul.mubr.f32.gmra.mrb[0].mxu0 %v1258
    %v2355 = vpop.f32.mrb[0].mxu0
    %v2356 = vadd.f32 0.0, %v2355
    %v2357 = vpop.f32.mrb[0].mxu0
    %2358 = vmatprep.mubr.f32.mxu0 0.0
    %2359 = vmatmul.mubr.f32.gmra.mrb[0].mxu0 %v1261
    %v2360 = vpop.f32.mrb[0].mxu0
    %v2361 = vadd.f32 0.0, %v2360
    %v2362 = vpop.f32.mrb[0].mxu0
    %2363 = vmatprep.mubr.f32.mxu0 0.0
    %2364 = vmatmul.mubr.f32.gmra.mrb[0].mxu0 %v1264
    %v2365 = vpop.f32.mrb[0].mxu0
    %v2366 = vadd.f32 0.0, %v2365
    %v2367 = vpop.f32.mrb[0].mxu0
    %2368 = vmatprep.mubr.f32.mxu0 0.0
    %2369 = vmatmul.mubr.f32.gmra.mrb[0].mxu0 %v1267
    %v2370 = vpop.f32.mrb[0].mxu0
    %v2371 = vadd.f32 0.0, %v2370
    %v2372 = vpop.f32.mrb[0].mxu0
    %2373 = vmatprep.mubr.f32.mxu0 0.0
    %2374 = vmatmul.mubr.f32.gmra.mrb[0].mxu0 %v1270
    %v2375 = vpop.f32.mrb[0].mxu0
    %v2376 = vadd.f32 0.0, %v2375
    %v2377 = vpop.f32.mrb[0].mxu0
    %2378 = vmatprep.mubr.f32.mxu0 0.0
    %2379 = vmatmul.mubr.f32.gmra.mrb[0].mxu0 %v1273
    %v2380 = vpop.f32.mrb[0].mxu0
    %v2381 = vadd.f32 0.0, %v2380
    %v2382 = vpop.f32.mrb[0].mxu0
    %2383 = vmatprep.mubr.f32.mxu0 0.0
    %2384 = vmatmul.mubr.f32.gmra.mrb[0].mxu0 %v1276
    %v2385 = vpop.f32.mrb[0].mxu0
    %v2386 = vadd.f32 0.0, %v2385
    %v2387 = vpop.f32.mrb[0].mxu0
    %2388 = vmatprep.mubr.f32.mxu0 0.0
    %2389 = vmatmul.mubr.f32.gmra.mrb[0].mxu0 %v1279
    %v2390 = vpop.f32.mrb[0].mxu0
    %v2391 = vadd.f32 0.0, %v2390
    %v2392 = vpop.f32.mrb[0].mxu0
    %2393 = vmatprep.mubr.f32.mxu0 0.0
    %2394 = vmatmul.mubr.f32.gmra.mrb[0].mxu0 %v1282
    %v2395 = vpop.f32.mrb[0].mxu0
    %v2396 = vadd.f32 0.0, %v2395
    %v2397 = vpop.f32.mrb[0].mxu0
    %2398 = vmatprep.mubr.f32.mxu0 0.0
    %2399 = vmatmul.mubr.f32.gmra.mrb[0].mxu0 %v1285
    %v2400 = vpop.f32.mrb[0].mxu0
    %v2401 = vadd.f32 0.0, %v2400
    %v2402 = vpop.f32.mrb[0].mxu0
    %2403 = vmatprep.mubr.f32.mxu0 0.0
    %2404 = vmatmul.mubr.f32.gmra.mrb[0].mxu0 %v1288
    %v2405 = vpop.f32.mrb[0].mxu0
    %v2406 = vadd.f32 0.0, %v2405
    %v2407 = vpop.f32.mrb[0].mxu0
    %2408 = vmatprep.mubr.f32.mxu0 0.0
    %2409 = vmatmul.mubr.f32.gmra.mrb[0].mxu0 %v1291
    %v2410 = vpop.f32.mrb[0].mxu0
    %v2411 = vadd.f32 0.0, %v2410
    %v2412 = vpop.f32.mrb[0].mxu0
    %2413 = vmatprep.mubr.f32.mxu0 0.0
    %2414 = vmatmul.mubr.f32.gmra.mrb[0].mxu0 %v1294
    %v2415 = vpop.f32.mrb[0].mxu0
    %v2416 = vadd.f32 0.0, %v2415
    %v2417 = vpop.f32.mrb[0].mxu0
    %2418 = vmatprep.mubr.f32.mxu0 0.0
    %2419 = vmatmul.mubr.f32.gmra.mrb[0].mxu0 %v1297
    %v2420 = vpop.f32.mrb[0].mxu0
    %v2421 = vadd.f32 0.0, %v2420
    %v2422 = vpop.f32.mrb[0].mxu0
    %2423 = vmatprep.mubr.f32.mxu0 0.0
    %2424 = vmatmul.mubr.f32.gmra.mrb[0].mxu0 %v1300
    %v2425 = vpop.f32.mrb[0].mxu0
    %v2426 = vadd.f32 0.0, %v2425
    %v2427 = vpop.f32.mrb[0].mxu0
    %2428 = vmatprep.mubr.f32.mxu0 0.0
    %2429 = vmatmul.mubr.f32.gmra.mrb[0].mxu0 %v1303
    %v2430 = vpop.f32.mrb[0].mxu0
    %v2431 = vadd.f32 0.0, %v2430
    %v2432 = vpop.f32.mrb[0].mxu0
    %2433 = vmatprep.mubr.f32.mxu0 0.0
    %2434 = vmatmul.mubr.f32.gmra.mrb[0].mxu0 %v1306
    %v2435 = vpop.f32.mrb[0].mxu0
    %v2436 = vadd.f32 0.0, %v2435
    %v2437 = vpop.f32.mrb[0].mxu0
    %2438 = vmatprep.mubr.f32.mxu0 0.0
    %2439 = vmatmul.mubr.f32.gmra.mrb[0].mxu0 %v1309
    %v2440 = vpop.f32.mrb[0].mxu0
    %v2441 = vadd.f32 0.0, %v2440
    %v2442 = vpop.f32.mrb[0].mxu0
    %2443 = vmatprep.mubr.f32.mxu0 0.0
    %2444 = vmatmul.mubr.f32.gmra.mrb[0].mxu0 %v1312
    %v2445 = vpop.f32.mrb[0].mxu0
    %v2446 = vadd.f32 0.0, %v2445
    %v2447 = vpop.f32.mrb[0].mxu0
    %2448 = vmatprep.mubr.f32.mxu0 0.0
    %2449 = vmatmul.mubr.f32.gmra.mrb[0].mxu0 %v1315
    %v2450 = vpop.f32.mrb[0].mxu0
    %v2451 = vadd.f32 0.0, %v2450
    %v2452 = vpop.f32.mrb[0].mxu0
    %2453 = vmatprep.mubr.f32.mxu0 0.0
    %2454 = vmatmul.mubr.f32.gmra.mrb[0].mxu0 %v1318
    %v2455 = vpop.f32.mrb[0].mxu0
    %v2456 = vadd.f32 0.0, %v2455
    %v2457 = vpop.f32.mrb[0].mxu0
    %2458 = vmatprep.mubr.f32.mxu0 0.0
    %2459 = vmatmul.mubr.f32.gmra.mrb[0].mxu0 %v1321
    %v2460 = vpop.f32.mrb[0].mxu0
    %v2461 = vadd.f32 0.0, %v2460
    %v2462 = vpop.f32.mrb[0].mxu0
    %2463 = vmatprep.mubr.f32.mxu0 0.0
    %2464 = vmatmul.mubr.f32.gmra.mrb[0].mxu0 %v1324
    %v2465 = vpop.f32.mrb[0].mxu0
    %v2466 = vadd.f32 0.0, %v2465
    %v2467 = vpop.f32.mrb[0].mxu0
    %2468 = vmatprep.mubr.f32.mxu0 0.0
    %2469 = vmatmul.mubr.f32.gmra.mrb[0].mxu0 %v1327
    %v2470 = vpop.f32.mrb[0].mxu0
    %v2471 = vadd.f32 0.0, %v2470
    %v2472 = vpop.f32.mrb[0].mxu0
    %2473 = vmatprep.mubr.f32.mxu0 0.0
    %2474 = vmatmul.mubr.f32.gmra.mrb[0].mxu0 %v1330
    %v2475 = vpop.f32.mrb[0].mxu0
    %v2476 = vadd.f32 0.0, %v2475
    %v2477 = vpop.f32.mrb[0].mxu0
    %2478 = vmatprep.mubr.f32.mxu0 0.0
    %2479 = vmatmul.mubr.f32.gmra.mrb[0].mxu0 %v1333
    %v2480 = vpop.f32.mrb[0].mxu0
    %v2481 = vadd.f32 0.0, %v2480
    %v2482 = vpop.f32.mrb[0].mxu0
    %2483 = vmatprep.mubr.f32.mxu0 0.0
    %2484 = vmatmul.mubr.f32.gmra.mrb[0].mxu0 %v1336
    %v2485 = vpop.f32.mrb[0].mxu0
    %v2486 = vadd.f32 0.0, %v2485
    %v2487 = vpop.f32.mrb[0].mxu0
    %2488 = vmatprep.mubr.f32.mxu0 0.0
    %2489 = vmatmul.mubr.f32.gmra.mrb[0].mxu0 %v1339
    %v2490 = vpop.f32.mrb[0].mxu0
    %v2491 = vadd.f32 0.0, %v2490
    %v2492 = vpop.f32.mrb[0].mxu0
    %2493 = vmatprep.mubr.f32.mxu0 0.0
    %2494 = vmatmul.mubr.f32.gmra.mrb[0].mxu0 %v1342
    %v2495 = vpop.f32.mrb[0].mxu0
    %v2496 = vadd.f32 0.0, %v2495
    %v2497 = vpop.f32.mrb[0].mxu0
    %2498 = vmatprep.mubr.f32.mxu0 0.0
    %2499 = vmatmul.mubr.f32.gmra.mrb[0].mxu0 %v1345
    %v2500 = vpop.f32.mrb[0].mxu0
    %v2501 = vadd.f32 0.0, %v2500
    %v2502 = vpop.f32.mrb[0].mxu0
    %2503 = vmatprep.mubr.f32.mxu0 0.0
    %2504 = vmatmul.mubr.f32.gmra.mrb[0].mxu0 %v1348
    %v2505 = vpop.f32.mrb[0].mxu0
    %v2506 = vadd.f32 0.0, %v2505
    %v2507 = vpop.f32.mrb[0].mxu0
    %2508 = vmatprep.mubr.f32.mxu0 0.0
    %2509 = vmatmul.mubr.f32.gmra.mrb[0].mxu0 %v1351
    %v2510 = vpop.f32.mrb[0].mxu0
    %v2511 = vadd.f32 0.0, %v2510
    %v2512 = vpop.f32.mrb[0].mxu0
    %2513 = vmatprep.mubr.f32.mxu0 0.0
    %2514 = vmatmul.mubr.f32.gmra.mrb[0].mxu0 %v1354
    %v2515 = vpop.f32.mrb[0].mxu0
    %v2516 = vadd.f32 0.0, %v2515
    %v2517 = vpop.f32.mrb[0].mxu0
    %2518 = vmatprep.mubr.f32.mxu0 0.0
    %2519 = vmatmul.mubr.f32.gmra.mrb[0].mxu0 %v1357
    %v2520 = vpop.f32.mrb[0].mxu0
    %v2521 = vadd.f32 0.0, %v2520
    %v2522 = vpop.f32.mrb[0].mxu0
    %2523 = vmatprep.mubr.f32.mxu0 0.0
    %2524 = vmatmul.mubr.f32.gmra.mrb[0].mxu0 %v1360
    %v2525 = vpop.f32.mrb[0].mxu0
    %v2526 = vadd.f32 0.0, %v2525
    %v2527 = vpop.f32.mrb[0].mxu0
    %2528 = vmatprep.mubr.f32.mxu0 0.0
    %2529 = vmatmul.mubr.f32.gmra.mrb[0].mxu0 %v1363
    %v2530 = vpop.f32.mrb[0].mxu0
    %v2531 = vadd.f32 0.0, %v2530
    %v2532 = vpop.f32.mrb[0].mxu0
    %2533 = vmatprep.mubr.f32.mxu0 0.0
    %2534 = vmatmul.mubr.f32.gmra.mrb[0].mxu0 %v1366
    %v2535 = vpop.f32.mrb[0].mxu0
    %v2536 = vadd.f32 0.0, %v2535
    %v2537 = vpop.f32.mrb[0].mxu0
    %2538 = vmatprep.mubr.f32.mxu0 0.0
    %2539 = vmatmul.mubr.f32.gmra.mrb[0].mxu0 %v1369
    %v2540 = vpop.f32.mrb[0].mxu0
    %v2541 = vadd.f32 0.0, %v2540
    %v2542 = vpop.f32.mrb[0].mxu0
    %2543 = vmatprep.mubr.f32.mxu0 0.0
    %2544 = vmatmul.mubr.f32.gmra.mrb[0].mxu0 %v1372
    %v2545 = vpop.f32.mrb[0].mxu0
    %v2546 = vadd.f32 0.0, %v2545
    %v2547 = vpop.f32.mrb[0].mxu0
    %2548 = vmatprep.mubr.f32.mxu0 0.0
    %2549 = vmatmul.mubr.f32.gmra.mrb[0].mxu0 %v1375
    %v2550 = vpop.f32.mrb[0].mxu0
    %v2551 = vadd.f32 0.0, %v2550
    %v2552 = vpop.f32.mrb[0].mxu0
    %2553 = vmatprep.mubr.f32.mxu0 0.0
    %2554 = vmatmul.mubr.f32.gmra.mrb[0].mxu0 %v1378
    %v2555 = vpop.f32.mrb[0].mxu0
    %v2556 = vadd.f32 0.0, %v2555
    %v2557 = vpop.f32.mrb[0].mxu0
    %2558 = vmatprep.mubr.f32.mxu0 0.0
    %2559 = vmatmul.mubr.f32.gmra.mrb[0].mxu0 %v1381
    %v2560 = vpop.f32.mrb[0].mxu0
    %v2561 = vadd.f32 0.0, %v2560
    %v2562 = vpop.f32.mrb[0].mxu0
    %2563 = vmatprep.mubr.f32.mxu0 0.0
    %2564 = vmatmul.mubr.f32.gmra.mrb[0].mxu0 %v1384
    %v2565 = vpop.f32.mrb[0].mxu0
    %v2566 = vadd.f32 0.0, %v2565
    %v2567 = vpop.f32.mrb[0].mxu0
    %2568 = vmatprep.mubr.f32.mxu0 0.0
    %2569 = vmatmul.mubr.f32.gmra.mrb[0].mxu0 %v1387
    %v2570 = vpop.f32.mrb[0].mxu0
    %v2571 = vadd.f32 0.0, %v2570
    %v2572 = vpop.f32.mrb[0].mxu0
    %2573 = vmatprep.mubr.f32.mxu0 0.0
    %2574 = vmatmul.mubr.f32.gmra.mrb[0].mxu0 %v1390
    %v2575 = vpop.f32.mrb[0].mxu0
    %v2576 = vadd.f32 0.0, %v2575
    %v2577 = vpop.f32.mrb[0].mxu0
    %2578 = vmatprep.mubr.f32.mxu0 0.0
    %2579 = vmatmul.mubr.f32.gmra.mrb[0].mxu0 %v1393
    %v2580 = vpop.f32.mrb[0].mxu0
    %v2581 = vadd.f32 0.0, %v2580
    %v2582 = vpop.f32.mrb[0].mxu0
    %2583 = vmatprep.mubr.f32.mxu0 0.0
    %2584 = vmatmul.mubr.f32.gmra.mrb[0].mxu0 %v1396
    %v2585 = vpop.f32.mrb[0].mxu0
    %v2586 = vadd.f32 0.0, %v2585
    %v2587 = vpop.f32.mrb[0].mxu0
    %2588 = vmatprep.mubr.f32.mxu0 0.0
    %2589 = vmatmul.mubr.f32.gmra.mrb[0].mxu0 %v1399
    %v2590 = vpop.f32.mrb[0].mxu0
    %v2591 = vadd.f32 0.0, %v2590
    %v2592 = vpop.f32.mrb[0].mxu0
    %2593 = vmatprep.mubr.f32.mxu0 0.0
    %2594 = vmatmul.mubr.f32.gmra.mrb[0].mxu0 %v1402
    %v2595 = vpop.f32.mrb[0].mxu0
    %v2596 = vadd.f32 0.0, %v2595
    %v2597 = vpop.f32.mrb[0].mxu0
    %2598 = vmatprep.mubr.f32.mxu0 0.0
    %2599 = vmatmul.mubr.f32.gmra.mrb[0].mxu0 %v1405
    %v2600 = vpop.f32.mrb[0].mxu0
    %v2601 = vadd.f32 0.0, %v2600
    %v2602 = vpop.f32.mrb[0].mxu0
    %2603 = vmatprep.mubr.f32.mxu0 0.0
    %2604 = vmatmul.mubr.f32.gmra.mrb[0].mxu0 %v1408
    %v2605 = vpop.f32.mrb[0].mxu0
    %v2606 = vadd.f32 0.0, %v2605
    %v2607 = vpop.f32.mrb[0].mxu0
    %2608 = vmatprep.mubr.f32.mxu0 0.0
    %2609 = vmatmul.mubr.f32.gmra.mrb[0].mxu0 %v1411
    %v2610 = vpop.f32.mrb[0].mxu0
    %v2611 = vadd.f32 0.0, %v2610
    %v2612 = vpop.f32.mrb[0].mxu0
    %2613 = vmatprep.mubr.f32.mxu0 0.0
    %2614 = vmatmul.mubr.f32.gmra.mrb[0].mxu0 %v1414
    %v2615 = vpop.f32.mrb[0].mxu0
    %v2616 = vadd.f32 0.0, %v2615
    %v2617 = vpop.f32.mrb[0].mxu0
    %2618 = vmatprep.mubr.f32.mxu0 0.0
    %2619 = vmatmul.mubr.f32.gmra.mrb[0].mxu0 %v1417
    %v2620 = vpop.f32.mrb[0].mxu0
    %v2621 = vadd.f32 0.0, %v2620
    %v2622 = vpop.f32.mrb[0].mxu0
    %2623 = vmatprep.mubr.f32.mxu0 0.0
    %2624 = vmatmul.mubr.f32.gmra.mrb[0].mxu0 %v1420
    %v2625 = vpop.f32.mrb[0].mxu0
    %v2626 = vadd.f32 0.0, %v2625
    %v2627 = vpop.f32.mrb[0].mxu0
    %2628 = vmatprep.mubr.f32.mxu0 0.0
    %2629 = vmatmul.mubr.f32.gmra.mrb[0].mxu0 %v1423
    %v2630 = vpop.f32.mrb[0].mxu0
    %v2631 = vadd.f32 0.0, %v2630
    %v2632 = vpop.f32.mrb[0].mxu0
    %2633 = vmatprep.mubr.f32.mxu0 0.0
    %2634 = vmatmul.mubr.f32.gmra.mrb[0].mxu0 %v1426
    %v2635 = vpop.f32.mrb[0].mxu0
    %v2636 = vadd.f32 0.0, %v2635
    %v2637 = vpop.f32.mrb[0].mxu0
    %2638 = vmatprep.mubr.f32.mxu0 0.0
    %2639 = vmatmul.mubr.f32.gmra.mrb[0].mxu0 %v1429
    %v2640 = vpop.f32.mrb[0].mxu0
    %v2641 = vadd.f32 0.0, %v2640
    %v2642 = vpop.f32.mrb[0].mxu0
    %2643 = vmatprep.mubr.f32.mxu0 0.0
    %2644 = vmatmul.mubr.f32.gmra.mrb[0].mxu0 %v1432
    %v2645 = vpop.f32.mrb[0].mxu0
    %v2646 = vadd.f32 0.0, %v2645
    %v2647 = vpop.f32.mrb[0].mxu0
    %2648 = vmatprep.mubr.f32.mxu0 0.0
    %2649 = vmatmul.mubr.f32.gmra.mrb[0].mxu0 %v1435
    %v2650 = vpop.f32.mrb[0].mxu0
    %v2651 = vadd.f32 0.0, %v2650
    %v2652 = vpop.f32.mrb[0].mxu0
    %2653 = vmatprep.mubr.f32.mxu0 0.0
    %2654 = vmatmul.mubr.f32.gmra.mrb[0].mxu0 %v1438
    %v2655 = vpop.f32.mrb[0].mxu0
    %v2656 = vadd.f32 0.0, %v2655
    %v2657 = vpop.f32.mrb[0].mxu0
    %2658 = vmatprep.mubr.f32.mxu0 0.0
    %2659 = vmatmul.mubr.f32.gmra.mrb[0].mxu0 %v1441
    %v2660 = vpop.f32.mrb[0].mxu0
    %v2661 = vadd.f32 0.0, %v2660
    %v2662 = vpop.f32.mrb[0].mxu0
    %2663 = vmatprep.mubr.f32.mxu0 0.0
    %2664 = vmatmul.mubr.f32.gmra.mrb[0].mxu0 %v1444
    %v2665 = vpop.f32.mrb[0].mxu0
    %v2666 = vadd.f32 0.0, %v2665
    %v2667 = vpop.f32.mrb[0].mxu0
    %2668 = vmatprep.mubr.f32.mxu0 0.0
    %2669 = vmatmul.mubr.f32.gmra.mrb[0].mxu0 %v1447
    %v2670 = vpop.f32.mrb[0].mxu0
    %v2671 = vadd.f32 0.0, %v2670
    %v2672 = vpop.f32.mrb[0].mxu0
    %2673 = vmatprep.mubr.f32.mxu0 0.0
    %2674 = vmatmul.mubr.f32.gmra.mrb[0].mxu0 %v1450
    %v2675 = vpop.f32.mrb[0].mxu0
    %v2676 = vadd.f32 0.0, %v2675
    %v2677 = vpop.f32.mrb[0].mxu0
    %2678 = vmatprep.mubr.f32.mxu0 0.0
    %2679 = vmatmul.mubr.f32.gmra.mrb[0].mxu0 %v1453
    %v2680 = vpop.f32.mrb[0].mxu0
    %v2681 = vadd.f32 0.0, %v2680
    %v2682 = vpop.f32.mrb[0].mxu0
    %2683 = vmatprep.mubr.f32.mxu0 0.0
    %2684 = vmatmul.mubr.f32.gmra.mrb[0].mxu0 %v1456
    %v2685 = vpop.f32.mrb[0].mxu0
    %v2686 = vadd.f32 0.0, %v2685
    %v2687 = vpop.f32.mrb[0].mxu0
    %2688 = vmatprep.mubr.f32.mxu0 0.0
    %2689 = vmatmul.mubr.f32.gmra.mrb[0].mxu0 %v1459
    %v2690 = vpop.f32.mrb[0].mxu0
    %v2691 = vadd.f32 0.0, %v2690
    %v2692 = vpop.f32.mrb[0].mxu0
    %2693 = vmatprep.mubr.f32.mxu0 0.0
    %2694 = vmatmul.mubr.f32.gmra.mrb[0].mxu0 %v1462
    %v2695 = vpop.f32.mrb[0].mxu0
    %v2696 = vadd.f32 0.0, %v2695
    %v2697 = vpop.f32.mrb[0].mxu0
    %2698 = vmatprep.mubr.f32.mxu0 0.0
    %2699 = vmatmul.mubr.f32.gmra.mrb[0].mxu0 %v1465
    %v2700 = vpop.f32.mrb[0].mxu0
    %v2701 = vadd.f32 0.0, %v2700
    %v2702 = vpop.f32.mrb[0].mxu0
    %2703 = vmatprep.mubr.f32.mxu0 0.0
    %2704 = vmatmul.mubr.f32.gmra.mrb[0].mxu0 %v1468
    %v2705 = vpop.f32.mrb[0].mxu0
    %v2706 = vadd.f32 0.0, %v2705
    %v2707 = vpop.f32.mrb[0].mxu0
    %2708 = vmatprep.mubr.f32.mxu0 0.0
    %2709 = vmatmul.mubr.f32.gmra.mrb[0].mxu0 %v1471
    %v2710 = vpop.f32.mrb[0].mxu0
    %v2711 = vadd.f32 0.0, %v2710
    %v2712 = vpop.f32.mrb[0].mxu0
    %2713 = vmatprep.mubr.f32.mxu0 0.0
    %2714 = vmatmul.mubr.f32.gmra.mrb[0].mxu0 %v1474
    %v2715 = vpop.f32.mrb[0].mxu0
    %v2716 = vadd.f32 0.0, %v2715
    %v2717 = vpop.f32.mrb[0].mxu0
    %2718 = vmatprep.mubr.f32.mxu0 0.0
    %2719 = vmatmul.mubr.f32.gmra.mrb[0].mxu0 %v1477
    %v2720 = vpop.f32.mrb[0].mxu0
    %v2721 = vadd.f32 0.0, %v2720
    %v2722 = vpop.f32.mrb[0].mxu0
    %2723 = vmatprep.mubr.f32.mxu0 0.0
    %2724 = vmatmul.mubr.f32.gmra.mrb[0].mxu0 %v1480
    %v2725 = vpop.f32.mrb[0].mxu0
    %v2726 = vadd.f32 0.0, %v2725
    %v2727 = vpop.f32.mrb[0].mxu0
    %2728 = vmatprep.mubr.f32.mxu0 0.0
    %2729 = vmatmul.mubr.f32.gmra.mrb[0].mxu0 %v1483
    %v2730 = vpop.f32.mrb[0].mxu0
    %v2731 = vadd.f32 0.0, %v2730
    %v2732 = vpop.f32.mrb[0].mxu0
    %2733 = vmatprep.mubr.f32.mxu0 0.0
    %2734 = vmatmul.mubr.f32.gmra.mrb[0].mxu0 %v1486
    %v2735 = vpop.f32.mrb[0].mxu0
    %v2736 = vadd.f32 0.0, %v2735
    %v2737 = vpop.f32.mrb[0].mxu0
    %2738 = vmatprep.mubr.f32.mxu0 0.0
    %2739 = vmatmul.mubr.f32.gmra.mrb[0].mxu0 %v1489
    %v2740 = vpop.f32.mrb[0].mxu0
    %v2741 = vadd.f32 0.0, %v2740
    %v2742 = vpop.f32.mrb[0].mxu0
    %2743 = vmatprep.mubr.f32.mxu0 0.0
    %2744 = vmatmul.mubr.f32.gmra.mrb[0].mxu0 %v1492
    %v2745 = vpop.f32.mrb[0].mxu0
    %v2746 = vadd.f32 0.0, %v2745
    %v2747 = vpop.f32.mrb[0].mxu0
    %2748 = vmatprep.mubr.f32.mxu0 0.0
    %2749 = vmatmul.mubr.f32.gmra.mrb[0].mxu0 %v1495
    %v2750 = vpop.f32.mrb[0].mxu0
    %v2751 = vadd.f32 0.0, %v2750
    %v2752 = vpop.f32.mrb[0].mxu0
    %2753 = vmatprep.mubr.f32.mxu0 0.0
    %2754 = vmatmul.mubr.f32.gmra.mrb[0].mxu0 %v1498
    %v2755 = vpop.f32.mrb[0].mxu0
    %v2756 = vadd.f32 0.0, %v2755
    %v2757 = vpop.f32.mrb[0].mxu0
    %2758 = vmatprep.mubr.f32.mxu0 0.0
    %2759 = vmatmul.mubr.f32.gmra.mrb[0].mxu0 %v1501
    %v2760 = vpop.f32.mrb[0].mxu0
    %v2761 = vadd.f32 0.0, %v2760
    %v2762 = vpop.f32.mrb[0].mxu0
    %2763 = vmatprep.mubr.f32.mxu0 0.0
    %2764 = vmatmul.mubr.f32.gmra.mrb[0].mxu0 %v1504
    %v2765 = vpop.f32.mrb[0].mxu0
    %v2766 = vadd.f32 0.0, %v2765
    %v2767 = vpop.f32.mrb[0].mxu0
    %2768 = vmatprep.mubr.f32.mxu0 0.0
    %2769 = vmatmul.mubr.f32.gmra.mrb[0].mxu0 %v1507
    %v2770 = vpop.f32.mrb[0].mxu0
    %v2771 = vadd.f32 0.0, %v2770
    %v2772 = vpop.f32.mrb[0].mxu0
    %2773 = vmatprep.mubr.f32.mxu0 0.0
    %2774 = vmatmul.mubr.f32.gmra.mrb[0].mxu0 %v1510
    %v2775 = vpop.f32.mrb[0].mxu0
    %v2776 = vadd.f32 0.0, %v2775
    %v2777 = vpop.f32.mrb[0].mxu0
    %2778 = vmatprep.mubr.f32.mxu0 0.0
    %2779 = vmatmul.mubr.f32.gmra.mrb[0].mxu0 %v1513
    %v2780 = vpop.f32.mrb[0].mxu0
    %v2781 = vadd.f32 0.0, %v2780
    %v2782 = vpop.f32.mrb[0].mxu0
    %2783 = vmatprep.mubr.f32.mxu0 0.0
    %2784 = vmatmul.mubr.f32.gmra.mrb[0].mxu0 %v1516
    %v2785 = vpop.f32.mrb[0].mxu0
    %v2786 = vadd.f32 0.0, %v2785
    %v2787 = vpop.f32.mrb[0].mxu0
    %2788 = vmatprep.mubr.f32.mxu0 0.0
    %2789 = vmatmul.mubr.f32.gmra.mrb[0].mxu0 %v1519
    %v2790 = vpop.f32.mrb[0].mxu0
    %v2791 = vadd.f32 0.0, %v2790
    %v2792 = vpop.f32.mrb[0].mxu0
    %2793 = vmatprep.mubr.f32.mxu0 0.0
    %2794 = vmatmul.mubr.f32.gmra.mrb[0].mxu0 %v1522
    %v2795 = vpop.f32.mrb[0].mxu0
    %v2796 = vadd.f32 0.0, %v2795
    %v2797 = vpop.f32.mrb[0].mxu0
    %2798 = vmatprep.mubr.f32.mxu0 0.0
    %2799 = vmatmul.mubr.f32.gmra.mrb[0].mxu0 %v1525
    %v2800 = vpop.f32.mrb[0].mxu0
    %v2801 = vadd.f32 0.0, %v2800
    %v2802 = vpop.f32.mrb[0].mxu0
    %2803 = vmatprep.mubr.f32.mxu0 0.0
    %2804 = vmatmul.mubr.f32.gmra.mrb[0].mxu0 %v1528
    %v2805 = vpop.f32.mrb[0].mxu0
    %v2806 = vadd.f32 0.0, %v2805
    %v2807 = vpop.f32.mrb[0].mxu0
    %2808 = vmatprep.mubr.f32.mxu0 0.0
    %2809 = vmatmul.mubr.f32.gmra.mrb[0].mxu0 %v1531
    %v2810 = vpop.f32.mrb[0].mxu0
    %v2811 = vadd.f32 0.0, %v2810
    %v2812 = vpop.f32.mrb[0].mxu0
    %2813 = vmatprep.mubr.f32.mxu0 0.0
    %2814 = vmatmul.mubr.f32.gmra.mrb[0].mxu0 %v1534
    %v2815 = vpop.f32.mrb[0].mxu0
    %v2816 = vadd.f32 0.0, %v2815
    %v2817 = vpop.f32.mrb[0].mxu0
    %2818 = vmatprep.mubr.f32.mxu0 0.0
    %2819 = vmatmul.mubr.f32.gmra.mrb[0].mxu0 %v1537
    %v2820 = vpop.f32.mrb[0].mxu0
    %v2821 = vadd.f32 0.0, %v2820
    %v2822 = vpop.f32.mrb[0].mxu0
    %2823 = vmatprep.mubr.f32.mxu0 0.0
    %2824 = vmatmul.mubr.f32.gmra.mrb[0].mxu0 %v1540
    %v2825 = vpop.f32.mrb[0].mxu0
    %v2826 = vadd.f32 0.0, %v2825
    %v2827 = vpop.f32.mrb[0].mxu0
    %2828 = vmatprep.mubr.f32.mxu0 0.0
    %2829 = vmatmul.mubr.f32.gmra.mrb[0].mxu0 %v1543
    %v2830 = vpop.f32.mrb[0].mxu0
    %v2831 = vadd.f32 0.0, %v2830
    %v2832 = vpop.f32.mrb[0].mxu0
    %2833 = vmatprep.mubr.f32.mxu0 0.0
    %2834 = vmatmul.mubr.f32.gmra.mrb[0].mxu0 %v1546
    %v2835 = vpop.f32.mrb[0].mxu0
    %v2836 = vadd.f32 0.0, %v2835
    %v2837 = vpop.f32.mrb[0].mxu0
    %2838 = vmatprep.mubr.f32.mxu0 0.0
    %2839 = vmatmul.mubr.f32.gmra.mrb[0].mxu0 %v1549
    %v2840 = vpop.f32.mrb[0].mxu0
    %v2841 = vadd.f32 0.0, %v2840
    %v2842 = vpop.f32.mrb[0].mxu0
    %2843 = vmatprep.mubr.f32.mxu0 0.0
    %2844 = vmatmul.mubr.f32.gmra.mrb[0].mxu0 %v1552
    %v2845 = vpop.f32.mrb[0].mxu0
    %v2846 = vadd.f32 0.0, %v2845
    %v2847 = vpop.f32.mrb[0].mxu0
    %2848 = vmatprep.mubr.f32.mxu0 0.0
    %2849 = vmatmul.mubr.f32.gmra.mrb[0].mxu0 %v1555
    %v2850 = vpop.f32.mrb[0].mxu0
    %v2851 = vadd.f32 0.0, %v2850
    %v2852 = vpop.f32.mrb[0].mxu0
    %2853 = vmatprep.mubr.f32.mxu0 0.0
    %2854 = vmatmul.mubr.f32.gmra.mrb[0].mxu0 %v1558
    %v2855 = vpop.f32.mrb[0].mxu0
    %v2856 = vadd.f32 0.0, %v2855
    %v2857 = vpop.f32.mrb[0].mxu0
    %2858 = vmatprep.mubr.f32.mxu0 0.0
    %2859 = vmatmul.mubr.f32.gmra.mrb[0].mxu0 %v1561
    %v2860 = vpop.f32.mrb[0].mxu0
    %v2861 = vadd.f32 0.0, %v2860
    %v2862 = vpop.f32.mrb[0].mxu0
    %2863 = vmatprep.mubr.f32.mxu0 0.0
    %2864 = vmatmul.mubr.f32.gmra.mrb[0].mxu0 %v1564
    %v2865 = vpop.f32.mrb[0].mxu0
    %v2866 = vadd.f32 0.0, %v2865
    %v2867 = vpop.f32.mrb[0].mxu0
    %2868 = vmatprep.mubr.f32.mxu0 0.0
    %2869 = vmatmul.mubr.f32.gmra.mrb[0].mxu0 %v1567
    %v2870 = vpop.f32.mrb[0].mxu0
    %v2871 = vadd.f32 0.0, %v2870
    %v2872 = vpop.f32.mrb[0].mxu0
    %2873 = vmatprep.mubr.f32.mxu0 0.0
    %2874 = vmatmul.mubr.f32.gmra.mrb[0].mxu0 %v1570
    %v2875 = vpop.f32.mrb[0].mxu0
    %v2876 = vadd.f32 0.0, %v2875
    %v2877 = vpop.f32.mrb[0].mxu0
    %2878 = vmatprep.mubr.f32.mxu0 0.0
    %2879 = vmatmul.mubr.f32.gmra.mrb[0].mxu0 %v1573
    %v2880 = vpop.f32.mrb[0].mxu0
    %v2881 = vadd.f32 0.0, %v2880
    %v2882 = vpop.f32.mrb[0].mxu0
    %2883 = vmatprep.mubr.f32.mxu0 0.0
    %2884 = vmatmul.mubr.f32.gmra.mrb[0].mxu0 %v1576
    %v2885 = vpop.f32.mrb[0].mxu0
    %v2886 = vadd.f32 0.0, %v2885
    %v2887 = vpop.f32.mrb[0].mxu0
    %2888 = vmatprep.mubr.f32.mxu0 0.0
    %2889 = vmatmul.mubr.f32.gmra.mrb[0].mxu0 %v1579
    %v2890 = vpop.f32.mrb[0].mxu0
    %v2891 = vadd.f32 0.0, %v2890
    %v2892 = vpop.f32.mrb[0].mxu0
    %2893 = vmatprep.mubr.f32.mxu0 0.0
    %2894 = vmatmul.mubr.f32.gmra.mrb[0].mxu0 %v1582
    %v2895 = vpop.f32.mrb[0].mxu0
    %v2896 = vadd.f32 0.0, %v2895
    %v2897 = vpop.f32.mrb[0].mxu0
    %2898 = vmatprep.mubr.f32.mxu0 0.0
    %2899 = vmatmul.mubr.f32.gmra.mrb[0].mxu0 %v1585
    %v2900 = vpop.f32.mrb[0].mxu0
    %v2901 = vadd.f32 0.0, %v2900
    %v2902 = vpop.f32.mrb[0].mxu0
    %2903 = vmatprep.mubr.f32.mxu0 0.0
    %2904 = vmatmul.mubr.f32.gmra.mrb[0].mxu0 %v1588
    %v2905 = vpop.f32.mrb[0].mxu0
    %v2906 = vadd.f32 0.0, %v2905
    %v2907 = vpop.f32.mrb[0].mxu0
    %2908 = vmatprep.mubr.f32.mxu0 0.0
    %2909 = vmatmul.mubr.f32.gmra.mrb[0].mxu0 %v1591
    %v2910 = vpop.f32.mrb[0].mxu0
    %v2911 = vadd.f32 0.0, %v2910
    %v2912 = vpop.f32.mrb[0].mxu0
    %2913 = vmatprep.mubr.f32.mxu0 0.0
    %2914 = vmatmul.mubr.f32.gmra.mrb[0].mxu0 %v1594
    %v2915 = vpop.f32.mrb[0].mxu0
    %v2916 = vadd.f32 0.0, %v2915
    %v2917 = vpop.f32.mrb[0].mxu0
    %2918 = vmatprep.mubr.f32.mxu0 0.0
    %2919 = vmatmul.mubr.f32.gmra.mrb[0].mxu0 %v1597
    %v2920 = vpop.f32.mrb[0].mxu0
    %v2921 = vadd.f32 0.0, %v2920
    %v2922 = vpop.f32.mrb[0].mxu0
    %2923 = vmatprep.mubr.f32.mxu0 0.0
    %2924 = vmatmul.mubr.f32.gmra.mrb[0].mxu0 %v1600
    %v2925 = vpop.f32.mrb[0].mxu0
    %v2926 = vadd.f32 0.0, %v2925
    %v2927 = vpop.f32.mrb[0].mxu0
    %2928 = vmatprep.mubr.f32.mxu0 0.0
    %2929 = vmatmul.mubr.f32.gmra.mrb[0].mxu0 %v1603
    %v2930 = vpop.f32.mrb[0].mxu0
    %v2931 = vadd.f32 0.0, %v2930
    %v2932 = vpop.f32.mrb[0].mxu0
    %2933 = vmatprep.mubr.f32.mxu0 0.0
    %2934 = vmatmul.mubr.f32.gmra.mrb[0].mxu0 %v1606
    %v2935 = vpop.f32.mrb[0].mxu0
    %v2936 = vadd.f32 0.0, %v2935
    %v2937 = vpop.f32.mrb[0].mxu0
    %2938 = vmatprep.mubr.f32.mxu0 0.0
    %2939 = vmatmul.mubr.f32.gmra.mrb[0].mxu0 %v1609
    %v2940 = vpop.f32.mrb[0].mxu0
    %v2941 = vadd.f32 0.0, %v2940
    %v2942 = vpop.f32.mrb[0].mxu0
    %2943 = vmatprep.mubr.f32.mxu0 0.0
    %2944 = vmatmul.mubr.f32.gmra.mrb[0].mxu0 %v1612
    %v2945 = vpop.f32.mrb[0].mxu0
    %v2946 = vadd.f32 0.0, %v2945
    %v2947 = vpop.f32.mrb[0].mxu0
    %2948 = vmatprep.mubr.f32.mxu0 0.0
    %2949 = vmatmul.mubr.f32.gmra.mrb[0].mxu0 %v1615
    %v2950 = vpop.f32.mrb[0].mxu0
    %v2951 = vadd.f32 0.0, %v2950
    %v2952 = vpop.f32.mrb[0].mxu0
    %2953 = vmatprep.mubr.f32.mxu0 0.0
    %2954 = vmatmul.mubr.f32.gmra.mrb[0].mxu0 %v1618
    %v2955 = vpop.f32.mrb[0].mxu0
    %v2956 = vadd.f32 0.0, %v2955
    %v2957 = vpop.f32.mrb[0].mxu0
    %2958 = vmatprep.mubr.f32.mxu0 0.0
    %2959 = vmatmul.mubr.f32.gmra.mrb[0].mxu0 %v1621
    %v2960 = vpop.f32.mrb[0].mxu0
    %v2961 = vadd.f32 0.0, %v2960
    %v2962 = vpop.f32.mrb[0].mxu0
    %2963 = vmatprep.mubr.f32.mxu0 0.0
    %2964 = vmatmul.mubr.f32.gmra.mrb[0].mxu0 %v1624
    %v2965 = vpop.f32.mrb[0].mxu0
    %v2966 = vadd.f32 0.0, %v2965
    %v2967 = vpop.f32.mrb[0].mxu0
    %2968 = vmatprep.mubr.f32.mxu0 0.0
    %2969 = vmatmul.mubr.f32.gmra.mrb[0].mxu0 %v1627
    %v2970 = vpop.f32.mrb[0].mxu0
    %v2971 = vadd.f32 0.0, %v2970
    %v2972 = vpop.f32.mrb[0].mxu0
    %2973 = vdwg.mxu0
    %2974 = vxpose.xlu0.b32.start [1/16] %v1696, 128
    %2975 = vxpose.xlu0.b32.cont [2/16] %v1701, 128
    %2976 = vxpose.xlu0.b32.cont [3/16] %v1706, 128
    %2977 = vxpose.xlu0.b32.cont [4/16] %v1711, 128
    %2978 = vxpose.xlu0.b32.cont [5/16] %v1716, 128
    %2979 = vxpose.xlu0.b32.cont [6/16] %v1721, 128
    %2980 = vxpose.xlu0.b32.cont [7/16] %v1726, 128
    %2981 = vxpose.xlu0.b32.cont [8/16] %v1731, 128
    %2982 = vxpose.xlu0.b32.cont [9/16] %v1736, 128
    %2983 = vxpose.xlu0.b32.cont [10/16] %v1741, 128
    %2984 = vxpose.xlu0.b32.cont [11/16] %v1746, 128
    %2985 = vxpose.xlu0.b32.cont [12/16] %v1751, 128
    %2986 = vxpose.xlu0.b32.cont [13/16] %v1756, 128
    %2987 = vxpose.xlu0.b32.cont [14/16] %v1761, 128
    %2988 = vxpose.xlu0.b32.cont [15/16] %v1766, 128
    %2989 = vxpose.xlu0.b32.end [16/16] %v1771, 128
    %v2990 = vpop.trf.xlu0
    %v2991 = vpop.trf.xlu0
    %v2992 = vpop.trf.xlu0
    %v2993 = vpop.trf.xlu0
    %v2994 = vpop.trf.xlu0
    %v2995 = vpop.trf.xlu0
    %v2996 = vpop.trf.xlu0
    %v2997 = vpop.trf.xlu0
    %v2998 = vpop.trf.xlu0
    %v2999 = vpop.trf.xlu0
    %v3000 = vpop.trf.xlu0
    %v3001 = vpop.trf.xlu0
    %v3002 = vpop.trf.xlu0
    %v3003 = vpop.trf.xlu0
    %v3004 = vpop.trf.xlu0
    %v3005 = vpop.trf.xlu0
    %3006 = vxpose.xlu0.b32.start [1/16] %v1776, 128
    %3007 = vxpose.xlu0.b32.cont [2/16] %v1781, 128
    %3008 = vxpose.xlu0.b32.cont [3/16] %v1786, 128
    %3009 = vxpose.xlu0.b32.cont [4/16] %v1791, 128
    %3010 = vxpose.xlu0.b32.cont [5/16] %v1796, 128
    %3011 = vxpose.xlu0.b32.cont [6/16] %v1801, 128
    %3012 = vxpose.xlu0.b32.cont [7/16] %v1806, 128
    %3013 = vxpose.xlu0.b32.cont [8/16] %v1811, 128
    %3014 = vxpose.xlu0.b32.cont [9/16] %v1816, 128
    %3015 = vxpose.xlu0.b32.cont [10/16] %v1821, 128
    %3016 = vxpose.xlu0.b32.cont [11/16] %v1826, 128
    %3017 = vxpose.xlu0.b32.cont [12/16] %v1831, 128
    %3018 = vxpose.xlu0.b32.cont [13/16] %v1836, 128
    %3019 = vxpose.xlu0.b32.cont [14/16] %v1841, 128
    %3020 = vxpose.xlu0.b32.cont [15/16] %v1846, 128
    %3021 = vxpose.xlu0.b32.end [16/16] %v1851, 128
    %v3022 = vpop.trf.xlu0
    %v3023 = vpop.trf.xlu0
    %v3024 = vpop.trf.xlu0
    %v3025 = vpop.trf.xlu0
    %v3026 = vpop.trf.xlu0
    %v3027 = vpop.trf.xlu0
    %v3028 = vpop.trf.xlu0
    %v3029 = vpop.trf.xlu0
    %v3030 = vpop.trf.xlu0
    %v3031 = vpop.trf.xlu0
    %v3032 = vpop.trf.xlu0
    %v3033 = vpop.trf.xlu0
    %v3034 = vpop.trf.xlu0
    %v3035 = vpop.trf.xlu0
    %v3036 = vpop.trf.xlu0
    %v3037 = vpop.trf.xlu0
    %3038 = vxpose.xlu0.b32.start [1/16] %v1856, 128
    %3039 = vxpose.xlu0.b32.cont [2/16] %v1861, 128
    %3040 = vxpose.xlu0.b32.cont [3/16] %v1866, 128
    %3041 = vxpose.xlu0.b32.cont [4/16] %v1871, 128
    %3042 = vxpose.xlu0.b32.cont [5/16] %v1876, 128
    %3043 = vxpose.xlu0.b32.cont [6/16] %v1881, 128
    %3044 = vxpose.xlu0.b32.cont [7/16] %v1886, 128
    %3045 = vxpose.xlu0.b32.cont [8/16] %v1891, 128
    %3046 = vxpose.xlu0.b32.cont [9/16] %v1896, 128
    %3047 = vxpose.xlu0.b32.cont [10/16] %v1901, 128
    %3048 = vxpose.xlu0.b32.cont [11/16] %v1906, 128
    %3049 = vxpose.xlu0.b32.cont [12/16] %v1911, 128
    %3050 = vxpose.xlu0.b32.cont [13/16] %v1916, 128
    %3051 = vxpose.xlu0.b32.cont [14/16] %v1921, 128
    %3052 = vxpose.xlu0.b32.cont [15/16] %v1926, 128
    %3053 = vxpose.xlu0.b32.end [16/16] %v1931, 128
    %v3054 = vpop.trf.xlu0
    %v3055 = vpop.trf.xlu0
    %v3056 = vpop.trf.xlu0
    %v3057 = vpop.trf.xlu0
    %v3058 = vpop.trf.xlu0
    %v3059 = vpop.trf.xlu0
    %v3060 = vpop.trf.xlu0
    %v3061 = vpop.trf.xlu0
    %v3062 = vpop.trf.xlu0
    %v3063 = vpop.trf.xlu0
    %v3064 = vpop.trf.xlu0
    %v3065 = vpop.trf.xlu0
    %v3066 = vpop.trf.xlu0
    %v3067 = vpop.trf.xlu0
    %v3068 = vpop.trf.xlu0
    %v3069 = vpop.trf.xlu0
    %3070 = vxpose.xlu0.b32.start [1/16] %v1936, 128
    %3071 = vxpose.xlu0.b32.cont [2/16] %v1941, 128
    %3072 = vxpose.xlu0.b32.cont [3/16] %v1946, 128
    %3073 = vxpose.xlu0.b32.cont [4/16] %v1951, 128
    %3074 = vxpose.xlu0.b32.cont [5/16] %v1956, 128
    %3075 = vxpose.xlu0.b32.cont [6/16] %v1961, 128
    %3076 = vxpose.xlu0.b32.cont [7/16] %v1966, 128
    %3077 = vxpose.xlu0.b32.cont [8/16] %v1971, 128
    %3078 = vxpose.xlu0.b32.cont [9/16] %v1976, 128
    %3079 = vxpose.xlu0.b32.cont [10/16] %v1981, 128
    %3080 = vxpose.xlu0.b32.cont [11/16] %v1986, 128
    %3081 = vxpose.xlu0.b32.cont [12/16] %v1991, 128
    %3082 = vxpose.xlu0.b32.cont [13/16] %v1996, 128
    %3083 = vxpose.xlu0.b32.cont [14/16] %v2001, 128
    %3084 = vxpose.xlu0.b32.cont [15/16] %v2006, 128
    %3085 = vxpose.xlu0.b32.end [16/16] %v2011, 128
    %v3086 = vpop.trf.xlu0
    %v3087 = vpop.trf.xlu0
    %v3088 = vpop.trf.xlu0
    %v3089 = vpop.trf.xlu0
    %v3090 = vpop.trf.xlu0
    %v3091 = vpop.trf.xlu0
    %v3092 = vpop.trf.xlu0
    %v3093 = vpop.trf.xlu0
    %v3094 = vpop.trf.xlu0
    %v3095 = vpop.trf.xlu0
    %v3096 = vpop.trf.xlu0
    %v3097 = vpop.trf.xlu0
    %v3098 = vpop.trf.xlu0
    %v3099 = vpop.trf.xlu0
    %v3100 = vpop.trf.xlu0
    %v3101 = vpop.trf.xlu0
    %3102 = vxpose.xlu0.b32.start [1/16] %v2016, 128
    %3103 = vxpose.xlu0.b32.cont [2/16] %v2021, 128
    %3104 = vxpose.xlu0.b32.cont [3/16] %v2026, 128
    %3105 = vxpose.xlu0.b32.cont [4/16] %v2031, 128
    %3106 = vxpose.xlu0.b32.cont [5/16] %v2036, 128
    %3107 = vxpose.xlu0.b32.cont [6/16] %v2041, 128
    %3108 = vxpose.xlu0.b32.cont [7/16] %v2046, 128
    %3109 = vxpose.xlu0.b32.cont [8/16] %v2051, 128
    %3110 = vxpose.xlu0.b32.cont [9/16] %v2056, 128
    %3111 = vxpose.xlu0.b32.cont [10/16] %v2061, 128
    %3112 = vxpose.xlu0.b32.cont [11/16] %v2066, 128
    %3113 = vxpose.xlu0.b32.cont [12/16] %v2071, 128
    %3114 = vxpose.xlu0.b32.cont [13/16] %v2076, 128
    %3115 = vxpose.xlu0.b32.cont [14/16] %v2081, 128
    %3116 = vxpose.xlu0.b32.cont [15/16] %v2086, 128
    %3117 = vxpose.xlu0.b32.end [16/16] %v2091, 128
    %v3118 = vpop.trf.xlu0
    %v3119 = vpop.trf.xlu0
    %v3120 = vpop.trf.xlu0
    %v3121 = vpop.trf.xlu0
    %v3122 = vpop.trf.xlu0
    %v3123 = vpop.trf.xlu0
    %v3124 = vpop.trf.xlu0
    %v3125 = vpop.trf.xlu0
    %v3126 = vpop.trf.xlu0
    %v3127 = vpop.trf.xlu0
    %v3128 = vpop.trf.xlu0
    %v3129 = vpop.trf.xlu0
    %v3130 = vpop.trf.xlu0
    %v3131 = vpop.trf.xlu0
    %v3132 = vpop.trf.xlu0
    %v3133 = vpop.trf.xlu0
    %3134 = vxpose.xlu0.b32.start [1/16] %v2096, 128
    %3135 = vxpose.xlu0.b32.cont [2/16] %v2101, 128
    %3136 = vxpose.xlu0.b32.cont [3/16] %v2106, 128
    %3137 = vxpose.xlu0.b32.cont [4/16] %v2111, 128
    %3138 = vxpose.xlu0.b32.cont [5/16] %v2116, 128
    %3139 = vxpose.xlu0.b32.cont [6/16] %v2121, 128
    %3140 = vxpose.xlu0.b32.cont [7/16] %v2126, 128
    %3141 = vxpose.xlu0.b32.cont [8/16] %v2131, 128
    %3142 = vxpose.xlu0.b32.cont [9/16] %v2136, 128
    %3143 = vxpose.xlu0.b32.cont [10/16] %v2141, 128
    %3144 = vxpose.xlu0.b32.cont [11/16] %v2146, 128
    %3145 = vxpose.xlu0.b32.cont [12/16] %v2151, 128
    %3146 = vxpose.xlu0.b32.cont [13/16] %v2156, 128
    %3147 = vxpose.xlu0.b32.cont [14/16] %v2161, 128
    %3148 = vxpose.xlu0.b32.cont [15/16] %v2166, 128
    %3149 = vxpose.xlu0.b32.end [16/16] %v2171, 128
    %v3150 = vpop.trf.xlu0
    %v3151 = vpop.trf.xlu0
    %v3152 = vpop.trf.xlu0
    %v3153 = vpop.trf.xlu0
    %v3154 = vpop.trf.xlu0
    %v3155 = vpop.trf.xlu0
    %v3156 = vpop.trf.xlu0
    %v3157 = vpop.trf.xlu0
    %v3158 = vpop.trf.xlu0
    %v3159 = vpop.trf.xlu0
    %v3160 = vpop.trf.xlu0
    %v3161 = vpop.trf.xlu0
    %v3162 = vpop.trf.xlu0
    %v3163 = vpop.trf.xlu0
    %v3164 = vpop.trf.xlu0
    %v3165 = vpop.trf.xlu0
    %3166 = vxpose.xlu0.b32.start [1/16] %v2176, 128
    %3167 = vxpose.xlu0.b32.cont [2/16] %v2181, 128
    %3168 = vxpose.xlu0.b32.cont [3/16] %v2186, 128
    %3169 = vxpose.xlu0.b32.cont [4/16] %v2191, 128
    %3170 = vxpose.xlu0.b32.cont [5/16] %v2196, 128
    %3171 = vxpose.xlu0.b32.cont [6/16] %v2201, 128
    %3172 = vxpose.xlu0.b32.cont [7/16] %v2206, 128
    %3173 = vxpose.xlu0.b32.cont [8/16] %v2211, 128
    %3174 = vxpose.xlu0.b32.cont [9/16] %v2216, 128
    %3175 = vxpose.xlu0.b32.cont [10/16] %v2221, 128
    %3176 = vxpose.xlu0.b32.cont [11/16] %v2226, 128
    %3177 = vxpose.xlu0.b32.cont [12/16] %v2231, 128
    %3178 = vxpose.xlu0.b32.cont [13/16] %v2236, 128
    %3179 = vxpose.xlu0.b32.cont [14/16] %v2241, 128
    %3180 = vxpose.xlu0.b32.cont [15/16] %v2246, 128
    %3181 = vxpose.xlu0.b32.end [16/16] %v2251, 128
    %v3182 = vpop.trf.xlu0
    %v3183 = vpop.trf.xlu0
    %v3184 = vpop.trf.xlu0
    %v3185 = vpop.trf.xlu0
    %v3186 = vpop.trf.xlu0
    %v3187 = vpop.trf.xlu0
    %v3188 = vpop.trf.xlu0
    %v3189 = vpop.trf.xlu0
    %v3190 = vpop.trf.xlu0
    %v3191 = vpop.trf.xlu0
    %v3192 = vpop.trf.xlu0
    %v3193 = vpop.trf.xlu0
    %v3194 = vpop.trf.xlu0
    %v3195 = vpop.trf.xlu0
    %v3196 = vpop.trf.xlu0
    %v3197 = vpop.trf.xlu0
    %3198 = vxpose.xlu0.b32.start [1/16] %v2256, 128
    %3199 = vxpose.xlu0.b32.cont [2/16] %v2261, 128
    %3200 = vxpose.xlu0.b32.cont [3/16] %v2266, 128
    %3201 = vxpose.xlu0.b32.cont [4/16] %v2271, 128
    %3202 = vxpose.xlu0.b32.cont [5/16] %v2276, 128
    %3203 = vxpose.xlu0.b32.cont [6/16] %v2281, 128
    %3204 = vxpose.xlu0.b32.cont [7/16] %v2286, 128
    %3205 = vxpose.xlu0.b32.cont [8/16] %v2291, 128
    %3206 = vxpose.xlu0.b32.cont [9/16] %v2296, 128
    %3207 = vxpose.xlu0.b32.cont [10/16] %v2301, 128
    %3208 = vxpose.xlu0.b32.cont [11/16] %v2306, 128
    %3209 = vxpose.xlu0.b32.cont [12/16] %v2311, 128
    %3210 = vxpose.xlu0.b32.cont [13/16] %v2316, 128
    %3211 = vxpose.xlu0.b32.cont [14/16] %v2321, 128
    %3212 = vxpose.xlu0.b32.cont [15/16] %v2326, 128
    %3213 = vxpose.xlu0.b32.end [16/16] %v2331, 128
    %v3214 = vpop.trf.xlu0
    %v3215 = vpop.trf.xlu0
    %v3216 = vpop.trf.xlu0
    %v3217 = vpop.trf.xlu0
    %v3218 = vpop.trf.xlu0
    %v3219 = vpop.trf.xlu0
    %v3220 = vpop.trf.xlu0
    %v3221 = vpop.trf.xlu0
    %v3222 = vpop.trf.xlu0
    %v3223 = vpop.trf.xlu0
    %v3224 = vpop.trf.xlu0
    %v3225 = vpop.trf.xlu0
    %v3226 = vpop.trf.xlu0
    %v3227 = vpop.trf.xlu0
    %v3228 = vpop.trf.xlu0
    %v3229 = vpop.trf.xlu0
    %3230 = vxpose.xlu0.b32.start [1/16] %v2336, 128
    %3231 = vxpose.xlu0.b32.cont [2/16] %v2341, 128
    %3232 = vxpose.xlu0.b32.cont [3/16] %v2346, 128
    %3233 = vxpose.xlu0.b32.cont [4/16] %v2351, 128
    %3234 = vxpose.xlu0.b32.cont [5/16] %v2356, 128
    %3235 = vxpose.xlu0.b32.cont [6/16] %v2361, 128
    %3236 = vxpose.xlu0.b32.cont [7/16] %v2366, 128
    %3237 = vxpose.xlu0.b32.cont [8/16] %v2371, 128
    %3238 = vxpose.xlu0.b32.cont [9/16] %v2376, 128
    %3239 = vxpose.xlu0.b32.cont [10/16] %v2381, 128
    %3240 = vxpose.xlu0.b32.cont [11/16] %v2386, 128
    %3241 = vxpose.xlu0.b32.cont [12/16] %v2391, 128
    %3242 = vxpose.xlu0.b32.cont [13/16] %v2396, 128
    %3243 = vxpose.xlu0.b32.cont [14/16] %v2401, 128
    %3244 = vxpose.xlu0.b32.cont [15/16] %v2406, 128
    %3245 = vxpose.xlu0.b32.end [16/16] %v2411, 128
    %v3246 = vpop.trf.xlu0
    %v3247 = vpop.trf.xlu0
    %v3248 = vpop.trf.xlu0
    %v3249 = vpop.trf.xlu0
    %v3250 = vpop.trf.xlu0
    %v3251 = vpop.trf.xlu0
    %v3252 = vpop.trf.xlu0
    %v3253 = vpop.trf.xlu0
    %v3254 = vpop.trf.xlu0
    %v3255 = vpop.trf.xlu0
    %v3256 = vpop.trf.xlu0
    %v3257 = vpop.trf.xlu0
    %v3258 = vpop.trf.xlu0
    %v3259 = vpop.trf.xlu0
    %v3260 = vpop.trf.xlu0
    %v3261 = vpop.trf.xlu0
    %3262 = vxpose.xlu0.b32.start [1/16] %v2416, 128
    %3263 = vxpose.xlu0.b32.cont [2/16] %v2421, 128
    %3264 = vxpose.xlu0.b32.cont [3/16] %v2426, 128
    %3265 = vxpose.xlu0.b32.cont [4/16] %v2431, 128
    %3266 = vxpose.xlu0.b32.cont [5/16] %v2436, 128
    %3267 = vxpose.xlu0.b32.cont [6/16] %v2441, 128
    %3268 = vxpose.xlu0.b32.cont [7/16] %v2446, 128
    %3269 = vxpose.xlu0.b32.cont [8/16] %v2451, 128
    %3270 = vxpose.xlu0.b32.cont [9/16] %v2456, 128
    %3271 = vxpose.xlu0.b32.cont [10/16] %v2461, 128
    %3272 = vxpose.xlu0.b32.cont [11/16] %v2466, 128
    %3273 = vxpose.xlu0.b32.cont [12/16] %v2471, 128
    %3274 = vxpose.xlu0.b32.cont [13/16] %v2476, 128
    %3275 = vxpose.xlu0.b32.cont [14/16] %v2481, 128
    %3276 = vxpose.xlu0.b32.cont [15/16] %v2486, 128
    %3277 = vxpose.xlu0.b32.end [16/16] %v2491, 128
    %v3278 = vpop.trf.xlu0
    %v3279 = vpop.trf.xlu0
    %v3280 = vpop.trf.xlu0
    %v3281 = vpop.trf.xlu0
    %v3282 = vpop.trf.xlu0
    %v3283 = vpop.trf.xlu0
    %v3284 = vpop.trf.xlu0
    %v3285 = vpop.trf.xlu0
    %v3286 = vpop.trf.xlu0
    %v3287 = vpop.trf.xlu0
    %v3288 = vpop.trf.xlu0
    %v3289 = vpop.trf.xlu0
    %v3290 = vpop.trf.xlu0
    %v3291 = vpop.trf.xlu0
    %v3292 = vpop.trf.xlu0
    %v3293 = vpop.trf.xlu0
    %3294 = vxpose.xlu0.b32.start [1/16] %v2496, 128
    %3295 = vxpose.xlu0.b32.cont [2/16] %v2501, 128
    %3296 = vxpose.xlu0.b32.cont [3/16] %v2506, 128
    %3297 = vxpose.xlu0.b32.cont [4/16] %v2511, 128
    %3298 = vxpose.xlu0.b32.cont [5/16] %v2516, 128
    %3299 = vxpose.xlu0.b32.cont [6/16] %v2521, 128
    %3300 = vxpose.xlu0.b32.cont [7/16] %v2526, 128
    %3301 = vxpose.xlu0.b32.cont [8/16] %v2531, 128
    %3302 = vxpose.xlu0.b32.cont [9/16] %v2536, 128
    %3303 = vxpose.xlu0.b32.cont [10/16] %v2541, 128
    %3304 = vxpose.xlu0.b32.cont [11/16] %v2546, 128
    %3305 = vxpose.xlu0.b32.cont [12/16] %v2551, 128
    %3306 = vxpose.xlu0.b32.cont [13/16] %v2556, 128
    %3307 = vxpose.xlu0.b32.cont [14/16] %v2561, 128
    %3308 = vxpose.xlu0.b32.cont [15/16] %v2566, 128
    %3309 = vxpose.xlu0.b32.end [16/16] %v2571, 128
    %v3310 = vpop.trf.xlu0
    %v3311 = vpop.trf.xlu0
    %v3312 = vpop.trf.xlu0
    %v3313 = vpop.trf.xlu0
    %v3314 = vpop.trf.xlu0
    %v3315 = vpop.trf.xlu0
    %v3316 = vpop.trf.xlu0
    %v3317 = vpop.trf.xlu0
    %v3318 = vpop.trf.xlu0
    %v3319 = vpop.trf.xlu0
    %v3320 = vpop.trf.xlu0
    %v3321 = vpop.trf.xlu0
    %v3322 = vpop.trf.xlu0
    %v3323 = vpop.trf.xlu0
    %v3324 = vpop.trf.xlu0
    %v3325 = vpop.trf.xlu0
    %3326 = vxpose.xlu0.b32.start [1/16] %v2576, 128
    %3327 = vxpose.xlu0.b32.cont [2/16] %v2581, 128
    %3328 = vxpose.xlu0.b32.cont [3/16] %v2586, 128
    %3329 = vxpose.xlu0.b32.cont [4/16] %v2591, 128
    %3330 = vxpose.xlu0.b32.cont [5/16] %v2596, 128
    %3331 = vxpose.xlu0.b32.cont [6/16] %v2601, 128
    %3332 = vxpose.xlu0.b32.cont [7/16] %v2606, 128
    %3333 = vxpose.xlu0.b32.cont [8/16] %v2611, 128
    %3334 = vxpose.xlu0.b32.cont [9/16] %v2616, 128
    %3335 = vxpose.xlu0.b32.cont [10/16] %v2621, 128
    %3336 = vxpose.xlu0.b32.cont [11/16] %v2626, 128
    %3337 = vxpose.xlu0.b32.cont [12/16] %v2631, 128
    %3338 = vxpose.xlu0.b32.cont [13/16] %v2636, 128
    %3339 = vxpose.xlu0.b32.cont [14/16] %v2641, 128
    %3340 = vxpose.xlu0.b32.cont [15/16] %v2646, 128
    %3341 = vxpose.xlu0.b32.end [16/16] %v2651, 128
    %v3342 = vpop.trf.xlu0
    %v3343 = vpop.trf.xlu0
    %v3344 = vpop.trf.xlu0
    %v3345 = vpop.trf.xlu0
    %v3346 = vpop.trf.xlu0
    %v3347 = vpop.trf.xlu0
    %v3348 = vpop.trf.xlu0
    %v3349 = vpop.trf.xlu0
    %v3350 = vpop.trf.xlu0
    %v3351 = vpop.trf.xlu0
    %v3352 = vpop.trf.xlu0
    %v3353 = vpop.trf.xlu0
    %v3354 = vpop.trf.xlu0
    %v3355 = vpop.trf.xlu0
    %v3356 = vpop.trf.xlu0
    %v3357 = vpop.trf.xlu0
    %3358 = vxpose.xlu0.b32.start [1/16] %v2656, 128
    %3359 = vxpose.xlu0.b32.cont [2/16] %v2661, 128
    %3360 = vxpose.xlu0.b32.cont [3/16] %v2666, 128
    %3361 = vxpose.xlu0.b32.cont [4/16] %v2671, 128
    %3362 = vxpose.xlu0.b32.cont [5/16] %v2676, 128
    %3363 = vxpose.xlu0.b32.cont [6/16] %v2681, 128
    %3364 = vxpose.xlu0.b32.cont [7/16] %v2686, 128
    %3365 = vxpose.xlu0.b32.cont [8/16] %v2691, 128
    %3366 = vxpose.xlu0.b32.cont [9/16] %v2696, 128
    %3367 = vxpose.xlu0.b32.cont [10/16] %v2701, 128
    %3368 = vxpose.xlu0.b32.cont [11/16] %v2706, 128
    %3369 = vxpose.xlu0.b32.cont [12/16] %v2711, 128
    %3370 = vxpose.xlu0.b32.cont [13/16] %v2716, 128
    %3371 = vxpose.xlu0.b32.cont [14/16] %v2721, 128
    %3372 = vxpose.xlu0.b32.cont [15/16] %v2726, 128
    %3373 = vxpose.xlu0.b32.end [16/16] %v2731, 128
    %v3374 = vpop.trf.xlu0
    %v3375 = vpop.trf.xlu0
    %v3376 = vpop.trf.xlu0
    %v3377 = vpop.trf.xlu0
    %v3378 = vpop.trf.xlu0
    %v3379 = vpop.trf.xlu0
    %v3380 = vpop.trf.xlu0
    %v3381 = vpop.trf.xlu0
    %v3382 = vpop.trf.xlu0
    %v3383 = vpop.trf.xlu0
    %v3384 = vpop.trf.xlu0
    %v3385 = vpop.trf.xlu0
    %v3386 = vpop.trf.xlu0
    %v3387 = vpop.trf.xlu0
    %v3388 = vpop.trf.xlu0
    %v3389 = vpop.trf.xlu0
    %3390 = vxpose.xlu0.b32.start [1/16] %v2736, 128
    %3391 = vxpose.xlu0.b32.cont [2/16] %v2741, 128
    %3392 = vxpose.xlu0.b32.cont [3/16] %v2746, 128
    %3393 = vxpose.xlu0.b32.cont [4/16] %v2751, 128
    %3394 = vxpose.xlu0.b32.cont [5/16] %v2756, 128
    %3395 = vxpose.xlu0.b32.cont [6/16] %v2761, 128
    %3396 = vxpose.xlu0.b32.cont [7/16] %v2766, 128
    %3397 = vxpose.xlu0.b32.cont [8/16] %v2771, 128
    %3398 = vxpose.xlu0.b32.cont [9/16] %v2776, 128
    %3399 = vxpose.xlu0.b32.cont [10/16] %v2781, 128
    %3400 = vxpose.xlu0.b32.cont [11/16] %v2786, 128
    %3401 = vxpose.xlu0.b32.cont [12/16] %v2791, 128
    %3402 = vxpose.xlu0.b32.cont [13/16] %v2796, 128
    %3403 = vxpose.xlu0.b32.cont [14/16] %v2801, 128
    %3404 = vxpose.xlu0.b32.cont [15/16] %v2806, 128
    %3405 = vxpose.xlu0.b32.end [16/16] %v2811, 128
    %v3406 = vpop.trf.xlu0
    %v3407 = vpop.trf.xlu0
    %v3408 = vpop.trf.xlu0
    %v3409 = vpop.trf.xlu0
    %v3410 = vpop.trf.xlu0
    %v3411 = vpop.trf.xlu0
    %v3412 = vpop.trf.xlu0
    %v3413 = vpop.trf.xlu0
    %v3414 = vpop.trf.xlu0
    %v3415 = vpop.trf.xlu0
    %v3416 = vpop.trf.xlu0
    %v3417 = vpop.trf.xlu0
    %v3418 = vpop.trf.xlu0
    %v3419 = vpop.trf.xlu0
    %v3420 = vpop.trf.xlu0
    %v3421 = vpop.trf.xlu0
    %3422 = vxpose.xlu0.b32.start [1/16] %v2816, 128
    %3423 = vxpose.xlu0.b32.cont [2/16] %v2821, 128
    %3424 = vxpose.xlu0.b32.cont [3/16] %v2826, 128
    %3425 = vxpose.xlu0.b32.cont [4/16] %v2831, 128
    %3426 = vxpose.xlu0.b32.cont [5/16] %v2836, 128
    %3427 = vxpose.xlu0.b32.cont [6/16] %v2841, 128
    %3428 = vxpose.xlu0.b32.cont [7/16] %v2846, 128
    %3429 = vxpose.xlu0.b32.cont [8/16] %v2851, 128
    %3430 = vxpose.xlu0.b32.cont [9/16] %v2856, 128
    %3431 = vxpose.xlu0.b32.cont [10/16] %v2861, 128
    %3432 = vxpose.xlu0.b32.cont [11/16] %v2866, 128
    %3433 = vxpose.xlu0.b32.cont [12/16] %v2871, 128
    %3434 = vxpose.xlu0.b32.cont [13/16] %v2876, 128
    %3435 = vxpose.xlu0.b32.cont [14/16] %v2881, 128
    %3436 = vxpose.xlu0.b32.cont [15/16] %v2886, 128
    %3437 = vxpose.xlu0.b32.end [16/16] %v2891, 128
    %v3438 = vpop.trf.xlu0
    %v3439 = vpop.trf.xlu0
    %v3440 = vpop.trf.xlu0
    %v3441 = vpop.trf.xlu0
    %v3442 = vpop.trf.xlu0
    %v3443 = vpop.trf.xlu0
    %v3444 = vpop.trf.xlu0
    %v3445 = vpop.trf.xlu0
    %v3446 = vpop.trf.xlu0
    %v3447 = vpop.trf.xlu0
    %v3448 = vpop.trf.xlu0
    %v3449 = vpop.trf.xlu0
    %v3450 = vpop.trf.xlu0
    %v3451 = vpop.trf.xlu0
    %v3452 = vpop.trf.xlu0
    %v3453 = vpop.trf.xlu0
    %3454 = vxpose.xlu0.b32.start [1/16] %v2896, 128
    %3455 = vxpose.xlu0.b32.cont [2/16] %v2901, 128
    %3456 = vxpose.xlu0.b32.cont [3/16] %v2906, 128
    %3457 = vxpose.xlu0.b32.cont [4/16] %v2911, 128
    %3458 = vxpose.xlu0.b32.cont [5/16] %v2916, 128
    %3459 = vxpose.xlu0.b32.cont [6/16] %v2921, 128
    %3460 = vxpose.xlu0.b32.cont [7/16] %v2926, 128
    %3461 = vxpose.xlu0.b32.cont [8/16] %v2931, 128
    %3462 = vxpose.xlu0.b32.cont [9/16] %v2936, 128
    %3463 = vxpose.xlu0.b32.cont [10/16] %v2941, 128
    %3464 = vxpose.xlu0.b32.cont [11/16] %v2946, 128
    %3465 = vxpose.xlu0.b32.cont [12/16] %v2951, 128
    %3466 = vxpose.xlu0.b32.cont [13/16] %v2956, 128
    %3467 = vxpose.xlu0.b32.cont [14/16] %v2961, 128
    %3468 = vxpose.xlu0.b32.cont [15/16] %v2966, 128
    %3469 = vxpose.xlu0.b32.end [16/16] %v2971, 128
    %v3470 = vpop.trf.xlu0
    %v3471 = vpop.trf.xlu0
    %v3472 = vpop.trf.xlu0
    %v3473 = vpop.trf.xlu0
    %v3474 = vpop.trf.xlu0
    %v3475 = vpop.trf.xlu0
    %v3476 = vpop.trf.xlu0
    %v3477 = vpop.trf.xlu0
    %v3478 = vpop.trf.xlu0
    %v3479 = vpop.trf.xlu0
    %v3480 = vpop.trf.xlu0
    %v3481 = vpop.trf.xlu0
    %v3482 = vpop.trf.xlu0
    %v3483 = vpop.trf.xlu0
    %v3484 = vpop.trf.xlu0
    %v3485 = vpop.trf.xlu0
    %v3486 = vmul.f32 %v2990, %v2990
    %v3487 = vmul.f32 %v2991, %v2991
    %v3488 = vmul.f32 %v3022, %v3022
    %v3489 = vmul.f32 %v3023, %v3023
    %v3490 = vmul.f32 %v3054, %v3054
    %v3491 = vmul.f32 %v3055, %v3055
    %v3492 = vmul.f32 %v3086, %v3086
    %v3493 = vmul.f32 %v3087, %v3087
    %v3494 = vmul.f32 %v3118, %v3118
    %v3495 = vmul.f32 %v3119, %v3119
    %v3496 = vmul.f32 %v3150, %v3150
    %v3497 = vmul.f32 %v3151, %v3151
    %v3498 = vmul.f32 %v3182, %v3182
    %v3499 = vmul.f32 %v3183, %v3183
    %v3500 = vmul.f32 %v3214, %v3214
    %v3501 = vmul.f32 %v3215, %v3215
    %v3502 = vmul.f32 %v3246, %v3246
    %v3503 = vmul.f32 %v3247, %v3247
    %v3504 = vmul.f32 %v3278, %v3278
    %v3505 = vmul.f32 %v3279, %v3279
    %v3506 = vmul.f32 %v3310, %v3310
    %v3507 = vmul.f32 %v3311, %v3311
    %v3508 = vmul.f32 %v3342, %v3342
    %v3509 = vmul.f32 %v3343, %v3343
    %v3510 = vmul.f32 %v3374, %v3374
    %v3511 = vmul.f32 %v3375, %v3375
    %v3512 = vmul.f32 %v3406, %v3406
    %v3513 = vmul.f32 %v3407, %v3407
    %v3514 = vmul.f32 %v3438, %v3438
    %v3515 = vmul.f32 %v3439, %v3439
    %v3516 = vmul.f32 %v3470, %v3470
    %v3517 = vmul.f32 %v3471, %v3471
    %v3518 = vmul.f32 %v2990, %v3246
    %v3519 = vmul.f32 %v2991, %v3247
    %v3520 = vmul.f32 %v3022, %v3278
    %v3521 = vmul.f32 %v3023, %v3279
    %v3522 = vmul.f32 %v3054, %v3310
    %v3523 = vmul.f32 %v3055, %v3311
    %v3524 = vmul.f32 %v3086, %v3342
    %v3525 = vmul.f32 %v3087, %v3343
    %v3526 = vmul.f32 %v3118, %v3374
    %v3527 = vmul.f32 %v3119, %v3375
    %v3528 = vmul.f32 %v3150, %v3406
    %v3529 = vmul.f32 %v3151, %v3407
    %v3530 = vmul.f32 %v3182, %v3438
    %v3531 = vmul.f32 %v3183, %v3439
    %v3532 = vmul.f32 %v3214, %v3470
    %v3533 = vmul.f32 %v3215, %v3471
    %v3534 = vmul.f32 %v91, %v91
    %v3535 = vmul.f32 %v92, %v92
    %v3536 = vmul.f32 %v93, %v93
    %v3537 = vmul.f32 %v94, %v94
    %v3538 = vmul.f32 %v95, %v95
    %v3539 = vmul.f32 %v96, %v96
    %v3540 = vmul.f32 %v97, %v97
    %v3541 = vmul.f32 %v98, %v98
    %v3542 = vmul.f32 %v99, %v99
    %v3543 = vmul.f32 %v100, %v100
    %v3544 = vmul.f32 %v101, %v101
    %v3545 = vmul.f32 %v102, %v102
    %v3546 = vmul.f32 %v103, %v103
    %v3547 = vmul.f32 %v104, %v104
    %v3548 = vmul.f32 %v105, %v105
    %v3549 = vmul.f32 %v106, %v106
    %v3550 = vmul.f32 %v107, %v107
    %v3551 = vmul.f32 %v108, %v108
    %v3552 = vmul.f32 %v109, %v109
    %v3553 = vmul.f32 %v110, %v110
    %v3554 = vmul.f32 %v111, %v111
    %v3555 = vmul.f32 %v112, %v112
    %v3556 = vmul.f32 %v113, %v113
    %v3557 = vmul.f32 %v114, %v114
    %v3558 = vmul.f32 %v115, %v115
    %v3559 = vmul.f32 %v116, %v116
    %v3560 = vmul.f32 %v117, %v117
    %v3561 = vmul.f32 %v118, %v118
    %v3562 = vmul.f32 %v119, %v119
    %v3563 = vmul.f32 %v120, %v120
    %v3564 = vmul.f32 %v121, %v121
    %v3565 = vmul.f32 %v122, %v122
    %v3566 = vmul.f32 %v91, %v107
    %v3567 = vmul.f32 %v92, %v108
    %v3568 = vmul.f32 %v93, %v109
    %v3569 = vmul.f32 %v94, %v110
    %v3570 = vmul.f32 %v95, %v111
    %v3571 = vmul.f32 %v96, %v112
    %v3572 = vmul.f32 %v97, %v113
    %v3573 = vmul.f32 %v98, %v114
    %v3574 = vmul.f32 %v99, %v115
    %v3575 = vmul.f32 %v100, %v116
    %v3576 = vmul.f32 %v101, %v117
    %v3577 = vmul.f32 %v102, %v118
    %v3578 = vmul.f32 %v103, %v119
    %v3579 = vmul.f32 %v104, %v120
    %v3580 = vmul.f32 %v105, %v121
    %v3581 = vmul.f32 %v106, %v122
    %3582 = vmatprep.subr.mxu0 0.0
    %3583 = vmatpush1.msra.mxu0 %v73
    %3584 = vmatprep.subr.mxu0 0.0
    %3585 = vmatpush1.msra.mxu0 %v74
    %3586 = vmatprep.subr.mxu0 0.0
    %3587 = vmatpush1.msra.mxu0 %v75
    %3588 = vmatprep.subr.mxu0 0.0
    %3589 = vmatpush1.msra.mxu0 %v76
    %3590 = vmatprep.subr.mxu0 0.0
    %3591 = vmatpush1.msra.mxu0 %v77
    %3592 = vmatprep.subr.mxu0 0.0
    %3593 = vmatpush1.msra.mxu0 %v78
    %3594 = vmatprep.subr.mxu0 0.0
    %3595 = vmatpush1.msra.mxu0 %v79
    %3596 = vmatprep.subr.mxu0 0.0
    %3597 = vmatpush1.msra.mxu0 %v80
    %3598 = vmatprep.subr.mxu0 0.0
    %3599 = vmatpush1.msra.mxu0 %v81
    %3600 = vmatprep.subr.mxu0 0.0
    %3601 = vmatpush1.msra.mxu0 %v82
    %3602 = vmatprep.subr.mxu0 0.0
    %3603 = vmatpush1.msra.mxu0 %v83
    %3604 = vmatprep.subr.mxu0 0.0
    %3605 = vmatpush1.msra.mxu0 %v84
    %3606 = vmatprep.subr.mxu0 0.0
    %3607 = vmatpush1.msra.mxu0 %v85
    %3608 = vmatprep.subr.mxu0 0.0
    %3609 = vmatpush1.msra.mxu0 %v86
    %3610 = vmatprep.subr.mxu0 0.0
    %3611 = vmatpush1.msra.mxu0 %v87
    %3612 = vmatprep.subr.mxu0 0.0
    %3613 = vmatpush1.msra.mxu0 %v88
    %3614 = vmatprep.subr.mxu0 0.0
    %3615 = vmatpush1.msra.mxu0 0.0
    %3616 = vmatprep.subr.mxu0 0.0
    %3617 = vmatpush1.msra.mxu0 0.0
    %3618 = vmatprep.subr.mxu0 0.0
    %3619 = vmatpush1.msra.mxu0 0.0
    %3620 = vmatprep.subr.mxu0 0.0
    %3621 = vmatpush1.msra.mxu0 0.0
    %3622 = vmatprep.subr.mxu0 0.0
    %3623 = vmatpush1.msra.mxu0 0.0
    %3624 = vmatprep.subr.mxu0 0.0
    %3625 = vmatpush1.msra.mxu0 0.0
    %3626 = vmatprep.subr.mxu0 0.0
    %3627 = vmatpush1.msra.mxu0 0.0
    %3628 = vmatprep.subr.mxu0 0.0
    %3629 = vmatpush1.msra.mxu0 0.0
    %3630 = vmatprep.subr.mxu0 0.0
    %3631 = vmatpush1.msra.mxu0 0.0
    %3632 = vmatprep.subr.mxu0 0.0
    %3633 = vmatpush1.msra.mxu0 0.0
    %3634 = vmatprep.subr.mxu0 0.0
    %3635 = vmatpush1.msra.mxu0 0.0
    %3636 = vmatprep.subr.mxu0 0.0
    %3637 = vmatpush1.msra.mxu0 0.0
    %3638 = vmatprep.subr.mxu0 0.0
    %3639 = vmatpush1.msra.mxu0 0.0
    %3640 = vmatprep.subr.mxu0 0.0
    %3641 = vmatpush1.msra.mxu0 0.0
    %3642 = vmatprep.subr.mxu0 0.0
    %3643 = vmatpush1.msra.mxu0 0.0
    %3644 = vmatprep.subr.mxu0 0.0
    %3645 = vmatpush1.msra.mxu0 0.0
    %3646 = vmatprep.mubr.f32.mxu0 0.0
    %3647 = vmatmul.mubr.f32.gmra.mrb[0].mxu0 %v3534
    %v3648 = vpop.f32.mrb[0].mxu0
    %v3649 = vadd.f32 0.0, %v3648
    %v3650 = vpop.f32.mrb[0].mxu0
    %3651 = vmatprep.mubr.f32.mxu0 0.0
    %3652 = vmatmul.mubr.f32.gmra.mrb[0].mxu0 %v3535
    %v3653 = vpop.f32.mrb[0].mxu0
    %v3654 = vadd.f32 0.0, %v3653
    %v3655 = vpop.f32.mrb[0].mxu0
    %3656 = vmatprep.mubr.f32.mxu0 0.0
    %3657 = vmatmul.mubr.f32.gmra.mrb[0].mxu0 %v3536
    %v3658 = vpop.f32.mrb[0].mxu0
    %v3659 = vadd.f32 0.0, %v3658
    %v3660 = vpop.f32.mrb[0].mxu0
    %3661 = vmatprep.mubr.f32.mxu0 0.0
    %3662 = vmatmul.mubr.f32.gmra.mrb[0].mxu0 %v3537
    %v3663 = vpop.f32.mrb[0].mxu0
    %v3664 = vadd.f32 0.0, %v3663
    %v3665 = vpop.f32.mrb[0].mxu0
    %3666 = vmatprep.mubr.f32.mxu0 0.0
    %3667 = vmatmul.mubr.f32.gmra.mrb[0].mxu0 %v3538
    %v3668 = vpop.f32.mrb[0].mxu0
    %v3669 = vadd.f32 0.0, %v3668
    %v3670 = vpop.f32.mrb[0].mxu0
    %3671 = vmatprep.mubr.f32.mxu0 0.0
    %3672 = vmatmul.mubr.f32.gmra.mrb[0].mxu0 %v3539
    %v3673 = vpop.f32.mrb[0].mxu0
    %v3674 = vadd.f32 0.0, %v3673
    %v3675 = vpop.f32.mrb[0].mxu0
    %3676 = vmatprep.mubr.f32.mxu0 0.0
    %3677 = vmatmul.mubr.f32.gmra.mrb[0].mxu0 %v3540
    %v3678 = vpop.f32.mrb[0].mxu0
    %v3679 = vadd.f32 0.0, %v3678
    %v3680 = vpop.f32.mrb[0].mxu0
    %3681 = vmatprep.mubr.f32.mxu0 0.0
    %3682 = vmatmul.mubr.f32.gmra.mrb[0].mxu0 %v3541
    %v3683 = vpop.f32.mrb[0].mxu0
    %v3684 = vadd.f32 0.0, %v3683
    %v3685 = vpop.f32.mrb[0].mxu0
    %3686 = vmatprep.mubr.f32.mxu0 0.0
    %3687 = vmatmul.mubr.f32.gmra.mrb[0].mxu0 %v3542
    %v3688 = vpop.f32.mrb[0].mxu0
    %v3689 = vadd.f32 0.0, %v3688
    %v3690 = vpop.f32.mrb[0].mxu0
    %3691 = vmatprep.mubr.f32.mxu0 0.0
    %3692 = vmatmul.mubr.f32.gmra.mrb[0].mxu0 %v3543
    %v3693 = vpop.f32.mrb[0].mxu0
    %v3694 = vadd.f32 0.0, %v3693
    %v3695 = vpop.f32.mrb[0].mxu0
    %3696 = vmatprep.mubr.f32.mxu0 0.0
    %3697 = vmatmul.mubr.f32.gmra.mrb[0].mxu0 %v3544
    %v3698 = vpop.f32.mrb[0].mxu0
    %v3699 = vadd.f32 0.0, %v3698
    %v3700 = vpop.f32.mrb[0].mxu0
    %3701 = vmatprep.mubr.f32.mxu0 0.0
    %3702 = vmatmul.mubr.f32.gmra.mrb[0].mxu0 %v3545
    %v3703 = vpop.f32.mrb[0].mxu0
    %v3704 = vadd.f32 0.0, %v3703
    %v3705 = vpop.f32.mrb[0].mxu0
    %3706 = vmatprep.mubr.f32.mxu0 0.0
    %3707 = vmatmul.mubr.f32.gmra.mrb[0].mxu0 %v3546
    %v3708 = vpop.f32.mrb[0].mxu0
    %v3709 = vadd.f32 0.0, %v3708
    %v3710 = vpop.f32.mrb[0].mxu0
    %3711 = vmatprep.mubr.f32.mxu0 0.0
    %3712 = vmatmul.mubr.f32.gmra.mrb[0].mxu0 %v3547
    %v3713 = vpop.f32.mrb[0].mxu0
    %v3714 = vadd.f32 0.0, %v3713
    %v3715 = vpop.f32.mrb[0].mxu0
    %3716 = vmatprep.mubr.f32.mxu0 0.0
    %3717 = vmatmul.mubr.f32.gmra.mrb[0].mxu0 %v3548
    %v3718 = vpop.f32.mrb[0].mxu0
    %v3719 = vadd.f32 0.0, %v3718
    %v3720 = vpop.f32.mrb[0].mxu0
    %3721 = vmatprep.mubr.f32.mxu0 0.0
    %3722 = vmatmul.mubr.f32.gmra.mrb[0].mxu0 %v3549
    %v3723 = vpop.f32.mrb[0].mxu0
    %v3724 = vadd.f32 0.0, %v3723
    %v3725 = vpop.f32.mrb[0].mxu0
    %3726 = vmatprep.mubr.f32.mxu0 0.0
    %3727 = vmatmul.mubr.f32.gmra.mrb[0].mxu0 %v3550
    %v3728 = vpop.f32.mrb[0].mxu0
    %v3729 = vadd.f32 0.0, %v3728
    %v3730 = vpop.f32.mrb[0].mxu0
    %3731 = vmatprep.mubr.f32.mxu0 0.0
    %3732 = vmatmul.mubr.f32.gmra.mrb[0].mxu0 %v3551
    %v3733 = vpop.f32.mrb[0].mxu0
    %v3734 = vadd.f32 0.0, %v3733
    %v3735 = vpop.f32.mrb[0].mxu0
    %3736 = vmatprep.mubr.f32.mxu0 0.0
    %3737 = vmatmul.mubr.f32.gmra.mrb[0].mxu0 %v3552
    %v3738 = vpop.f32.mrb[0].mxu0
    %v3739 = vadd.f32 0.0, %v3738
    %v3740 = vpop.f32.mrb[0].mxu0
    %3741 = vmatprep.mubr.f32.mxu0 0.0
    %3742 = vmatmul.mubr.f32.gmra.mrb[0].mxu0 %v3553
    %v3743 = vpop.f32.mrb[0].mxu0
    %v3744 = vadd.f32 0.0, %v3743
    %v3745 = vpop.f32.mrb[0].mxu0
    %3746 = vmatprep.mubr.f32.mxu0 0.0
    %3747 = vmatmul.mubr.f32.gmra.mrb[0].mxu0 %v3554
    %v3748 = vpop.f32.mrb[0].mxu0
    %v3749 = vadd.f32 0.0, %v3748
    %v3750 = vpop.f32.mrb[0].mxu0
    %3751 = vmatprep.mubr.f32.mxu0 0.0
    %3752 = vmatmul.mubr.f32.gmra.mrb[0].mxu0 %v3555
    %v3753 = vpop.f32.mrb[0].mxu0
    %v3754 = vadd.f32 0.0, %v3753
    %v3755 = vpop.f32.mrb[0].mxu0
    %3756 = vmatprep.mubr.f32.mxu0 0.0
    %3757 = vmatmul.mubr.f32.gmra.mrb[0].mxu0 %v3556
    %v3758 = vpop.f32.mrb[0].mxu0
    %v3759 = vadd.f32 0.0, %v3758
    %v3760 = vpop.f32.mrb[0].mxu0
    %3761 = vmatprep.mubr.f32.mxu0 0.0
    %3762 = vmatmul.mubr.f32.gmra.mrb[0].mxu0 %v3557
    %v3763 = vpop.f32.mrb[0].mxu0
    %v3764 = vadd.f32 0.0, %v3763
    %v3765 = vpop.f32.mrb[0].mxu0
    %3766 = vmatprep.mubr.f32.mxu0 0.0
    %3767 = vmatmul.mubr.f32.gmra.mrb[0].mxu0 %v3558
    %v3768 = vpop.f32.mrb[0].mxu0
    %v3769 = vadd.f32 0.0, %v3768
    %v3770 = vpop.f32.mrb[0].mxu0
    %3771 = vmatprep.mubr.f32.mxu0 0.0
    %3772 = vmatmul.mubr.f32.gmra.mrb[0].mxu0 %v3559
    %v3773 = vpop.f32.mrb[0].mxu0
    %v3774 = vadd.f32 0.0, %v3773
    %v3775 = vpop.f32.mrb[0].mxu0
    %3776 = vmatprep.mubr.f32.mxu0 0.0
    %3777 = vmatmul.mubr.f32.gmra.mrb[0].mxu0 %v3560
    %v3778 = vpop.f32.mrb[0].mxu0
    %v3779 = vadd.f32 0.0, %v3778
    %v3780 = vpop.f32.mrb[0].mxu0
    %3781 = vmatprep.mubr.f32.mxu0 0.0
    %3782 = vmatmul.mubr.f32.gmra.mrb[0].mxu0 %v3561
    %v3783 = vpop.f32.mrb[0].mxu0
    %v3784 = vadd.f32 0.0, %v3783
    %v3785 = vpop.f32.mrb[0].mxu0
    %3786 = vmatprep.mubr.f32.mxu0 0.0
    %3787 = vmatmul.mubr.f32.gmra.mrb[0].mxu0 %v3562
    %v3788 = vpop.f32.mrb[0].mxu0
    %v3789 = vadd.f32 0.0, %v3788
    %v3790 = vpop.f32.mrb[0].mxu0
    %3791 = vmatprep.mubr.f32.mxu0 0.0
    %3792 = vmatmul.mubr.f32.gmra.mrb[0].mxu0 %v3563
    %v3793 = vpop.f32.mrb[0].mxu0
    %v3794 = vadd.f32 0.0, %v3793
    %v3795 = vpop.f32.mrb[0].mxu0
    %3796 = vmatprep.mubr.f32.mxu0 0.0
    %3797 = vmatmul.mubr.f32.gmra.mrb[0].mxu0 %v3564
    %v3798 = vpop.f32.mrb[0].mxu0
    %v3799 = vadd.f32 0.0, %v3798
    %v3800 = vpop.f32.mrb[0].mxu0
    %3801 = vmatprep.mubr.f32.mxu0 0.0
    %3802 = vmatmul.mubr.f32.gmra.mrb[0].mxu0 %v3565
    %v3803 = vpop.f32.mrb[0].mxu0
    %v3804 = vadd.f32 0.0, %v3803
    %v3805 = vpop.f32.mrb[0].mxu0
    %3806 = vmatprep.mubr.f32.mxu0 0.0
    %3807 = vmatmul.mubr.f32.gmra.mrb[0].mxu0 %v3566
    %v3808 = vpop.f32.mrb[0].mxu0
    %v3809 = vadd.f32 0.0, %v3808
    %v3810 = vpop.f32.mrb[0].mxu0
    %3811 = vmatprep.mubr.f32.mxu0 0.0
    %3812 = vmatmul.mubr.f32.gmra.mrb[0].mxu0 %v3567
    %v3813 = vpop.f32.mrb[0].mxu0
    %v3814 = vadd.f32 0.0, %v3813
    %v3815 = vpop.f32.mrb[0].mxu0
    %3816 = vmatprep.mubr.f32.mxu0 0.0
    %3817 = vmatmul.mubr.f32.gmra.mrb[0].mxu0 %v3568
    %v3818 = vpop.f32.mrb[0].mxu0
    %v3819 = vadd.f32 0.0, %v3818
    %v3820 = vpop.f32.mrb[0].mxu0
    %3821 = vmatprep.mubr.f32.mxu0 0.0
    %3822 = vmatmul.mubr.f32.gmra.mrb[0].mxu0 %v3569
    %v3823 = vpop.f32.mrb[0].mxu0
    %v3824 = vadd.f32 0.0, %v3823
    %v3825 = vpop.f32.mrb[0].mxu0
    %3826 = vmatprep.mubr.f32.mxu0 0.0
    %3827 = vmatmul.mubr.f32.gmra.mrb[0].mxu0 %v3570
    %v3828 = vpop.f32.mrb[0].mxu0
    %v3829 = vadd.f32 0.0, %v3828
    %v3830 = vpop.f32.mrb[0].mxu0
    %3831 = vmatprep.mubr.f32.mxu0 0.0
    %3832 = vmatmul.mubr.f32.gmra.mrb[0].mxu0 %v3571
    %v3833 = vpop.f32.mrb[0].mxu0
    %v3834 = vadd.f32 0.0, %v3833
    %v3835 = vpop.f32.mrb[0].mxu0
    %3836 = vmatprep.mubr.f32.mxu0 0.0
    %3837 = vmatmul.mubr.f32.gmra.mrb[0].mxu0 %v3572
    %v3838 = vpop.f32.mrb[0].mxu0
    %v3839 = vadd.f32 0.0, %v3838
    %v3840 = vpop.f32.mrb[0].mxu0
    %3841 = vmatprep.mubr.f32.mxu0 0.0
    %3842 = vmatmul.mubr.f32.gmra.mrb[0].mxu0 %v3573
    %v3843 = vpop.f32.mrb[0].mxu0
    %v3844 = vadd.f32 0.0, %v3843
    %v3845 = vpop.f32.mrb[0].mxu0
    %3846 = vmatprep.mubr.f32.mxu0 0.0
    %3847 = vmatmul.mubr.f32.gmra.mrb[0].mxu0 %v3574
    %v3848 = vpop.f32.mrb[0].mxu0
    %v3849 = vadd.f32 0.0, %v3848
    %v3850 = vpop.f32.mrb[0].mxu0
    %3851 = vmatprep.mubr.f32.mxu0 0.0
    %3852 = vmatmul.mubr.f32.gmra.mrb[0].mxu0 %v3575
    %v3853 = vpop.f32.mrb[0].mxu0
    %v3854 = vadd.f32 0.0, %v3853
    %v3855 = vpop.f32.mrb[0].mxu0
    %3856 = vmatprep.mubr.f32.mxu0 0.0
    %3857 = vmatmul.mubr.f32.gmra.mrb[0].mxu0 %v3576
    %v3858 = vpop.f32.mrb[0].mxu0
    %v3859 = vadd.f32 0.0, %v3858
    %v3860 = vpop.f32.mrb[0].mxu0
    %3861 = vmatprep.mubr.f32.mxu0 0.0
    %3862 = vmatmul.mubr.f32.gmra.mrb[0].mxu0 %v3577
    %v3863 = vpop.f32.mrb[0].mxu0
    %v3864 = vadd.f32 0.0, %v3863
    %v3865 = vpop.f32.mrb[0].mxu0
    %3866 = vmatprep.mubr.f32.mxu0 0.0
    %3867 = vmatmul.mubr.f32.gmra.mrb[0].mxu0 %v3578
    %v3868 = vpop.f32.mrb[0].mxu0
    %v3869 = vadd.f32 0.0, %v3868
    %v3870 = vpop.f32.mrb[0].mxu0
    %3871 = vmatprep.mubr.f32.mxu0 0.0
    %3872 = vmatmul.mubr.f32.gmra.mrb[0].mxu0 %v3579
    %v3873 = vpop.f32.mrb[0].mxu0
    %v3874 = vadd.f32 0.0, %v3873
    %v3875 = vpop.f32.mrb[0].mxu0
    %3876 = vmatprep.mubr.f32.mxu0 0.0
    %3877 = vmatmul.mubr.f32.gmra.mrb[0].mxu0 %v3580
    %v3878 = vpop.f32.mrb[0].mxu0
    %v3879 = vadd.f32 0.0, %v3878
    %v3880 = vpop.f32.mrb[0].mxu0
    %3881 = vmatprep.mubr.f32.mxu0 0.0
    %3882 = vmatmul.mubr.f32.gmra.mrb[0].mxu0 %v3581
    %v3883 = vpop.f32.mrb[0].mxu0
    %v3884 = vadd.f32 0.0, %v3883
    %v3885 = vpop.f32.mrb[0].mxu0
    %3886 = vdwg.mxu0
    %3887 = vxpose.xlu0.b32.start [1/16] %v3649, 128
    %3888 = vxpose.xlu0.b32.cont [2/16] %v3654, 128
    %3889 = vxpose.xlu0.b32.cont [3/16] 0.0, 128
    %3890 = vxpose.xlu0.b32.cont [4/16] 0.0, 128
    %3891 = vxpose.xlu0.b32.cont [5/16] 0.0, 128
    %3892 = vxpose.xlu0.b32.cont [6/16] 0.0, 128
    %3893 = vxpose.xlu0.b32.cont [7/16] 0.0, 128
    %3894 = vxpose.xlu0.b32.cont [8/16] 0.0, 128
    %3895 = vxpose.xlu0.b32.cont [9/16] 0.0, 128
    %3896 = vxpose.xlu0.b32.cont [10/16] 0.0, 128
    %3897 = vxpose.xlu0.b32.cont [11/16] 0.0, 128
    %3898 = vxpose.xlu0.b32.cont [12/16] 0.0, 128
    %3899 = vxpose.xlu0.b32.cont [13/16] 0.0, 128
    %3900 = vxpose.xlu0.b32.cont [14/16] 0.0, 128
    %3901 = vxpose.xlu0.b32.cont [15/16] 0.0, 128
    %3902 = vxpose.xlu0.b32.end [16/16] 0.0, 128
    %v3903 = vpop.trf.xlu0
    %v3904 = vpop.trf.xlu0
    %v3905 = vpop.trf.xlu0
    %v3906 = vpop.trf.xlu0
    %v3907 = vpop.trf.xlu0
    %v3908 = vpop.trf.xlu0
    %v3909 = vpop.trf.xlu0
    %v3910 = vpop.trf.xlu0
    %v3911 = vpop.trf.xlu0
    %v3912 = vpop.trf.xlu0
    %v3913 = vpop.trf.xlu0
    %v3914 = vpop.trf.xlu0
    %v3915 = vpop.trf.xlu0
    %v3916 = vpop.trf.xlu0
    %v3917 = vpop.trf.xlu0
    %v3918 = vpop.trf.xlu0
    %3919 = vxpose.xlu0.b32.start [1/16] %v3659, 128
    %3920 = vxpose.xlu0.b32.cont [2/16] %v3664, 128
    %3921 = vxpose.xlu0.b32.cont [3/16] 0.0, 128
    %3922 = vxpose.xlu0.b32.cont [4/16] 0.0, 128
    %3923 = vxpose.xlu0.b32.cont [5/16] 0.0, 128
    %3924 = vxpose.xlu0.b32.cont [6/16] 0.0, 128
    %3925 = vxpose.xlu0.b32.cont [7/16] 0.0, 128
    %3926 = vxpose.xlu0.b32.cont [8/16] 0.0, 128
    %3927 = vxpose.xlu0.b32.cont [9/16] 0.0, 128
    %3928 = vxpose.xlu0.b32.cont [10/16] 0.0, 128
    %3929 = vxpose.xlu0.b32.cont [11/16] 0.0, 128
    %3930 = vxpose.xlu0.b32.cont [12/16] 0.0, 128
    %3931 = vxpose.xlu0.b32.cont [13/16] 0.0, 128
    %3932 = vxpose.xlu0.b32.cont [14/16] 0.0, 128
    %3933 = vxpose.xlu0.b32.cont [15/16] 0.0, 128
    %3934 = vxpose.xlu0.b32.end [16/16] 0.0, 128
    %v3935 = vpop.trf.xlu0
    %v3936 = vpop.trf.xlu0
    %v3937 = vpop.trf.xlu0
    %v3938 = vpop.trf.xlu0
    %v3939 = vpop.trf.xlu0
    %v3940 = vpop.trf.xlu0
    %v3941 = vpop.trf.xlu0
    %v3942 = vpop.trf.xlu0
    %v3943 = vpop.trf.xlu0
    %v3944 = vpop.trf.xlu0
    %v3945 = vpop.trf.xlu0
    %v3946 = vpop.trf.xlu0
    %v3947 = vpop.trf.xlu0
    %v3948 = vpop.trf.xlu0
    %v3949 = vpop.trf.xlu0
    %v3950 = vpop.trf.xlu0
    %3951 = vxpose.xlu0.b32.start [1/16] %v3669, 128
    %3952 = vxpose.xlu0.b32.cont [2/16] %v3674, 128
    %3953 = vxpose.xlu0.b32.cont [3/16] 0.0, 128
    %3954 = vxpose.xlu0.b32.cont [4/16] 0.0, 128
    %3955 = vxpose.xlu0.b32.cont [5/16] 0.0, 128
    %3956 = vxpose.xlu0.b32.cont [6/16] 0.0, 128
    %3957 = vxpose.xlu0.b32.cont [7/16] 0.0, 128
    %3958 = vxpose.xlu0.b32.cont [8/16] 0.0, 128
    %3959 = vxpose.xlu0.b32.cont [9/16] 0.0, 128
    %3960 = vxpose.xlu0.b32.cont [10/16] 0.0, 128
    %3961 = vxpose.xlu0.b32.cont [11/16] 0.0, 128
    %3962 = vxpose.xlu0.b32.cont [12/16] 0.0, 128
    %3963 = vxpose.xlu0.b32.cont [13/16] 0.0, 128
    %3964 = vxpose.xlu0.b32.cont [14/16] 0.0, 128
    %3965 = vxpose.xlu0.b32.cont [15/16] 0.0, 128
    %3966 = vxpose.xlu0.b32.end [16/16] 0.0, 128
    %v3967 = vpop.trf.xlu0
    %v3968 = vpop.trf.xlu0
    %v3969 = vpop.trf.xlu0
    %v3970 = vpop.trf.xlu0
    %v3971 = vpop.trf.xlu0
    %v3972 = vpop.trf.xlu0
    %v3973 = vpop.trf.xlu0
    %v3974 = vpop.trf.xlu0
    %v3975 = vpop.trf.xlu0
    %v3976 = vpop.trf.xlu0
    %v3977 = vpop.trf.xlu0
    %v3978 = vpop.trf.xlu0
    %v3979 = vpop.trf.xlu0
    %v3980 = vpop.trf.xlu0
    %v3981 = vpop.trf.xlu0
    %v3982 = vpop.trf.xlu0
    %3983 = vxpose.xlu0.b32.start [1/16] %v3679, 128
    %3984 = vxpose.xlu0.b32.cont [2/16] %v3684, 128
    %3985 = vxpose.xlu0.b32.cont [3/16] 0.0, 128
    %3986 = vxpose.xlu0.b32.cont [4/16] 0.0, 128
    %3987 = vxpose.xlu0.b32.cont [5/16] 0.0, 128
    %3988 = vxpose.xlu0.b32.cont [6/16] 0.0, 128
    %3989 = vxpose.xlu0.b32.cont [7/16] 0.0, 128
    %3990 = vxpose.xlu0.b32.cont [8/16] 0.0, 128
    %3991 = vxpose.xlu0.b32.cont [9/16] 0.0, 128
    %3992 = vxpose.xlu0.b32.cont [10/16] 0.0, 128
    %3993 = vxpose.xlu0.b32.cont [11/16] 0.0, 128
    %3994 = vxpose.xlu0.b32.cont [12/16] 0.0, 128
    %3995 = vxpose.xlu0.b32.cont [13/16] 0.0, 128
    %3996 = vxpose.xlu0.b32.cont [14/16] 0.0, 128
    %3997 = vxpose.xlu0.b32.cont [15/16] 0.0, 128
    %3998 = vxpose.xlu0.b32.end [16/16] 0.0, 128
    %v3999 = vpop.trf.xlu0
    %v4000 = vpop.trf.xlu0
    %v4001 = vpop.trf.xlu0
    %v4002 = vpop.trf.xlu0
    %v4003 = vpop.trf.xlu0
    %v4004 = vpop.trf.xlu0
    %v4005 = vpop.trf.xlu0
    %v4006 = vpop.trf.xlu0
    %v4007 = vpop.trf.xlu0
    %v4008 = vpop.trf.xlu0
    %v4009 = vpop.trf.xlu0
    %v4010 = vpop.trf.xlu0
    %v4011 = vpop.trf.xlu0
    %v4012 = vpop.trf.xlu0
    %v4013 = vpop.trf.xlu0
    %v4014 = vpop.trf.xlu0
    %4015 = vxpose.xlu0.b32.start [1/16] %v3689, 128
    %4016 = vxpose.xlu0.b32.cont [2/16] %v3694, 128
    %4017 = vxpose.xlu0.b32.cont [3/16] 0.0, 128
    %4018 = vxpose.xlu0.b32.cont [4/16] 0.0, 128
    %4019 = vxpose.xlu0.b32.cont [5/16] 0.0, 128
    %4020 = vxpose.xlu0.b32.cont [6/16] 0.0, 128
    %4021 = vxpose.xlu0.b32.cont [7/16] 0.0, 128
    %4022 = vxpose.xlu0.b32.cont [8/16] 0.0, 128
    %4023 = vxpose.xlu0.b32.cont [9/16] 0.0, 128
    %4024 = vxpose.xlu0.b32.cont [10/16] 0.0, 128
    %4025 = vxpose.xlu0.b32.cont [11/16] 0.0, 128
    %4026 = vxpose.xlu0.b32.cont [12/16] 0.0, 128
    %4027 = vxpose.xlu0.b32.cont [13/16] 0.0, 128
    %4028 = vxpose.xlu0.b32.cont [14/16] 0.0, 128
    %4029 = vxpose.xlu0.b32.cont [15/16] 0.0, 128
    %4030 = vxpose.xlu0.b32.end [16/16] 0.0, 128
    %v4031 = vpop.trf.xlu0
    %v4032 = vpop.trf.xlu0
    %v4033 = vpop.trf.xlu0
    %v4034 = vpop.trf.xlu0
    %v4035 = vpop.trf.xlu0
    %v4036 = vpop.trf.xlu0
    %v4037 = vpop.trf.xlu0
    %v4038 = vpop.trf.xlu0
    %v4039 = vpop.trf.xlu0
    %v4040 = vpop.trf.xlu0
    %v4041 = vpop.trf.xlu0
    %v4042 = vpop.trf.xlu0
    %v4043 = vpop.trf.xlu0
    %v4044 = vpop.trf.xlu0
    %v4045 = vpop.trf.xlu0
    %v4046 = vpop.trf.xlu0
    %4047 = vxpose.xlu0.b32.start [1/16] %v3699, 128
    %4048 = vxpose.xlu0.b32.cont [2/16] %v3704, 128
    %4049 = vxpose.xlu0.b32.cont [3/16] 0.0, 128
    %4050 = vxpose.xlu0.b32.cont [4/16] 0.0, 128
    %4051 = vxpose.xlu0.b32.cont [5/16] 0.0, 128
    %4052 = vxpose.xlu0.b32.cont [6/16] 0.0, 128
    %4053 = vxpose.xlu0.b32.cont [7/16] 0.0, 128
    %4054 = vxpose.xlu0.b32.cont [8/16] 0.0, 128
    %4055 = vxpose.xlu0.b32.cont [9/16] 0.0, 128
    %4056 = vxpose.xlu0.b32.cont [10/16] 0.0, 128
    %4057 = vxpose.xlu0.b32.cont [11/16] 0.0, 128
    %4058 = vxpose.xlu0.b32.cont [12/16] 0.0, 128
    %4059 = vxpose.xlu0.b32.cont [13/16] 0.0, 128
    %4060 = vxpose.xlu0.b32.cont [14/16] 0.0, 128
    %4061 = vxpose.xlu0.b32.cont [15/16] 0.0, 128
    %4062 = vxpose.xlu0.b32.end [16/16] 0.0, 128
    %v4063 = vpop.trf.xlu0
    %v4064 = vpop.trf.xlu0
    %v4065 = vpop.trf.xlu0
    %v4066 = vpop.trf.xlu0
    %v4067 = vpop.trf.xlu0
    %v4068 = vpop.trf.xlu0
    %v4069 = vpop.trf.xlu0
    %v4070 = vpop.trf.xlu0
    %v4071 = vpop.trf.xlu0
    %v4072 = vpop.trf.xlu0
    %v4073 = vpop.trf.xlu0
    %v4074 = vpop.trf.xlu0
    %v4075 = vpop.trf.xlu0
    %v4076 = vpop.trf.xlu0
    %v4077 = vpop.trf.xlu0
    %v4078 = vpop.trf.xlu0
    %4079 = vxpose.xlu0.b32.start [1/16] %v3709, 128
    %4080 = vxpose.xlu0.b32.cont [2/16] %v3714, 128
    %4081 = vxpose.xlu0.b32.cont [3/16] 0.0, 128
    %4082 = vxpose.xlu0.b32.cont [4/16] 0.0, 128
    %4083 = vxpose.xlu0.b32.cont [5/16] 0.0, 128
    %4084 = vxpose.xlu0.b32.cont [6/16] 0.0, 128
    %4085 = vxpose.xlu0.b32.cont [7/16] 0.0, 128
    %4086 = vxpose.xlu0.b32.cont [8/16] 0.0, 128
    %4087 = vxpose.xlu0.b32.cont [9/16] 0.0, 128
    %4088 = vxpose.xlu0.b32.cont [10/16] 0.0, 128
    %4089 = vxpose.xlu0.b32.cont [11/16] 0.0, 128
    %4090 = vxpose.xlu0.b32.cont [12/16] 0.0, 128
    %4091 = vxpose.xlu0.b32.cont [13/16] 0.0, 128
    %4092 = vxpose.xlu0.b32.cont [14/16] 0.0, 128
    %4093 = vxpose.xlu0.b32.cont [15/16] 0.0, 128
    %4094 = vxpose.xlu0.b32.end [16/16] 0.0, 128
    %v4095 = vpop.trf.xlu0
    %v4096 = vpop.trf.xlu0
    %v4097 = vpop.trf.xlu0
    %v4098 = vpop.trf.xlu0
    %v4099 = vpop.trf.xlu0
    %v4100 = vpop.trf.xlu0
    %v4101 = vpop.trf.xlu0
    %v4102 = vpop.trf.xlu0
    %v4103 = vpop.trf.xlu0
    %v4104 = vpop.trf.xlu0
    %v4105 = vpop.trf.xlu0
    %v4106 = vpop.trf.xlu0
    %v4107 = vpop.trf.xlu0
    %v4108 = vpop.trf.xlu0
    %v4109 = vpop.trf.xlu0
    %v4110 = vpop.trf.xlu0
    %4111 = vxpose.xlu0.b32.start [1/16] %v3719, 128
    %4112 = vxpose.xlu0.b32.cont [2/16] %v3724, 128
    %4113 = vxpose.xlu0.b32.cont [3/16] 0.0, 128
    %4114 = vxpose.xlu0.b32.cont [4/16] 0.0, 128
    %4115 = vxpose.xlu0.b32.cont [5/16] 0.0, 128
    %4116 = vxpose.xlu0.b32.cont [6/16] 0.0, 128
    %4117 = vxpose.xlu0.b32.cont [7/16] 0.0, 128
    %4118 = vxpose.xlu0.b32.cont [8/16] 0.0, 128
    %4119 = vxpose.xlu0.b32.cont [9/16] 0.0, 128
    %4120 = vxpose.xlu0.b32.cont [10/16] 0.0, 128
    %4121 = vxpose.xlu0.b32.cont [11/16] 0.0, 128
    %4122 = vxpose.xlu0.b32.cont [12/16] 0.0, 128
    %4123 = vxpose.xlu0.b32.cont [13/16] 0.0, 128
    %4124 = vxpose.xlu0.b32.cont [14/16] 0.0, 128
    %4125 = vxpose.xlu0.b32.cont [15/16] 0.0, 128
    %4126 = vxpose.xlu0.b32.end [16/16] 0.0, 128
    %v4127 = vpop.trf.xlu0
    %v4128 = vpop.trf.xlu0
    %v4129 = vpop.trf.xlu0
    %v4130 = vpop.trf.xlu0
    %v4131 = vpop.trf.xlu0
    %v4132 = vpop.trf.xlu0
    %v4133 = vpop.trf.xlu0
    %v4134 = vpop.trf.xlu0
    %v4135 = vpop.trf.xlu0
    %v4136 = vpop.trf.xlu0
    %v4137 = vpop.trf.xlu0
    %v4138 = vpop.trf.xlu0
    %v4139 = vpop.trf.xlu0
    %v4140 = vpop.trf.xlu0
    %v4141 = vpop.trf.xlu0
    %v4142 = vpop.trf.xlu0
    %4143 = vxpose.xlu0.b32.start [1/16] %v3729, 128
    %4144 = vxpose.xlu0.b32.cont [2/16] %v3734, 128
    %4145 = vxpose.xlu0.b32.cont [3/16] 0.0, 128
    %4146 = vxpose.xlu0.b32.cont [4/16] 0.0, 128
    %4147 = vxpose.xlu0.b32.cont [5/16] 0.0, 128
    %4148 = vxpose.xlu0.b32.cont [6/16] 0.0, 128
    %4149 = vxpose.xlu0.b32.cont [7/16] 0.0, 128
    %4150 = vxpose.xlu0.b32.cont [8/16] 0.0, 128
    %4151 = vxpose.xlu0.b32.cont [9/16] 0.0, 128
    %4152 = vxpose.xlu0.b32.cont [10/16] 0.0, 128
    %4153 = vxpose.xlu0.b32.cont [11/16] 0.0, 128
    %4154 = vxpose.xlu0.b32.cont [12/16] 0.0, 128
    %4155 = vxpose.xlu0.b32.cont [13/16] 0.0, 128
    %4156 = vxpose.xlu0.b32.cont [14/16] 0.0, 128
    %4157 = vxpose.xlu0.b32.cont [15/16] 0.0, 128
    %4158 = vxpose.xlu0.b32.end [16/16] 0.0, 128
    %v4159 = vpop.trf.xlu0
    %v4160 = vpop.trf.xlu0
    %v4161 = vpop.trf.xlu0
    %v4162 = vpop.trf.xlu0
    %v4163 = vpop.trf.xlu0
    %v4164 = vpop.trf.xlu0
    %v4165 = vpop.trf.xlu0
    %v4166 = vpop.trf.xlu0
    %v4167 = vpop.trf.xlu0
    %v4168 = vpop.trf.xlu0
    %v4169 = vpop.trf.xlu0
    %v4170 = vpop.trf.xlu0
    %v4171 = vpop.trf.xlu0
    %v4172 = vpop.trf.xlu0
    %v4173 = vpop.trf.xlu0
    %v4174 = vpop.trf.xlu0
    %4175 = vxpose.xlu0.b32.start [1/16] %v3739, 128
    %4176 = vxpose.xlu0.b32.cont [2/16] %v3744, 128
    %4177 = vxpose.xlu0.b32.cont [3/16] 0.0, 128
    %4178 = vxpose.xlu0.b32.cont [4/16] 0.0, 128
    %4179 = vxpose.xlu0.b32.cont [5/16] 0.0, 128
    %4180 = vxpose.xlu0.b32.cont [6/16] 0.0, 128
    %4181 = vxpose.xlu0.b32.cont [7/16] 0.0, 128
    %4182 = vxpose.xlu0.b32.cont [8/16] 0.0, 128
    %4183 = vxpose.xlu0.b32.cont [9/16] 0.0, 128
    %4184 = vxpose.xlu0.b32.cont [10/16] 0.0, 128
    %4185 = vxpose.xlu0.b32.cont [11/16] 0.0, 128
    %4186 = vxpose.xlu0.b32.cont [12/16] 0.0, 128
    %4187 = vxpose.xlu0.b32.cont [13/16] 0.0, 128
    %4188 = vxpose.xlu0.b32.cont [14/16] 0.0, 128
    %4189 = vxpose.xlu0.b32.cont [15/16] 0.0, 128
    %4190 = vxpose.xlu0.b32.end [16/16] 0.0, 128
    %v4191 = vpop.trf.xlu0
    %v4192 = vpop.trf.xlu0
    %v4193 = vpop.trf.xlu0
    %v4194 = vpop.trf.xlu0
    %v4195 = vpop.trf.xlu0
    %v4196 = vpop.trf.xlu0
    %v4197 = vpop.trf.xlu0
    %v4198 = vpop.trf.xlu0
    %v4199 = vpop.trf.xlu0
    %v4200 = vpop.trf.xlu0
    %v4201 = vpop.trf.xlu0
    %v4202 = vpop.trf.xlu0
    %v4203 = vpop.trf.xlu0
    %v4204 = vpop.trf.xlu0
    %v4205 = vpop.trf.xlu0
    %v4206 = vpop.trf.xlu0
    %4207 = vxpose.xlu0.b32.start [1/16] %v3749, 128
    %4208 = vxpose.xlu0.b32.cont [2/16] %v3754, 128
    %4209 = vxpose.xlu0.b32.cont [3/16] 0.0, 128
    %4210 = vxpose.xlu0.b32.cont [4/16] 0.0, 128
    %4211 = vxpose.xlu0.b32.cont [5/16] 0.0, 128
    %4212 = vxpose.xlu0.b32.cont [6/16] 0.0, 128
    %4213 = vxpose.xlu0.b32.cont [7/16] 0.0, 128
    %4214 = vxpose.xlu0.b32.cont [8/16] 0.0, 128
    %4215 = vxpose.xlu0.b32.cont [9/16] 0.0, 128
    %4216 = vxpose.xlu0.b32.cont [10/16] 0.0, 128
    %4217 = vxpose.xlu0.b32.cont [11/16] 0.0, 128
    %4218 = vxpose.xlu0.b32.cont [12/16] 0.0, 128
    %4219 = vxpose.xlu0.b32.cont [13/16] 0.0, 128
    %4220 = vxpose.xlu0.b32.cont [14/16] 0.0, 128
    %4221 = vxpose.xlu0.b32.cont [15/16] 0.0, 128
    %4222 = vxpose.xlu0.b32.end [16/16] 0.0, 128
    %v4223 = vpop.trf.xlu0
    %v4224 = vpop.trf.xlu0
    %v4225 = vpop.trf.xlu0
    %v4226 = vpop.trf.xlu0
    %v4227 = vpop.trf.xlu0
    %v4228 = vpop.trf.xlu0
    %v4229 = vpop.trf.xlu0
    %v4230 = vpop.trf.xlu0
    %v4231 = vpop.trf.xlu0
    %v4232 = vpop.trf.xlu0
    %v4233 = vpop.trf.xlu0
    %v4234 = vpop.trf.xlu0
    %v4235 = vpop.trf.xlu0
    %v4236 = vpop.trf.xlu0
    %v4237 = vpop.trf.xlu0
    %v4238 = vpop.trf.xlu0
    %4239 = vxpose.xlu0.b32.start [1/16] %v3759, 128
    %4240 = vxpose.xlu0.b32.cont [2/16] %v3764, 128
    %4241 = vxpose.xlu0.b32.cont [3/16] 0.0, 128
    %4242 = vxpose.xlu0.b32.cont [4/16] 0.0, 128
    %4243 = vxpose.xlu0.b32.cont [5/16] 0.0, 128
    %4244 = vxpose.xlu0.b32.cont [6/16] 0.0, 128
    %4245 = vxpose.xlu0.b32.cont [7/16] 0.0, 128
    %4246 = vxpose.xlu0.b32.cont [8/16] 0.0, 128
    %4247 = vxpose.xlu0.b32.cont [9/16] 0.0, 128
    %4248 = vxpose.xlu0.b32.cont [10/16] 0.0, 128
    %4249 = vxpose.xlu0.b32.cont [11/16] 0.0, 128
    %4250 = vxpose.xlu0.b32.cont [12/16] 0.0, 128
    %4251 = vxpose.xlu0.b32.cont [13/16] 0.0, 128
    %4252 = vxpose.xlu0.b32.cont [14/16] 0.0, 128
    %4253 = vxpose.xlu0.b32.cont [15/16] 0.0, 128
    %4254 = vxpose.xlu0.b32.end [16/16] 0.0, 128
    %v4255 = vpop.trf.xlu0
    %v4256 = vpop.trf.xlu0
    %v4257 = vpop.trf.xlu0
    %v4258 = vpop.trf.xlu0
    %v4259 = vpop.trf.xlu0
    %v4260 = vpop.trf.xlu0
    %v4261 = vpop.trf.xlu0
    %v4262 = vpop.trf.xlu0
    %v4263 = vpop.trf.xlu0
    %v4264 = vpop.trf.xlu0
    %v4265 = vpop.trf.xlu0
    %v4266 = vpop.trf.xlu0
    %v4267 = vpop.trf.xlu0
    %v4268 = vpop.trf.xlu0
    %v4269 = vpop.trf.xlu0
    %v4270 = vpop.trf.xlu0
    %4271 = vxpose.xlu0.b32.start [1/16] %v3769, 128
    %4272 = vxpose.xlu0.b32.cont [2/16] %v3774, 128
    %4273 = vxpose.xlu0.b32.cont [3/16] 0.0, 128
    %4274 = vxpose.xlu0.b32.cont [4/16] 0.0, 128
    %4275 = vxpose.xlu0.b32.cont [5/16] 0.0, 128
    %4276 = vxpose.xlu0.b32.cont [6/16] 0.0, 128
    %4277 = vxpose.xlu0.b32.cont [7/16] 0.0, 128
    %4278 = vxpose.xlu0.b32.cont [8/16] 0.0, 128
    %4279 = vxpose.xlu0.b32.cont [9/16] 0.0, 128
    %4280 = vxpose.xlu0.b32.cont [10/16] 0.0, 128
    %4281 = vxpose.xlu0.b32.cont [11/16] 0.0, 128
    %4282 = vxpose.xlu0.b32.cont [12/16] 0.0, 128
    %4283 = vxpose.xlu0.b32.cont [13/16] 0.0, 128
    %4284 = vxpose.xlu0.b32.cont [14/16] 0.0, 128
    %4285 = vxpose.xlu0.b32.cont [15/16] 0.0, 128
    %4286 = vxpose.xlu0.b32.end [16/16] 0.0, 128
    %v4287 = vpop.trf.xlu0
    %v4288 = vpop.trf.xlu0
    %v4289 = vpop.trf.xlu0
    %v4290 = vpop.trf.xlu0
    %v4291 = vpop.trf.xlu0
    %v4292 = vpop.trf.xlu0
    %v4293 = vpop.trf.xlu0
    %v4294 = vpop.trf.xlu0
    %v4295 = vpop.trf.xlu0
    %v4296 = vpop.trf.xlu0
    %v4297 = vpop.trf.xlu0
    %v4298 = vpop.trf.xlu0
    %v4299 = vpop.trf.xlu0
    %v4300 = vpop.trf.xlu0
    %v4301 = vpop.trf.xlu0
    %v4302 = vpop.trf.xlu0
    %4303 = vxpose.xlu0.b32.start [1/16] %v3779, 128
    %4304 = vxpose.xlu0.b32.cont [2/16] %v3784, 128
    %4305 = vxpose.xlu0.b32.cont [3/16] 0.0, 128
    %4306 = vxpose.xlu0.b32.cont [4/16] 0.0, 128
    %4307 = vxpose.xlu0.b32.cont [5/16] 0.0, 128
    %4308 = vxpose.xlu0.b32.cont [6/16] 0.0, 128
    %4309 = vxpose.xlu0.b32.cont [7/16] 0.0, 128
    %4310 = vxpose.xlu0.b32.cont [8/16] 0.0, 128
    %4311 = vxpose.xlu0.b32.cont [9/16] 0.0, 128
    %4312 = vxpose.xlu0.b32.cont [10/16] 0.0, 128
    %4313 = vxpose.xlu0.b32.cont [11/16] 0.0, 128
    %4314 = vxpose.xlu0.b32.cont [12/16] 0.0, 128
    %4315 = vxpose.xlu0.b32.cont [13/16] 0.0, 128
    %4316 = vxpose.xlu0.b32.cont [14/16] 0.0, 128
    %4317 = vxpose.xlu0.b32.cont [15/16] 0.0, 128
    %4318 = vxpose.xlu0.b32.end [16/16] 0.0, 128
    %v4319 = vpop.trf.xlu0
    %v4320 = vpop.trf.xlu0
    %v4321 = vpop.trf.xlu0
    %v4322 = vpop.trf.xlu0
    %v4323 = vpop.trf.xlu0
    %v4324 = vpop.trf.xlu0
    %v4325 = vpop.trf.xlu0
    %v4326 = vpop.trf.xlu0
    %v4327 = vpop.trf.xlu0
    %v4328 = vpop.trf.xlu0
    %v4329 = vpop.trf.xlu0
    %v4330 = vpop.trf.xlu0
    %v4331 = vpop.trf.xlu0
    %v4332 = vpop.trf.xlu0
    %v4333 = vpop.trf.xlu0
    %v4334 = vpop.trf.xlu0
    %4335 = vxpose.xlu0.b32.start [1/16] %v3789, 128
    %4336 = vxpose.xlu0.b32.cont [2/16] %v3794, 128
    %4337 = vxpose.xlu0.b32.cont [3/16] 0.0, 128
    %4338 = vxpose.xlu0.b32.cont [4/16] 0.0, 128
    %4339 = vxpose.xlu0.b32.cont [5/16] 0.0, 128
    %4340 = vxpose.xlu0.b32.cont [6/16] 0.0, 128
    %4341 = vxpose.xlu0.b32.cont [7/16] 0.0, 128
    %4342 = vxpose.xlu0.b32.cont [8/16] 0.0, 128
    %4343 = vxpose.xlu0.b32.cont [9/16] 0.0, 128
    %4344 = vxpose.xlu0.b32.cont [10/16] 0.0, 128
    %4345 = vxpose.xlu0.b32.cont [11/16] 0.0, 128
    %4346 = vxpose.xlu0.b32.cont [12/16] 0.0, 128
    %4347 = vxpose.xlu0.b32.cont [13/16] 0.0, 128
    %4348 = vxpose.xlu0.b32.cont [14/16] 0.0, 128
    %4349 = vxpose.xlu0.b32.cont [15/16] 0.0, 128
    %4350 = vxpose.xlu0.b32.end [16/16] 0.0, 128
    %v4351 = vpop.trf.xlu0
    %v4352 = vpop.trf.xlu0
    %v4353 = vpop.trf.xlu0
    %v4354 = vpop.trf.xlu0
    %v4355 = vpop.trf.xlu0
    %v4356 = vpop.trf.xlu0
    %v4357 = vpop.trf.xlu0
    %v4358 = vpop.trf.xlu0
    %v4359 = vpop.trf.xlu0
    %v4360 = vpop.trf.xlu0
    %v4361 = vpop.trf.xlu0
    %v4362 = vpop.trf.xlu0
    %v4363 = vpop.trf.xlu0
    %v4364 = vpop.trf.xlu0
    %v4365 = vpop.trf.xlu0
    %v4366 = vpop.trf.xlu0
    %4367 = vxpose.xlu0.b32.start [1/16] %v3799, 128
    %4368 = vxpose.xlu0.b32.cont [2/16] %v3804, 128
    %4369 = vxpose.xlu0.b32.cont [3/16] 0.0, 128
    %4370 = vxpose.xlu0.b32.cont [4/16] 0.0, 128
    %4371 = vxpose.xlu0.b32.cont [5/16] 0.0, 128
    %4372 = vxpose.xlu0.b32.cont [6/16] 0.0, 128
    %4373 = vxpose.xlu0.b32.cont [7/16] 0.0, 128
    %4374 = vxpose.xlu0.b32.cont [8/16] 0.0, 128
    %4375 = vxpose.xlu0.b32.cont [9/16] 0.0, 128
    %4376 = vxpose.xlu0.b32.cont [10/16] 0.0, 128
    %4377 = vxpose.xlu0.b32.cont [11/16] 0.0, 128
    %4378 = vxpose.xlu0.b32.cont [12/16] 0.0, 128
    %4379 = vxpose.xlu0.b32.cont [13/16] 0.0, 128
    %4380 = vxpose.xlu0.b32.cont [14/16] 0.0, 128
    %4381 = vxpose.xlu0.b32.cont [15/16] 0.0, 128
    %4382 = vxpose.xlu0.b32.end [16/16] 0.0, 128
    %v4383 = vpop.trf.xlu0
    %v4384 = vpop.trf.xlu0
    %v4385 = vpop.trf.xlu0
    %v4386 = vpop.trf.xlu0
    %v4387 = vpop.trf.xlu0
    %v4388 = vpop.trf.xlu0
    %v4389 = vpop.trf.xlu0
    %v4390 = vpop.trf.xlu0
    %v4391 = vpop.trf.xlu0
    %v4392 = vpop.trf.xlu0
    %v4393 = vpop.trf.xlu0
    %v4394 = vpop.trf.xlu0
    %v4395 = vpop.trf.xlu0
    %v4396 = vpop.trf.xlu0
    %v4397 = vpop.trf.xlu0
    %v4398 = vpop.trf.xlu0
    %4399 = vxpose.xlu0.b32.start [1/16] %v3809, 128
    %4400 = vxpose.xlu0.b32.cont [2/16] %v3814, 128
    %4401 = vxpose.xlu0.b32.cont [3/16] 0.0, 128
    %4402 = vxpose.xlu0.b32.cont [4/16] 0.0, 128
    %4403 = vxpose.xlu0.b32.cont [5/16] 0.0, 128
    %4404 = vxpose.xlu0.b32.cont [6/16] 0.0, 128
    %4405 = vxpose.xlu0.b32.cont [7/16] 0.0, 128
    %4406 = vxpose.xlu0.b32.cont [8/16] 0.0, 128
    %4407 = vxpose.xlu0.b32.cont [9/16] 0.0, 128
    %4408 = vxpose.xlu0.b32.cont [10/16] 0.0, 128
    %4409 = vxpose.xlu0.b32.cont [11/16] 0.0, 128
    %4410 = vxpose.xlu0.b32.cont [12/16] 0.0, 128
    %4411 = vxpose.xlu0.b32.cont [13/16] 0.0, 128
    %4412 = vxpose.xlu0.b32.cont [14/16] 0.0, 128
    %4413 = vxpose.xlu0.b32.cont [15/16] 0.0, 128
    %4414 = vxpose.xlu0.b32.end [16/16] 0.0, 128
    %v4415 = vpop.trf.xlu0
    %v4416 = vpop.trf.xlu0
    %v4417 = vpop.trf.xlu0
    %v4418 = vpop.trf.xlu0
    %v4419 = vpop.trf.xlu0
    %v4420 = vpop.trf.xlu0
    %v4421 = vpop.trf.xlu0
    %v4422 = vpop.trf.xlu0
    %v4423 = vpop.trf.xlu0
    %v4424 = vpop.trf.xlu0
    %v4425 = vpop.trf.xlu0
    %v4426 = vpop.trf.xlu0
    %v4427 = vpop.trf.xlu0
    %v4428 = vpop.trf.xlu0
    %v4429 = vpop.trf.xlu0
    %v4430 = vpop.trf.xlu0
    %4431 = vxpose.xlu0.b32.start [1/16] %v3819, 128
    %4432 = vxpose.xlu0.b32.cont [2/16] %v3824, 128
    %4433 = vxpose.xlu0.b32.cont [3/16] 0.0, 128
    %4434 = vxpose.xlu0.b32.cont [4/16] 0.0, 128
    %4435 = vxpose.xlu0.b32.cont [5/16] 0.0, 128
    %4436 = vxpose.xlu0.b32.cont [6/16] 0.0, 128
    %4437 = vxpose.xlu0.b32.cont [7/16] 0.0, 128
    %4438 = vxpose.xlu0.b32.cont [8/16] 0.0, 128
    %4439 = vxpose.xlu0.b32.cont [9/16] 0.0, 128
    %4440 = vxpose.xlu0.b32.cont [10/16] 0.0, 128
    %4441 = vxpose.xlu0.b32.cont [11/16] 0.0, 128
    %4442 = vxpose.xlu0.b32.cont [12/16] 0.0, 128
    %4443 = vxpose.xlu0.b32.cont [13/16] 0.0, 128
    %4444 = vxpose.xlu0.b32.cont [14/16] 0.0, 128
    %4445 = vxpose.xlu0.b32.cont [15/16] 0.0, 128
    %4446 = vxpose.xlu0.b32.end [16/16] 0.0, 128
    %v4447 = vpop.trf.xlu0
    %v4448 = vpop.trf.xlu0
    %v4449 = vpop.trf.xlu0
    %v4450 = vpop.trf.xlu0
    %v4451 = vpop.trf.xlu0
    %v4452 = vpop.trf.xlu0
    %v4453 = vpop.trf.xlu0
    %v4454 = vpop.trf.xlu0
    %v4455 = vpop.trf.xlu0
    %v4456 = vpop.trf.xlu0
    %v4457 = vpop.trf.xlu0
    %v4458 = vpop.trf.xlu0
    %v4459 = vpop.trf.xlu0
    %v4460 = vpop.trf.xlu0
    %v4461 = vpop.trf.xlu0
    %v4462 = vpop.trf.xlu0
    %4463 = vxpose.xlu0.b32.start [1/16] %v3829, 128
    %4464 = vxpose.xlu0.b32.cont [2/16] %v3834, 128
    %4465 = vxpose.xlu0.b32.cont [3/16] 0.0, 128
    %4466 = vxpose.xlu0.b32.cont [4/16] 0.0, 128
    %4467 = vxpose.xlu0.b32.cont [5/16] 0.0, 128
    %4468 = vxpose.xlu0.b32.cont [6/16] 0.0, 128
    %4469 = vxpose.xlu0.b32.cont [7/16] 0.0, 128
    %4470 = vxpose.xlu0.b32.cont [8/16] 0.0, 128
    %4471 = vxpose.xlu0.b32.cont [9/16] 0.0, 128
    %4472 = vxpose.xlu0.b32.cont [10/16] 0.0, 128
    %4473 = vxpose.xlu0.b32.cont [11/16] 0.0, 128
    %4474 = vxpose.xlu0.b32.cont [12/16] 0.0, 128
    %4475 = vxpose.xlu0.b32.cont [13/16] 0.0, 128
    %4476 = vxpose.xlu0.b32.cont [14/16] 0.0, 128
    %4477 = vxpose.xlu0.b32.cont [15/16] 0.0, 128
    %4478 = vxpose.xlu0.b32.end [16/16] 0.0, 128
    %v4479 = vpop.trf.xlu0
    %v4480 = vpop.trf.xlu0
    %v4481 = vpop.trf.xlu0
    %v4482 = vpop.trf.xlu0
    %v4483 = vpop.trf.xlu0
    %v4484 = vpop.trf.xlu0
    %v4485 = vpop.trf.xlu0
    %v4486 = vpop.trf.xlu0
    %v4487 = vpop.trf.xlu0
    %v4488 = vpop.trf.xlu0
    %v4489 = vpop.trf.xlu0
    %v4490 = vpop.trf.xlu0
    %v4491 = vpop.trf.xlu0
    %v4492 = vpop.trf.xlu0
    %v4493 = vpop.trf.xlu0
    %v4494 = vpop.trf.xlu0
    %4495 = vxpose.xlu0.b32.start [1/16] %v3839, 128
    %4496 = vxpose.xlu0.b32.cont [2/16] %v3844, 128
    %4497 = vxpose.xlu0.b32.cont [3/16] 0.0, 128
    %4498 = vxpose.xlu0.b32.cont [4/16] 0.0, 128
    %4499 = vxpose.xlu0.b32.cont [5/16] 0.0, 128
    %4500 = vxpose.xlu0.b32.cont [6/16] 0.0, 128
    %4501 = vxpose.xlu0.b32.cont [7/16] 0.0, 128
    %4502 = vxpose.xlu0.b32.cont [8/16] 0.0, 128
    %4503 = vxpose.xlu0.b32.cont [9/16] 0.0, 128
    %4504 = vxpose.xlu0.b32.cont [10/16] 0.0, 128
    %4505 = vxpose.xlu0.b32.cont [11/16] 0.0, 128
    %4506 = vxpose.xlu0.b32.cont [12/16] 0.0, 128
    %4507 = vxpose.xlu0.b32.cont [13/16] 0.0, 128
    %4508 = vxpose.xlu0.b32.cont [14/16] 0.0, 128
    %4509 = vxpose.xlu0.b32.cont [15/16] 0.0, 128
    %4510 = vxpose.xlu0.b32.end [16/16] 0.0, 128
    %v4511 = vpop.trf.xlu0
    %v4512 = vpop.trf.xlu0
    %v4513 = vpop.trf.xlu0
    %v4514 = vpop.trf.xlu0
    %v4515 = vpop.trf.xlu0
    %v4516 = vpop.trf.xlu0
    %v4517 = vpop.trf.xlu0
    %v4518 = vpop.trf.xlu0
    %v4519 = vpop.trf.xlu0
    %v4520 = vpop.trf.xlu0
    %v4521 = vpop.trf.xlu0
    %v4522 = vpop.trf.xlu0
    %v4523 = vpop.trf.xlu0
    %v4524 = vpop.trf.xlu0
    %v4525 = vpop.trf.xlu0
    %v4526 = vpop.trf.xlu0
    %4527 = vxpose.xlu0.b32.start [1/16] %v3849, 128
    %4528 = vxpose.xlu0.b32.cont [2/16] %v3854, 128
    %4529 = vxpose.xlu0.b32.cont [3/16] 0.0, 128
    %4530 = vxpose.xlu0.b32.cont [4/16] 0.0, 128
    %4531 = vxpose.xlu0.b32.cont [5/16] 0.0, 128
    %4532 = vxpose.xlu0.b32.cont [6/16] 0.0, 128
    %4533 = vxpose.xlu0.b32.cont [7/16] 0.0, 128
    %4534 = vxpose.xlu0.b32.cont [8/16] 0.0, 128
    %4535 = vxpose.xlu0.b32.cont [9/16] 0.0, 128
    %4536 = vxpose.xlu0.b32.cont [10/16] 0.0, 128
    %4537 = vxpose.xlu0.b32.cont [11/16] 0.0, 128
    %4538 = vxpose.xlu0.b32.cont [12/16] 0.0, 128
    %4539 = vxpose.xlu0.b32.cont [13/16] 0.0, 128
    %4540 = vxpose.xlu0.b32.cont [14/16] 0.0, 128
    %4541 = vxpose.xlu0.b32.cont [15/16] 0.0, 128
    %4542 = vxpose.xlu0.b32.end [16/16] 0.0, 128
    %v4543 = vpop.trf.xlu0
    %v4544 = vpop.trf.xlu0
    %v4545 = vpop.trf.xlu0
    %v4546 = vpop.trf.xlu0
    %v4547 = vpop.trf.xlu0
    %v4548 = vpop.trf.xlu0
    %v4549 = vpop.trf.xlu0
    %v4550 = vpop.trf.xlu0
    %v4551 = vpop.trf.xlu0
    %v4552 = vpop.trf.xlu0
    %v4553 = vpop.trf.xlu0
    %v4554 = vpop.trf.xlu0
    %v4555 = vpop.trf.xlu0
    %v4556 = vpop.trf.xlu0
    %v4557 = vpop.trf.xlu0
    %v4558 = vpop.trf.xlu0
    %4559 = vxpose.xlu0.b32.start [1/16] %v3859, 128
    %4560 = vxpose.xlu0.b32.cont [2/16] %v3864, 128
    %4561 = vxpose.xlu0.b32.cont [3/16] 0.0, 128
    %4562 = vxpose.xlu0.b32.cont [4/16] 0.0, 128
    %4563 = vxpose.xlu0.b32.cont [5/16] 0.0, 128
    %4564 = vxpose.xlu0.b32.cont [6/16] 0.0, 128
    %4565 = vxpose.xlu0.b32.cont [7/16] 0.0, 128
    %4566 = vxpose.xlu0.b32.cont [8/16] 0.0, 128
    %4567 = vxpose.xlu0.b32.cont [9/16] 0.0, 128
    %4568 = vxpose.xlu0.b32.cont [10/16] 0.0, 128
    %4569 = vxpose.xlu0.b32.cont [11/16] 0.0, 128
    %4570 = vxpose.xlu0.b32.cont [12/16] 0.0, 128
    %4571 = vxpose.xlu0.b32.cont [13/16] 0.0, 128
    %4572 = vxpose.xlu0.b32.cont [14/16] 0.0, 128
    %4573 = vxpose.xlu0.b32.cont [15/16] 0.0, 128
    %4574 = vxpose.xlu0.b32.end [16/16] 0.0, 128
    %v4575 = vpop.trf.xlu0
    %v4576 = vpop.trf.xlu0
    %v4577 = vpop.trf.xlu0
    %v4578 = vpop.trf.xlu0
    %v4579 = vpop.trf.xlu0
    %v4580 = vpop.trf.xlu0
    %v4581 = vpop.trf.xlu0
    %v4582 = vpop.trf.xlu0
    %v4583 = vpop.trf.xlu0
    %v4584 = vpop.trf.xlu0
    %v4585 = vpop.trf.xlu0
    %v4586 = vpop.trf.xlu0
    %v4587 = vpop.trf.xlu0
    %v4588 = vpop.trf.xlu0
    %v4589 = vpop.trf.xlu0
    %v4590 = vpop.trf.xlu0
    %4591 = vxpose.xlu0.b32.start [1/16] %v3869, 128
    %4592 = vxpose.xlu0.b32.cont [2/16] %v3874, 128
    %4593 = vxpose.xlu0.b32.cont [3/16] 0.0, 128
    %4594 = vxpose.xlu0.b32.cont [4/16] 0.0, 128
    %4595 = vxpose.xlu0.b32.cont [5/16] 0.0, 128
    %4596 = vxpose.xlu0.b32.cont [6/16] 0.0, 128
    %4597 = vxpose.xlu0.b32.cont [7/16] 0.0, 128
    %4598 = vxpose.xlu0.b32.cont [8/16] 0.0, 128
    %4599 = vxpose.xlu0.b32.cont [9/16] 0.0, 128
    %4600 = vxpose.xlu0.b32.cont [10/16] 0.0, 128
    %4601 = vxpose.xlu0.b32.cont [11/16] 0.0, 128
    %4602 = vxpose.xlu0.b32.cont [12/16] 0.0, 128
    %4603 = vxpose.xlu0.b32.cont [13/16] 0.0, 128
    %4604 = vxpose.xlu0.b32.cont [14/16] 0.0, 128
    %4605 = vxpose.xlu0.b32.cont [15/16] 0.0, 128
    %4606 = vxpose.xlu0.b32.end [16/16] 0.0, 128
    %v4607 = vpop.trf.xlu0
    %v4608 = vpop.trf.xlu0
    %v4609 = vpop.trf.xlu0
    %v4610 = vpop.trf.xlu0
    %v4611 = vpop.trf.xlu0
    %v4612 = vpop.trf.xlu0
    %v4613 = vpop.trf.xlu0
    %v4614 = vpop.trf.xlu0
    %v4615 = vpop.trf.xlu0
    %v4616 = vpop.trf.xlu0
    %v4617 = vpop.trf.xlu0
    %v4618 = vpop.trf.xlu0
    %v4619 = vpop.trf.xlu0
    %v4620 = vpop.trf.xlu0
    %v4621 = vpop.trf.xlu0
    %v4622 = vpop.trf.xlu0
    %4623 = vxpose.xlu0.b32.start [1/16] %v3879, 128
    %4624 = vxpose.xlu0.b32.cont [2/16] %v3884, 128
    %4625 = vxpose.xlu0.b32.cont [3/16] 0.0, 128
    %4626 = vxpose.xlu0.b32.cont [4/16] 0.0, 128
    %4627 = vxpose.xlu0.b32.cont [5/16] 0.0, 128
    %4628 = vxpose.xlu0.b32.cont [6/16] 0.0, 128
    %4629 = vxpose.xlu0.b32.cont [7/16] 0.0, 128
    %4630 = vxpose.xlu0.b32.cont [8/16] 0.0, 128
    %4631 = vxpose.xlu0.b32.cont [9/16] 0.0, 128
    %4632 = vxpose.xlu0.b32.cont [10/16] 0.0, 128
    %4633 = vxpose.xlu0.b32.cont [11/16] 0.0, 128
    %4634 = vxpose.xlu0.b32.cont [12/16] 0.0, 128
    %4635 = vxpose.xlu0.b32.cont [13/16] 0.0, 128
    %4636 = vxpose.xlu0.b32.cont [14/16] 0.0, 128
    %4637 = vxpose.xlu0.b32.cont [15/16] 0.0, 128
    %4638 = vxpose.xlu0.b32.end [16/16] 0.0, 128
    %v4639 = vpop.trf.xlu0
    %v4640 = vpop.trf.xlu0
    %v4641 = vpop.trf.xlu0
    %v4642 = vpop.trf.xlu0
    %v4643 = vpop.trf.xlu0
    %v4644 = vpop.trf.xlu0
    %v4645 = vpop.trf.xlu0
    %v4646 = vpop.trf.xlu0
    %v4647 = vpop.trf.xlu0
    %v4648 = vpop.trf.xlu0
    %v4649 = vpop.trf.xlu0
    %v4650 = vpop.trf.xlu0
    %v4651 = vpop.trf.xlu0
    %v4652 = vpop.trf.xlu0
    %v4653 = vpop.trf.xlu0
    %v4654 = vpop.trf.xlu0
    %v4656 = vsel %vm860, %v3903, 0
    %v4659 = vsel %vm860, %v3904, 0
    %v4662 = vsel %vm860, %v3905, 0
    %v4665 = vsel %vm860, %v3906, 0
    %v4668 = vsel %vm860, %v3907, 0
    %v4671 = vsel %vm860, %v3908, 0
    %v4674 = vsel %vm860, %v3909, 0
    %v4677 = vsel %vm860, %v3910, 0
    %v4680 = vsel %vm860, %v3911, 0
    %v4683 = vsel %vm860, %v3912, 0
    %v4686 = vsel %vm860, %v3913, 0
    %v4689 = vsel %vm860, %v3914, 0
    %v4692 = vsel %vm860, %v3915, 0
    %v4695 = vsel %vm860, %v3916, 0
    %v4698 = vsel %vm860, %v3917, 0
    %v4701 = vsel %vm860, %v3918, 0
    %v4704 = vsel %vm860, %v3935, 0
    %v4707 = vsel %vm860, %v3936, 0
    %v4710 = vsel %vm860, %v3937, 0
    %v4713 = vsel %vm860, %v3938, 0
    %v4716 = vsel %vm860, %v3939, 0
    %v4719 = vsel %vm860, %v3940, 0
    %v4722 = vsel %vm860, %v3941, 0
    %v4725 = vsel %vm860, %v3942, 0
    %v4728 = vsel %vm860, %v3943, 0
    %v4731 = vsel %vm860, %v3944, 0
    %v4734 = vsel %vm860, %v3945, 0
    %v4737 = vsel %vm860, %v3946, 0
    %v4740 = vsel %vm860, %v3947, 0
    %v4743 = vsel %vm860, %v3948, 0
    %v4746 = vsel %vm860, %v3949, 0
    %v4749 = vsel %vm860, %v3950, 0
    %v4752 = vsel %vm860, %v3967, 0
    %v4755 = vsel %vm860, %v3968, 0
    %v4758 = vsel %vm860, %v3969, 0
    %v4761 = vsel %vm860, %v3970, 0
    %v4764 = vsel %vm860, %v3971, 0
    %v4767 = vsel %vm860, %v3972, 0
    %v4770 = vsel %vm860, %v3973, 0
    %v4773 = vsel %vm860, %v3974, 0
    %v4776 = vsel %vm860, %v3975, 0
    %v4779 = vsel %vm860, %v3976, 0
    %v4782 = vsel %vm860, %v3977, 0
    %v4785 = vsel %vm860, %v3978, 0
    %v4788 = vsel %vm860, %v3979, 0
    %v4791 = vsel %vm860, %v3980, 0
    %v4794 = vsel %vm860, %v3981, 0
    %v4797 = vsel %vm860, %v3982, 0
    %v4800 = vsel %vm860, %v3999, 0
    %v4803 = vsel %vm860, %v4000, 0
    %v4806 = vsel %vm860, %v4001, 0
    %v4809 = vsel %vm860, %v4002, 0
    %v4812 = vsel %vm860, %v4003, 0
    %v4815 = vsel %vm860, %v4004, 0
    %v4818 = vsel %vm860, %v4005, 0
    %v4821 = vsel %vm860, %v4006, 0
    %v4824 = vsel %vm860, %v4007, 0
    %v4827 = vsel %vm860, %v4008, 0
    %v4830 = vsel %vm860, %v4009, 0
    %v4833 = vsel %vm860, %v4010, 0
    %v4836 = vsel %vm860, %v4011, 0
    %v4839 = vsel %vm860, %v4012, 0
    %v4842 = vsel %vm860, %v4013, 0
    %v4845 = vsel %vm860, %v4014, 0
    %v4848 = vsel %vm860, %v4031, 0
    %v4851 = vsel %vm860, %v4032, 0
    %v4854 = vsel %vm860, %v4033, 0
    %v4857 = vsel %vm860, %v4034, 0
    %v4860 = vsel %vm860, %v4035, 0
    %v4863 = vsel %vm860, %v4036, 0
    %v4866 = vsel %vm860, %v4037, 0
    %v4869 = vsel %vm860, %v4038, 0
    %v4872 = vsel %vm860, %v4039, 0
    %v4875 = vsel %vm860, %v4040, 0
    %v4878 = vsel %vm860, %v4041, 0
    %v4881 = vsel %vm860, %v4042, 0
    %v4884 = vsel %vm860, %v4043, 0
    %v4887 = vsel %vm860, %v4044, 0
    %v4890 = vsel %vm860, %v4045, 0
    %v4893 = vsel %vm860, %v4046, 0
    %v4896 = vsel %vm860, %v4063, 0
    %v4899 = vsel %vm860, %v4064, 0
    %v4902 = vsel %vm860, %v4065, 0
    %v4905 = vsel %vm860, %v4066, 0
    %v4908 = vsel %vm860, %v4067, 0
    %v4911 = vsel %vm860, %v4068, 0
    %v4914 = vsel %vm860, %v4069, 0
    %v4917 = vsel %vm860, %v4070, 0
    %v4920 = vsel %vm860, %v4071, 0
    %v4923 = vsel %vm860, %v4072, 0
    %v4926 = vsel %vm860, %v4073, 0
    %v4929 = vsel %vm860, %v4074, 0
    %v4932 = vsel %vm860, %v4075, 0
    %v4935 = vsel %vm860, %v4076, 0
    %v4938 = vsel %vm860, %v4077, 0
    %v4941 = vsel %vm860, %v4078, 0
    %v4944 = vsel %vm860, %v4095, 0
    %v4947 = vsel %vm860, %v4096, 0
    %v4950 = vsel %vm860, %v4097, 0
    %v4953 = vsel %vm860, %v4098, 0
    %v4956 = vsel %vm860, %v4099, 0
    %v4959 = vsel %vm860, %v4100, 0
    %v4962 = vsel %vm860, %v4101, 0
    %v4965 = vsel %vm860, %v4102, 0
    %v4968 = vsel %vm860, %v4103, 0
    %v4971 = vsel %vm860, %v4104, 0
    %v4974 = vsel %vm860, %v4105, 0
    %v4977 = vsel %vm860, %v4106, 0
    %v4980 = vsel %vm860, %v4107, 0
    %v4983 = vsel %vm860, %v4108, 0
    %v4986 = vsel %vm860, %v4109, 0
    %v4989 = vsel %vm860, %v4110, 0
    %v4992 = vsel %vm860, %v4127, 0
    %v4995 = vsel %vm860, %v4128, 0
    %v4998 = vsel %vm860, %v4129, 0
    %v5001 = vsel %vm860, %v4130, 0
    %v5004 = vsel %vm860, %v4131, 0
    %v5007 = vsel %vm860, %v4132, 0
    %v5010 = vsel %vm860, %v4133, 0
    %v5013 = vsel %vm860, %v4134, 0
    %v5016 = vsel %vm860, %v4135, 0
    %v5019 = vsel %vm860, %v4136, 0
    %v5022 = vsel %vm860, %v4137, 0
    %v5025 = vsel %vm860, %v4138, 0
    %v5028 = vsel %vm860, %v4139, 0
    %v5031 = vsel %vm860, %v4140, 0
    %v5034 = vsel %vm860, %v4141, 0
    %v5037 = vsel %vm860, %v4142, 0
    %v5040 = vsel %vm860, %v4159, 0
    %v5043 = vsel %vm860, %v4160, 0
    %v5046 = vsel %vm860, %v4161, 0
    %v5049 = vsel %vm860, %v4162, 0
    %v5052 = vsel %vm860, %v4163, 0
    %v5055 = vsel %vm860, %v4164, 0
    %v5058 = vsel %vm860, %v4165, 0
    %v5061 = vsel %vm860, %v4166, 0
    %v5064 = vsel %vm860, %v4167, 0
    %v5067 = vsel %vm860, %v4168, 0
    %v5070 = vsel %vm860, %v4169, 0
    %v5073 = vsel %vm860, %v4170, 0
    %v5076 = vsel %vm860, %v4171, 0
    %v5079 = vsel %vm860, %v4172, 0
    %v5082 = vsel %vm860, %v4173, 0
    %v5085 = vsel %vm860, %v4174, 0
    %v5088 = vsel %vm860, %v4191, 0
    %v5091 = vsel %vm860, %v4192, 0
    %v5094 = vsel %vm860, %v4193, 0
    %v5097 = vsel %vm860, %v4194, 0
    %v5100 = vsel %vm860, %v4195, 0
    %v5103 = vsel %vm860, %v4196, 0
    %v5106 = vsel %vm860, %v4197, 0
    %v5109 = vsel %vm860, %v4198, 0
    %v5112 = vsel %vm860, %v4199, 0
    %v5115 = vsel %vm860, %v4200, 0
    %v5118 = vsel %vm860, %v4201, 0
    %v5121 = vsel %vm860, %v4202, 0
    %v5124 = vsel %vm860, %v4203, 0
    %v5127 = vsel %vm860, %v4204, 0
    %v5130 = vsel %vm860, %v4205, 0
    %v5133 = vsel %vm860, %v4206, 0
    %v5136 = vsel %vm860, %v4223, 0
    %v5139 = vsel %vm860, %v4224, 0
    %v5142 = vsel %vm860, %v4225, 0
    %v5145 = vsel %vm860, %v4226, 0
    %v5148 = vsel %vm860, %v4227, 0
    %v5151 = vsel %vm860, %v4228, 0
    %v5154 = vsel %vm860, %v4229, 0
    %v5157 = vsel %vm860, %v4230, 0
    %v5160 = vsel %vm860, %v4231, 0
    %v5163 = vsel %vm860, %v4232, 0
    %v5166 = vsel %vm860, %v4233, 0
    %v5169 = vsel %vm860, %v4234, 0
    %v5172 = vsel %vm860, %v4235, 0
    %v5175 = vsel %vm860, %v4236, 0
    %v5178 = vsel %vm860, %v4237, 0
    %v5181 = vsel %vm860, %v4238, 0
    %v5184 = vsel %vm860, %v4255, 0
    %v5187 = vsel %vm860, %v4256, 0
    %v5190 = vsel %vm860, %v4257, 0
    %v5193 = vsel %vm860, %v4258, 0
    %v5196 = vsel %vm860, %v4259, 0
    %v5199 = vsel %vm860, %v4260, 0
    %v5202 = vsel %vm860, %v4261, 0
    %v5205 = vsel %vm860, %v4262, 0
    %v5208 = vsel %vm860, %v4263, 0
    %v5211 = vsel %vm860, %v4264, 0
    %v5214 = vsel %vm860, %v4265, 0
    %v5217 = vsel %vm860, %v4266, 0
    %v5220 = vsel %vm860, %v4267, 0
    %v5223 = vsel %vm860, %v4268, 0
    %v5226 = vsel %vm860, %v4269, 0
    %v5229 = vsel %vm860, %v4270, 0
    %v5232 = vsel %vm860, %v4287, 0
    %v5235 = vsel %vm860, %v4288, 0
    %v5238 = vsel %vm860, %v4289, 0
    %v5241 = vsel %vm860, %v4290, 0
    %v5244 = vsel %vm860, %v4291, 0
    %v5247 = vsel %vm860, %v4292, 0
    %v5250 = vsel %vm860, %v4293, 0
    %v5253 = vsel %vm860, %v4294, 0
    %v5256 = vsel %vm860, %v4295, 0
    %v5259 = vsel %vm860, %v4296, 0
    %v5262 = vsel %vm860, %v4297, 0
    %v5265 = vsel %vm860, %v4298, 0
    %v5268 = vsel %vm860, %v4299, 0
    %v5271 = vsel %vm860, %v4300, 0
    %v5274 = vsel %vm860, %v4301, 0
    %v5277 = vsel %vm860, %v4302, 0
    %v5280 = vsel %vm860, %v4319, 0
    %v5283 = vsel %vm860, %v4320, 0
    %v5286 = vsel %vm860, %v4321, 0
    %v5289 = vsel %vm860, %v4322, 0
    %v5292 = vsel %vm860, %v4323, 0
    %v5295 = vsel %vm860, %v4324, 0
    %v5298 = vsel %vm860, %v4325, 0
    %v5301 = vsel %vm860, %v4326, 0
    %v5304 = vsel %vm860, %v4327, 0
    %v5307 = vsel %vm860, %v4328, 0
    %v5310 = vsel %vm860, %v4329, 0
    %v5313 = vsel %vm860, %v4330, 0
    %v5316 = vsel %vm860, %v4331, 0
    %v5319 = vsel %vm860, %v4332, 0
    %v5322 = vsel %vm860, %v4333, 0
    %v5325 = vsel %vm860, %v4334, 0
    %v5328 = vsel %vm860, %v4351, 0
    %v5331 = vsel %vm860, %v4352, 0
    %v5334 = vsel %vm860, %v4353, 0
    %v5337 = vsel %vm860, %v4354, 0
    %v5340 = vsel %vm860, %v4355, 0
    %v5343 = vsel %vm860, %v4356, 0
    %v5346 = vsel %vm860, %v4357, 0
    %v5349 = vsel %vm860, %v4358, 0
    %v5352 = vsel %vm860, %v4359, 0
    %v5355 = vsel %vm860, %v4360, 0
    %v5358 = vsel %vm860, %v4361, 0
    %v5361 = vsel %vm860, %v4362, 0
    %v5364 = vsel %vm860, %v4363, 0
    %v5367 = vsel %vm860, %v4364, 0
    %v5370 = vsel %vm860, %v4365, 0
    %v5373 = vsel %vm860, %v4366, 0
    %v5376 = vsel %vm860, %v4383, 0
    %v5379 = vsel %vm860, %v4384, 0
    %v5382 = vsel %vm860, %v4385, 0
    %v5385 = vsel %vm860, %v4386, 0
    %v5388 = vsel %vm860, %v4387, 0
    %v5391 = vsel %vm860, %v4388, 0
    %v5394 = vsel %vm860, %v4389, 0
    %v5397 = vsel %vm860, %v4390, 0
    %v5400 = vsel %vm860, %v4391, 0
    %v5403 = vsel %vm860, %v4392, 0
    %v5406 = vsel %vm860, %v4393, 0
    %v5409 = vsel %vm860, %v4394, 0
    %v5412 = vsel %vm860, %v4395, 0
    %v5415 = vsel %vm860, %v4396, 0
    %v5418 = vsel %vm860, %v4397, 0
    %v5421 = vsel %vm860, %v4398, 0
    %v5424 = vsel %vm860, %v4415, 0
    %v5427 = vsel %vm860, %v4416, 0
    %v5430 = vsel %vm860, %v4417, 0
    %v5433 = vsel %vm860, %v4418, 0
    %v5436 = vsel %vm860, %v4419, 0
    %v5439 = vsel %vm860, %v4420, 0
    %v5442 = vsel %vm860, %v4421, 0
    %v5445 = vsel %vm860, %v4422, 0
    %v5448 = vsel %vm860, %v4423, 0
    %v5451 = vsel %vm860, %v4424, 0
    %v5454 = vsel %vm860, %v4425, 0
    %v5457 = vsel %vm860, %v4426, 0
    %v5460 = vsel %vm860, %v4427, 0
    %v5463 = vsel %vm860, %v4428, 0
    %v5466 = vsel %vm860, %v4429, 0
    %v5469 = vsel %vm860, %v4430, 0
    %v5472 = vsel %vm860, %v4447, 0
    %v5475 = vsel %vm860, %v4448, 0
    %v5478 = vsel %vm860, %v4449, 0
    %v5481 = vsel %vm860, %v4450, 0
    %v5484 = vsel %vm860, %v4451, 0
    %v5487 = vsel %vm860, %v4452, 0
    %v5490 = vsel %vm860, %v4453, 0
    %v5493 = vsel %vm860, %v4454, 0
    %v5496 = vsel %vm860, %v4455, 0
    %v5499 = vsel %vm860, %v4456, 0
    %v5502 = vsel %vm860, %v4457, 0
    %v5505 = vsel %vm860, %v4458, 0
    %v5508 = vsel %vm860, %v4459, 0
    %v5511 = vsel %vm860, %v4460, 0
    %v5514 = vsel %vm860, %v4461, 0
    %v5517 = vsel %vm860, %v4462, 0
    %v5520 = vsel %vm860, %v4479, 0
    %v5523 = vsel %vm860, %v4480, 0
    %v5526 = vsel %vm860, %v4481, 0
    %v5529 = vsel %vm860, %v4482, 0
    %v5532 = vsel %vm860, %v4483, 0
    %v5535 = vsel %vm860, %v4484, 0
    %v5538 = vsel %vm860, %v4485, 0
    %v5541 = vsel %vm860, %v4486, 0
    %v5544 = vsel %vm860, %v4487, 0
    %v5547 = vsel %vm860, %v4488, 0
    %v5550 = vsel %vm860, %v4489, 0
    %v5553 = vsel %vm860, %v4490, 0
    %v5556 = vsel %vm860, %v4491, 0
    %v5559 = vsel %vm860, %v4492, 0
    %v5562 = vsel %vm860, %v4493, 0
    %v5565 = vsel %vm860, %v4494, 0
    %v5568 = vsel %vm860, %v4511, 0
    %v5571 = vsel %vm860, %v4512, 0
    %v5574 = vsel %vm860, %v4513, 0
    %v5577 = vsel %vm860, %v4514, 0
    %v5580 = vsel %vm860, %v4515, 0
    %v5583 = vsel %vm860, %v4516, 0
    %v5586 = vsel %vm860, %v4517, 0
    %v5589 = vsel %vm860, %v4518, 0
    %v5592 = vsel %vm860, %v4519, 0
    %v5595 = vsel %vm860, %v4520, 0
    %v5598 = vsel %vm860, %v4521, 0
    %v5601 = vsel %vm860, %v4522, 0
    %v5604 = vsel %vm860, %v4523, 0
    %v5607 = vsel %vm860, %v4524, 0
    %v5610 = vsel %vm860, %v4525, 0
    %v5613 = vsel %vm860, %v4526, 0
    %v5616 = vsel %vm860, %v4543, 0
    %v5619 = vsel %vm860, %v4544, 0
    %v5622 = vsel %vm860, %v4545, 0
    %v5625 = vsel %vm860, %v4546, 0
    %v5628 = vsel %vm860, %v4547, 0
    %v5631 = vsel %vm860, %v4548, 0
    %v5634 = vsel %vm860, %v4549, 0
    %v5637 = vsel %vm860, %v4550, 0
    %v5640 = vsel %vm860, %v4551, 0
    %v5643 = vsel %vm860, %v4552, 0
    %v5646 = vsel %vm860, %v4553, 0
    %v5649 = vsel %vm860, %v4554, 0
    %v5652 = vsel %vm860, %v4555, 0
    %v5655 = vsel %vm860, %v4556, 0
    %v5658 = vsel %vm860, %v4557, 0
    %v5661 = vsel %vm860, %v4558, 0
    %v5664 = vsel %vm860, %v4575, 0
    %v5667 = vsel %vm860, %v4576, 0
    %v5670 = vsel %vm860, %v4577, 0
    %v5673 = vsel %vm860, %v4578, 0
    %v5676 = vsel %vm860, %v4579, 0
    %v5679 = vsel %vm860, %v4580, 0
    %v5682 = vsel %vm860, %v4581, 0
    %v5685 = vsel %vm860, %v4582, 0
    %v5688 = vsel %vm860, %v4583, 0
    %v5691 = vsel %vm860, %v4584, 0
    %v5694 = vsel %vm860, %v4585, 0
    %v5697 = vsel %vm860, %v4586, 0
    %v5700 = vsel %vm860, %v4587, 0
    %v5703 = vsel %vm860, %v4588, 0
    %v5706 = vsel %vm860, %v4589, 0
    %v5709 = vsel %vm860, %v4590, 0
    %v5712 = vsel %vm860, %v4607, 0
    %v5715 = vsel %vm860, %v4608, 0
    %v5718 = vsel %vm860, %v4609, 0
    %v5721 = vsel %vm860, %v4610, 0
    %v5724 = vsel %vm860, %v4611, 0
    %v5727 = vsel %vm860, %v4612, 0
    %v5730 = vsel %vm860, %v4613, 0
    %v5733 = vsel %vm860, %v4614, 0
    %v5736 = vsel %vm860, %v4615, 0
    %v5739 = vsel %vm860, %v4616, 0
    %v5742 = vsel %vm860, %v4617, 0
    %v5745 = vsel %vm860, %v4618, 0
    %v5748 = vsel %vm860, %v4619, 0
    %v5751 = vsel %vm860, %v4620, 0
    %v5754 = vsel %vm860, %v4621, 0
    %v5757 = vsel %vm860, %v4622, 0
    %v5760 = vsel %vm860, %v4639, 0
    %v5763 = vsel %vm860, %v4640, 0
    %v5766 = vsel %vm860, %v4641, 0
    %v5769 = vsel %vm860, %v4642, 0
    %v5772 = vsel %vm860, %v4643, 0
    %v5775 = vsel %vm860, %v4644, 0
    %v5778 = vsel %vm860, %v4645, 0
    %v5781 = vsel %vm860, %v4646, 0
    %v5784 = vsel %vm860, %v4647, 0
    %v5787 = vsel %vm860, %v4648, 0
    %v5790 = vsel %vm860, %v4649, 0
    %v5793 = vsel %vm860, %v4650, 0
    %v5796 = vsel %vm860, %v4651, 0
    %v5799 = vsel %vm860, %v4652, 0
    %v5802 = vsel %vm860, %v4653, 0
    %v5805 = vsel %vm860, %v4654, 0
    %5807 = vmatprep.subr.mxu0 0.0
    %5808 = vmatpush1.msra.mxu0 %v89
    %5809 = vmatprep.subr.mxu0 0.0
    %5810 = vmatpush1.msra.mxu0 %v90
    %5811 = vmatprep.subr.mxu0 0.0
    %5812 = vmatpush1.msra.mxu0 0.0
    %5813 = vmatprep.subr.mxu0 0.0
    %5814 = vmatpush1.msra.mxu0 0.0
    %5815 = vmatprep.subr.mxu0 0.0
    %5816 = vmatpush1.msra.mxu0 0.0
    %5817 = vmatprep.subr.mxu0 0.0
    %5818 = vmatpush1.msra.mxu0 0.0
    %5819 = vmatprep.subr.mxu0 0.0
    %5820 = vmatpush1.msra.mxu0 0.0
    %5821 = vmatprep.subr.mxu0 0.0
    %5822 = vmatpush1.msra.mxu0 0.0
    %5823 = vmatprep.subr.mxu0 0.0
    %5824 = vmatpush1.msra.mxu0 0.0
    %5825 = vmatprep.subr.mxu0 0.0
    %5826 = vmatpush1.msra.mxu0 0.0
    %5827 = vmatprep.subr.mxu0 0.0
    %5828 = vmatpush1.msra.mxu0 0.0
    %5829 = vmatprep.subr.mxu0 0.0
    %5830 = vmatpush1.msra.mxu0 0.0
    %5831 = vmatprep.subr.mxu0 0.0
    %5832 = vmatpush1.msra.mxu0 0.0
    %5833 = vmatprep.subr.mxu0 0.0
    %5834 = vmatpush1.msra.mxu0 0.0
    %5835 = vmatprep.subr.mxu0 0.0
    %5836 = vmatpush1.msra.mxu0 0.0
    %5837 = vmatprep.subr.mxu0 0.0
    %5838 = vmatpush1.msra.mxu0 0.0
    %5839 = vmatprep.subr.mxu0 0.0
    %5840 = vmatpush1.msra.mxu0 0.0
    %5841 = vmatprep.subr.mxu0 0.0
    %5842 = vmatpush1.msra.mxu0 0.0
    %5843 = vmatprep.subr.mxu0 0.0
    %5844 = vmatpush1.msra.mxu0 0.0
    %5845 = vmatprep.subr.mxu0 0.0
    %5846 = vmatpush1.msra.mxu0 0.0
    %5847 = vmatprep.subr.mxu0 0.0
    %5848 = vmatpush1.msra.mxu0 0.0
    %5849 = vmatprep.subr.mxu0 0.0
    %5850 = vmatpush1.msra.mxu0 0.0
    %5851 = vmatprep.subr.mxu0 0.0
    %5852 = vmatpush1.msra.mxu0 0.0
    %5853 = vmatprep.subr.mxu0 0.0
    %5854 = vmatpush1.msra.mxu0 0.0
    %5855 = vmatprep.subr.mxu0 0.0
    %5856 = vmatpush1.msra.mxu0 0.0
    %5857 = vmatprep.subr.mxu0 0.0
    %5858 = vmatpush1.msra.mxu0 0.0
    %5859 = vmatprep.subr.mxu0 0.0
    %5860 = vmatpush1.msra.mxu0 0.0
    %5861 = vmatprep.subr.mxu0 0.0
    %5862 = vmatpush1.msra.mxu0 0.0
    %5863 = vmatprep.subr.mxu0 0.0
    %5864 = vmatpush1.msra.mxu0 0.0
    %5865 = vmatprep.subr.mxu0 0.0
    %5866 = vmatpush1.msra.mxu0 0.0
    %5867 = vmatprep.subr.mxu0 0.0
    %5868 = vmatpush1.msra.mxu0 0.0
    %5869 = vmatprep.subr.mxu0 0.0
    %5870 = vmatpush1.msra.mxu0 0.0
    %5871 = vmatprep.mubr.f32.mxu0 0.0
    %5872 = vmatmul.mubr.f32.gmra.mrb[0].mxu0 %v4656
    %v5873 = vpop.f32.mrb[0].mxu0
    %v5874 = vadd.f32 0.0, %v5873
    %v5875 = vpop.f32.mrb[0].mxu0
    %5876 = vmatprep.mubr.f32.mxu0 0.0
    %5877 = vmatmul.mubr.f32.gmra.mrb[0].mxu0 %v4659
    %v5878 = vpop.f32.mrb[0].mxu0
    %v5879 = vadd.f32 0.0, %v5878
    %v5880 = vpop.f32.mrb[0].mxu0
    %5881 = vmatprep.mubr.f32.mxu0 0.0
    %5882 = vmatmul.mubr.f32.gmra.mrb[0].mxu0 %v4662
    %v5883 = vpop.f32.mrb[0].mxu0
    %v5884 = vadd.f32 0.0, %v5883
    %v5885 = vpop.f32.mrb[0].mxu0
    %5886 = vmatprep.mubr.f32.mxu0 0.0
    %5887 = vmatmul.mubr.f32.gmra.mrb[0].mxu0 %v4665
    %v5888 = vpop.f32.mrb[0].mxu0
    %v5889 = vadd.f32 0.0, %v5888
    %v5890 = vpop.f32.mrb[0].mxu0
    %5891 = vmatprep.mubr.f32.mxu0 0.0
    %5892 = vmatmul.mubr.f32.gmra.mrb[0].mxu0 %v4668
    %v5893 = vpop.f32.mrb[0].mxu0
    %v5894 = vadd.f32 0.0, %v5893
    %v5895 = vpop.f32.mrb[0].mxu0
    %5896 = vmatprep.mubr.f32.mxu0 0.0
    %5897 = vmatmul.mubr.f32.gmra.mrb[0].mxu0 %v4671
    %v5898 = vpop.f32.mrb[0].mxu0
    %v5899 = vadd.f32 0.0, %v5898
    %v5900 = vpop.f32.mrb[0].mxu0
    %5901 = vmatprep.mubr.f32.mxu0 0.0
    %5902 = vmatmul.mubr.f32.gmra.mrb[0].mxu0 %v4674
    %v5903 = vpop.f32.mrb[0].mxu0
    %v5904 = vadd.f32 0.0, %v5903
    %v5905 = vpop.f32.mrb[0].mxu0
    %5906 = vmatprep.mubr.f32.mxu0 0.0
    %5907 = vmatmul.mubr.f32.gmra.mrb[0].mxu0 %v4677
    %v5908 = vpop.f32.mrb[0].mxu0
    %v5909 = vadd.f32 0.0, %v5908
    %v5910 = vpop.f32.mrb[0].mxu0
    %5911 = vmatprep.mubr.f32.mxu0 0.0
    %5912 = vmatmul.mubr.f32.gmra.mrb[0].mxu0 %v4680
    %v5913 = vpop.f32.mrb[0].mxu0
    %v5914 = vadd.f32 0.0, %v5913
    %v5915 = vpop.f32.mrb[0].mxu0
    %5916 = vmatprep.mubr.f32.mxu0 0.0
    %5917 = vmatmul.mubr.f32.gmra.mrb[0].mxu0 %v4683
    %v5918 = vpop.f32.mrb[0].mxu0
    %v5919 = vadd.f32 0.0, %v5918
    %v5920 = vpop.f32.mrb[0].mxu0
    %5921 = vmatprep.mubr.f32.mxu0 0.0
    %5922 = vmatmul.mubr.f32.gmra.mrb[0].mxu0 %v4686
    %v5923 = vpop.f32.mrb[0].mxu0
    %v5924 = vadd.f32 0.0, %v5923
    %v5925 = vpop.f32.mrb[0].mxu0
    %5926 = vmatprep.mubr.f32.mxu0 0.0
    %5927 = vmatmul.mubr.f32.gmra.mrb[0].mxu0 %v4689
    %v5928 = vpop.f32.mrb[0].mxu0
    %v5929 = vadd.f32 0.0, %v5928
    %v5930 = vpop.f32.mrb[0].mxu0
    %5931 = vmatprep.mubr.f32.mxu0 0.0
    %5932 = vmatmul.mubr.f32.gmra.mrb[0].mxu0 %v4692
    %v5933 = vpop.f32.mrb[0].mxu0
    %v5934 = vadd.f32 0.0, %v5933
    %v5935 = vpop.f32.mrb[0].mxu0
    %5936 = vmatprep.mubr.f32.mxu0 0.0
    %5937 = vmatmul.mubr.f32.gmra.mrb[0].mxu0 %v4695
    %v5938 = vpop.f32.mrb[0].mxu0
    %v5939 = vadd.f32 0.0, %v5938
    %v5940 = vpop.f32.mrb[0].mxu0
    %5941 = vmatprep.mubr.f32.mxu0 0.0
    %5942 = vmatmul.mubr.f32.gmra.mrb[0].mxu0 %v4698
    %v5943 = vpop.f32.mrb[0].mxu0
    %v5944 = vadd.f32 0.0, %v5943
    %v5945 = vpop.f32.mrb[0].mxu0
    %5946 = vmatprep.mubr.f32.mxu0 0.0
    %5947 = vmatmul.mubr.f32.gmra.mrb[0].mxu0 %v4701
    %v5948 = vpop.f32.mrb[0].mxu0
    %v5949 = vadd.f32 0.0, %v5948
    %v5950 = vpop.f32.mrb[0].mxu0
    %5951 = vmatprep.mubr.f32.mxu0 0.0
    %5952 = vmatmul.mubr.f32.gmra.mrb[0].mxu0 %v4704
    %v5953 = vpop.f32.mrb[0].mxu0
    %v5954 = vadd.f32 0.0, %v5953
    %v5955 = vpop.f32.mrb[0].mxu0
    %5956 = vmatprep.mubr.f32.mxu0 0.0
    %5957 = vmatmul.mubr.f32.gmra.mrb[0].mxu0 %v4707
    %v5958 = vpop.f32.mrb[0].mxu0
    %v5959 = vadd.f32 0.0, %v5958
    %v5960 = vpop.f32.mrb[0].mxu0
    %5961 = vmatprep.mubr.f32.mxu0 0.0
    %5962 = vmatmul.mubr.f32.gmra.mrb[0].mxu0 %v4710
    %v5963 = vpop.f32.mrb[0].mxu0
    %v5964 = vadd.f32 0.0, %v5963
    %v5965 = vpop.f32.mrb[0].mxu0
    %5966 = vmatprep.mubr.f32.mxu0 0.0
    %5967 = vmatmul.mubr.f32.gmra.mrb[0].mxu0 %v4713
    %v5968 = vpop.f32.mrb[0].mxu0
    %v5969 = vadd.f32 0.0, %v5968
    %v5970 = vpop.f32.mrb[0].mxu0
    %5971 = vmatprep.mubr.f32.mxu0 0.0
    %5972 = vmatmul.mubr.f32.gmra.mrb[0].mxu0 %v4716
    %v5973 = vpop.f32.mrb[0].mxu0
    %v5974 = vadd.f32 0.0, %v5973
    %v5975 = vpop.f32.mrb[0].mxu0
    %5976 = vmatprep.mubr.f32.mxu0 0.0
    %5977 = vmatmul.mubr.f32.gmra.mrb[0].mxu0 %v4719
    %v5978 = vpop.f32.mrb[0].mxu0
    %v5979 = vadd.f32 0.0, %v5978
    %v5980 = vpop.f32.mrb[0].mxu0
    %5981 = vmatprep.mubr.f32.mxu0 0.0
    %5982 = vmatmul.mubr.f32.gmra.mrb[0].mxu0 %v4722
    %v5983 = vpop.f32.mrb[0].mxu0
    %v5984 = vadd.f32 0.0, %v5983
    %v5985 = vpop.f32.mrb[0].mxu0
    %5986 = vmatprep.mubr.f32.mxu0 0.0
    %5987 = vmatmul.mubr.f32.gmra.mrb[0].mxu0 %v4725
    %v5988 = vpop.f32.mrb[0].mxu0
    %v5989 = vadd.f32 0.0, %v5988
    %v5990 = vpop.f32.mrb[0].mxu0
    %5991 = vmatprep.mubr.f32.mxu0 0.0
    %5992 = vmatmul.mubr.f32.gmra.mrb[0].mxu0 %v4728
    %v5993 = vpop.f32.mrb[0].mxu0
    %v5994 = vadd.f32 0.0, %v5993
    %v5995 = vpop.f32.mrb[0].mxu0
    %5996 = vmatprep.mubr.f32.mxu0 0.0
    %5997 = vmatmul.mubr.f32.gmra.mrb[0].mxu0 %v4731
    %v5998 = vpop.f32.mrb[0].mxu0
    %v5999 = vadd.f32 0.0, %v5998
    %v6000 = vpop.f32.mrb[0].mxu0
    %6001 = vmatprep.mubr.f32.mxu0 0.0
    %6002 = vmatmul.mubr.f32.gmra.mrb[0].mxu0 %v4734
    %v6003 = vpop.f32.mrb[0].mxu0
    %v6004 = vadd.f32 0.0, %v6003
    %v6005 = vpop.f32.mrb[0].mxu0
    %6006 = vmatprep.mubr.f32.mxu0 0.0
    %6007 = vmatmul.mubr.f32.gmra.mrb[0].mxu0 %v4737
    %v6008 = vpop.f32.mrb[0].mxu0
    %v6009 = vadd.f32 0.0, %v6008
    %v6010 = vpop.f32.mrb[0].mxu0
    %6011 = vmatprep.mubr.f32.mxu0 0.0
    %6012 = vmatmul.mubr.f32.gmra.mrb[0].mxu0 %v4740
    %v6013 = vpop.f32.mrb[0].mxu0
    %v6014 = vadd.f32 0.0, %v6013
    %v6015 = vpop.f32.mrb[0].mxu0
    %6016 = vmatprep.mubr.f32.mxu0 0.0
    %6017 = vmatmul.mubr.f32.gmra.mrb[0].mxu0 %v4743
    %v6018 = vpop.f32.mrb[0].mxu0
    %v6019 = vadd.f32 0.0, %v6018
    %v6020 = vpop.f32.mrb[0].mxu0
    %6021 = vmatprep.mubr.f32.mxu0 0.0
    %6022 = vmatmul.mubr.f32.gmra.mrb[0].mxu0 %v4746
    %v6023 = vpop.f32.mrb[0].mxu0
    %v6024 = vadd.f32 0.0, %v6023
    %v6025 = vpop.f32.mrb[0].mxu0
    %6026 = vmatprep.mubr.f32.mxu0 0.0
    %6027 = vmatmul.mubr.f32.gmra.mrb[0].mxu0 %v4749
    %v6028 = vpop.f32.mrb[0].mxu0
    %v6029 = vadd.f32 0.0, %v6028
    %v6030 = vpop.f32.mrb[0].mxu0
    %6031 = vmatprep.mubr.f32.mxu0 0.0
    %6032 = vmatmul.mubr.f32.gmra.mrb[0].mxu0 %v4752
    %v6033 = vpop.f32.mrb[0].mxu0
    %v6034 = vadd.f32 0.0, %v6033
    %v6035 = vpop.f32.mrb[0].mxu0
    %6036 = vmatprep.mubr.f32.mxu0 0.0
    %6037 = vmatmul.mubr.f32.gmra.mrb[0].mxu0 %v4755
    %v6038 = vpop.f32.mrb[0].mxu0
    %v6039 = vadd.f32 0.0, %v6038
    %v6040 = vpop.f32.mrb[0].mxu0
    %6041 = vmatprep.mubr.f32.mxu0 0.0
    %6042 = vmatmul.mubr.f32.gmra.mrb[0].mxu0 %v4758
    %v6043 = vpop.f32.mrb[0].mxu0
    %v6044 = vadd.f32 0.0, %v6043
    %v6045 = vpop.f32.mrb[0].mxu0
    %6046 = vmatprep.mubr.f32.mxu0 0.0
    %6047 = vmatmul.mubr.f32.gmra.mrb[0].mxu0 %v4761
    %v6048 = vpop.f32.mrb[0].mxu0
    %v6049 = vadd.f32 0.0, %v6048
    %v6050 = vpop.f32.mrb[0].mxu0
    %6051 = vmatprep.mubr.f32.mxu0 0.0
    %6052 = vmatmul.mubr.f32.gmra.mrb[0].mxu0 %v4764
    %v6053 = vpop.f32.mrb[0].mxu0
    %v6054 = vadd.f32 0.0, %v6053
    %v6055 = vpop.f32.mrb[0].mxu0
    %6056 = vmatprep.mubr.f32.mxu0 0.0
    %6057 = vmatmul.mubr.f32.gmra.mrb[0].mxu0 %v4767
    %v6058 = vpop.f32.mrb[0].mxu0
    %v6059 = vadd.f32 0.0, %v6058
    %v6060 = vpop.f32.mrb[0].mxu0
    %6061 = vmatprep.mubr.f32.mxu0 0.0
    %6062 = vmatmul.mubr.f32.gmra.mrb[0].mxu0 %v4770
    %v6063 = vpop.f32.mrb[0].mxu0
    %v6064 = vadd.f32 0.0, %v6063
    %v6065 = vpop.f32.mrb[0].mxu0
    %6066 = vmatprep.mubr.f32.mxu0 0.0
    %6067 = vmatmul.mubr.f32.gmra.mrb[0].mxu0 %v4773
    %v6068 = vpop.f32.mrb[0].mxu0
    %v6069 = vadd.f32 0.0, %v6068
    %v6070 = vpop.f32.mrb[0].mxu0
    %6071 = vmatprep.mubr.f32.mxu0 0.0
    %6072 = vmatmul.mubr.f32.gmra.mrb[0].mxu0 %v4776
    %v6073 = vpop.f32.mrb[0].mxu0
    %v6074 = vadd.f32 0.0, %v6073
    %v6075 = vpop.f32.mrb[0].mxu0
    %6076 = vmatprep.mubr.f32.mxu0 0.0
    %6077 = vmatmul.mubr.f32.gmra.mrb[0].mxu0 %v4779
    %v6078 = vpop.f32.mrb[0].mxu0
    %v6079 = vadd.f32 0.0, %v6078
    %v6080 = vpop.f32.mrb[0].mxu0
    %6081 = vmatprep.mubr.f32.mxu0 0.0
    %6082 = vmatmul.mubr.f32.gmra.mrb[0].mxu0 %v4782
    %v6083 = vpop.f32.mrb[0].mxu0
    %v6084 = vadd.f32 0.0, %v6083
    %v6085 = vpop.f32.mrb[0].mxu0
    %6086 = vmatprep.mubr.f32.mxu0 0.0
    %6087 = vmatmul.mubr.f32.gmra.mrb[0].mxu0 %v4785
    %v6088 = vpop.f32.mrb[0].mxu0
    %v6089 = vadd.f32 0.0, %v6088
    %v6090 = vpop.f32.mrb[0].mxu0
    %6091 = vmatprep.mubr.f32.mxu0 0.0
    %6092 = vmatmul.mubr.f32.gmra.mrb[0].mxu0 %v4788
    %v6093 = vpop.f32.mrb[0].mxu0
    %v6094 = vadd.f32 0.0, %v6093
    %v6095 = vpop.f32.mrb[0].mxu0
    %6096 = vmatprep.mubr.f32.mxu0 0.0
    %6097 = vmatmul.mubr.f32.gmra.mrb[0].mxu0 %v4791
    %v6098 = vpop.f32.mrb[0].mxu0
    %v6099 = vadd.f32 0.0, %v6098
    %v6100 = vpop.f32.mrb[0].mxu0
    %6101 = vmatprep.mubr.f32.mxu0 0.0
    %6102 = vmatmul.mubr.f32.gmra.mrb[0].mxu0 %v4794
    %v6103 = vpop.f32.mrb[0].mxu0
    %v6104 = vadd.f32 0.0, %v6103
    %v6105 = vpop.f32.mrb[0].mxu0
    %6106 = vmatprep.mubr.f32.mxu0 0.0
    %6107 = vmatmul.mubr.f32.gmra.mrb[0].mxu0 %v4797
    %v6108 = vpop.f32.mrb[0].mxu0
    %v6109 = vadd.f32 0.0, %v6108
    %v6110 = vpop.f32.mrb[0].mxu0
    %6111 = vmatprep.mubr.f32.mxu0 0.0
    %6112 = vmatmul.mubr.f32.gmra.mrb[0].mxu0 %v4800
    %v6113 = vpop.f32.mrb[0].mxu0
    %v6114 = vadd.f32 0.0, %v6113
    %v6115 = vpop.f32.mrb[0].mxu0
    %6116 = vmatprep.mubr.f32.mxu0 0.0
    %6117 = vmatmul.mubr.f32.gmra.mrb[0].mxu0 %v4803
    %v6118 = vpop.f32.mrb[0].mxu0
    %v6119 = vadd.f32 0.0, %v6118
    %v6120 = vpop.f32.mrb[0].mxu0
    %6121 = vmatprep.mubr.f32.mxu0 0.0
    %6122 = vmatmul.mubr.f32.gmra.mrb[0].mxu0 %v4806
    %v6123 = vpop.f32.mrb[0].mxu0
    %v6124 = vadd.f32 0.0, %v6123
    %v6125 = vpop.f32.mrb[0].mxu0
    %6126 = vmatprep.mubr.f32.mxu0 0.0
    %6127 = vmatmul.mubr.f32.gmra.mrb[0].mxu0 %v4809
    %v6128 = vpop.f32.mrb[0].mxu0
    %v6129 = vadd.f32 0.0, %v6128
    %v6130 = vpop.f32.mrb[0].mxu0
    %6131 = vmatprep.mubr.f32.mxu0 0.0
    %6132 = vmatmul.mubr.f32.gmra.mrb[0].mxu0 %v4812
    %v6133 = vpop.f32.mrb[0].mxu0
    %v6134 = vadd.f32 0.0, %v6133
    %v6135 = vpop.f32.mrb[0].mxu0
    %6136 = vmatprep.mubr.f32.mxu0 0.0
    %6137 = vmatmul.mubr.f32.gmra.mrb[0].mxu0 %v4815
    %v6138 = vpop.f32.mrb[0].mxu0
    %v6139 = vadd.f32 0.0, %v6138
    %v6140 = vpop.f32.mrb[0].mxu0
    %6141 = vmatprep.mubr.f32.mxu0 0.0
    %6142 = vmatmul.mubr.f32.gmra.mrb[0].mxu0 %v4818
    %v6143 = vpop.f32.mrb[0].mxu0
    %v6144 = vadd.f32 0.0, %v6143
    %v6145 = vpop.f32.mrb[0].mxu0
    %6146 = vmatprep.mubr.f32.mxu0 0.0
    %6147 = vmatmul.mubr.f32.gmra.mrb[0].mxu0 %v4821
    %v6148 = vpop.f32.mrb[0].mxu0
    %v6149 = vadd.f32 0.0, %v6148
    %v6150 = vpop.f32.mrb[0].mxu0
    %6151 = vmatprep.mubr.f32.mxu0 0.0
    %6152 = vmatmul.mubr.f32.gmra.mrb[0].mxu0 %v4824
    %v6153 = vpop.f32.mrb[0].mxu0
    %v6154 = vadd.f32 0.0, %v6153
    %v6155 = vpop.f32.mrb[0].mxu0
    %6156 = vmatprep.mubr.f32.mxu0 0.0
    %6157 = vmatmul.mubr.f32.gmra.mrb[0].mxu0 %v4827
    %v6158 = vpop.f32.mrb[0].mxu0
    %v6159 = vadd.f32 0.0, %v6158
    %v6160 = vpop.f32.mrb[0].mxu0
    %6161 = vmatprep.mubr.f32.mxu0 0.0
    %6162 = vmatmul.mubr.f32.gmra.mrb[0].mxu0 %v4830
    %v6163 = vpop.f32.mrb[0].mxu0
    %v6164 = vadd.f32 0.0, %v6163
    %v6165 = vpop.f32.mrb[0].mxu0
    %6166 = vmatprep.mubr.f32.mxu0 0.0
    %6167 = vmatmul.mubr.f32.gmra.mrb[0].mxu0 %v4833
    %v6168 = vpop.f32.mrb[0].mxu0
    %v6169 = vadd.f32 0.0, %v6168
    %v6170 = vpop.f32.mrb[0].mxu0
    %6171 = vmatprep.mubr.f32.mxu0 0.0
    %6172 = vmatmul.mubr.f32.gmra.mrb[0].mxu0 %v4836
    %v6173 = vpop.f32.mrb[0].mxu0
    %v6174 = vadd.f32 0.0, %v6173
    %v6175 = vpop.f32.mrb[0].mxu0
    %6176 = vmatprep.mubr.f32.mxu0 0.0
    %6177 = vmatmul.mubr.f32.gmra.mrb[0].mxu0 %v4839
    %v6178 = vpop.f32.mrb[0].mxu0
    %v6179 = vadd.f32 0.0, %v6178
    %v6180 = vpop.f32.mrb[0].mxu0
    %6181 = vmatprep.mubr.f32.mxu0 0.0
    %6182 = vmatmul.mubr.f32.gmra.mrb[0].mxu0 %v4842
    %v6183 = vpop.f32.mrb[0].mxu0
    %v6184 = vadd.f32 0.0, %v6183
    %v6185 = vpop.f32.mrb[0].mxu0
    %6186 = vmatprep.mubr.f32.mxu0 0.0
    %6187 = vmatmul.mubr.f32.gmra.mrb[0].mxu0 %v4845
    %v6188 = vpop.f32.mrb[0].mxu0
    %v6189 = vadd.f32 0.0, %v6188
    %v6190 = vpop.f32.mrb[0].mxu0
    %6191 = vmatprep.mubr.f32.mxu0 0.0
    %6192 = vmatmul.mubr.f32.gmra.mrb[0].mxu0 %v4848
    %v6193 = vpop.f32.mrb[0].mxu0
    %v6194 = vadd.f32 0.0, %v6193
    %v6195 = vpop.f32.mrb[0].mxu0
    %6196 = vmatprep.mubr.f32.mxu0 0.0
    %6197 = vmatmul.mubr.f32.gmra.mrb[0].mxu0 %v4851
    %v6198 = vpop.f32.mrb[0].mxu0
    %v6199 = vadd.f32 0.0, %v6198
    %v6200 = vpop.f32.mrb[0].mxu0
    %6201 = vmatprep.mubr.f32.mxu0 0.0
    %6202 = vmatmul.mubr.f32.gmra.mrb[0].mxu0 %v4854
    %v6203 = vpop.f32.mrb[0].mxu0
    %v6204 = vadd.f32 0.0, %v6203
    %v6205 = vpop.f32.mrb[0].mxu0
    %6206 = vmatprep.mubr.f32.mxu0 0.0
    %6207 = vmatmul.mubr.f32.gmra.mrb[0].mxu0 %v4857
    %v6208 = vpop.f32.mrb[0].mxu0
    %v6209 = vadd.f32 0.0, %v6208
    %v6210 = vpop.f32.mrb[0].mxu0
    %6211 = vmatprep.mubr.f32.mxu0 0.0
    %6212 = vmatmul.mubr.f32.gmra.mrb[0].mxu0 %v4860
    %v6213 = vpop.f32.mrb[0].mxu0
    %v6214 = vadd.f32 0.0, %v6213
    %v6215 = vpop.f32.mrb[0].mxu0
    %6216 = vmatprep.mubr.f32.mxu0 0.0
    %6217 = vmatmul.mubr.f32.gmra.mrb[0].mxu0 %v4863
    %v6218 = vpop.f32.mrb[0].mxu0
    %v6219 = vadd.f32 0.0, %v6218
    %v6220 = vpop.f32.mrb[0].mxu0
    %6221 = vmatprep.mubr.f32.mxu0 0.0
    %6222 = vmatmul.mubr.f32.gmra.mrb[0].mxu0 %v4866
    %v6223 = vpop.f32.mrb[0].mxu0
    %v6224 = vadd.f32 0.0, %v6223
    %v6225 = vpop.f32.mrb[0].mxu0
    %6226 = vmatprep.mubr.f32.mxu0 0.0
    %6227 = vmatmul.mubr.f32.gmra.mrb[0].mxu0 %v4869
    %v6228 = vpop.f32.mrb[0].mxu0
    %v6229 = vadd.f32 0.0, %v6228
    %v6230 = vpop.f32.mrb[0].mxu0
    %6231 = vmatprep.mubr.f32.mxu0 0.0
    %6232 = vmatmul.mubr.f32.gmra.mrb[0].mxu0 %v4872
    %v6233 = vpop.f32.mrb[0].mxu0
    %v6234 = vadd.f32 0.0, %v6233
    %v6235 = vpop.f32.mrb[0].mxu0
    %6236 = vmatprep.mubr.f32.mxu0 0.0
    %6237 = vmatmul.mubr.f32.gmra.mrb[0].mxu0 %v4875
    %v6238 = vpop.f32.mrb[0].mxu0
    %v6239 = vadd.f32 0.0, %v6238
    %v6240 = vpop.f32.mrb[0].mxu0
    %6241 = vmatprep.mubr.f32.mxu0 0.0
    %6242 = vmatmul.mubr.f32.gmra.mrb[0].mxu0 %v4878
    %v6243 = vpop.f32.mrb[0].mxu0
    %v6244 = vadd.f32 0.0, %v6243
    %v6245 = vpop.f32.mrb[0].mxu0
    %6246 = vmatprep.mubr.f32.mxu0 0.0
    %6247 = vmatmul.mubr.f32.gmra.mrb[0].mxu0 %v4881
    %v6248 = vpop.f32.mrb[0].mxu0
    %v6249 = vadd.f32 0.0, %v6248
    %v6250 = vpop.f32.mrb[0].mxu0
    %6251 = vmatprep.mubr.f32.mxu0 0.0
    %6252 = vmatmul.mubr.f32.gmra.mrb[0].mxu0 %v4884
    %v6253 = vpop.f32.mrb[0].mxu0
    %v6254 = vadd.f32 0.0, %v6253
    %v6255 = vpop.f32.mrb[0].mxu0
    %6256 = vmatprep.mubr.f32.mxu0 0.0
    %6257 = vmatmul.mubr.f32.gmra.mrb[0].mxu0 %v4887
    %v6258 = vpop.f32.mrb[0].mxu0
    %v6259 = vadd.f32 0.0, %v6258
    %v6260 = vpop.f32.mrb[0].mxu0
    %6261 = vmatprep.mubr.f32.mxu0 0.0
    %6262 = vmatmul.mubr.f32.gmra.mrb[0].mxu0 %v4890
    %v6263 = vpop.f32.mrb[0].mxu0
    %v6264 = vadd.f32 0.0, %v6263
    %v6265 = vpop.f32.mrb[0].mxu0
    %6266 = vmatprep.mubr.f32.mxu0 0.0
    %6267 = vmatmul.mubr.f32.gmra.mrb[0].mxu0 %v4893
    %v6268 = vpop.f32.mrb[0].mxu0
    %v6269 = vadd.f32 0.0, %v6268
    %v6270 = vpop.f32.mrb[0].mxu0
    %6271 = vmatprep.mubr.f32.mxu0 0.0
    %6272 = vmatmul.mubr.f32.gmra.mrb[0].mxu0 %v4896
    %v6273 = vpop.f32.mrb[0].mxu0
    %v6274 = vadd.f32 0.0, %v6273
    %v6275 = vpop.f32.mrb[0].mxu0
    %6276 = vmatprep.mubr.f32.mxu0 0.0
    %6277 = vmatmul.mubr.f32.gmra.mrb[0].mxu0 %v4899
    %v6278 = vpop.f32.mrb[0].mxu0
    %v6279 = vadd.f32 0.0, %v6278
    %v6280 = vpop.f32.mrb[0].mxu0
    %6281 = vmatprep.mubr.f32.mxu0 0.0
    %6282 = vmatmul.mubr.f32.gmra.mrb[0].mxu0 %v4902
    %v6283 = vpop.f32.mrb[0].mxu0
    %v6284 = vadd.f32 0.0, %v6283
    %v6285 = vpop.f32.mrb[0].mxu0
    %6286 = vmatprep.mubr.f32.mxu0 0.0
    %6287 = vmatmul.mubr.f32.gmra.mrb[0].mxu0 %v4905
    %v6288 = vpop.f32.mrb[0].mxu0
    %v6289 = vadd.f32 0.0, %v6288
    %v6290 = vpop.f32.mrb[0].mxu0
    %6291 = vmatprep.mubr.f32.mxu0 0.0
    %6292 = vmatmul.mubr.f32.gmra.mrb[0].mxu0 %v4908
    %v6293 = vpop.f32.mrb[0].mxu0
    %v6294 = vadd.f32 0.0, %v6293
    %v6295 = vpop.f32.mrb[0].mxu0
    %6296 = vmatprep.mubr.f32.mxu0 0.0
    %6297 = vmatmul.mubr.f32.gmra.mrb[0].mxu0 %v4911
    %v6298 = vpop.f32.mrb[0].mxu0
    %v6299 = vadd.f32 0.0, %v6298
    %v6300 = vpop.f32.mrb[0].mxu0
    %6301 = vmatprep.mubr.f32.mxu0 0.0
    %6302 = vmatmul.mubr.f32.gmra.mrb[0].mxu0 %v4914
    %v6303 = vpop.f32.mrb[0].mxu0
    %v6304 = vadd.f32 0.0, %v6303
    %v6305 = vpop.f32.mrb[0].mxu0
    %6306 = vmatprep.mubr.f32.mxu0 0.0
    %6307 = vmatmul.mubr.f32.gmra.mrb[0].mxu0 %v4917
    %v6308 = vpop.f32.mrb[0].mxu0
    %v6309 = vadd.f32 0.0, %v6308
    %v6310 = vpop.f32.mrb[0].mxu0
    %6311 = vmatprep.mubr.f32.mxu0 0.0
    %6312 = vmatmul.mubr.f32.gmra.mrb[0].mxu0 %v4920
    %v6313 = vpop.f32.mrb[0].mxu0
    %v6314 = vadd.f32 0.0, %v6313
    %v6315 = vpop.f32.mrb[0].mxu0
    %6316 = vmatprep.mubr.f32.mxu0 0.0
    %6317 = vmatmul.mubr.f32.gmra.mrb[0].mxu0 %v4923
    %v6318 = vpop.f32.mrb[0].mxu0
    %v6319 = vadd.f32 0.0, %v6318
    %v6320 = vpop.f32.mrb[0].mxu0
    %6321 = vmatprep.mubr.f32.mxu0 0.0
    %6322 = vmatmul.mubr.f32.gmra.mrb[0].mxu0 %v4926
    %v6323 = vpop.f32.mrb[0].mxu0
    %v6324 = vadd.f32 0.0, %v6323
    %v6325 = vpop.f32.mrb[0].mxu0
    %6326 = vmatprep.mubr.f32.mxu0 0.0
    %6327 = vmatmul.mubr.f32.gmra.mrb[0].mxu0 %v4929
    %v6328 = vpop.f32.mrb[0].mxu0
    %v6329 = vadd.f32 0.0, %v6328
    %v6330 = vpop.f32.mrb[0].mxu0
    %6331 = vmatprep.mubr.f32.mxu0 0.0
    %6332 = vmatmul.mubr.f32.gmra.mrb[0].mxu0 %v4932
    %v6333 = vpop.f32.mrb[0].mxu0
    %v6334 = vadd.f32 0.0, %v6333
    %v6335 = vpop.f32.mrb[0].mxu0
    %6336 = vmatprep.mubr.f32.mxu0 0.0
    %6337 = vmatmul.mubr.f32.gmra.mrb[0].mxu0 %v4935
    %v6338 = vpop.f32.mrb[0].mxu0
    %v6339 = vadd.f32 0.0, %v6338
    %v6340 = vpop.f32.mrb[0].mxu0
    %6341 = vmatprep.mubr.f32.mxu0 0.0
    %6342 = vmatmul.mubr.f32.gmra.mrb[0].mxu0 %v4938
    %v6343 = vpop.f32.mrb[0].mxu0
    %v6344 = vadd.f32 0.0, %v6343
    %v6345 = vpop.f32.mrb[0].mxu0
    %6346 = vmatprep.mubr.f32.mxu0 0.0
    %6347 = vmatmul.mubr.f32.gmra.mrb[0].mxu0 %v4941
    %v6348 = vpop.f32.mrb[0].mxu0
    %v6349 = vadd.f32 0.0, %v6348
    %v6350 = vpop.f32.mrb[0].mxu0
    %6351 = vmatprep.mubr.f32.mxu0 0.0
    %6352 = vmatmul.mubr.f32.gmra.mrb[0].mxu0 %v4944
    %v6353 = vpop.f32.mrb[0].mxu0
    %v6354 = vadd.f32 0.0, %v6353
    %v6355 = vpop.f32.mrb[0].mxu0
    %6356 = vmatprep.mubr.f32.mxu0 0.0
    %6357 = vmatmul.mubr.f32.gmra.mrb[0].mxu0 %v4947
    %v6358 = vpop.f32.mrb[0].mxu0
    %v6359 = vadd.f32 0.0, %v6358
    %v6360 = vpop.f32.mrb[0].mxu0
    %6361 = vmatprep.mubr.f32.mxu0 0.0
    %6362 = vmatmul.mubr.f32.gmra.mrb[0].mxu0 %v4950
    %v6363 = vpop.f32.mrb[0].mxu0
    %v6364 = vadd.f32 0.0, %v6363
    %v6365 = vpop.f32.mrb[0].mxu0
    %6366 = vmatprep.mubr.f32.mxu0 0.0
    %6367 = vmatmul.mubr.f32.gmra.mrb[0].mxu0 %v4953
    %v6368 = vpop.f32.mrb[0].mxu0
    %v6369 = vadd.f32 0.0, %v6368
    %v6370 = vpop.f32.mrb[0].mxu0
    %6371 = vmatprep.mubr.f32.mxu0 0.0
    %6372 = vmatmul.mubr.f32.gmra.mrb[0].mxu0 %v4956
    %v6373 = vpop.f32.mrb[0].mxu0
    %v6374 = vadd.f32 0.0, %v6373
    %v6375 = vpop.f32.mrb[0].mxu0
    %6376 = vmatprep.mubr.f32.mxu0 0.0
    %6377 = vmatmul.mubr.f32.gmra.mrb[0].mxu0 %v4959
    %v6378 = vpop.f32.mrb[0].mxu0
    %v6379 = vadd.f32 0.0, %v6378
    %v6380 = vpop.f32.mrb[0].mxu0
    %6381 = vmatprep.mubr.f32.mxu0 0.0
    %6382 = vmatmul.mubr.f32.gmra.mrb[0].mxu0 %v4962
    %v6383 = vpop.f32.mrb[0].mxu0
    %v6384 = vadd.f32 0.0, %v6383
    %v6385 = vpop.f32.mrb[0].mxu0
    %6386 = vmatprep.mubr.f32.mxu0 0.0
    %6387 = vmatmul.mubr.f32.gmra.mrb[0].mxu0 %v4965
    %v6388 = vpop.f32.mrb[0].mxu0
    %v6389 = vadd.f32 0.0, %v6388
    %v6390 = vpop.f32.mrb[0].mxu0
    %6391 = vmatprep.mubr.f32.mxu0 0.0
    %6392 = vmatmul.mubr.f32.gmra.mrb[0].mxu0 %v4968
    %v6393 = vpop.f32.mrb[0].mxu0
    %v6394 = vadd.f32 0.0, %v6393
    %v6395 = vpop.f32.mrb[0].mxu0
    %6396 = vmatprep.mubr.f32.mxu0 0.0
    %6397 = vmatmul.mubr.f32.gmra.mrb[0].mxu0 %v4971
    %v6398 = vpop.f32.mrb[0].mxu0
    %v6399 = vadd.f32 0.0, %v6398
    %v6400 = vpop.f32.mrb[0].mxu0
    %6401 = vmatprep.mubr.f32.mxu0 0.0
    %6402 = vmatmul.mubr.f32.gmra.mrb[0].mxu0 %v4974
    %v6403 = vpop.f32.mrb[0].mxu0
    %v6404 = vadd.f32 0.0, %v6403
    %v6405 = vpop.f32.mrb[0].mxu0
    %6406 = vmatprep.mubr.f32.mxu0 0.0
    %6407 = vmatmul.mubr.f32.gmra.mrb[0].mxu0 %v4977
    %v6408 = vpop.f32.mrb[0].mxu0
    %v6409 = vadd.f32 0.0, %v6408
    %v6410 = vpop.f32.mrb[0].mxu0
    %6411 = vmatprep.mubr.f32.mxu0 0.0
    %6412 = vmatmul.mubr.f32.gmra.mrb[0].mxu0 %v4980
    %v6413 = vpop.f32.mrb[0].mxu0
    %v6414 = vadd.f32 0.0, %v6413
    %v6415 = vpop.f32.mrb[0].mxu0
    %6416 = vmatprep.mubr.f32.mxu0 0.0
    %6417 = vmatmul.mubr.f32.gmra.mrb[0].mxu0 %v4983
    %v6418 = vpop.f32.mrb[0].mxu0
    %v6419 = vadd.f32 0.0, %v6418
    %v6420 = vpop.f32.mrb[0].mxu0
    %6421 = vmatprep.mubr.f32.mxu0 0.0
    %6422 = vmatmul.mubr.f32.gmra.mrb[0].mxu0 %v4986
    %v6423 = vpop.f32.mrb[0].mxu0
    %v6424 = vadd.f32 0.0, %v6423
    %v6425 = vpop.f32.mrb[0].mxu0
    %6426 = vmatprep.mubr.f32.mxu0 0.0
    %6427 = vmatmul.mubr.f32.gmra.mrb[0].mxu0 %v4989
    %v6428 = vpop.f32.mrb[0].mxu0
    %v6429 = vadd.f32 0.0, %v6428
    %v6430 = vpop.f32.mrb[0].mxu0
    %6431 = vmatprep.mubr.f32.mxu0 0.0
    %6432 = vmatmul.mubr.f32.gmra.mrb[0].mxu0 %v4992
    %v6433 = vpop.f32.mrb[0].mxu0
    %v6434 = vadd.f32 0.0, %v6433
    %v6435 = vpop.f32.mrb[0].mxu0
    %6436 = vmatprep.mubr.f32.mxu0 0.0
    %6437 = vmatmul.mubr.f32.gmra.mrb[0].mxu0 %v4995
    %v6438 = vpop.f32.mrb[0].mxu0
    %v6439 = vadd.f32 0.0, %v6438
    %v6440 = vpop.f32.mrb[0].mxu0
    %6441 = vmatprep.mubr.f32.mxu0 0.0
    %6442 = vmatmul.mubr.f32.gmra.mrb[0].mxu0 %v4998
    %v6443 = vpop.f32.mrb[0].mxu0
    %v6444 = vadd.f32 0.0, %v6443
    %v6445 = vpop.f32.mrb[0].mxu0
    %6446 = vmatprep.mubr.f32.mxu0 0.0
    %6447 = vmatmul.mubr.f32.gmra.mrb[0].mxu0 %v5001
    %v6448 = vpop.f32.mrb[0].mxu0
    %v6449 = vadd.f32 0.0, %v6448
    %v6450 = vpop.f32.mrb[0].mxu0
    %6451 = vmatprep.mubr.f32.mxu0 0.0
    %6452 = vmatmul.mubr.f32.gmra.mrb[0].mxu0 %v5004
    %v6453 = vpop.f32.mrb[0].mxu0
    %v6454 = vadd.f32 0.0, %v6453
    %v6455 = vpop.f32.mrb[0].mxu0
    %6456 = vmatprep.mubr.f32.mxu0 0.0
    %6457 = vmatmul.mubr.f32.gmra.mrb[0].mxu0 %v5007
    %v6458 = vpop.f32.mrb[0].mxu0
    %v6459 = vadd.f32 0.0, %v6458
    %v6460 = vpop.f32.mrb[0].mxu0
    %6461 = vmatprep.mubr.f32.mxu0 0.0
    %6462 = vmatmul.mubr.f32.gmra.mrb[0].mxu0 %v5010
    %v6463 = vpop.f32.mrb[0].mxu0
    %v6464 = vadd.f32 0.0, %v6463
    %v6465 = vpop.f32.mrb[0].mxu0
    %6466 = vmatprep.mubr.f32.mxu0 0.0
    %6467 = vmatmul.mubr.f32.gmra.mrb[0].mxu0 %v5013
    %v6468 = vpop.f32.mrb[0].mxu0
    %v6469 = vadd.f32 0.0, %v6468
    %v6470 = vpop.f32.mrb[0].mxu0
    %6471 = vmatprep.mubr.f32.mxu0 0.0
    %6472 = vmatmul.mubr.f32.gmra.mrb[0].mxu0 %v5016
    %v6473 = vpop.f32.mrb[0].mxu0
    %v6474 = vadd.f32 0.0, %v6473
    %v6475 = vpop.f32.mrb[0].mxu0
    %6476 = vmatprep.mubr.f32.mxu0 0.0
    %6477 = vmatmul.mubr.f32.gmra.mrb[0].mxu0 %v5019
    %v6478 = vpop.f32.mrb[0].mxu0
    %v6479 = vadd.f32 0.0, %v6478
    %v6480 = vpop.f32.mrb[0].mxu0
    %6481 = vmatprep.mubr.f32.mxu0 0.0
    %6482 = vmatmul.mubr.f32.gmra.mrb[0].mxu0 %v5022
    %v6483 = vpop.f32.mrb[0].mxu0
    %v6484 = vadd.f32 0.0, %v6483
    %v6485 = vpop.f32.mrb[0].mxu0
    %6486 = vmatprep.mubr.f32.mxu0 0.0
    %6487 = vmatmul.mubr.f32.gmra.mrb[0].mxu0 %v5025
    %v6488 = vpop.f32.mrb[0].mxu0
    %v6489 = vadd.f32 0.0, %v6488
    %v6490 = vpop.f32.mrb[0].mxu0
    %6491 = vmatprep.mubr.f32.mxu0 0.0
    %6492 = vmatmul.mubr.f32.gmra.mrb[0].mxu0 %v5028
    %v6493 = vpop.f32.mrb[0].mxu0
    %v6494 = vadd.f32 0.0, %v6493
    %v6495 = vpop.f32.mrb[0].mxu0
    %6496 = vmatprep.mubr.f32.mxu0 0.0
    %6497 = vmatmul.mubr.f32.gmra.mrb[0].mxu0 %v5031
    %v6498 = vpop.f32.mrb[0].mxu0
    %v6499 = vadd.f32 0.0, %v6498
    %v6500 = vpop.f32.mrb[0].mxu0
    %6501 = vmatprep.mubr.f32.mxu0 0.0
    %6502 = vmatmul.mubr.f32.gmra.mrb[0].mxu0 %v5034
    %v6503 = vpop.f32.mrb[0].mxu0
    %v6504 = vadd.f32 0.0, %v6503
    %v6505 = vpop.f32.mrb[0].mxu0
    %6506 = vmatprep.mubr.f32.mxu0 0.0
    %6507 = vmatmul.mubr.f32.gmra.mrb[0].mxu0 %v5037
    %v6508 = vpop.f32.mrb[0].mxu0
    %v6509 = vadd.f32 0.0, %v6508
    %v6510 = vpop.f32.mrb[0].mxu0
    %6511 = vmatprep.mubr.f32.mxu0 0.0
    %6512 = vmatmul.mubr.f32.gmra.mrb[0].mxu0 %v5040
    %v6513 = vpop.f32.mrb[0].mxu0
    %v6514 = vadd.f32 0.0, %v6513
    %v6515 = vpop.f32.mrb[0].mxu0
    %6516 = vmatprep.mubr.f32.mxu0 0.0
    %6517 = vmatmul.mubr.f32.gmra.mrb[0].mxu0 %v5043
    %v6518 = vpop.f32.mrb[0].mxu0
    %v6519 = vadd.f32 0.0, %v6518
    %v6520 = vpop.f32.mrb[0].mxu0
    %6521 = vmatprep.mubr.f32.mxu0 0.0
    %6522 = vmatmul.mubr.f32.gmra.mrb[0].mxu0 %v5046
    %v6523 = vpop.f32.mrb[0].mxu0
    %v6524 = vadd.f32 0.0, %v6523
    %v6525 = vpop.f32.mrb[0].mxu0
    %6526 = vmatprep.mubr.f32.mxu0 0.0
    %6527 = vmatmul.mubr.f32.gmra.mrb[0].mxu0 %v5049
    %v6528 = vpop.f32.mrb[0].mxu0
    %v6529 = vadd.f32 0.0, %v6528
    %v6530 = vpop.f32.mrb[0].mxu0
    %6531 = vmatprep.mubr.f32.mxu0 0.0
    %6532 = vmatmul.mubr.f32.gmra.mrb[0].mxu0 %v5052
    %v6533 = vpop.f32.mrb[0].mxu0
    %v6534 = vadd.f32 0.0, %v6533
    %v6535 = vpop.f32.mrb[0].mxu0
    %6536 = vmatprep.mubr.f32.mxu0 0.0
    %6537 = vmatmul.mubr.f32.gmra.mrb[0].mxu0 %v5055
    %v6538 = vpop.f32.mrb[0].mxu0
    %v6539 = vadd.f32 0.0, %v6538
    %v6540 = vpop.f32.mrb[0].mxu0
    %6541 = vmatprep.mubr.f32.mxu0 0.0
    %6542 = vmatmul.mubr.f32.gmra.mrb[0].mxu0 %v5058
    %v6543 = vpop.f32.mrb[0].mxu0
    %v6544 = vadd.f32 0.0, %v6543
    %v6545 = vpop.f32.mrb[0].mxu0
    %6546 = vmatprep.mubr.f32.mxu0 0.0
    %6547 = vmatmul.mubr.f32.gmra.mrb[0].mxu0 %v5061
    %v6548 = vpop.f32.mrb[0].mxu0
    %v6549 = vadd.f32 0.0, %v6548
    %v6550 = vpop.f32.mrb[0].mxu0
    %6551 = vmatprep.mubr.f32.mxu0 0.0
    %6552 = vmatmul.mubr.f32.gmra.mrb[0].mxu0 %v5064
    %v6553 = vpop.f32.mrb[0].mxu0
    %v6554 = vadd.f32 0.0, %v6553
    %v6555 = vpop.f32.mrb[0].mxu0
    %6556 = vmatprep.mubr.f32.mxu0 0.0
    %6557 = vmatmul.mubr.f32.gmra.mrb[0].mxu0 %v5067
    %v6558 = vpop.f32.mrb[0].mxu0
    %v6559 = vadd.f32 0.0, %v6558
    %v6560 = vpop.f32.mrb[0].mxu0
    %6561 = vmatprep.mubr.f32.mxu0 0.0
    %6562 = vmatmul.mubr.f32.gmra.mrb[0].mxu0 %v5070
    %v6563 = vpop.f32.mrb[0].mxu0
    %v6564 = vadd.f32 0.0, %v6563
    %v6565 = vpop.f32.mrb[0].mxu0
    %6566 = vmatprep.mubr.f32.mxu0 0.0
    %6567 = vmatmul.mubr.f32.gmra.mrb[0].mxu0 %v5073
    %v6568 = vpop.f32.mrb[0].mxu0
    %v6569 = vadd.f32 0.0, %v6568
    %v6570 = vpop.f32.mrb[0].mxu0
    %6571 = vmatprep.mubr.f32.mxu0 0.0
    %6572 = vmatmul.mubr.f32.gmra.mrb[0].mxu0 %v5076
    %v6573 = vpop.f32.mrb[0].mxu0
    %v6574 = vadd.f32 0.0, %v6573
    %v6575 = vpop.f32.mrb[0].mxu0
    %6576 = vmatprep.mubr.f32.mxu0 0.0
    %6577 = vmatmul.mubr.f32.gmra.mrb[0].mxu0 %v5079
    %v6578 = vpop.f32.mrb[0].mxu0
    %v6579 = vadd.f32 0.0, %v6578
    %v6580 = vpop.f32.mrb[0].mxu0
    %6581 = vmatprep.mubr.f32.mxu0 0.0
    %6582 = vmatmul.mubr.f32.gmra.mrb[0].mxu0 %v5082
    %v6583 = vpop.f32.mrb[0].mxu0
    %v6584 = vadd.f32 0.0, %v6583
    %v6585 = vpop.f32.mrb[0].mxu0
    %6586 = vmatprep.mubr.f32.mxu0 0.0
    %6587 = vmatmul.mubr.f32.gmra.mrb[0].mxu0 %v5085
    %v6588 = vpop.f32.mrb[0].mxu0
    %v6589 = vadd.f32 0.0, %v6588
    %v6590 = vpop.f32.mrb[0].mxu0
    %6591 = vmatprep.mubr.f32.mxu0 0.0
    %6592 = vmatmul.mubr.f32.gmra.mrb[0].mxu0 %v5088
    %v6593 = vpop.f32.mrb[0].mxu0
    %v6594 = vadd.f32 0.0, %v6593
    %v6595 = vpop.f32.mrb[0].mxu0
    %6596 = vmatprep.mubr.f32.mxu0 0.0
    %6597 = vmatmul.mubr.f32.gmra.mrb[0].mxu0 %v5091
    %v6598 = vpop.f32.mrb[0].mxu0
    %v6599 = vadd.f32 0.0, %v6598
    %v6600 = vpop.f32.mrb[0].mxu0
    %6601 = vmatprep.mubr.f32.mxu0 0.0
    %6602 = vmatmul.mubr.f32.gmra.mrb[0].mxu0 %v5094
    %v6603 = vpop.f32.mrb[0].mxu0
    %v6604 = vadd.f32 0.0, %v6603
    %v6605 = vpop.f32.mrb[0].mxu0
    %6606 = vmatprep.mubr.f32.mxu0 0.0
    %6607 = vmatmul.mubr.f32.gmra.mrb[0].mxu0 %v5097
    %v6608 = vpop.f32.mrb[0].mxu0
    %v6609 = vadd.f32 0.0, %v6608
    %v6610 = vpop.f32.mrb[0].mxu0
    %6611 = vmatprep.mubr.f32.mxu0 0.0
    %6612 = vmatmul.mubr.f32.gmra.mrb[0].mxu0 %v5100
    %v6613 = vpop.f32.mrb[0].mxu0
    %v6614 = vadd.f32 0.0, %v6613
    %v6615 = vpop.f32.mrb[0].mxu0
    %6616 = vmatprep.mubr.f32.mxu0 0.0
    %6617 = vmatmul.mubr.f32.gmra.mrb[0].mxu0 %v5103
    %v6618 = vpop.f32.mrb[0].mxu0
    %v6619 = vadd.f32 0.0, %v6618
    %v6620 = vpop.f32.mrb[0].mxu0
    %6621 = vmatprep.mubr.f32.mxu0 0.0
    %6622 = vmatmul.mubr.f32.gmra.mrb[0].mxu0 %v5106
    %v6623 = vpop.f32.mrb[0].mxu0
    %v6624 = vadd.f32 0.0, %v6623
    %v6625 = vpop.f32.mrb[0].mxu0
    %6626 = vmatprep.mubr.f32.mxu0 0.0
    %6627 = vmatmul.mubr.f32.gmra.mrb[0].mxu0 %v5109
    %v6628 = vpop.f32.mrb[0].mxu0
    %v6629 = vadd.f32 0.0, %v6628
    %v6630 = vpop.f32.mrb[0].mxu0
    %6631 = vmatprep.mubr.f32.mxu0 0.0
    %6632 = vmatmul.mubr.f32.gmra.mrb[0].mxu0 %v5112
    %v6633 = vpop.f32.mrb[0].mxu0
    %v6634 = vadd.f32 0.0, %v6633
    %v6635 = vpop.f32.mrb[0].mxu0
    %6636 = vmatprep.mubr.f32.mxu0 0.0
    %6637 = vmatmul.mubr.f32.gmra.mrb[0].mxu0 %v5115
    %v6638 = vpop.f32.mrb[0].mxu0
    %v6639 = vadd.f32 0.0, %v6638
    %v6640 = vpop.f32.mrb[0].mxu0
    %6641 = vmatprep.mubr.f32.mxu0 0.0
    %6642 = vmatmul.mubr.f32.gmra.mrb[0].mxu0 %v5118
    %v6643 = vpop.f32.mrb[0].mxu0
    %v6644 = vadd.f32 0.0, %v6643
    %v6645 = vpop.f32.mrb[0].mxu0
    %6646 = vmatprep.mubr.f32.mxu0 0.0
    %6647 = vmatmul.mubr.f32.gmra.mrb[0].mxu0 %v5121
    %v6648 = vpop.f32.mrb[0].mxu0
    %v6649 = vadd.f32 0.0, %v6648
    %v6650 = vpop.f32.mrb[0].mxu0
    %6651 = vmatprep.mubr.f32.mxu0 0.0
    %6652 = vmatmul.mubr.f32.gmra.mrb[0].mxu0 %v5124
    %v6653 = vpop.f32.mrb[0].mxu0
    %v6654 = vadd.f32 0.0, %v6653
    %v6655 = vpop.f32.mrb[0].mxu0
    %6656 = vmatprep.mubr.f32.mxu0 0.0
    %6657 = vmatmul.mubr.f32.gmra.mrb[0].mxu0 %v5127
    %v6658 = vpop.f32.mrb[0].mxu0
    %v6659 = vadd.f32 0.0, %v6658
    %v6660 = vpop.f32.mrb[0].mxu0
    %6661 = vmatprep.mubr.f32.mxu0 0.0
    %6662 = vmatmul.mubr.f32.gmra.mrb[0].mxu0 %v5130
    %v6663 = vpop.f32.mrb[0].mxu0
    %v6664 = vadd.f32 0.0, %v6663
    %v6665 = vpop.f32.mrb[0].mxu0
    %6666 = vmatprep.mubr.f32.mxu0 0.0
    %6667 = vmatmul.mubr.f32.gmra.mrb[0].mxu0 %v5133
    %v6668 = vpop.f32.mrb[0].mxu0
    %v6669 = vadd.f32 0.0, %v6668
    %v6670 = vpop.f32.mrb[0].mxu0
    %6671 = vmatprep.mubr.f32.mxu0 0.0
    %6672 = vmatmul.mubr.f32.gmra.mrb[0].mxu0 %v5136
    %v6673 = vpop.f32.mrb[0].mxu0
    %v6674 = vadd.f32 0.0, %v6673
    %v6675 = vpop.f32.mrb[0].mxu0
    %6676 = vmatprep.mubr.f32.mxu0 0.0
    %6677 = vmatmul.mubr.f32.gmra.mrb[0].mxu0 %v5139
    %v6678 = vpop.f32.mrb[0].mxu0
    %v6679 = vadd.f32 0.0, %v6678
    %v6680 = vpop.f32.mrb[0].mxu0
    %6681 = vmatprep.mubr.f32.mxu0 0.0
    %6682 = vmatmul.mubr.f32.gmra.mrb[0].mxu0 %v5142
    %v6683 = vpop.f32.mrb[0].mxu0
    %v6684 = vadd.f32 0.0, %v6683
    %v6685 = vpop.f32.mrb[0].mxu0
    %6686 = vmatprep.mubr.f32.mxu0 0.0
    %6687 = vmatmul.mubr.f32.gmra.mrb[0].mxu0 %v5145
    %v6688 = vpop.f32.mrb[0].mxu0
    %v6689 = vadd.f32 0.0, %v6688
    %v6690 = vpop.f32.mrb[0].mxu0
    %6691 = vmatprep.mubr.f32.mxu0 0.0
    %6692 = vmatmul.mubr.f32.gmra.mrb[0].mxu0 %v5148
    %v6693 = vpop.f32.mrb[0].mxu0
    %v6694 = vadd.f32 0.0, %v6693
    %v6695 = vpop.f32.mrb[0].mxu0
    %6696 = vmatprep.mubr.f32.mxu0 0.0
    %6697 = vmatmul.mubr.f32.gmra.mrb[0].mxu0 %v5151
    %v6698 = vpop.f32.mrb[0].mxu0
    %v6699 = vadd.f32 0.0, %v6698
    %v6700 = vpop.f32.mrb[0].mxu0
    %6701 = vmatprep.mubr.f32.mxu0 0.0
    %6702 = vmatmul.mubr.f32.gmra.mrb[0].mxu0 %v5154
    %v6703 = vpop.f32.mrb[0].mxu0
    %v6704 = vadd.f32 0.0, %v6703
    %v6705 = vpop.f32.mrb[0].mxu0
    %6706 = vmatprep.mubr.f32.mxu0 0.0
    %6707 = vmatmul.mubr.f32.gmra.mrb[0].mxu0 %v5157
    %v6708 = vpop.f32.mrb[0].mxu0
    %v6709 = vadd.f32 0.0, %v6708
    %v6710 = vpop.f32.mrb[0].mxu0
    %6711 = vmatprep.mubr.f32.mxu0 0.0
    %6712 = vmatmul.mubr.f32.gmra.mrb[0].mxu0 %v5160
    %v6713 = vpop.f32.mrb[0].mxu0
    %v6714 = vadd.f32 0.0, %v6713
    %v6715 = vpop.f32.mrb[0].mxu0
    %6716 = vmatprep.mubr.f32.mxu0 0.0
    %6717 = vmatmul.mubr.f32.gmra.mrb[0].mxu0 %v5163
    %v6718 = vpop.f32.mrb[0].mxu0
    %v6719 = vadd.f32 0.0, %v6718
    %v6720 = vpop.f32.mrb[0].mxu0
    %6721 = vmatprep.mubr.f32.mxu0 0.0
    %6722 = vmatmul.mubr.f32.gmra.mrb[0].mxu0 %v5166
    %v6723 = vpop.f32.mrb[0].mxu0
    %v6724 = vadd.f32 0.0, %v6723
    %v6725 = vpop.f32.mrb[0].mxu0
    %6726 = vmatprep.mubr.f32.mxu0 0.0
    %6727 = vmatmul.mubr.f32.gmra.mrb[0].mxu0 %v5169
    %v6728 = vpop.f32.mrb[0].mxu0
    %v6729 = vadd.f32 0.0, %v6728
    %v6730 = vpop.f32.mrb[0].mxu0
    %6731 = vmatprep.mubr.f32.mxu0 0.0
    %6732 = vmatmul.mubr.f32.gmra.mrb[0].mxu0 %v5172
    %v6733 = vpop.f32.mrb[0].mxu0
    %v6734 = vadd.f32 0.0, %v6733
    %v6735 = vpop.f32.mrb[0].mxu0
    %6736 = vmatprep.mubr.f32.mxu0 0.0
    %6737 = vmatmul.mubr.f32.gmra.mrb[0].mxu0 %v5175
    %v6738 = vpop.f32.mrb[0].mxu0
    %v6739 = vadd.f32 0.0, %v6738
    %v6740 = vpop.f32.mrb[0].mxu0
    %6741 = vmatprep.mubr.f32.mxu0 0.0
    %6742 = vmatmul.mubr.f32.gmra.mrb[0].mxu0 %v5178
    %v6743 = vpop.f32.mrb[0].mxu0
    %v6744 = vadd.f32 0.0, %v6743
    %v6745 = vpop.f32.mrb[0].mxu0
    %6746 = vmatprep.mubr.f32.mxu0 0.0
    %6747 = vmatmul.mubr.f32.gmra.mrb[0].mxu0 %v5181
    %v6748 = vpop.f32.mrb[0].mxu0
    %v6749 = vadd.f32 0.0, %v6748
    %v6750 = vpop.f32.mrb[0].mxu0
    %6751 = vmatprep.mubr.f32.mxu0 0.0
    %6752 = vmatmul.mubr.f32.gmra.mrb[0].mxu0 %v5184
    %v6753 = vpop.f32.mrb[0].mxu0
    %v6754 = vadd.f32 0.0, %v6753
    %v6755 = vpop.f32.mrb[0].mxu0
    %6756 = vmatprep.mubr.f32.mxu0 0.0
    %6757 = vmatmul.mubr.f32.gmra.mrb[0].mxu0 %v5187
    %v6758 = vpop.f32.mrb[0].mxu0
    %v6759 = vadd.f32 0.0, %v6758
    %v6760 = vpop.f32.mrb[0].mxu0
    %6761 = vmatprep.mubr.f32.mxu0 0.0
    %6762 = vmatmul.mubr.f32.gmra.mrb[0].mxu0 %v5190
    %v6763 = vpop.f32.mrb[0].mxu0
    %v6764 = vadd.f32 0.0, %v6763
    %v6765 = vpop.f32.mrb[0].mxu0
    %6766 = vmatprep.mubr.f32.mxu0 0.0
    %6767 = vmatmul.mubr.f32.gmra.mrb[0].mxu0 %v5193
    %v6768 = vpop.f32.mrb[0].mxu0
    %v6769 = vadd.f32 0.0, %v6768
    %v6770 = vpop.f32.mrb[0].mxu0
    %6771 = vmatprep.mubr.f32.mxu0 0.0
    %6772 = vmatmul.mubr.f32.gmra.mrb[0].mxu0 %v5196
    %v6773 = vpop.f32.mrb[0].mxu0
    %v6774 = vadd.f32 0.0, %v6773
    %v6775 = vpop.f32.mrb[0].mxu0
    %6776 = vmatprep.mubr.f32.mxu0 0.0
    %6777 = vmatmul.mubr.f32.gmra.mrb[0].mxu0 %v5199
    %v6778 = vpop.f32.mrb[0].mxu0
    %v6779 = vadd.f32 0.0, %v6778
    %v6780 = vpop.f32.mrb[0].mxu0
    %6781 = vmatprep.mubr.f32.mxu0 0.0
    %6782 = vmatmul.mubr.f32.gmra.mrb[0].mxu0 %v5202
    %v6783 = vpop.f32.mrb[0].mxu0
    %v6784 = vadd.f32 0.0, %v6783
    %v6785 = vpop.f32.mrb[0].mxu0
    %6786 = vmatprep.mubr.f32.mxu0 0.0
    %6787 = vmatmul.mubr.f32.gmra.mrb[0].mxu0 %v5205
    %v6788 = vpop.f32.mrb[0].mxu0
    %v6789 = vadd.f32 0.0, %v6788
    %v6790 = vpop.f32.mrb[0].mxu0
    %6791 = vmatprep.mubr.f32.mxu0 0.0
    %6792 = vmatmul.mubr.f32.gmra.mrb[0].mxu0 %v5208
    %v6793 = vpop.f32.mrb[0].mxu0
    %v6794 = vadd.f32 0.0, %v6793
    %v6795 = vpop.f32.mrb[0].mxu0
    %6796 = vmatprep.mubr.f32.mxu0 0.0
    %6797 = vmatmul.mubr.f32.gmra.mrb[0].mxu0 %v5211
    %v6798 = vpop.f32.mrb[0].mxu0
    %v6799 = vadd.f32 0.0, %v6798
    %v6800 = vpop.f32.mrb[0].mxu0
    %6801 = vmatprep.mubr.f32.mxu0 0.0
    %6802 = vmatmul.mubr.f32.gmra.mrb[0].mxu0 %v5214
    %v6803 = vpop.f32.mrb[0].mxu0
    %v6804 = vadd.f32 0.0, %v6803
    %v6805 = vpop.f32.mrb[0].mxu0
    %6806 = vmatprep.mubr.f32.mxu0 0.0
    %6807 = vmatmul.mubr.f32.gmra.mrb[0].mxu0 %v5217
    %v6808 = vpop.f32.mrb[0].mxu0
    %v6809 = vadd.f32 0.0, %v6808
    %v6810 = vpop.f32.mrb[0].mxu0
    %6811 = vmatprep.mubr.f32.mxu0 0.0
    %6812 = vmatmul.mubr.f32.gmra.mrb[0].mxu0 %v5220
    %v6813 = vpop.f32.mrb[0].mxu0
    %v6814 = vadd.f32 0.0, %v6813
    %v6815 = vpop.f32.mrb[0].mxu0
    %6816 = vmatprep.mubr.f32.mxu0 0.0
    %6817 = vmatmul.mubr.f32.gmra.mrb[0].mxu0 %v5223
    %v6818 = vpop.f32.mrb[0].mxu0
    %v6819 = vadd.f32 0.0, %v6818
    %v6820 = vpop.f32.mrb[0].mxu0
    %6821 = vmatprep.mubr.f32.mxu0 0.0
    %6822 = vmatmul.mubr.f32.gmra.mrb[0].mxu0 %v5226
    %v6823 = vpop.f32.mrb[0].mxu0
    %v6824 = vadd.f32 0.0, %v6823
    %v6825 = vpop.f32.mrb[0].mxu0
    %6826 = vmatprep.mubr.f32.mxu0 0.0
    %6827 = vmatmul.mubr.f32.gmra.mrb[0].mxu0 %v5229
    %v6828 = vpop.f32.mrb[0].mxu0
    %v6829 = vadd.f32 0.0, %v6828
    %v6830 = vpop.f32.mrb[0].mxu0
    %6831 = vmatprep.mubr.f32.mxu0 0.0
    %6832 = vmatmul.mubr.f32.gmra.mrb[0].mxu0 %v5232
    %v6833 = vpop.f32.mrb[0].mxu0
    %v6834 = vadd.f32 0.0, %v6833
    %v6835 = vpop.f32.mrb[0].mxu0
    %6836 = vmatprep.mubr.f32.mxu0 0.0
    %6837 = vmatmul.mubr.f32.gmra.mrb[0].mxu0 %v5235
    %v6838 = vpop.f32.mrb[0].mxu0
    %v6839 = vadd.f32 0.0, %v6838
    %v6840 = vpop.f32.mrb[0].mxu0
    %6841 = vmatprep.mubr.f32.mxu0 0.0
    %6842 = vmatmul.mubr.f32.gmra.mrb[0].mxu0 %v5238
    %v6843 = vpop.f32.mrb[0].mxu0
    %v6844 = vadd.f32 0.0, %v6843
    %v6845 = vpop.f32.mrb[0].mxu0
    %6846 = vmatprep.mubr.f32.mxu0 0.0
    %6847 = vmatmul.mubr.f32.gmra.mrb[0].mxu0 %v5241
    %v6848 = vpop.f32.mrb[0].mxu0
    %v6849 = vadd.f32 0.0, %v6848
    %v6850 = vpop.f32.mrb[0].mxu0
    %6851 = vmatprep.mubr.f32.mxu0 0.0
    %6852 = vmatmul.mubr.f32.gmra.mrb[0].mxu0 %v5244
    %v6853 = vpop.f32.mrb[0].mxu0
    %v6854 = vadd.f32 0.0, %v6853
    %v6855 = vpop.f32.mrb[0].mxu0
    %6856 = vmatprep.mubr.f32.mxu0 0.0
    %6857 = vmatmul.mubr.f32.gmra.mrb[0].mxu0 %v5247
    %v6858 = vpop.f32.mrb[0].mxu0
    %v6859 = vadd.f32 0.0, %v6858
    %v6860 = vpop.f32.mrb[0].mxu0
    %6861 = vmatprep.mubr.f32.mxu0 0.0
    %6862 = vmatmul.mubr.f32.gmra.mrb[0].mxu0 %v5250
    %v6863 = vpop.f32.mrb[0].mxu0
    %v6864 = vadd.f32 0.0, %v6863
    %v6865 = vpop.f32.mrb[0].mxu0
    %6866 = vmatprep.mubr.f32.mxu0 0.0
    %6867 = vmatmul.mubr.f32.gmra.mrb[0].mxu0 %v5253
    %v6868 = vpop.f32.mrb[0].mxu0
    %v6869 = vadd.f32 0.0, %v6868
    %v6870 = vpop.f32.mrb[0].mxu0
    %6871 = vmatprep.mubr.f32.mxu0 0.0
    %6872 = vmatmul.mubr.f32.gmra.mrb[0].mxu0 %v5256
    %v6873 = vpop.f32.mrb[0].mxu0
    %v6874 = vadd.f32 0.0, %v6873
    %v6875 = vpop.f32.mrb[0].mxu0
    %6876 = vmatprep.mubr.f32.mxu0 0.0
    %6877 = vmatmul.mubr.f32.gmra.mrb[0].mxu0 %v5259
    %v6878 = vpop.f32.mrb[0].mxu0
    %v6879 = vadd.f32 0.0, %v6878
    %v6880 = vpop.f32.mrb[0].mxu0
    %6881 = vmatprep.mubr.f32.mxu0 0.0
    %6882 = vmatmul.mubr.f32.gmra.mrb[0].mxu0 %v5262
    %v6883 = vpop.f32.mrb[0].mxu0
    %v6884 = vadd.f32 0.0, %v6883
    %v6885 = vpop.f32.mrb[0].mxu0
    %6886 = vmatprep.mubr.f32.mxu0 0.0
    %6887 = vmatmul.mubr.f32.gmra.mrb[0].mxu0 %v5265
    %v6888 = vpop.f32.mrb[0].mxu0
    %v6889 = vadd.f32 0.0, %v6888
    %v6890 = vpop.f32.mrb[0].mxu0
    %6891 = vmatprep.mubr.f32.mxu0 0.0
    %6892 = vmatmul.mubr.f32.gmra.mrb[0].mxu0 %v5268
    %v6893 = vpop.f32.mrb[0].mxu0
    %v6894 = vadd.f32 0.0, %v6893
    %v6895 = vpop.f32.mrb[0].mxu0
    %6896 = vmatprep.mubr.f32.mxu0 0.0
    %6897 = vmatmul.mubr.f32.gmra.mrb[0].mxu0 %v5271
    %v6898 = vpop.f32.mrb[0].mxu0
    %v6899 = vadd.f32 0.0, %v6898
    %v6900 = vpop.f32.mrb[0].mxu0
    %6901 = vmatprep.mubr.f32.mxu0 0.0
    %6902 = vmatmul.mubr.f32.gmra.mrb[0].mxu0 %v5274
    %v6903 = vpop.f32.mrb[0].mxu0
    %v6904 = vadd.f32 0.0, %v6903
    %v6905 = vpop.f32.mrb[0].mxu0
    %6906 = vmatprep.mubr.f32.mxu0 0.0
    %6907 = vmatmul.mubr.f32.gmra.mrb[0].mxu0 %v5277
    %v6908 = vpop.f32.mrb[0].mxu0
    %v6909 = vadd.f32 0.0, %v6908
    %v6910 = vpop.f32.mrb[0].mxu0
    %6911 = vmatprep.mubr.f32.mxu0 0.0
    %6912 = vmatmul.mubr.f32.gmra.mrb[0].mxu0 %v5280
    %v6913 = vpop.f32.mrb[0].mxu0
    %v6914 = vadd.f32 0.0, %v6913
    %v6915 = vpop.f32.mrb[0].mxu0
    %6916 = vmatprep.mubr.f32.mxu0 0.0
    %6917 = vmatmul.mubr.f32.gmra.mrb[0].mxu0 %v5283
    %v6918 = vpop.f32.mrb[0].mxu0
    %v6919 = vadd.f32 0.0, %v6918
    %v6920 = vpop.f32.mrb[0].mxu0
    %6921 = vmatprep.mubr.f32.mxu0 0.0
    %6922 = vmatmul.mubr.f32.gmra.mrb[0].mxu0 %v5286
    %v6923 = vpop.f32.mrb[0].mxu0
    %v6924 = vadd.f32 0.0, %v6923
    %v6925 = vpop.f32.mrb[0].mxu0
    %6926 = vmatprep.mubr.f32.mxu0 0.0
    %6927 = vmatmul.mubr.f32.gmra.mrb[0].mxu0 %v5289
    %v6928 = vpop.f32.mrb[0].mxu0
    %v6929 = vadd.f32 0.0, %v6928
    %v6930 = vpop.f32.mrb[0].mxu0
    %6931 = vmatprep.mubr.f32.mxu0 0.0
    %6932 = vmatmul.mubr.f32.gmra.mrb[0].mxu0 %v5292
    %v6933 = vpop.f32.mrb[0].mxu0
    %v6934 = vadd.f32 0.0, %v6933
    %v6935 = vpop.f32.mrb[0].mxu0
    %6936 = vmatprep.mubr.f32.mxu0 0.0
    %6937 = vmatmul.mubr.f32.gmra.mrb[0].mxu0 %v5295
    %v6938 = vpop.f32.mrb[0].mxu0
    %v6939 = vadd.f32 0.0, %v6938
    %v6940 = vpop.f32.mrb[0].mxu0
    %6941 = vmatprep.mubr.f32.mxu0 0.0
    %6942 = vmatmul.mubr.f32.gmra.mrb[0].mxu0 %v5298
    %v6943 = vpop.f32.mrb[0].mxu0
    %v6944 = vadd.f32 0.0, %v6943
    %v6945 = vpop.f32.mrb[0].mxu0
    %6946 = vmatprep.mubr.f32.mxu0 0.0
    %6947 = vmatmul.mubr.f32.gmra.mrb[0].mxu0 %v5301
    %v6948 = vpop.f32.mrb[0].mxu0
    %v6949 = vadd.f32 0.0, %v6948
    %v6950 = vpop.f32.mrb[0].mxu0
    %6951 = vmatprep.mubr.f32.mxu0 0.0
    %6952 = vmatmul.mubr.f32.gmra.mrb[0].mxu0 %v5304
    %v6953 = vpop.f32.mrb[0].mxu0
    %v6954 = vadd.f32 0.0, %v6953
    %v6955 = vpop.f32.mrb[0].mxu0
    %6956 = vmatprep.mubr.f32.mxu0 0.0
    %6957 = vmatmul.mubr.f32.gmra.mrb[0].mxu0 %v5307
    %v6958 = vpop.f32.mrb[0].mxu0
    %v6959 = vadd.f32 0.0, %v6958
    %v6960 = vpop.f32.mrb[0].mxu0
    %6961 = vmatprep.mubr.f32.mxu0 0.0
    %6962 = vmatmul.mubr.f32.gmra.mrb[0].mxu0 %v5310
    %v6963 = vpop.f32.mrb[0].mxu0
    %v6964 = vadd.f32 0.0, %v6963
    %v6965 = vpop.f32.mrb[0].mxu0
    %6966 = vmatprep.mubr.f32.mxu0 0.0
    %6967 = vmatmul.mubr.f32.gmra.mrb[0].mxu0 %v5313
    %v6968 = vpop.f32.mrb[0].mxu0
    %v6969 = vadd.f32 0.0, %v6968
    %v6970 = vpop.f32.mrb[0].mxu0
    %6971 = vmatprep.mubr.f32.mxu0 0.0
    %6972 = vmatmul.mubr.f32.gmra.mrb[0].mxu0 %v5316
    %v6973 = vpop.f32.mrb[0].mxu0
    %v6974 = vadd.f32 0.0, %v6973
    %v6975 = vpop.f32.mrb[0].mxu0
    %6976 = vmatprep.mubr.f32.mxu0 0.0
    %6977 = vmatmul.mubr.f32.gmra.mrb[0].mxu0 %v5319
    %v6978 = vpop.f32.mrb[0].mxu0
    %v6979 = vadd.f32 0.0, %v6978
    %v6980 = vpop.f32.mrb[0].mxu0
    %6981 = vmatprep.mubr.f32.mxu0 0.0
    %6982 = vmatmul.mubr.f32.gmra.mrb[0].mxu0 %v5322
    %v6983 = vpop.f32.mrb[0].mxu0
    %v6984 = vadd.f32 0.0, %v6983
    %v6985 = vpop.f32.mrb[0].mxu0
    %6986 = vmatprep.mubr.f32.mxu0 0.0
    %6987 = vmatmul.mubr.f32.gmra.mrb[0].mxu0 %v5325
    %v6988 = vpop.f32.mrb[0].mxu0
    %v6989 = vadd.f32 0.0, %v6988
    %v6990 = vpop.f32.mrb[0].mxu0
    %6991 = vmatprep.mubr.f32.mxu0 0.0
    %6992 = vmatmul.mubr.f32.gmra.mrb[0].mxu0 %v5328
    %v6993 = vpop.f32.mrb[0].mxu0
    %v6994 = vadd.f32 0.0, %v6993
    %v6995 = vpop.f32.mrb[0].mxu0
    %6996 = vmatprep.mubr.f32.mxu0 0.0
    %6997 = vmatmul.mubr.f32.gmra.mrb[0].mxu0 %v5331
    %v6998 = vpop.f32.mrb[0].mxu0
    %v6999 = vadd.f32 0.0, %v6998
    %v7000 = vpop.f32.mrb[0].mxu0
    %7001 = vmatprep.mubr.f32.mxu0 0.0
    %7002 = vmatmul.mubr.f32.gmra.mrb[0].mxu0 %v5334
    %v7003 = vpop.f32.mrb[0].mxu0
    %v7004 = vadd.f32 0.0, %v7003
    %v7005 = vpop.f32.mrb[0].mxu0
    %7006 = vmatprep.mubr.f32.mxu0 0.0
    %7007 = vmatmul.mubr.f32.gmra.mrb[0].mxu0 %v5337
    %v7008 = vpop.f32.mrb[0].mxu0
    %v7009 = vadd.f32 0.0, %v7008
    %v7010 = vpop.f32.mrb[0].mxu0
    %7011 = vmatprep.mubr.f32.mxu0 0.0
    %7012 = vmatmul.mubr.f32.gmra.mrb[0].mxu0 %v5340
    %v7013 = vpop.f32.mrb[0].mxu0
    %v7014 = vadd.f32 0.0, %v7013
    %v7015 = vpop.f32.mrb[0].mxu0
    %7016 = vmatprep.mubr.f32.mxu0 0.0
    %7017 = vmatmul.mubr.f32.gmra.mrb[0].mxu0 %v5343
    %v7018 = vpop.f32.mrb[0].mxu0
    %v7019 = vadd.f32 0.0, %v7018
    %v7020 = vpop.f32.mrb[0].mxu0
    %7021 = vmatprep.mubr.f32.mxu0 0.0
    %7022 = vmatmul.mubr.f32.gmra.mrb[0].mxu0 %v5346
    %v7023 = vpop.f32.mrb[0].mxu0
    %v7024 = vadd.f32 0.0, %v7023
    %v7025 = vpop.f32.mrb[0].mxu0
    %7026 = vmatprep.mubr.f32.mxu0 0.0
    %7027 = vmatmul.mubr.f32.gmra.mrb[0].mxu0 %v5349
    %v7028 = vpop.f32.mrb[0].mxu0
    %v7029 = vadd.f32 0.0, %v7028
    %v7030 = vpop.f32.mrb[0].mxu0
    %7031 = vmatprep.mubr.f32.mxu0 0.0
    %7032 = vmatmul.mubr.f32.gmra.mrb[0].mxu0 %v5352
    %v7033 = vpop.f32.mrb[0].mxu0
    %v7034 = vadd.f32 0.0, %v7033
    %v7035 = vpop.f32.mrb[0].mxu0
    %7036 = vmatprep.mubr.f32.mxu0 0.0
    %7037 = vmatmul.mubr.f32.gmra.mrb[0].mxu0 %v5355
    %v7038 = vpop.f32.mrb[0].mxu0
    %v7039 = vadd.f32 0.0, %v7038
    %v7040 = vpop.f32.mrb[0].mxu0
    %7041 = vmatprep.mubr.f32.mxu0 0.0
    %7042 = vmatmul.mubr.f32.gmra.mrb[0].mxu0 %v5358
    %v7043 = vpop.f32.mrb[0].mxu0
    %v7044 = vadd.f32 0.0, %v7043
    %v7045 = vpop.f32.mrb[0].mxu0
    %7046 = vmatprep.mubr.f32.mxu0 0.0
    %7047 = vmatmul.mubr.f32.gmra.mrb[0].mxu0 %v5361
    %v7048 = vpop.f32.mrb[0].mxu0
    %v7049 = vadd.f32 0.0, %v7048
    %v7050 = vpop.f32.mrb[0].mxu0
    %7051 = vmatprep.mubr.f32.mxu0 0.0
    %7052 = vmatmul.mubr.f32.gmra.mrb[0].mxu0 %v5364
    %v7053 = vpop.f32.mrb[0].mxu0
    %v7054 = vadd.f32 0.0, %v7053
    %v7055 = vpop.f32.mrb[0].mxu0
    %7056 = vmatprep.mubr.f32.mxu0 0.0
    %7057 = vmatmul.mubr.f32.gmra.mrb[0].mxu0 %v5367
    %v7058 = vpop.f32.mrb[0].mxu0
    %v7059 = vadd.f32 0.0, %v7058
    %v7060 = vpop.f32.mrb[0].mxu0
    %7061 = vmatprep.mubr.f32.mxu0 0.0
    %7062 = vmatmul.mubr.f32.gmra.mrb[0].mxu0 %v5370
    %v7063 = vpop.f32.mrb[0].mxu0
    %v7064 = vadd.f32 0.0, %v7063
    %v7065 = vpop.f32.mrb[0].mxu0
    %7066 = vmatprep.mubr.f32.mxu0 0.0
    %7067 = vmatmul.mubr.f32.gmra.mrb[0].mxu0 %v5373
    %v7068 = vpop.f32.mrb[0].mxu0
    %v7069 = vadd.f32 0.0, %v7068
    %v7070 = vpop.f32.mrb[0].mxu0
    %7071 = vmatprep.mubr.f32.mxu0 0.0
    %7072 = vmatmul.mubr.f32.gmra.mrb[0].mxu0 %v5376
    %v7073 = vpop.f32.mrb[0].mxu0
    %v7074 = vadd.f32 0.0, %v7073
    %v7075 = vpop.f32.mrb[0].mxu0
    %7076 = vmatprep.mubr.f32.mxu0 0.0
    %7077 = vmatmul.mubr.f32.gmra.mrb[0].mxu0 %v5379
    %v7078 = vpop.f32.mrb[0].mxu0
    %v7079 = vadd.f32 0.0, %v7078
    %v7080 = vpop.f32.mrb[0].mxu0
    %7081 = vmatprep.mubr.f32.mxu0 0.0
    %7082 = vmatmul.mubr.f32.gmra.mrb[0].mxu0 %v5382
    %v7083 = vpop.f32.mrb[0].mxu0
    %v7084 = vadd.f32 0.0, %v7083
    %v7085 = vpop.f32.mrb[0].mxu0
    %7086 = vmatprep.mubr.f32.mxu0 0.0
    %7087 = vmatmul.mubr.f32.gmra.mrb[0].mxu0 %v5385
    %v7088 = vpop.f32.mrb[0].mxu0
    %v7089 = vadd.f32 0.0, %v7088
    %v7090 = vpop.f32.mrb[0].mxu0
    %7091 = vmatprep.mubr.f32.mxu0 0.0
    %7092 = vmatmul.mubr.f32.gmra.mrb[0].mxu0 %v5388
    %v7093 = vpop.f32.mrb[0].mxu0
    %v7094 = vadd.f32 0.0, %v7093
    %v7095 = vpop.f32.mrb[0].mxu0
    %7096 = vmatprep.mubr.f32.mxu0 0.0
    %7097 = vmatmul.mubr.f32.gmra.mrb[0].mxu0 %v5391
    %v7098 = vpop.f32.mrb[0].mxu0
    %v7099 = vadd.f32 0.0, %v7098
    %v7100 = vpop.f32.mrb[0].mxu0
    %7101 = vmatprep.mubr.f32.mxu0 0.0
    %7102 = vmatmul.mubr.f32.gmra.mrb[0].mxu0 %v5394
    %v7103 = vpop.f32.mrb[0].mxu0
    %v7104 = vadd.f32 0.0, %v7103
    %v7105 = vpop.f32.mrb[0].mxu0
    %7106 = vmatprep.mubr.f32.mxu0 0.0
    %7107 = vmatmul.mubr.f32.gmra.mrb[0].mxu0 %v5397
    %v7108 = vpop.f32.mrb[0].mxu0
    %v7109 = vadd.f32 0.0, %v7108
    %v7110 = vpop.f32.mrb[0].mxu0
    %7111 = vmatprep.mubr.f32.mxu0 0.0
    %7112 = vmatmul.mubr.f32.gmra.mrb[0].mxu0 %v5400
    %v7113 = vpop.f32.mrb[0].mxu0
    %v7114 = vadd.f32 0.0, %v7113
    %v7115 = vpop.f32.mrb[0].mxu0
    %7116 = vmatprep.mubr.f32.mxu0 0.0
    %7117 = vmatmul.mubr.f32.gmra.mrb[0].mxu0 %v5403
    %v7118 = vpop.f32.mrb[0].mxu0
    %v7119 = vadd.f32 0.0, %v7118
    %v7120 = vpop.f32.mrb[0].mxu0
    %7121 = vmatprep.mubr.f32.mxu0 0.0
    %7122 = vmatmul.mubr.f32.gmra.mrb[0].mxu0 %v5406
    %v7123 = vpop.f32.mrb[0].mxu0
    %v7124 = vadd.f32 0.0, %v7123
    %v7125 = vpop.f32.mrb[0].mxu0
    %7126 = vmatprep.mubr.f32.mxu0 0.0
    %7127 = vmatmul.mubr.f32.gmra.mrb[0].mxu0 %v5409
    %v7128 = vpop.f32.mrb[0].mxu0
    %v7129 = vadd.f32 0.0, %v7128
    %v7130 = vpop.f32.mrb[0].mxu0
    %7131 = vmatprep.mubr.f32.mxu0 0.0
    %7132 = vmatmul.mubr.f32.gmra.mrb[0].mxu0 %v5412
    %v7133 = vpop.f32.mrb[0].mxu0
    %v7134 = vadd.f32 0.0, %v7133
    %v7135 = vpop.f32.mrb[0].mxu0
    %7136 = vmatprep.mubr.f32.mxu0 0.0
    %7137 = vmatmul.mubr.f32.gmra.mrb[0].mxu0 %v5415
    %v7138 = vpop.f32.mrb[0].mxu0
    %v7139 = vadd.f32 0.0, %v7138
    %v7140 = vpop.f32.mrb[0].mxu0
    %7141 = vmatprep.mubr.f32.mxu0 0.0
    %7142 = vmatmul.mubr.f32.gmra.mrb[0].mxu0 %v5418
    %v7143 = vpop.f32.mrb[0].mxu0
    %v7144 = vadd.f32 0.0, %v7143
    %v7145 = vpop.f32.mrb[0].mxu0
    %7146 = vmatprep.mubr.f32.mxu0 0.0
    %7147 = vmatmul.mubr.f32.gmra.mrb[0].mxu0 %v5421
    %v7148 = vpop.f32.mrb[0].mxu0
    %v7149 = vadd.f32 0.0, %v7148
    %v7150 = vpop.f32.mrb[0].mxu0
    %7151 = vmatprep.mubr.f32.mxu0 0.0
    %7152 = vmatmul.mubr.f32.gmra.mrb[0].mxu0 %v5424
    %v7153 = vpop.f32.mrb[0].mxu0
    %v7154 = vadd.f32 0.0, %v7153
    %v7155 = vpop.f32.mrb[0].mxu0
    %7156 = vmatprep.mubr.f32.mxu0 0.0
    %7157 = vmatmul.mubr.f32.gmra.mrb[0].mxu0 %v5427
    %v7158 = vpop.f32.mrb[0].mxu0
    %v7159 = vadd.f32 0.0, %v7158
    %v7160 = vpop.f32.mrb[0].mxu0
    %7161 = vmatprep.mubr.f32.mxu0 0.0
    %7162 = vmatmul.mubr.f32.gmra.mrb[0].mxu0 %v5430
    %v7163 = vpop.f32.mrb[0].mxu0
    %v7164 = vadd.f32 0.0, %v7163
    %v7165 = vpop.f32.mrb[0].mxu0
    %7166 = vmatprep.mubr.f32.mxu0 0.0
    %7167 = vmatmul.mubr.f32.gmra.mrb[0].mxu0 %v5433
    %v7168 = vpop.f32.mrb[0].mxu0
    %v7169 = vadd.f32 0.0, %v7168
    %v7170 = vpop.f32.mrb[0].mxu0
    %7171 = vmatprep.mubr.f32.mxu0 0.0
    %7172 = vmatmul.mubr.f32.gmra.mrb[0].mxu0 %v5436
    %v7173 = vpop.f32.mrb[0].mxu0
    %v7174 = vadd.f32 0.0, %v7173
    %v7175 = vpop.f32.mrb[0].mxu0
    %7176 = vmatprep.mubr.f32.mxu0 0.0
    %7177 = vmatmul.mubr.f32.gmra.mrb[0].mxu0 %v5439
    %v7178 = vpop.f32.mrb[0].mxu0
    %v7179 = vadd.f32 0.0, %v7178
    %v7180 = vpop.f32.mrb[0].mxu0
    %7181 = vmatprep.mubr.f32.mxu0 0.0
    %7182 = vmatmul.mubr.f32.gmra.mrb[0].mxu0 %v5442
    %v7183 = vpop.f32.mrb[0].mxu0
    %v7184 = vadd.f32 0.0, %v7183
    %v7185 = vpop.f32.mrb[0].mxu0
    %7186 = vmatprep.mubr.f32.mxu0 0.0
    %7187 = vmatmul.mubr.f32.gmra.mrb[0].mxu0 %v5445
    %v7188 = vpop.f32.mrb[0].mxu0
    %v7189 = vadd.f32 0.0, %v7188
    %v7190 = vpop.f32.mrb[0].mxu0
    %7191 = vmatprep.mubr.f32.mxu0 0.0
    %7192 = vmatmul.mubr.f32.gmra.mrb[0].mxu0 %v5448
    %v7193 = vpop.f32.mrb[0].mxu0
    %v7194 = vadd.f32 0.0, %v7193
    %v7195 = vpop.f32.mrb[0].mxu0
    %7196 = vmatprep.mubr.f32.mxu0 0.0
    %7197 = vmatmul.mubr.f32.gmra.mrb[0].mxu0 %v5451
    %v7198 = vpop.f32.mrb[0].mxu0
    %v7199 = vadd.f32 0.0, %v7198
    %v7200 = vpop.f32.mrb[0].mxu0
    %7201 = vmatprep.mubr.f32.mxu0 0.0
    %7202 = vmatmul.mubr.f32.gmra.mrb[0].mxu0 %v5454
    %v7203 = vpop.f32.mrb[0].mxu0
    %v7204 = vadd.f32 0.0, %v7203
    %v7205 = vpop.f32.mrb[0].mxu0
    %7206 = vmatprep.mubr.f32.mxu0 0.0
    %7207 = vmatmul.mubr.f32.gmra.mrb[0].mxu0 %v5457
    %v7208 = vpop.f32.mrb[0].mxu0
    %v7209 = vadd.f32 0.0, %v7208
    %v7210 = vpop.f32.mrb[0].mxu0
    %7211 = vmatprep.mubr.f32.mxu0 0.0
    %7212 = vmatmul.mubr.f32.gmra.mrb[0].mxu0 %v5460
    %v7213 = vpop.f32.mrb[0].mxu0
    %v7214 = vadd.f32 0.0, %v7213
    %v7215 = vpop.f32.mrb[0].mxu0
    %7216 = vmatprep.mubr.f32.mxu0 0.0
    %7217 = vmatmul.mubr.f32.gmra.mrb[0].mxu0 %v5463
    %v7218 = vpop.f32.mrb[0].mxu0
    %v7219 = vadd.f32 0.0, %v7218
    %v7220 = vpop.f32.mrb[0].mxu0
    %7221 = vmatprep.mubr.f32.mxu0 0.0
    %7222 = vmatmul.mubr.f32.gmra.mrb[0].mxu0 %v5466
    %v7223 = vpop.f32.mrb[0].mxu0
    %v7224 = vadd.f32 0.0, %v7223
    %v7225 = vpop.f32.mrb[0].mxu0
    %7226 = vmatprep.mubr.f32.mxu0 0.0
    %7227 = vmatmul.mubr.f32.gmra.mrb[0].mxu0 %v5469
    %v7228 = vpop.f32.mrb[0].mxu0
    %v7229 = vadd.f32 0.0, %v7228
    %v7230 = vpop.f32.mrb[0].mxu0
    %7231 = vmatprep.mubr.f32.mxu0 0.0
    %7232 = vmatmul.mubr.f32.gmra.mrb[0].mxu0 %v5472
    %v7233 = vpop.f32.mrb[0].mxu0
    %v7234 = vadd.f32 0.0, %v7233
    %v7235 = vpop.f32.mrb[0].mxu0
    %7236 = vmatprep.mubr.f32.mxu0 0.0
    %7237 = vmatmul.mubr.f32.gmra.mrb[0].mxu0 %v5475
    %v7238 = vpop.f32.mrb[0].mxu0
    %v7239 = vadd.f32 0.0, %v7238
    %v7240 = vpop.f32.mrb[0].mxu0
    %7241 = vmatprep.mubr.f32.mxu0 0.0
    %7242 = vmatmul.mubr.f32.gmra.mrb[0].mxu0 %v5478
    %v7243 = vpop.f32.mrb[0].mxu0
    %v7244 = vadd.f32 0.0, %v7243
    %v7245 = vpop.f32.mrb[0].mxu0
    %7246 = vmatprep.mubr.f32.mxu0 0.0
    %7247 = vmatmul.mubr.f32.gmra.mrb[0].mxu0 %v5481
    %v7248 = vpop.f32.mrb[0].mxu0
    %v7249 = vadd.f32 0.0, %v7248
    %v7250 = vpop.f32.mrb[0].mxu0
    %7251 = vmatprep.mubr.f32.mxu0 0.0
    %7252 = vmatmul.mubr.f32.gmra.mrb[0].mxu0 %v5484
    %v7253 = vpop.f32.mrb[0].mxu0
    %v7254 = vadd.f32 0.0, %v7253
    %v7255 = vpop.f32.mrb[0].mxu0
    %7256 = vmatprep.mubr.f32.mxu0 0.0
    %7257 = vmatmul.mubr.f32.gmra.mrb[0].mxu0 %v5487
    %v7258 = vpop.f32.mrb[0].mxu0
    %v7259 = vadd.f32 0.0, %v7258
    %v7260 = vpop.f32.mrb[0].mxu0
    %7261 = vmatprep.mubr.f32.mxu0 0.0
    %7262 = vmatmul.mubr.f32.gmra.mrb[0].mxu0 %v5490
    %v7263 = vpop.f32.mrb[0].mxu0
    %v7264 = vadd.f32 0.0, %v7263
    %v7265 = vpop.f32.mrb[0].mxu0
    %7266 = vmatprep.mubr.f32.mxu0 0.0
    %7267 = vmatmul.mubr.f32.gmra.mrb[0].mxu0 %v5493
    %v7268 = vpop.f32.mrb[0].mxu0
    %v7269 = vadd.f32 0.0, %v7268
    %v7270 = vpop.f32.mrb[0].mxu0
    %7271 = vmatprep.mubr.f32.mxu0 0.0
    %7272 = vmatmul.mubr.f32.gmra.mrb[0].mxu0 %v5496
    %v7273 = vpop.f32.mrb[0].mxu0
    %v7274 = vadd.f32 0.0, %v7273
    %v7275 = vpop.f32.mrb[0].mxu0
    %7276 = vmatprep.mubr.f32.mxu0 0.0
    %7277 = vmatmul.mubr.f32.gmra.mrb[0].mxu0 %v5499
    %v7278 = vpop.f32.mrb[0].mxu0
    %v7279 = vadd.f32 0.0, %v7278
    %v7280 = vpop.f32.mrb[0].mxu0
    %7281 = vmatprep.mubr.f32.mxu0 0.0
    %7282 = vmatmul.mubr.f32.gmra.mrb[0].mxu0 %v5502
    %v7283 = vpop.f32.mrb[0].mxu0
    %v7284 = vadd.f32 0.0, %v7283
    %v7285 = vpop.f32.mrb[0].mxu0
    %7286 = vmatprep.mubr.f32.mxu0 0.0
    %7287 = vmatmul.mubr.f32.gmra.mrb[0].mxu0 %v5505
    %v7288 = vpop.f32.mrb[0].mxu0
    %v7289 = vadd.f32 0.0, %v7288
    %v7290 = vpop.f32.mrb[0].mxu0
    %7291 = vmatprep.mubr.f32.mxu0 0.0
    %7292 = vmatmul.mubr.f32.gmra.mrb[0].mxu0 %v5508
    %v7293 = vpop.f32.mrb[0].mxu0
    %v7294 = vadd.f32 0.0, %v7293
    %v7295 = vpop.f32.mrb[0].mxu0
    %7296 = vmatprep.mubr.f32.mxu0 0.0
    %7297 = vmatmul.mubr.f32.gmra.mrb[0].mxu0 %v5511
    %v7298 = vpop.f32.mrb[0].mxu0
    %v7299 = vadd.f32 0.0, %v7298
    %v7300 = vpop.f32.mrb[0].mxu0
    %7301 = vmatprep.mubr.f32.mxu0 0.0
    %7302 = vmatmul.mubr.f32.gmra.mrb[0].mxu0 %v5514
    %v7303 = vpop.f32.mrb[0].mxu0
    %v7304 = vadd.f32 0.0, %v7303
    %v7305 = vpop.f32.mrb[0].mxu0
    %7306 = vmatprep.mubr.f32.mxu0 0.0
    %7307 = vmatmul.mubr.f32.gmra.mrb[0].mxu0 %v5517
    %v7308 = vpop.f32.mrb[0].mxu0
    %v7309 = vadd.f32 0.0, %v7308
    %v7310 = vpop.f32.mrb[0].mxu0
    %7311 = vmatprep.mubr.f32.mxu0 0.0
    %7312 = vmatmul.mubr.f32.gmra.mrb[0].mxu0 %v5520
    %v7313 = vpop.f32.mrb[0].mxu0
    %v7314 = vadd.f32 0.0, %v7313
    %v7315 = vpop.f32.mrb[0].mxu0
    %7316 = vmatprep.mubr.f32.mxu0 0.0
    %7317 = vmatmul.mubr.f32.gmra.mrb[0].mxu0 %v5523
    %v7318 = vpop.f32.mrb[0].mxu0
    %v7319 = vadd.f32 0.0, %v7318
    %v7320 = vpop.f32.mrb[0].mxu0
    %7321 = vmatprep.mubr.f32.mxu0 0.0
    %7322 = vmatmul.mubr.f32.gmra.mrb[0].mxu0 %v5526
    %v7323 = vpop.f32.mrb[0].mxu0
    %v7324 = vadd.f32 0.0, %v7323
    %v7325 = vpop.f32.mrb[0].mxu0
    %7326 = vmatprep.mubr.f32.mxu0 0.0
    %7327 = vmatmul.mubr.f32.gmra.mrb[0].mxu0 %v5529
    %v7328 = vpop.f32.mrb[0].mxu0
    %v7329 = vadd.f32 0.0, %v7328
    %v7330 = vpop.f32.mrb[0].mxu0
    %7331 = vmatprep.mubr.f32.mxu0 0.0
    %7332 = vmatmul.mubr.f32.gmra.mrb[0].mxu0 %v5532
    %v7333 = vpop.f32.mrb[0].mxu0
    %v7334 = vadd.f32 0.0, %v7333
    %v7335 = vpop.f32.mrb[0].mxu0
    %7336 = vmatprep.mubr.f32.mxu0 0.0
    %7337 = vmatmul.mubr.f32.gmra.mrb[0].mxu0 %v5535
    %v7338 = vpop.f32.mrb[0].mxu0
    %v7339 = vadd.f32 0.0, %v7338
    %v7340 = vpop.f32.mrb[0].mxu0
    %7341 = vmatprep.mubr.f32.mxu0 0.0
    %7342 = vmatmul.mubr.f32.gmra.mrb[0].mxu0 %v5538
    %v7343 = vpop.f32.mrb[0].mxu0
    %v7344 = vadd.f32 0.0, %v7343
    %v7345 = vpop.f32.mrb[0].mxu0
    %7346 = vmatprep.mubr.f32.mxu0 0.0
    %7347 = vmatmul.mubr.f32.gmra.mrb[0].mxu0 %v5541
    %v7348 = vpop.f32.mrb[0].mxu0
    %v7349 = vadd.f32 0.0, %v7348
    %v7350 = vpop.f32.mrb[0].mxu0
    %7351 = vmatprep.mubr.f32.mxu0 0.0
    %7352 = vmatmul.mubr.f32.gmra.mrb[0].mxu0 %v5544
    %v7353 = vpop.f32.mrb[0].mxu0
    %v7354 = vadd.f32 0.0, %v7353
    %v7355 = vpop.f32.mrb[0].mxu0
    %7356 = vmatprep.mubr.f32.mxu0 0.0
    %7357 = vmatmul.mubr.f32.gmra.mrb[0].mxu0 %v5547
    %v7358 = vpop.f32.mrb[0].mxu0
    %v7359 = vadd.f32 0.0, %v7358
    %v7360 = vpop.f32.mrb[0].mxu0
    %7361 = vmatprep.mubr.f32.mxu0 0.0
    %7362 = vmatmul.mubr.f32.gmra.mrb[0].mxu0 %v5550
    %v7363 = vpop.f32.mrb[0].mxu0
    %v7364 = vadd.f32 0.0, %v7363
    %v7365 = vpop.f32.mrb[0].mxu0
    %7366 = vmatprep.mubr.f32.mxu0 0.0
    %7367 = vmatmul.mubr.f32.gmra.mrb[0].mxu0 %v5553
    %v7368 = vpop.f32.mrb[0].mxu0
    %v7369 = vadd.f32 0.0, %v7368
    %v7370 = vpop.f32.mrb[0].mxu0
    %7371 = vmatprep.mubr.f32.mxu0 0.0
    %7372 = vmatmul.mubr.f32.gmra.mrb[0].mxu0 %v5556
    %v7373 = vpop.f32.mrb[0].mxu0
    %v7374 = vadd.f32 0.0, %v7373
    %v7375 = vpop.f32.mrb[0].mxu0
    %7376 = vmatprep.mubr.f32.mxu0 0.0
    %7377 = vmatmul.mubr.f32.gmra.mrb[0].mxu0 %v5559
    %v7378 = vpop.f32.mrb[0].mxu0
    %v7379 = vadd.f32 0.0, %v7378
    %v7380 = vpop.f32.mrb[0].mxu0
    %7381 = vmatprep.mubr.f32.mxu0 0.0
    %7382 = vmatmul.mubr.f32.gmra.mrb[0].mxu0 %v5562
    %v7383 = vpop.f32.mrb[0].mxu0
    %v7384 = vadd.f32 0.0, %v7383
    %v7385 = vpop.f32.mrb[0].mxu0
    %7386 = vmatprep.mubr.f32.mxu0 0.0
    %7387 = vmatmul.mubr.f32.gmra.mrb[0].mxu0 %v5565
    %v7388 = vpop.f32.mrb[0].mxu0
    %v7389 = vadd.f32 0.0, %v7388
    %v7390 = vpop.f32.mrb[0].mxu0
    %7391 = vmatprep.mubr.f32.mxu0 0.0
    %7392 = vmatmul.mubr.f32.gmra.mrb[0].mxu0 %v5568
    %v7393 = vpop.f32.mrb[0].mxu0
    %v7394 = vadd.f32 0.0, %v7393
    %v7395 = vpop.f32.mrb[0].mxu0
    %7396 = vmatprep.mubr.f32.mxu0 0.0
    %7397 = vmatmul.mubr.f32.gmra.mrb[0].mxu0 %v5571
    %v7398 = vpop.f32.mrb[0].mxu0
    %v7399 = vadd.f32 0.0, %v7398
    %v7400 = vpop.f32.mrb[0].mxu0
    %7401 = vmatprep.mubr.f32.mxu0 0.0
    %7402 = vmatmul.mubr.f32.gmra.mrb[0].mxu0 %v5574
    %v7403 = vpop.f32.mrb[0].mxu0
    %v7404 = vadd.f32 0.0, %v7403
    %v7405 = vpop.f32.mrb[0].mxu0
    %7406 = vmatprep.mubr.f32.mxu0 0.0
    %7407 = vmatmul.mubr.f32.gmra.mrb[0].mxu0 %v5577
    %v7408 = vpop.f32.mrb[0].mxu0
    %v7409 = vadd.f32 0.0, %v7408
    %v7410 = vpop.f32.mrb[0].mxu0
    %7411 = vmatprep.mubr.f32.mxu0 0.0
    %7412 = vmatmul.mubr.f32.gmra.mrb[0].mxu0 %v5580
    %v7413 = vpop.f32.mrb[0].mxu0
    %v7414 = vadd.f32 0.0, %v7413
    %v7415 = vpop.f32.mrb[0].mxu0
    %7416 = vmatprep.mubr.f32.mxu0 0.0
    %7417 = vmatmul.mubr.f32.gmra.mrb[0].mxu0 %v5583
    %v7418 = vpop.f32.mrb[0].mxu0
    %v7419 = vadd.f32 0.0, %v7418
    %v7420 = vpop.f32.mrb[0].mxu0
    %7421 = vmatprep.mubr.f32.mxu0 0.0
    %7422 = vmatmul.mubr.f32.gmra.mrb[0].mxu0 %v5586
    %v7423 = vpop.f32.mrb[0].mxu0
    %v7424 = vadd.f32 0.0, %v7423
    %v7425 = vpop.f32.mrb[0].mxu0
    %7426 = vmatprep.mubr.f32.mxu0 0.0
    %7427 = vmatmul.mubr.f32.gmra.mrb[0].mxu0 %v5589
    %v7428 = vpop.f32.mrb[0].mxu0
    %v7429 = vadd.f32 0.0, %v7428
    %v7430 = vpop.f32.mrb[0].mxu0
    %7431 = vmatprep.mubr.f32.mxu0 0.0
    %7432 = vmatmul.mubr.f32.gmra.mrb[0].mxu0 %v5592
    %v7433 = vpop.f32.mrb[0].mxu0
    %v7434 = vadd.f32 0.0, %v7433
    %v7435 = vpop.f32.mrb[0].mxu0
    %7436 = vmatprep.mubr.f32.mxu0 0.0
    %7437 = vmatmul.mubr.f32.gmra.mrb[0].mxu0 %v5595
    %v7438 = vpop.f32.mrb[0].mxu0
    %v7439 = vadd.f32 0.0, %v7438
    %v7440 = vpop.f32.mrb[0].mxu0
    %7441 = vmatprep.mubr.f32.mxu0 0.0
    %7442 = vmatmul.mubr.f32.gmra.mrb[0].mxu0 %v5598
    %v7443 = vpop.f32.mrb[0].mxu0
    %v7444 = vadd.f32 0.0, %v7443
    %v7445 = vpop.f32.mrb[0].mxu0
    %7446 = vmatprep.mubr.f32.mxu0 0.0
    %7447 = vmatmul.mubr.f32.gmra.mrb[0].mxu0 %v5601
    %v7448 = vpop.f32.mrb[0].mxu0
    %v7449 = vadd.f32 0.0, %v7448
    %v7450 = vpop.f32.mrb[0].mxu0
    %7451 = vmatprep.mubr.f32.mxu0 0.0
    %7452 = vmatmul.mubr.f32.gmra.mrb[0].mxu0 %v5604
    %v7453 = vpop.f32.mrb[0].mxu0
    %v7454 = vadd.f32 0.0, %v7453
    %v7455 = vpop.f32.mrb[0].mxu0
    %7456 = vmatprep.mubr.f32.mxu0 0.0
    %7457 = vmatmul.mubr.f32.gmra.mrb[0].mxu0 %v5607
    %v7458 = vpop.f32.mrb[0].mxu0
    %v7459 = vadd.f32 0.0, %v7458
    %v7460 = vpop.f32.mrb[0].mxu0
    %7461 = vmatprep.mubr.f32.mxu0 0.0
    %7462 = vmatmul.mubr.f32.gmra.mrb[0].mxu0 %v5610
    %v7463 = vpop.f32.mrb[0].mxu0
    %v7464 = vadd.f32 0.0, %v7463
    %v7465 = vpop.f32.mrb[0].mxu0
    %7466 = vmatprep.mubr.f32.mxu0 0.0
    %7467 = vmatmul.mubr.f32.gmra.mrb[0].mxu0 %v5613
    %v7468 = vpop.f32.mrb[0].mxu0
    %v7469 = vadd.f32 0.0, %v7468
    %v7470 = vpop.f32.mrb[0].mxu0
    %7471 = vmatprep.mubr.f32.mxu0 0.0
    %7472 = vmatmul.mubr.f32.gmra.mrb[0].mxu0 %v5616
    %v7473 = vpop.f32.mrb[0].mxu0
    %v7474 = vadd.f32 0.0, %v7473
    %v7475 = vpop.f32.mrb[0].mxu0
    %7476 = vmatprep.mubr.f32.mxu0 0.0
    %7477 = vmatmul.mubr.f32.gmra.mrb[0].mxu0 %v5619
    %v7478 = vpop.f32.mrb[0].mxu0
    %v7479 = vadd.f32 0.0, %v7478
    %v7480 = vpop.f32.mrb[0].mxu0
    %7481 = vmatprep.mubr.f32.mxu0 0.0
    %7482 = vmatmul.mubr.f32.gmra.mrb[0].mxu0 %v5622
    %v7483 = vpop.f32.mrb[0].mxu0
    %v7484 = vadd.f32 0.0, %v7483
    %v7485 = vpop.f32.mrb[0].mxu0
    %7486 = vmatprep.mubr.f32.mxu0 0.0
    %7487 = vmatmul.mubr.f32.gmra.mrb[0].mxu0 %v5625
    %v7488 = vpop.f32.mrb[0].mxu0
    %v7489 = vadd.f32 0.0, %v7488
    %v7490 = vpop.f32.mrb[0].mxu0
    %7491 = vmatprep.mubr.f32.mxu0 0.0
    %7492 = vmatmul.mubr.f32.gmra.mrb[0].mxu0 %v5628
    %v7493 = vpop.f32.mrb[0].mxu0
    %v7494 = vadd.f32 0.0, %v7493
    %v7495 = vpop.f32.mrb[0].mxu0
    %7496 = vmatprep.mubr.f32.mxu0 0.0
    %7497 = vmatmul.mubr.f32.gmra.mrb[0].mxu0 %v5631
    %v7498 = vpop.f32.mrb[0].mxu0
    %v7499 = vadd.f32 0.0, %v7498
    %v7500 = vpop.f32.mrb[0].mxu0
    %7501 = vmatprep.mubr.f32.mxu0 0.0
    %7502 = vmatmul.mubr.f32.gmra.mrb[0].mxu0 %v5634
    %v7503 = vpop.f32.mrb[0].mxu0
    %v7504 = vadd.f32 0.0, %v7503
    %v7505 = vpop.f32.mrb[0].mxu0
    %7506 = vmatprep.mubr.f32.mxu0 0.0
    %7507 = vmatmul.mubr.f32.gmra.mrb[0].mxu0 %v5637
    %v7508 = vpop.f32.mrb[0].mxu0
    %v7509 = vadd.f32 0.0, %v7508
    %v7510 = vpop.f32.mrb[0].mxu0
    %7511 = vmatprep.mubr.f32.mxu0 0.0
    %7512 = vmatmul.mubr.f32.gmra.mrb[0].mxu0 %v5640
    %v7513 = vpop.f32.mrb[0].mxu0
    %v7514 = vadd.f32 0.0, %v7513
    %v7515 = vpop.f32.mrb[0].mxu0
    %7516 = vmatprep.mubr.f32.mxu0 0.0
    %7517 = vmatmul.mubr.f32.gmra.mrb[0].mxu0 %v5643
    %v7518 = vpop.f32.mrb[0].mxu0
    %v7519 = vadd.f32 0.0, %v7518
    %v7520 = vpop.f32.mrb[0].mxu0
    %7521 = vmatprep.mubr.f32.mxu0 0.0
    %7522 = vmatmul.mubr.f32.gmra.mrb[0].mxu0 %v5646
    %v7523 = vpop.f32.mrb[0].mxu0
    %v7524 = vadd.f32 0.0, %v7523
    %v7525 = vpop.f32.mrb[0].mxu0
    %7526 = vmatprep.mubr.f32.mxu0 0.0
    %7527 = vmatmul.mubr.f32.gmra.mrb[0].mxu0 %v5649
    %v7528 = vpop.f32.mrb[0].mxu0
    %v7529 = vadd.f32 0.0, %v7528
    %v7530 = vpop.f32.mrb[0].mxu0
    %7531 = vmatprep.mubr.f32.mxu0 0.0
    %7532 = vmatmul.mubr.f32.gmra.mrb[0].mxu0 %v5652
    %v7533 = vpop.f32.mrb[0].mxu0
    %v7534 = vadd.f32 0.0, %v7533
    %v7535 = vpop.f32.mrb[0].mxu0
    %7536 = vmatprep.mubr.f32.mxu0 0.0
    %7537 = vmatmul.mubr.f32.gmra.mrb[0].mxu0 %v5655
    %v7538 = vpop.f32.mrb[0].mxu0
    %v7539 = vadd.f32 0.0, %v7538
    %v7540 = vpop.f32.mrb[0].mxu0
    %7541 = vmatprep.mubr.f32.mxu0 0.0
    %7542 = vmatmul.mubr.f32.gmra.mrb[0].mxu0 %v5658
    %v7543 = vpop.f32.mrb[0].mxu0
    %v7544 = vadd.f32 0.0, %v7543
    %v7545 = vpop.f32.mrb[0].mxu0
    %7546 = vmatprep.mubr.f32.mxu0 0.0
    %7547 = vmatmul.mubr.f32.gmra.mrb[0].mxu0 %v5661
    %v7548 = vpop.f32.mrb[0].mxu0
    %v7549 = vadd.f32 0.0, %v7548
    %v7550 = vpop.f32.mrb[0].mxu0
    %7551 = vmatprep.mubr.f32.mxu0 0.0
    %7552 = vmatmul.mubr.f32.gmra.mrb[0].mxu0 %v5664
    %v7553 = vpop.f32.mrb[0].mxu0
    %v7554 = vadd.f32 0.0, %v7553
    %v7555 = vpop.f32.mrb[0].mxu0
    %7556 = vmatprep.mubr.f32.mxu0 0.0
    %7557 = vmatmul.mubr.f32.gmra.mrb[0].mxu0 %v5667
    %v7558 = vpop.f32.mrb[0].mxu0
    %v7559 = vadd.f32 0.0, %v7558
    %v7560 = vpop.f32.mrb[0].mxu0
    %7561 = vmatprep.mubr.f32.mxu0 0.0
    %7562 = vmatmul.mubr.f32.gmra.mrb[0].mxu0 %v5670
    %v7563 = vpop.f32.mrb[0].mxu0
    %v7564 = vadd.f32 0.0, %v7563
    %v7565 = vpop.f32.mrb[0].mxu0
    %7566 = vmatprep.mubr.f32.mxu0 0.0
    %7567 = vmatmul.mubr.f32.gmra.mrb[0].mxu0 %v5673
    %v7568 = vpop.f32.mrb[0].mxu0
    %v7569 = vadd.f32 0.0, %v7568
    %v7570 = vpop.f32.mrb[0].mxu0
    %7571 = vmatprep.mubr.f32.mxu0 0.0
    %7572 = vmatmul.mubr.f32.gmra.mrb[0].mxu0 %v5676
    %v7573 = vpop.f32.mrb[0].mxu0
    %v7574 = vadd.f32 0.0, %v7573
    %v7575 = vpop.f32.mrb[0].mxu0
    %7576 = vmatprep.mubr.f32.mxu0 0.0
    %7577 = vmatmul.mubr.f32.gmra.mrb[0].mxu0 %v5679
    %v7578 = vpop.f32.mrb[0].mxu0
    %v7579 = vadd.f32 0.0, %v7578
    %v7580 = vpop.f32.mrb[0].mxu0
    %7581 = vmatprep.mubr.f32.mxu0 0.0
    %7582 = vmatmul.mubr.f32.gmra.mrb[0].mxu0 %v5682
    %v7583 = vpop.f32.mrb[0].mxu0
    %v7584 = vadd.f32 0.0, %v7583
    %v7585 = vpop.f32.mrb[0].mxu0
    %7586 = vmatprep.mubr.f32.mxu0 0.0
    %7587 = vmatmul.mubr.f32.gmra.mrb[0].mxu0 %v5685
    %v7588 = vpop.f32.mrb[0].mxu0
    %v7589 = vadd.f32 0.0, %v7588
    %v7590 = vpop.f32.mrb[0].mxu0
    %7591 = vmatprep.mubr.f32.mxu0 0.0
    %7592 = vmatmul.mubr.f32.gmra.mrb[0].mxu0 %v5688
    %v7593 = vpop.f32.mrb[0].mxu0
    %v7594 = vadd.f32 0.0, %v7593
    %v7595 = vpop.f32.mrb[0].mxu0
    %7596 = vmatprep.mubr.f32.mxu0 0.0
    %7597 = vmatmul.mubr.f32.gmra.mrb[0].mxu0 %v5691
    %v7598 = vpop.f32.mrb[0].mxu0
    %v7599 = vadd.f32 0.0, %v7598
    %v7600 = vpop.f32.mrb[0].mxu0
    %7601 = vmatprep.mubr.f32.mxu0 0.0
    %7602 = vmatmul.mubr.f32.gmra.mrb[0].mxu0 %v5694
    %v7603 = vpop.f32.mrb[0].mxu0
    %v7604 = vadd.f32 0.0, %v7603
    %v7605 = vpop.f32.mrb[0].mxu0
    %7606 = vmatprep.mubr.f32.mxu0 0.0
    %7607 = vmatmul.mubr.f32.gmra.mrb[0].mxu0 %v5697
    %v7608 = vpop.f32.mrb[0].mxu0
    %v7609 = vadd.f32 0.0, %v7608
    %v7610 = vpop.f32.mrb[0].mxu0
    %7611 = vmatprep.mubr.f32.mxu0 0.0
    %7612 = vmatmul.mubr.f32.gmra.mrb[0].mxu0 %v5700
    %v7613 = vpop.f32.mrb[0].mxu0
    %v7614 = vadd.f32 0.0, %v7613
    %v7615 = vpop.f32.mrb[0].mxu0
    %7616 = vmatprep.mubr.f32.mxu0 0.0
    %7617 = vmatmul.mubr.f32.gmra.mrb[0].mxu0 %v5703
    %v7618 = vpop.f32.mrb[0].mxu0
    %v7619 = vadd.f32 0.0, %v7618
    %v7620 = vpop.f32.mrb[0].mxu0
    %7621 = vmatprep.mubr.f32.mxu0 0.0
    %7622 = vmatmul.mubr.f32.gmra.mrb[0].mxu0 %v5706
    %v7623 = vpop.f32.mrb[0].mxu0
    %v7624 = vadd.f32 0.0, %v7623
    %v7625 = vpop.f32.mrb[0].mxu0
    %7626 = vmatprep.mubr.f32.mxu0 0.0
    %7627 = vmatmul.mubr.f32.gmra.mrb[0].mxu0 %v5709
    %v7628 = vpop.f32.mrb[0].mxu0
    %v7629 = vadd.f32 0.0, %v7628
    %v7630 = vpop.f32.mrb[0].mxu0
    %7631 = vmatprep.mubr.f32.mxu0 0.0
    %7632 = vmatmul.mubr.f32.gmra.mrb[0].mxu0 %v5712
    %v7633 = vpop.f32.mrb[0].mxu0
    %v7634 = vadd.f32 0.0, %v7633
    %v7635 = vpop.f32.mrb[0].mxu0
    %7636 = vmatprep.mubr.f32.mxu0 0.0
    %7637 = vmatmul.mubr.f32.gmra.mrb[0].mxu0 %v5715
    %v7638 = vpop.f32.mrb[0].mxu0
    %v7639 = vadd.f32 0.0, %v7638
    %v7640 = vpop.f32.mrb[0].mxu0
    %7641 = vmatprep.mubr.f32.mxu0 0.0
    %7642 = vmatmul.mubr.f32.gmra.mrb[0].mxu0 %v5718
    %v7643 = vpop.f32.mrb[0].mxu0
    %v7644 = vadd.f32 0.0, %v7643
    %v7645 = vpop.f32.mrb[0].mxu0
    %7646 = vmatprep.mubr.f32.mxu0 0.0
    %7647 = vmatmul.mubr.f32.gmra.mrb[0].mxu0 %v5721
    %v7648 = vpop.f32.mrb[0].mxu0
    %v7649 = vadd.f32 0.0, %v7648
    %v7650 = vpop.f32.mrb[0].mxu0
    %7651 = vmatprep.mubr.f32.mxu0 0.0
    %7652 = vmatmul.mubr.f32.gmra.mrb[0].mxu0 %v5724
    %v7653 = vpop.f32.mrb[0].mxu0
    %v7654 = vadd.f32 0.0, %v7653
    %v7655 = vpop.f32.mrb[0].mxu0
    %7656 = vmatprep.mubr.f32.mxu0 0.0
    %7657 = vmatmul.mubr.f32.gmra.mrb[0].mxu0 %v5727
    %v7658 = vpop.f32.mrb[0].mxu0
    %v7659 = vadd.f32 0.0, %v7658
    %v7660 = vpop.f32.mrb[0].mxu0
    %7661 = vmatprep.mubr.f32.mxu0 0.0
    %7662 = vmatmul.mubr.f32.gmra.mrb[0].mxu0 %v5730
    %v7663 = vpop.f32.mrb[0].mxu0
    %v7664 = vadd.f32 0.0, %v7663
    %v7665 = vpop.f32.mrb[0].mxu0
    %7666 = vmatprep.mubr.f32.mxu0 0.0
    %7667 = vmatmul.mubr.f32.gmra.mrb[0].mxu0 %v5733
    %v7668 = vpop.f32.mrb[0].mxu0
    %v7669 = vadd.f32 0.0, %v7668
    %v7670 = vpop.f32.mrb[0].mxu0
    %7671 = vmatprep.mubr.f32.mxu0 0.0
    %7672 = vmatmul.mubr.f32.gmra.mrb[0].mxu0 %v5736
    %v7673 = vpop.f32.mrb[0].mxu0
    %v7674 = vadd.f32 0.0, %v7673
    %v7675 = vpop.f32.mrb[0].mxu0
    %7676 = vmatprep.mubr.f32.mxu0 0.0
    %7677 = vmatmul.mubr.f32.gmra.mrb[0].mxu0 %v5739
    %v7678 = vpop.f32.mrb[0].mxu0
    %v7679 = vadd.f32 0.0, %v7678
    %v7680 = vpop.f32.mrb[0].mxu0
    %7681 = vmatprep.mubr.f32.mxu0 0.0
    %7682 = vmatmul.mubr.f32.gmra.mrb[0].mxu0 %v5742
    %v7683 = vpop.f32.mrb[0].mxu0
    %v7684 = vadd.f32 0.0, %v7683
    %v7685 = vpop.f32.mrb[0].mxu0
    %7686 = vmatprep.mubr.f32.mxu0 0.0
    %7687 = vmatmul.mubr.f32.gmra.mrb[0].mxu0 %v5745
    %v7688 = vpop.f32.mrb[0].mxu0
    %v7689 = vadd.f32 0.0, %v7688
    %v7690 = vpop.f32.mrb[0].mxu0
    %7691 = vmatprep.mubr.f32.mxu0 0.0
    %7692 = vmatmul.mubr.f32.gmra.mrb[0].mxu0 %v5748
    %v7693 = vpop.f32.mrb[0].mxu0
    %v7694 = vadd.f32 0.0, %v7693
    %v7695 = vpop.f32.mrb[0].mxu0
    %7696 = vmatprep.mubr.f32.mxu0 0.0
    %7697 = vmatmul.mubr.f32.gmra.mrb[0].mxu0 %v5751
    %v7698 = vpop.f32.mrb[0].mxu0
    %v7699 = vadd.f32 0.0, %v7698
    %v7700 = vpop.f32.mrb[0].mxu0
    %7701 = vmatprep.mubr.f32.mxu0 0.0
    %7702 = vmatmul.mubr.f32.gmra.mrb[0].mxu0 %v5754
    %v7703 = vpop.f32.mrb[0].mxu0
    %v7704 = vadd.f32 0.0, %v7703
    %v7705 = vpop.f32.mrb[0].mxu0
    %7706 = vmatprep.mubr.f32.mxu0 0.0
    %7707 = vmatmul.mubr.f32.gmra.mrb[0].mxu0 %v5757
    %v7708 = vpop.f32.mrb[0].mxu0
    %v7709 = vadd.f32 0.0, %v7708
    %v7710 = vpop.f32.mrb[0].mxu0
    %7711 = vmatprep.mubr.f32.mxu0 0.0
    %7712 = vmatmul.mubr.f32.gmra.mrb[0].mxu0 %v5760
    %v7713 = vpop.f32.mrb[0].mxu0
    %v7714 = vadd.f32 0.0, %v7713
    %v7715 = vpop.f32.mrb[0].mxu0
    %7716 = vmatprep.mubr.f32.mxu0 0.0
    %7717 = vmatmul.mubr.f32.gmra.mrb[0].mxu0 %v5763
    %v7718 = vpop.f32.mrb[0].mxu0
    %v7719 = vadd.f32 0.0, %v7718
    %v7720 = vpop.f32.mrb[0].mxu0
    %7721 = vmatprep.mubr.f32.mxu0 0.0
    %7722 = vmatmul.mubr.f32.gmra.mrb[0].mxu0 %v5766
    %v7723 = vpop.f32.mrb[0].mxu0
    %v7724 = vadd.f32 0.0, %v7723
    %v7725 = vpop.f32.mrb[0].mxu0
    %7726 = vmatprep.mubr.f32.mxu0 0.0
    %7727 = vmatmul.mubr.f32.gmra.mrb[0].mxu0 %v5769
    %v7728 = vpop.f32.mrb[0].mxu0
    %v7729 = vadd.f32 0.0, %v7728
    %v7730 = vpop.f32.mrb[0].mxu0
    %7731 = vmatprep.mubr.f32.mxu0 0.0
    %7732 = vmatmul.mubr.f32.gmra.mrb[0].mxu0 %v5772
    %v7733 = vpop.f32.mrb[0].mxu0
    %v7734 = vadd.f32 0.0, %v7733
    %v7735 = vpop.f32.mrb[0].mxu0
    %7736 = vmatprep.mubr.f32.mxu0 0.0
    %7737 = vmatmul.mubr.f32.gmra.mrb[0].mxu0 %v5775
    %v7738 = vpop.f32.mrb[0].mxu0
    %v7739 = vadd.f32 0.0, %v7738
    %v7740 = vpop.f32.mrb[0].mxu0
    %7741 = vmatprep.mubr.f32.mxu0 0.0
    %7742 = vmatmul.mubr.f32.gmra.mrb[0].mxu0 %v5778
    %v7743 = vpop.f32.mrb[0].mxu0
    %v7744 = vadd.f32 0.0, %v7743
    %v7745 = vpop.f32.mrb[0].mxu0
    %7746 = vmatprep.mubr.f32.mxu0 0.0
    %7747 = vmatmul.mubr.f32.gmra.mrb[0].mxu0 %v5781
    %v7748 = vpop.f32.mrb[0].mxu0
    %v7749 = vadd.f32 0.0, %v7748
    %v7750 = vpop.f32.mrb[0].mxu0
    %7751 = vmatprep.mubr.f32.mxu0 0.0
    %7752 = vmatmul.mubr.f32.gmra.mrb[0].mxu0 %v5784
    %v7753 = vpop.f32.mrb[0].mxu0
    %v7754 = vadd.f32 0.0, %v7753
    %v7755 = vpop.f32.mrb[0].mxu0
    %7756 = vmatprep.mubr.f32.mxu0 0.0
    %7757 = vmatmul.mubr.f32.gmra.mrb[0].mxu0 %v5787
    %v7758 = vpop.f32.mrb[0].mxu0
    %v7759 = vadd.f32 0.0, %v7758
    %v7760 = vpop.f32.mrb[0].mxu0
    %7761 = vmatprep.mubr.f32.mxu0 0.0
    %7762 = vmatmul.mubr.f32.gmra.mrb[0].mxu0 %v5790
    %v7763 = vpop.f32.mrb[0].mxu0
    %v7764 = vadd.f32 0.0, %v7763
    %v7765 = vpop.f32.mrb[0].mxu0
    %7766 = vmatprep.mubr.f32.mxu0 0.0
    %7767 = vmatmul.mubr.f32.gmra.mrb[0].mxu0 %v5793
    %v7768 = vpop.f32.mrb[0].mxu0
    %v7769 = vadd.f32 0.0, %v7768
    %v7770 = vpop.f32.mrb[0].mxu0
    %7771 = vmatprep.mubr.f32.mxu0 0.0
    %7772 = vmatmul.mubr.f32.gmra.mrb[0].mxu0 %v5796
    %v7773 = vpop.f32.mrb[0].mxu0
    %v7774 = vadd.f32 0.0, %v7773
    %v7775 = vpop.f32.mrb[0].mxu0
    %7776 = vmatprep.mubr.f32.mxu0 0.0
    %7777 = vmatmul.mubr.f32.gmra.mrb[0].mxu0 %v5799
    %v7778 = vpop.f32.mrb[0].mxu0
    %v7779 = vadd.f32 0.0, %v7778
    %v7780 = vpop.f32.mrb[0].mxu0
    %7781 = vmatprep.mubr.f32.mxu0 0.0
    %7782 = vmatmul.mubr.f32.gmra.mrb[0].mxu0 %v5802
    %v7783 = vpop.f32.mrb[0].mxu0
    %v7784 = vadd.f32 0.0, %v7783
    %v7785 = vpop.f32.mrb[0].mxu0
    %7786 = vmatprep.mubr.f32.mxu0 0.0
    %7787 = vmatmul.mubr.f32.gmra.mrb[0].mxu0 %v5805
    %v7788 = vpop.f32.mrb[0].mxu0
    %v7789 = vadd.f32 0.0, %v7788
    %v7790 = vpop.f32.mrb[0].mxu0
    %7791 = vdwg.mxu0
    %7792 = vxpose.xlu0.b32.start [1/16] %v5874, 128
    %7793 = vxpose.xlu0.b32.cont [2/16] %v5879, 128
    %7794 = vxpose.xlu0.b32.cont [3/16] %v5884, 128
    %7795 = vxpose.xlu0.b32.cont [4/16] %v5889, 128
    %7796 = vxpose.xlu0.b32.cont [5/16] %v5894, 128
    %7797 = vxpose.xlu0.b32.cont [6/16] %v5899, 128
    %7798 = vxpose.xlu0.b32.cont [7/16] %v5904, 128
    %7799 = vxpose.xlu0.b32.cont [8/16] %v5909, 128
    %7800 = vxpose.xlu0.b32.cont [9/16] %v5914, 128
    %7801 = vxpose.xlu0.b32.cont [10/16] %v5919, 128
    %7802 = vxpose.xlu0.b32.cont [11/16] %v5924, 128
    %7803 = vxpose.xlu0.b32.cont [12/16] %v5929, 128
    %7804 = vxpose.xlu0.b32.cont [13/16] %v5934, 128
    %7805 = vxpose.xlu0.b32.cont [14/16] %v5939, 128
    %7806 = vxpose.xlu0.b32.cont [15/16] %v5944, 128
    %7807 = vxpose.xlu0.b32.end [16/16] %v5949, 128
    %v7808 = vpop.trf.xlu0
    %v7809 = vpop.trf.xlu0
    %v7810 = vpop.trf.xlu0
    %v7811 = vpop.trf.xlu0
    %v7812 = vpop.trf.xlu0
    %v7813 = vpop.trf.xlu0
    %v7814 = vpop.trf.xlu0
    %v7815 = vpop.trf.xlu0
    %v7816 = vpop.trf.xlu0
    %v7817 = vpop.trf.xlu0
    %v7818 = vpop.trf.xlu0
    %v7819 = vpop.trf.xlu0
    %v7820 = vpop.trf.xlu0
    %v7821 = vpop.trf.xlu0
    %v7822 = vpop.trf.xlu0
    %v7823 = vpop.trf.xlu0
    %7824 = vxpose.xlu0.b32.start [1/16] %v5954, 128
    %7825 = vxpose.xlu0.b32.cont [2/16] %v5959, 128
    %7826 = vxpose.xlu0.b32.cont [3/16] %v5964, 128
    %7827 = vxpose.xlu0.b32.cont [4/16] %v5969, 128
    %7828 = vxpose.xlu0.b32.cont [5/16] %v5974, 128
    %7829 = vxpose.xlu0.b32.cont [6/16] %v5979, 128
    %7830 = vxpose.xlu0.b32.cont [7/16] %v5984, 128
    %7831 = vxpose.xlu0.b32.cont [8/16] %v5989, 128
    %7832 = vxpose.xlu0.b32.cont [9/16] %v5994, 128
    %7833 = vxpose.xlu0.b32.cont [10/16] %v5999, 128
    %7834 = vxpose.xlu0.b32.cont [11/16] %v6004, 128
    %7835 = vxpose.xlu0.b32.cont [12/16] %v6009, 128
    %7836 = vxpose.xlu0.b32.cont [13/16] %v6014, 128
    %7837 = vxpose.xlu0.b32.cont [14/16] %v6019, 128
    %7838 = vxpose.xlu0.b32.cont [15/16] %v6024, 128
    %7839 = vxpose.xlu0.b32.end [16/16] %v6029, 128
    %v7840 = vpop.trf.xlu0
    %v7841 = vpop.trf.xlu0
    %v7842 = vpop.trf.xlu0
    %v7843 = vpop.trf.xlu0
    %v7844 = vpop.trf.xlu0
    %v7845 = vpop.trf.xlu0
    %v7846 = vpop.trf.xlu0
    %v7847 = vpop.trf.xlu0
    %v7848 = vpop.trf.xlu0
    %v7849 = vpop.trf.xlu0
    %v7850 = vpop.trf.xlu0
    %v7851 = vpop.trf.xlu0
    %v7852 = vpop.trf.xlu0
    %v7853 = vpop.trf.xlu0
    %v7854 = vpop.trf.xlu0
    %v7855 = vpop.trf.xlu0
    %7856 = vxpose.xlu0.b32.start [1/16] %v6034, 128
    %7857 = vxpose.xlu0.b32.cont [2/16] %v6039, 128
    %7858 = vxpose.xlu0.b32.cont [3/16] %v6044, 128
    %7859 = vxpose.xlu0.b32.cont [4/16] %v6049, 128
    %7860 = vxpose.xlu0.b32.cont [5/16] %v6054, 128
    %7861 = vxpose.xlu0.b32.cont [6/16] %v6059, 128
    %7862 = vxpose.xlu0.b32.cont [7/16] %v6064, 128
    %7863 = vxpose.xlu0.b32.cont [8/16] %v6069, 128
    %7864 = vxpose.xlu0.b32.cont [9/16] %v6074, 128
    %7865 = vxpose.xlu0.b32.cont [10/16] %v6079, 128
    %7866 = vxpose.xlu0.b32.cont [11/16] %v6084, 128
    %7867 = vxpose.xlu0.b32.cont [12/16] %v6089, 128
    %7868 = vxpose.xlu0.b32.cont [13/16] %v6094, 128
    %7869 = vxpose.xlu0.b32.cont [14/16] %v6099, 128
    %7870 = vxpose.xlu0.b32.cont [15/16] %v6104, 128
    %7871 = vxpose.xlu0.b32.end [16/16] %v6109, 128
    %v7872 = vpop.trf.xlu0
    %v7873 = vpop.trf.xlu0
    %v7874 = vpop.trf.xlu0
    %v7875 = vpop.trf.xlu0
    %v7876 = vpop.trf.xlu0
    %v7877 = vpop.trf.xlu0
    %v7878 = vpop.trf.xlu0
    %v7879 = vpop.trf.xlu0
    %v7880 = vpop.trf.xlu0
    %v7881 = vpop.trf.xlu0
    %v7882 = vpop.trf.xlu0
    %v7883 = vpop.trf.xlu0
    %v7884 = vpop.trf.xlu0
    %v7885 = vpop.trf.xlu0
    %v7886 = vpop.trf.xlu0
    %v7887 = vpop.trf.xlu0
    %7888 = vxpose.xlu0.b32.start [1/16] %v6114, 128
    %7889 = vxpose.xlu0.b32.cont [2/16] %v6119, 128
    %7890 = vxpose.xlu0.b32.cont [3/16] %v6124, 128
    %7891 = vxpose.xlu0.b32.cont [4/16] %v6129, 128
    %7892 = vxpose.xlu0.b32.cont [5/16] %v6134, 128
    %7893 = vxpose.xlu0.b32.cont [6/16] %v6139, 128
    %7894 = vxpose.xlu0.b32.cont [7/16] %v6144, 128
    %7895 = vxpose.xlu0.b32.cont [8/16] %v6149, 128
    %7896 = vxpose.xlu0.b32.cont [9/16] %v6154, 128
    %7897 = vxpose.xlu0.b32.cont [10/16] %v6159, 128
    %7898 = vxpose.xlu0.b32.cont [11/16] %v6164, 128
    %7899 = vxpose.xlu0.b32.cont [12/16] %v6169, 128
    %7900 = vxpose.xlu0.b32.cont [13/16] %v6174, 128
    %7901 = vxpose.xlu0.b32.cont [14/16] %v6179, 128
    %7902 = vxpose.xlu0.b32.cont [15/16] %v6184, 128
    %7903 = vxpose.xlu0.b32.end [16/16] %v6189, 128
    %v7904 = vpop.trf.xlu0
    %v7905 = vpop.trf.xlu0
    %v7906 = vpop.trf.xlu0
    %v7907 = vpop.trf.xlu0
    %v7908 = vpop.trf.xlu0
    %v7909 = vpop.trf.xlu0
    %v7910 = vpop.trf.xlu0
    %v7911 = vpop.trf.xlu0
    %v7912 = vpop.trf.xlu0
    %v7913 = vpop.trf.xlu0
    %v7914 = vpop.trf.xlu0
    %v7915 = vpop.trf.xlu0
    %v7916 = vpop.trf.xlu0
    %v7917 = vpop.trf.xlu0
    %v7918 = vpop.trf.xlu0
    %v7919 = vpop.trf.xlu0
    %7920 = vxpose.xlu0.b32.start [1/16] %v6194, 128
    %7921 = vxpose.xlu0.b32.cont [2/16] %v6199, 128
    %7922 = vxpose.xlu0.b32.cont [3/16] %v6204, 128
    %7923 = vxpose.xlu0.b32.cont [4/16] %v6209, 128
    %7924 = vxpose.xlu0.b32.cont [5/16] %v6214, 128
    %7925 = vxpose.xlu0.b32.cont [6/16] %v6219, 128
    %7926 = vxpose.xlu0.b32.cont [7/16] %v6224, 128
    %7927 = vxpose.xlu0.b32.cont [8/16] %v6229, 128
    %7928 = vxpose.xlu0.b32.cont [9/16] %v6234, 128
    %7929 = vxpose.xlu0.b32.cont [10/16] %v6239, 128
    %7930 = vxpose.xlu0.b32.cont [11/16] %v6244, 128
    %7931 = vxpose.xlu0.b32.cont [12/16] %v6249, 128
    %7932 = vxpose.xlu0.b32.cont [13/16] %v6254, 128
    %7933 = vxpose.xlu0.b32.cont [14/16] %v6259, 128
    %7934 = vxpose.xlu0.b32.cont [15/16] %v6264, 128
    %7935 = vxpose.xlu0.b32.end [16/16] %v6269, 128
    %v7936 = vpop.trf.xlu0
    %v7937 = vpop.trf.xlu0
    %v7938 = vpop.trf.xlu0
    %v7939 = vpop.trf.xlu0
    %v7940 = vpop.trf.xlu0
    %v7941 = vpop.trf.xlu0
    %v7942 = vpop.trf.xlu0
    %v7943 = vpop.trf.xlu0
    %v7944 = vpop.trf.xlu0
    %v7945 = vpop.trf.xlu0
    %v7946 = vpop.trf.xlu0
    %v7947 = vpop.trf.xlu0
    %v7948 = vpop.trf.xlu0
    %v7949 = vpop.trf.xlu0
    %v7950 = vpop.trf.xlu0
    %v7951 = vpop.trf.xlu0
    %7952 = vxpose.xlu0.b32.start [1/16] %v6274, 128
    %7953 = vxpose.xlu0.b32.cont [2/16] %v6279, 128
    %7954 = vxpose.xlu0.b32.cont [3/16] %v6284, 128
    %7955 = vxpose.xlu0.b32.cont [4/16] %v6289, 128
    %7956 = vxpose.xlu0.b32.cont [5/16] %v6294, 128
    %7957 = vxpose.xlu0.b32.cont [6/16] %v6299, 128
    %7958 = vxpose.xlu0.b32.cont [7/16] %v6304, 128
    %7959 = vxpose.xlu0.b32.cont [8/16] %v6309, 128
    %7960 = vxpose.xlu0.b32.cont [9/16] %v6314, 128
    %7961 = vxpose.xlu0.b32.cont [10/16] %v6319, 128
    %7962 = vxpose.xlu0.b32.cont [11/16] %v6324, 128
    %7963 = vxpose.xlu0.b32.cont [12/16] %v6329, 128
    %7964 = vxpose.xlu0.b32.cont [13/16] %v6334, 128
    %7965 = vxpose.xlu0.b32.cont [14/16] %v6339, 128
    %7966 = vxpose.xlu0.b32.cont [15/16] %v6344, 128
    %7967 = vxpose.xlu0.b32.end [16/16] %v6349, 128
    %v7968 = vpop.trf.xlu0
    %v7969 = vpop.trf.xlu0
    %v7970 = vpop.trf.xlu0
    %v7971 = vpop.trf.xlu0
    %v7972 = vpop.trf.xlu0
    %v7973 = vpop.trf.xlu0
    %v7974 = vpop.trf.xlu0
    %v7975 = vpop.trf.xlu0
    %v7976 = vpop.trf.xlu0
    %v7977 = vpop.trf.xlu0
    %v7978 = vpop.trf.xlu0
    %v7979 = vpop.trf.xlu0
    %v7980 = vpop.trf.xlu0
    %v7981 = vpop.trf.xlu0
    %v7982 = vpop.trf.xlu0
    %v7983 = vpop.trf.xlu0
    %7984 = vxpose.xlu0.b32.start [1/16] %v6354, 128
    %7985 = vxpose.xlu0.b32.cont [2/16] %v6359, 128
    %7986 = vxpose.xlu0.b32.cont [3/16] %v6364, 128
    %7987 = vxpose.xlu0.b32.cont [4/16] %v6369, 128
    %7988 = vxpose.xlu0.b32.cont [5/16] %v6374, 128
    %7989 = vxpose.xlu0.b32.cont [6/16] %v6379, 128
    %7990 = vxpose.xlu0.b32.cont [7/16] %v6384, 128
    %7991 = vxpose.xlu0.b32.cont [8/16] %v6389, 128
    %7992 = vxpose.xlu0.b32.cont [9/16] %v6394, 128
    %7993 = vxpose.xlu0.b32.cont [10/16] %v6399, 128
    %7994 = vxpose.xlu0.b32.cont [11/16] %v6404, 128
    %7995 = vxpose.xlu0.b32.cont [12/16] %v6409, 128
    %7996 = vxpose.xlu0.b32.cont [13/16] %v6414, 128
    %7997 = vxpose.xlu0.b32.cont [14/16] %v6419, 128
    %7998 = vxpose.xlu0.b32.cont [15/16] %v6424, 128
    %7999 = vxpose.xlu0.b32.end [16/16] %v6429, 128
    %v8000 = vpop.trf.xlu0
    %v8001 = vpop.trf.xlu0
    %v8002 = vpop.trf.xlu0
    %v8003 = vpop.trf.xlu0
    %v8004 = vpop.trf.xlu0
    %v8005 = vpop.trf.xlu0
    %v8006 = vpop.trf.xlu0
    %v8007 = vpop.trf.xlu0
    %v8008 = vpop.trf.xlu0
    %v8009 = vpop.trf.xlu0
    %v8010 = vpop.trf.xlu0
    %v8011 = vpop.trf.xlu0
    %v8012 = vpop.trf.xlu0
    %v8013 = vpop.trf.xlu0
    %v8014 = vpop.trf.xlu0
    %v8015 = vpop.trf.xlu0
    %8016 = vxpose.xlu0.b32.start [1/16] %v6434, 128
    %8017 = vxpose.xlu0.b32.cont [2/16] %v6439, 128
    %8018 = vxpose.xlu0.b32.cont [3/16] %v6444, 128
    %8019 = vxpose.xlu0.b32.cont [4/16] %v6449, 128
    %8020 = vxpose.xlu0.b32.cont [5/16] %v6454, 128
    %8021 = vxpose.xlu0.b32.cont [6/16] %v6459, 128
    %8022 = vxpose.xlu0.b32.cont [7/16] %v6464, 128
    %8023 = vxpose.xlu0.b32.cont [8/16] %v6469, 128
    %8024 = vxpose.xlu0.b32.cont [9/16] %v6474, 128
    %8025 = vxpose.xlu0.b32.cont [10/16] %v6479, 128
    %8026 = vxpose.xlu0.b32.cont [11/16] %v6484, 128
    %8027 = vxpose.xlu0.b32.cont [12/16] %v6489, 128
    %8028 = vxpose.xlu0.b32.cont [13/16] %v6494, 128
    %8029 = vxpose.xlu0.b32.cont [14/16] %v6499, 128
    %8030 = vxpose.xlu0.b32.cont [15/16] %v6504, 128
    %8031 = vxpose.xlu0.b32.end [16/16] %v6509, 128
    %v8032 = vpop.trf.xlu0
    %v8033 = vpop.trf.xlu0
    %v8034 = vpop.trf.xlu0
    %v8035 = vpop.trf.xlu0
    %v8036 = vpop.trf.xlu0
    %v8037 = vpop.trf.xlu0
    %v8038 = vpop.trf.xlu0
    %v8039 = vpop.trf.xlu0
    %v8040 = vpop.trf.xlu0
    %v8041 = vpop.trf.xlu0
    %v8042 = vpop.trf.xlu0
    %v8043 = vpop.trf.xlu0
    %v8044 = vpop.trf.xlu0
    %v8045 = vpop.trf.xlu0
    %v8046 = vpop.trf.xlu0
    %v8047 = vpop.trf.xlu0
    %8048 = vxpose.xlu0.b32.start [1/16] %v6514, 128
    %8049 = vxpose.xlu0.b32.cont [2/16] %v6519, 128
    %8050 = vxpose.xlu0.b32.cont [3/16] %v6524, 128
    %8051 = vxpose.xlu0.b32.cont [4/16] %v6529, 128
    %8052 = vxpose.xlu0.b32.cont [5/16] %v6534, 128
    %8053 = vxpose.xlu0.b32.cont [6/16] %v6539, 128
    %8054 = vxpose.xlu0.b32.cont [7/16] %v6544, 128
    %8055 = vxpose.xlu0.b32.cont [8/16] %v6549, 128
    %8056 = vxpose.xlu0.b32.cont [9/16] %v6554, 128
    %8057 = vxpose.xlu0.b32.cont [10/16] %v6559, 128
    %8058 = vxpose.xlu0.b32.cont [11/16] %v6564, 128
    %8059 = vxpose.xlu0.b32.cont [12/16] %v6569, 128
    %8060 = vxpose.xlu0.b32.cont [13/16] %v6574, 128
    %8061 = vxpose.xlu0.b32.cont [14/16] %v6579, 128
    %8062 = vxpose.xlu0.b32.cont [15/16] %v6584, 128
    %8063 = vxpose.xlu0.b32.end [16/16] %v6589, 128
    %v8064 = vpop.trf.xlu0
    %v8065 = vpop.trf.xlu0
    %v8066 = vpop.trf.xlu0
    %v8067 = vpop.trf.xlu0
    %v8068 = vpop.trf.xlu0
    %v8069 = vpop.trf.xlu0
    %v8070 = vpop.trf.xlu0
    %v8071 = vpop.trf.xlu0
    %v8072 = vpop.trf.xlu0
    %v8073 = vpop.trf.xlu0
    %v8074 = vpop.trf.xlu0
    %v8075 = vpop.trf.xlu0
    %v8076 = vpop.trf.xlu0
    %v8077 = vpop.trf.xlu0
    %v8078 = vpop.trf.xlu0
    %v8079 = vpop.trf.xlu0
    %8080 = vxpose.xlu0.b32.start [1/16] %v6594, 128
    %8081 = vxpose.xlu0.b32.cont [2/16] %v6599, 128
    %8082 = vxpose.xlu0.b32.cont [3/16] %v6604, 128
    %8083 = vxpose.xlu0.b32.cont [4/16] %v6609, 128
    %8084 = vxpose.xlu0.b32.cont [5/16] %v6614, 128
    %8085 = vxpose.xlu0.b32.cont [6/16] %v6619, 128
    %8086 = vxpose.xlu0.b32.cont [7/16] %v6624, 128
    %8087 = vxpose.xlu0.b32.cont [8/16] %v6629, 128
    %8088 = vxpose.xlu0.b32.cont [9/16] %v6634, 128
    %8089 = vxpose.xlu0.b32.cont [10/16] %v6639, 128
    %8090 = vxpose.xlu0.b32.cont [11/16] %v6644, 128
    %8091 = vxpose.xlu0.b32.cont [12/16] %v6649, 128
    %8092 = vxpose.xlu0.b32.cont [13/16] %v6654, 128
    %8093 = vxpose.xlu0.b32.cont [14/16] %v6659, 128
    %8094 = vxpose.xlu0.b32.cont [15/16] %v6664, 128
    %8095 = vxpose.xlu0.b32.end [16/16] %v6669, 128
    %v8096 = vpop.trf.xlu0
    %v8097 = vpop.trf.xlu0
    %v8098 = vpop.trf.xlu0
    %v8099 = vpop.trf.xlu0
    %v8100 = vpop.trf.xlu0
    %v8101 = vpop.trf.xlu0
    %v8102 = vpop.trf.xlu0
    %v8103 = vpop.trf.xlu0
    %v8104 = vpop.trf.xlu0
    %v8105 = vpop.trf.xlu0
    %v8106 = vpop.trf.xlu0
    %v8107 = vpop.trf.xlu0
    %v8108 = vpop.trf.xlu0
    %v8109 = vpop.trf.xlu0
    %v8110 = vpop.trf.xlu0
    %v8111 = vpop.trf.xlu0
    %8112 = vxpose.xlu0.b32.start [1/16] %v6674, 128
    %8113 = vxpose.xlu0.b32.cont [2/16] %v6679, 128
    %8114 = vxpose.xlu0.b32.cont [3/16] %v6684, 128
    %8115 = vxpose.xlu0.b32.cont [4/16] %v6689, 128
    %8116 = vxpose.xlu0.b32.cont [5/16] %v6694, 128
    %8117 = vxpose.xlu0.b32.cont [6/16] %v6699, 128
    %8118 = vxpose.xlu0.b32.cont [7/16] %v6704, 128
    %8119 = vxpose.xlu0.b32.cont [8/16] %v6709, 128
    %8120 = vxpose.xlu0.b32.cont [9/16] %v6714, 128
    %8121 = vxpose.xlu0.b32.cont [10/16] %v6719, 128
    %8122 = vxpose.xlu0.b32.cont [11/16] %v6724, 128
    %8123 = vxpose.xlu0.b32.cont [12/16] %v6729, 128
    %8124 = vxpose.xlu0.b32.cont [13/16] %v6734, 128
    %8125 = vxpose.xlu0.b32.cont [14/16] %v6739, 128
    %8126 = vxpose.xlu0.b32.cont [15/16] %v6744, 128
    %8127 = vxpose.xlu0.b32.end [16/16] %v6749, 128
    %v8128 = vpop.trf.xlu0
    %v8129 = vpop.trf.xlu0
    %v8130 = vpop.trf.xlu0
    %v8131 = vpop.trf.xlu0
    %v8132 = vpop.trf.xlu0
    %v8133 = vpop.trf.xlu0
    %v8134 = vpop.trf.xlu0
    %v8135 = vpop.trf.xlu0
    %v8136 = vpop.trf.xlu0
    %v8137 = vpop.trf.xlu0
    %v8138 = vpop.trf.xlu0
    %v8139 = vpop.trf.xlu0
    %v8140 = vpop.trf.xlu0
    %v8141 = vpop.trf.xlu0
    %v8142 = vpop.trf.xlu0
    %v8143 = vpop.trf.xlu0
    %8144 = vxpose.xlu0.b32.start [1/16] %v6754, 128
    %8145 = vxpose.xlu0.b32.cont [2/16] %v6759, 128
    %8146 = vxpose.xlu0.b32.cont [3/16] %v6764, 128
    %8147 = vxpose.xlu0.b32.cont [4/16] %v6769, 128
    %8148 = vxpose.xlu0.b32.cont [5/16] %v6774, 128
    %8149 = vxpose.xlu0.b32.cont [6/16] %v6779, 128
    %8150 = vxpose.xlu0.b32.cont [7/16] %v6784, 128
    %8151 = vxpose.xlu0.b32.cont [8/16] %v6789, 128
    %8152 = vxpose.xlu0.b32.cont [9/16] %v6794, 128
    %8153 = vxpose.xlu0.b32.cont [10/16] %v6799, 128
    %8154 = vxpose.xlu0.b32.cont [11/16] %v6804, 128
    %8155 = vxpose.xlu0.b32.cont [12/16] %v6809, 128
    %8156 = vxpose.xlu0.b32.cont [13/16] %v6814, 128
    %8157 = vxpose.xlu0.b32.cont [14/16] %v6819, 128
    %8158 = vxpose.xlu0.b32.cont [15/16] %v6824, 128
    %8159 = vxpose.xlu0.b32.end [16/16] %v6829, 128
    %v8160 = vpop.trf.xlu0
    %v8161 = vpop.trf.xlu0
    %v8162 = vpop.trf.xlu0
    %v8163 = vpop.trf.xlu0
    %v8164 = vpop.trf.xlu0
    %v8165 = vpop.trf.xlu0
    %v8166 = vpop.trf.xlu0
    %v8167 = vpop.trf.xlu0
    %v8168 = vpop.trf.xlu0
    %v8169 = vpop.trf.xlu0
    %v8170 = vpop.trf.xlu0
    %v8171 = vpop.trf.xlu0
    %v8172 = vpop.trf.xlu0
    %v8173 = vpop.trf.xlu0
    %v8174 = vpop.trf.xlu0
    %v8175 = vpop.trf.xlu0
    %8176 = vxpose.xlu0.b32.start [1/16] %v6834, 128
    %8177 = vxpose.xlu0.b32.cont [2/16] %v6839, 128
    %8178 = vxpose.xlu0.b32.cont [3/16] %v6844, 128
    %8179 = vxpose.xlu0.b32.cont [4/16] %v6849, 128
    %8180 = vxpose.xlu0.b32.cont [5/16] %v6854, 128
    %8181 = vxpose.xlu0.b32.cont [6/16] %v6859, 128
    %8182 = vxpose.xlu0.b32.cont [7/16] %v6864, 128
    %8183 = vxpose.xlu0.b32.cont [8/16] %v6869, 128
    %8184 = vxpose.xlu0.b32.cont [9/16] %v6874, 128
    %8185 = vxpose.xlu0.b32.cont [10/16] %v6879, 128
    %8186 = vxpose.xlu0.b32.cont [11/16] %v6884, 128
    %8187 = vxpose.xlu0.b32.cont [12/16] %v6889, 128
    %8188 = vxpose.xlu0.b32.cont [13/16] %v6894, 128
    %8189 = vxpose.xlu0.b32.cont [14/16] %v6899, 128
    %8190 = vxpose.xlu0.b32.cont [15/16] %v6904, 128
    %8191 = vxpose.xlu0.b32.end [16/16] %v6909, 128
    %v8192 = vpop.trf.xlu0
    %v8193 = vpop.trf.xlu0
    %v8194 = vpop.trf.xlu0
    %v8195 = vpop.trf.xlu0
    %v8196 = vpop.trf.xlu0
    %v8197 = vpop.trf.xlu0
    %v8198 = vpop.trf.xlu0
    %v8199 = vpop.trf.xlu0
    %v8200 = vpop.trf.xlu0
    %v8201 = vpop.trf.xlu0
    %v8202 = vpop.trf.xlu0
    %v8203 = vpop.trf.xlu0
    %v8204 = vpop.trf.xlu0
    %v8205 = vpop.trf.xlu0
    %v8206 = vpop.trf.xlu0
    %v8207 = vpop.trf.xlu0
    %8208 = vxpose.xlu0.b32.start [1/16] %v6914, 128
    %8209 = vxpose.xlu0.b32.cont [2/16] %v6919, 128
    %8210 = vxpose.xlu0.b32.cont [3/16] %v6924, 128
    %8211 = vxpose.xlu0.b32.cont [4/16] %v6929, 128
    %8212 = vxpose.xlu0.b32.cont [5/16] %v6934, 128
    %8213 = vxpose.xlu0.b32.cont [6/16] %v6939, 128
    %8214 = vxpose.xlu0.b32.cont [7/16] %v6944, 128
    %8215 = vxpose.xlu0.b32.cont [8/16] %v6949, 128
    %8216 = vxpose.xlu0.b32.cont [9/16] %v6954, 128
    %8217 = vxpose.xlu0.b32.cont [10/16] %v6959, 128
    %8218 = vxpose.xlu0.b32.cont [11/16] %v6964, 128
    %8219 = vxpose.xlu0.b32.cont [12/16] %v6969, 128
    %8220 = vxpose.xlu0.b32.cont [13/16] %v6974, 128
    %8221 = vxpose.xlu0.b32.cont [14/16] %v6979, 128
    %8222 = vxpose.xlu0.b32.cont [15/16] %v6984, 128
    %8223 = vxpose.xlu0.b32.end [16/16] %v6989, 128
    %v8224 = vpop.trf.xlu0
    %v8225 = vpop.trf.xlu0
    %v8226 = vpop.trf.xlu0
    %v8227 = vpop.trf.xlu0
    %v8228 = vpop.trf.xlu0
    %v8229 = vpop.trf.xlu0
    %v8230 = vpop.trf.xlu0
    %v8231 = vpop.trf.xlu0
    %v8232 = vpop.trf.xlu0
    %v8233 = vpop.trf.xlu0
    %v8234 = vpop.trf.xlu0
    %v8235 = vpop.trf.xlu0
    %v8236 = vpop.trf.xlu0
    %v8237 = vpop.trf.xlu0
    %v8238 = vpop.trf.xlu0
    %v8239 = vpop.trf.xlu0
    %8240 = vxpose.xlu0.b32.start [1/16] %v6994, 128
    %8241 = vxpose.xlu0.b32.cont [2/16] %v6999, 128
    %8242 = vxpose.xlu0.b32.cont [3/16] %v7004, 128
    %8243 = vxpose.xlu0.b32.cont [4/16] %v7009, 128
    %8244 = vxpose.xlu0.b32.cont [5/16] %v7014, 128
    %8245 = vxpose.xlu0.b32.cont [6/16] %v7019, 128
    %8246 = vxpose.xlu0.b32.cont [7/16] %v7024, 128
    %8247 = vxpose.xlu0.b32.cont [8/16] %v7029, 128
    %8248 = vxpose.xlu0.b32.cont [9/16] %v7034, 128
    %8249 = vxpose.xlu0.b32.cont [10/16] %v7039, 128
    %8250 = vxpose.xlu0.b32.cont [11/16] %v7044, 128
    %8251 = vxpose.xlu0.b32.cont [12/16] %v7049, 128
    %8252 = vxpose.xlu0.b32.cont [13/16] %v7054, 128
    %8253 = vxpose.xlu0.b32.cont [14/16] %v7059, 128
    %8254 = vxpose.xlu0.b32.cont [15/16] %v7064, 128
    %8255 = vxpose.xlu0.b32.end [16/16] %v7069, 128
    %v8256 = vpop.trf.xlu0
    %v8257 = vpop.trf.xlu0
    %v8258 = vpop.trf.xlu0
    %v8259 = vpop.trf.xlu0
    %v8260 = vpop.trf.xlu0
    %v8261 = vpop.trf.xlu0
    %v8262 = vpop.trf.xlu0
    %v8263 = vpop.trf.xlu0
    %v8264 = vpop.trf.xlu0
    %v8265 = vpop.trf.xlu0
    %v8266 = vpop.trf.xlu0
    %v8267 = vpop.trf.xlu0
    %v8268 = vpop.trf.xlu0
    %v8269 = vpop.trf.xlu0
    %v8270 = vpop.trf.xlu0
    %v8271 = vpop.trf.xlu0
    %8272 = vxpose.xlu0.b32.start [1/16] %v7074, 128
    %8273 = vxpose.xlu0.b32.cont [2/16] %v7079, 128
    %8274 = vxpose.xlu0.b32.cont [3/16] %v7084, 128
    %8275 = vxpose.xlu0.b32.cont [4/16] %v7089, 128
    %8276 = vxpose.xlu0.b32.cont [5/16] %v7094, 128
    %8277 = vxpose.xlu0.b32.cont [6/16] %v7099, 128
    %8278 = vxpose.xlu0.b32.cont [7/16] %v7104, 128
    %8279 = vxpose.xlu0.b32.cont [8/16] %v7109, 128
    %8280 = vxpose.xlu0.b32.cont [9/16] %v7114, 128
    %8281 = vxpose.xlu0.b32.cont [10/16] %v7119, 128
    %8282 = vxpose.xlu0.b32.cont [11/16] %v7124, 128
    %8283 = vxpose.xlu0.b32.cont [12/16] %v7129, 128
    %8284 = vxpose.xlu0.b32.cont [13/16] %v7134, 128
    %8285 = vxpose.xlu0.b32.cont [14/16] %v7139, 128
    %8286 = vxpose.xlu0.b32.cont [15/16] %v7144, 128
    %8287 = vxpose.xlu0.b32.end [16/16] %v7149, 128
    %v8288 = vpop.trf.xlu0
    %v8289 = vpop.trf.xlu0
    %v8290 = vpop.trf.xlu0
    %v8291 = vpop.trf.xlu0
    %v8292 = vpop.trf.xlu0
    %v8293 = vpop.trf.xlu0
    %v8294 = vpop.trf.xlu0
    %v8295 = vpop.trf.xlu0
    %v8296 = vpop.trf.xlu0
    %v8297 = vpop.trf.xlu0
    %v8298 = vpop.trf.xlu0
    %v8299 = vpop.trf.xlu0
    %v8300 = vpop.trf.xlu0
    %v8301 = vpop.trf.xlu0
    %v8302 = vpop.trf.xlu0
    %v8303 = vpop.trf.xlu0
    %8304 = vxpose.xlu0.b32.start [1/16] %v7154, 128
    %8305 = vxpose.xlu0.b32.cont [2/16] %v7159, 128
    %8306 = vxpose.xlu0.b32.cont [3/16] %v7164, 128
    %8307 = vxpose.xlu0.b32.cont [4/16] %v7169, 128
    %8308 = vxpose.xlu0.b32.cont [5/16] %v7174, 128
    %8309 = vxpose.xlu0.b32.cont [6/16] %v7179, 128
    %8310 = vxpose.xlu0.b32.cont [7/16] %v7184, 128
    %8311 = vxpose.xlu0.b32.cont [8/16] %v7189, 128
    %8312 = vxpose.xlu0.b32.cont [9/16] %v7194, 128
    %8313 = vxpose.xlu0.b32.cont [10/16] %v7199, 128
    %8314 = vxpose.xlu0.b32.cont [11/16] %v7204, 128
    %8315 = vxpose.xlu0.b32.cont [12/16] %v7209, 128
    %8316 = vxpose.xlu0.b32.cont [13/16] %v7214, 128
    %8317 = vxpose.xlu0.b32.cont [14/16] %v7219, 128
    %8318 = vxpose.xlu0.b32.cont [15/16] %v7224, 128
    %8319 = vxpose.xlu0.b32.end [16/16] %v7229, 128
    %v8320 = vpop.trf.xlu0
    %v8321 = vpop.trf.xlu0
    %v8322 = vpop.trf.xlu0
    %v8323 = vpop.trf.xlu0
    %v8324 = vpop.trf.xlu0
    %v8325 = vpop.trf.xlu0
    %v8326 = vpop.trf.xlu0
    %v8327 = vpop.trf.xlu0
    %v8328 = vpop.trf.xlu0
    %v8329 = vpop.trf.xlu0
    %v8330 = vpop.trf.xlu0
    %v8331 = vpop.trf.xlu0
    %v8332 = vpop.trf.xlu0
    %v8333 = vpop.trf.xlu0
    %v8334 = vpop.trf.xlu0
    %v8335 = vpop.trf.xlu0
    %8336 = vxpose.xlu0.b32.start [1/16] %v7234, 128
    %8337 = vxpose.xlu0.b32.cont [2/16] %v7239, 128
    %8338 = vxpose.xlu0.b32.cont [3/16] %v7244, 128
    %8339 = vxpose.xlu0.b32.cont [4/16] %v7249, 128
    %8340 = vxpose.xlu0.b32.cont [5/16] %v7254, 128
    %8341 = vxpose.xlu0.b32.cont [6/16] %v7259, 128
    %8342 = vxpose.xlu0.b32.cont [7/16] %v7264, 128
    %8343 = vxpose.xlu0.b32.cont [8/16] %v7269, 128
    %8344 = vxpose.xlu0.b32.cont [9/16] %v7274, 128
    %8345 = vxpose.xlu0.b32.cont [10/16] %v7279, 128
    %8346 = vxpose.xlu0.b32.cont [11/16] %v7284, 128
    %8347 = vxpose.xlu0.b32.cont [12/16] %v7289, 128
    %8348 = vxpose.xlu0.b32.cont [13/16] %v7294, 128
    %8349 = vxpose.xlu0.b32.cont [14/16] %v7299, 128
    %8350 = vxpose.xlu0.b32.cont [15/16] %v7304, 128
    %8351 = vxpose.xlu0.b32.end [16/16] %v7309, 128
    %v8352 = vpop.trf.xlu0
    %v8353 = vpop.trf.xlu0
    %v8354 = vpop.trf.xlu0
    %v8355 = vpop.trf.xlu0
    %v8356 = vpop.trf.xlu0
    %v8357 = vpop.trf.xlu0
    %v8358 = vpop.trf.xlu0
    %v8359 = vpop.trf.xlu0
    %v8360 = vpop.trf.xlu0
    %v8361 = vpop.trf.xlu0
    %v8362 = vpop.trf.xlu0
    %v8363 = vpop.trf.xlu0
    %v8364 = vpop.trf.xlu0
    %v8365 = vpop.trf.xlu0
    %v8366 = vpop.trf.xlu0
    %v8367 = vpop.trf.xlu0
    %8368 = vxpose.xlu0.b32.start [1/16] %v7314, 128
    %8369 = vxpose.xlu0.b32.cont [2/16] %v7319, 128
    %8370 = vxpose.xlu0.b32.cont [3/16] %v7324, 128
    %8371 = vxpose.xlu0.b32.cont [4/16] %v7329, 128
    %8372 = vxpose.xlu0.b32.cont [5/16] %v7334, 128
    %8373 = vxpose.xlu0.b32.cont [6/16] %v7339, 128
    %8374 = vxpose.xlu0.b32.cont [7/16] %v7344, 128
    %8375 = vxpose.xlu0.b32.cont [8/16] %v7349, 128
    %8376 = vxpose.xlu0.b32.cont [9/16] %v7354, 128
    %8377 = vxpose.xlu0.b32.cont [10/16] %v7359, 128
    %8378 = vxpose.xlu0.b32.cont [11/16] %v7364, 128
    %8379 = vxpose.xlu0.b32.cont [12/16] %v7369, 128
    %8380 = vxpose.xlu0.b32.cont [13/16] %v7374, 128
    %8381 = vxpose.xlu0.b32.cont [14/16] %v7379, 128
    %8382 = vxpose.xlu0.b32.cont [15/16] %v7384, 128
    %8383 = vxpose.xlu0.b32.end [16/16] %v7389, 128
    %v8384 = vpop.trf.xlu0
    %v8385 = vpop.trf.xlu0
    %v8386 = vpop.trf.xlu0
    %v8387 = vpop.trf.xlu0
    %v8388 = vpop.trf.xlu0
    %v8389 = vpop.trf.xlu0
    %v8390 = vpop.trf.xlu0
    %v8391 = vpop.trf.xlu0
    %v8392 = vpop.trf.xlu0
    %v8393 = vpop.trf.xlu0
    %v8394 = vpop.trf.xlu0
    %v8395 = vpop.trf.xlu0
    %v8396 = vpop.trf.xlu0
    %v8397 = vpop.trf.xlu0
    %v8398 = vpop.trf.xlu0
    %v8399 = vpop.trf.xlu0
    %8400 = vxpose.xlu0.b32.start [1/16] %v7394, 128
    %8401 = vxpose.xlu0.b32.cont [2/16] %v7399, 128
    %8402 = vxpose.xlu0.b32.cont [3/16] %v7404, 128
    %8403 = vxpose.xlu0.b32.cont [4/16] %v7409, 128
    %8404 = vxpose.xlu0.b32.cont [5/16] %v7414, 128
    %8405 = vxpose.xlu0.b32.cont [6/16] %v7419, 128
    %8406 = vxpose.xlu0.b32.cont [7/16] %v7424, 128
    %8407 = vxpose.xlu0.b32.cont [8/16] %v7429, 128
    %8408 = vxpose.xlu0.b32.cont [9/16] %v7434, 128
    %8409 = vxpose.xlu0.b32.cont [10/16] %v7439, 128
    %8410 = vxpose.xlu0.b32.cont [11/16] %v7444, 128
    %8411 = vxpose.xlu0.b32.cont [12/16] %v7449, 128
    %8412 = vxpose.xlu0.b32.cont [13/16] %v7454, 128
    %8413 = vxpose.xlu0.b32.cont [14/16] %v7459, 128
    %8414 = vxpose.xlu0.b32.cont [15/16] %v7464, 128
    %8415 = vxpose.xlu0.b32.end [16/16] %v7469, 128
    %v8416 = vpop.trf.xlu0
    %v8417 = vpop.trf.xlu0
    %v8418 = vpop.trf.xlu0
    %v8419 = vpop.trf.xlu0
    %v8420 = vpop.trf.xlu0
    %v8421 = vpop.trf.xlu0
    %v8422 = vpop.trf.xlu0
    %v8423 = vpop.trf.xlu0
    %v8424 = vpop.trf.xlu0
    %v8425 = vpop.trf.xlu0
    %v8426 = vpop.trf.xlu0
    %v8427 = vpop.trf.xlu0
    %v8428 = vpop.trf.xlu0
    %v8429 = vpop.trf.xlu0
    %v8430 = vpop.trf.xlu0
    %v8431 = vpop.trf.xlu0
    %8432 = vxpose.xlu0.b32.start [1/16] %v7474, 128
    %8433 = vxpose.xlu0.b32.cont [2/16] %v7479, 128
    %8434 = vxpose.xlu0.b32.cont [3/16] %v7484, 128
    %8435 = vxpose.xlu0.b32.cont [4/16] %v7489, 128
    %8436 = vxpose.xlu0.b32.cont [5/16] %v7494, 128
    %8437 = vxpose.xlu0.b32.cont [6/16] %v7499, 128
    %8438 = vxpose.xlu0.b32.cont [7/16] %v7504, 128
    %8439 = vxpose.xlu0.b32.cont [8/16] %v7509, 128
    %8440 = vxpose.xlu0.b32.cont [9/16] %v7514, 128
    %8441 = vxpose.xlu0.b32.cont [10/16] %v7519, 128
    %8442 = vxpose.xlu0.b32.cont [11/16] %v7524, 128
    %8443 = vxpose.xlu0.b32.cont [12/16] %v7529, 128
    %8444 = vxpose.xlu0.b32.cont [13/16] %v7534, 128
    %8445 = vxpose.xlu0.b32.cont [14/16] %v7539, 128
    %8446 = vxpose.xlu0.b32.cont [15/16] %v7544, 128
    %8447 = vxpose.xlu0.b32.end [16/16] %v7549, 128
    %v8448 = vpop.trf.xlu0
    %v8449 = vpop.trf.xlu0
    %v8450 = vpop.trf.xlu0
    %v8451 = vpop.trf.xlu0
    %v8452 = vpop.trf.xlu0
    %v8453 = vpop.trf.xlu0
    %v8454 = vpop.trf.xlu0
    %v8455 = vpop.trf.xlu0
    %v8456 = vpop.trf.xlu0
    %v8457 = vpop.trf.xlu0
    %v8458 = vpop.trf.xlu0
    %v8459 = vpop.trf.xlu0
    %v8460 = vpop.trf.xlu0
    %v8461 = vpop.trf.xlu0
    %v8462 = vpop.trf.xlu0
    %v8463 = vpop.trf.xlu0
    %8464 = vxpose.xlu0.b32.start [1/16] %v7554, 128
    %8465 = vxpose.xlu0.b32.cont [2/16] %v7559, 128
    %8466 = vxpose.xlu0.b32.cont [3/16] %v7564, 128
    %8467 = vxpose.xlu0.b32.cont [4/16] %v7569, 128
    %8468 = vxpose.xlu0.b32.cont [5/16] %v7574, 128
    %8469 = vxpose.xlu0.b32.cont [6/16] %v7579, 128
    %8470 = vxpose.xlu0.b32.cont [7/16] %v7584, 128
    %8471 = vxpose.xlu0.b32.cont [8/16] %v7589, 128
    %8472 = vxpose.xlu0.b32.cont [9/16] %v7594, 128
    %8473 = vxpose.xlu0.b32.cont [10/16] %v7599, 128
    %8474 = vxpose.xlu0.b32.cont [11/16] %v7604, 128
    %8475 = vxpose.xlu0.b32.cont [12/16] %v7609, 128
    %8476 = vxpose.xlu0.b32.cont [13/16] %v7614, 128
    %8477 = vxpose.xlu0.b32.cont [14/16] %v7619, 128
    %8478 = vxpose.xlu0.b32.cont [15/16] %v7624, 128
    %8479 = vxpose.xlu0.b32.end [16/16] %v7629, 128
    %v8480 = vpop.trf.xlu0
    %v8481 = vpop.trf.xlu0
    %v8482 = vpop.trf.xlu0
    %v8483 = vpop.trf.xlu0
    %v8484 = vpop.trf.xlu0
    %v8485 = vpop.trf.xlu0
    %v8486 = vpop.trf.xlu0
    %v8487 = vpop.trf.xlu0
    %v8488 = vpop.trf.xlu0
    %v8489 = vpop.trf.xlu0
    %v8490 = vpop.trf.xlu0
    %v8491 = vpop.trf.xlu0
    %v8492 = vpop.trf.xlu0
    %v8493 = vpop.trf.xlu0
    %v8494 = vpop.trf.xlu0
    %v8495 = vpop.trf.xlu0
    %8496 = vxpose.xlu0.b32.start [1/16] %v7634, 128
    %8497 = vxpose.xlu0.b32.cont [2/16] %v7639, 128
    %8498 = vxpose.xlu0.b32.cont [3/16] %v7644, 128
    %8499 = vxpose.xlu0.b32.cont [4/16] %v7649, 128
    %8500 = vxpose.xlu0.b32.cont [5/16] %v7654, 128
    %8501 = vxpose.xlu0.b32.cont [6/16] %v7659, 128
    %8502 = vxpose.xlu0.b32.cont [7/16] %v7664, 128
    %8503 = vxpose.xlu0.b32.cont [8/16] %v7669, 128
    %8504 = vxpose.xlu0.b32.cont [9/16] %v7674, 128
    %8505 = vxpose.xlu0.b32.cont [10/16] %v7679, 128
    %8506 = vxpose.xlu0.b32.cont [11/16] %v7684, 128
    %8507 = vxpose.xlu0.b32.cont [12/16] %v7689, 128
    %8508 = vxpose.xlu0.b32.cont [13/16] %v7694, 128
    %8509 = vxpose.xlu0.b32.cont [14/16] %v7699, 128
    %8510 = vxpose.xlu0.b32.cont [15/16] %v7704, 128
    %8511 = vxpose.xlu0.b32.end [16/16] %v7709, 128
    %v8512 = vpop.trf.xlu0
    %v8513 = vpop.trf.xlu0
    %v8514 = vpop.trf.xlu0
    %v8515 = vpop.trf.xlu0
    %v8516 = vpop.trf.xlu0
    %v8517 = vpop.trf.xlu0
    %v8518 = vpop.trf.xlu0
    %v8519 = vpop.trf.xlu0
    %v8520 = vpop.trf.xlu0
    %v8521 = vpop.trf.xlu0
    %v8522 = vpop.trf.xlu0
    %v8523 = vpop.trf.xlu0
    %v8524 = vpop.trf.xlu0
    %v8525 = vpop.trf.xlu0
    %v8526 = vpop.trf.xlu0
    %v8527 = vpop.trf.xlu0
    %8528 = vxpose.xlu0.b32.start [1/16] %v7714, 128
    %8529 = vxpose.xlu0.b32.cont [2/16] %v7719, 128
    %8530 = vxpose.xlu0.b32.cont [3/16] %v7724, 128
    %8531 = vxpose.xlu0.b32.cont [4/16] %v7729, 128
    %8532 = vxpose.xlu0.b32.cont [5/16] %v7734, 128
    %8533 = vxpose.xlu0.b32.cont [6/16] %v7739, 128
    %8534 = vxpose.xlu0.b32.cont [7/16] %v7744, 128
    %8535 = vxpose.xlu0.b32.cont [8/16] %v7749, 128
    %8536 = vxpose.xlu0.b32.cont [9/16] %v7754, 128
    %8537 = vxpose.xlu0.b32.cont [10/16] %v7759, 128
    %8538 = vxpose.xlu0.b32.cont [11/16] %v7764, 128
    %8539 = vxpose.xlu0.b32.cont [12/16] %v7769, 128
    %8540 = vxpose.xlu0.b32.cont [13/16] %v7774, 128
    %8541 = vxpose.xlu0.b32.cont [14/16] %v7779, 128
    %8542 = vxpose.xlu0.b32.cont [15/16] %v7784, 128
    %8543 = vxpose.xlu0.b32.end [16/16] %v7789, 128
    %v8544 = vpop.trf.xlu0
    %v8545 = vpop.trf.xlu0
    %v8546 = vpop.trf.xlu0
    %v8547 = vpop.trf.xlu0
    %v8548 = vpop.trf.xlu0
    %v8549 = vpop.trf.xlu0
    %v8550 = vpop.trf.xlu0
    %v8551 = vpop.trf.xlu0
    %v8552 = vpop.trf.xlu0
    %v8553 = vpop.trf.xlu0
    %v8554 = vpop.trf.xlu0
    %v8555 = vpop.trf.xlu0
    %v8556 = vpop.trf.xlu0
    %v8557 = vpop.trf.xlu0
    %v8558 = vpop.trf.xlu0
    %v8559 = vpop.trf.xlu0
    %v8560 = vsub.f32 %v7808, %v3486
    %v8561 = vsub.f32 %v7809, %v3487
    %v8562 = vsub.f32 %v7840, %v3488
    %v8563 = vsub.f32 %v7841, %v3489
    %v8564 = vsub.f32 %v7872, %v3490
    %v8565 = vsub.f32 %v7873, %v3491
    %v8566 = vsub.f32 %v7904, %v3492
    %v8567 = vsub.f32 %v7905, %v3493
    %v8568 = vsub.f32 %v7936, %v3494
    %v8569 = vsub.f32 %v7937, %v3495
    %v8570 = vsub.f32 %v7968, %v3496
    %v8571 = vsub.f32 %v7969, %v3497
    %v8572 = vsub.f32 %v8000, %v3498
    %v8573 = vsub.f32 %v8001, %v3499
    %v8574 = vsub.f32 %v8032, %v3500
    %v8575 = vsub.f32 %v8033, %v3501
    %v8576 = vsub.f32 %v8064, %v3502
    %v8577 = vsub.f32 %v8065, %v3503
    %v8578 = vsub.f32 %v8096, %v3504
    %v8579 = vsub.f32 %v8097, %v3505
    %v8580 = vsub.f32 %v8128, %v3506
    %v8581 = vsub.f32 %v8129, %v3507
    %v8582 = vsub.f32 %v8160, %v3508
    %v8583 = vsub.f32 %v8161, %v3509
    %v8584 = vsub.f32 %v8192, %v3510
    %v8585 = vsub.f32 %v8193, %v3511
    %v8586 = vsub.f32 %v8224, %v3512
    %v8587 = vsub.f32 %v8225, %v3513
    %v8588 = vsub.f32 %v8256, %v3514
    %v8589 = vsub.f32 %v8257, %v3515
    %v8590 = vsub.f32 %v8288, %v3516
    %v8591 = vsub.f32 %v8289, %v3517
    %v8592 = vsub.f32 %v8320, %v3518
    %v8593 = vsub.f32 %v8321, %v3519
    %v8594 = vsub.f32 %v8352, %v3520
    %v8595 = vsub.f32 %v8353, %v3521
    %v8596 = vsub.f32 %v8384, %v3522
    %v8597 = vsub.f32 %v8385, %v3523
    %v8598 = vsub.f32 %v8416, %v3524
    %v8599 = vsub.f32 %v8417, %v3525
    %v8600 = vsub.f32 %v8448, %v3526
    %v8601 = vsub.f32 %v8449, %v3527
    %v8602 = vsub.f32 %v8480, %v3528
    %v8603 = vsub.f32 %v8481, %v3529
    %v8604 = vsub.f32 %v8512, %v3530
    %v8605 = vsub.f32 %v8513, %v3531
    %v8606 = vsub.f32 %v8544, %v3532
    %v8607 = vsub.f32 %v8545, %v3533
    %v8608 = vmul.f32 %v3518, 2.0
    %v8609 = vmul.f32 %v3519, 2.0
    %v8610 = vmul.f32 %v3520, 2.0
    %v8611 = vmul.f32 %v3521, 2.0
    %v8612 = vmul.f32 %v3522, 2.0
    %v8613 = vmul.f32 %v3523, 2.0
    %v8614 = vmul.f32 %v3524, 2.0
    %v8615 = vmul.f32 %v3525, 2.0
    %v8616 = vmul.f32 %v3526, 2.0
    %v8617 = vmul.f32 %v3527, 2.0
    %v8618 = vmul.f32 %v3528, 2.0
    %v8619 = vmul.f32 %v3529, 2.0
    %v8620 = vmul.f32 %v3530, 2.0
    %v8621 = vmul.f32 %v3531, 2.0
    %v8622 = vmul.f32 %v3532, 2.0
    %v8623 = vmul.f32 %v3533, 2.0
    %v8624 = vadd.f32 %v8608, 0.0001
    %v8625 = vadd.f32 %v8609, 0.0001
    %v8626 = vadd.f32 %v8610, 0.0001
    %v8627 = vadd.f32 %v8611, 0.0001
    %v8628 = vadd.f32 %v8612, 0.0001
    %v8629 = vadd.f32 %v8613, 0.0001
    %v8630 = vadd.f32 %v8614, 0.0001
    %v8631 = vadd.f32 %v8615, 0.0001
    %v8632 = vadd.f32 %v8616, 0.0001
    %v8633 = vadd.f32 %v8617, 0.0001
    %v8634 = vadd.f32 %v8618, 0.0001
    %v8635 = vadd.f32 %v8619, 0.0001
    %v8636 = vadd.f32 %v8620, 0.0001
    %v8637 = vadd.f32 %v8621, 0.0001
    %v8638 = vadd.f32 %v8622, 0.0001
    %v8639 = vadd.f32 %v8623, 0.0001
    %v8640 = vmul.f32 %v8592, 2.0
    %v8641 = vmul.f32 %v8593, 2.0
    %v8642 = vmul.f32 %v8594, 2.0
    %v8643 = vmul.f32 %v8595, 2.0
    %v8644 = vmul.f32 %v8596, 2.0
    %v8645 = vmul.f32 %v8597, 2.0
    %v8646 = vmul.f32 %v8598, 2.0
    %v8647 = vmul.f32 %v8599, 2.0
    %v8648 = vmul.f32 %v8600, 2.0
    %v8649 = vmul.f32 %v8601, 2.0
    %v8650 = vmul.f32 %v8602, 2.0
    %v8651 = vmul.f32 %v8603, 2.0
    %v8652 = vmul.f32 %v8604, 2.0
    %v8653 = vmul.f32 %v8605, 2.0
    %v8654 = vmul.f32 %v8606, 2.0
    %v8655 = vmul.f32 %v8607, 2.0
    %v8656 = vadd.f32 %v8640, 0.0009
    %v8657 = vadd.f32 %v8641, 0.0009
    %v8658 = vadd.f32 %v8642, 0.0009
    %v8659 = vadd.f32 %v8643, 0.0009
    %v8660 = vadd.f32 %v8644, 0.0009
    %v8661 = vadd.f32 %v8645, 0.0009
    %v8662 = vadd.f32 %v8646, 0.0009
    %v8663 = vadd.f32 %v8647, 0.0009
    %v8664 = vadd.f32 %v8648, 0.0009
    %v8665 = vadd.f32 %v8649, 0.0009
    %v8666 = vadd.f32 %v8650, 0.0009
    %v8667 = vadd.f32 %v8651, 0.0009
    %v8668 = vadd.f32 %v8652, 0.0009
    %v8669 = vadd.f32 %v8653, 0.0009
    %v8670 = vadd.f32 %v8654, 0.0009
    %v8671 = vadd.f32 %v8655, 0.0009
    %v8672 = vmul.f32 %v8624, %v8656
    %v8673 = vmul.f32 %v8625, %v8657
    %v8674 = vmul.f32 %v8626, %v8658
    %v8675 = vmul.f32 %v8627, %v8659
    %v8676 = vmul.f32 %v8628, %v8660
    %v8677 = vmul.f32 %v8629, %v8661
    %v8678 = vmul.f32 %v8630, %v8662
    %v8679 = vmul.f32 %v8631, %v8663
    %v8680 = vmul.f32 %v8632, %v8664
    %v8681 = vmul.f32 %v8633, %v8665
    %v8682 = vmul.f32 %v8634, %v8666
    %v8683 = vmul.f32 %v8635, %v8667
    %v8684 = vmul.f32 %v8636, %v8668
    %v8685 = vmul.f32 %v8637, %v8669
    %v8686 = vmul.f32 %v8638, %v8670
    %v8687 = vmul.f32 %v8639, %v8671
    %v8688 = vadd.f32 %v3486, %v3502
    %v8689 = vadd.f32 %v3487, %v3503
    %v8690 = vadd.f32 %v3488, %v3504
    %v8691 = vadd.f32 %v3489, %v3505
    %v8692 = vadd.f32 %v3490, %v3506
    %v8693 = vadd.f32 %v3491, %v3507
    %v8694 = vadd.f32 %v3492, %v3508
    %v8695 = vadd.f32 %v3493, %v3509
    %v8696 = vadd.f32 %v3494, %v3510
    %v8697 = vadd.f32 %v3495, %v3511
    %v8698 = vadd.f32 %v3496, %v3512
    %v8699 = vadd.f32 %v3497, %v3513
    %v8700 = vadd.f32 %v3498, %v3514
    %v8701 = vadd.f32 %v3499, %v3515
    %v8702 = vadd.f32 %v3500, %v3516
    %v8703 = vadd.f32 %v3501, %v3517
    %v8704 = vadd.f32 %v8688, 0.0001
    %v8705 = vadd.f32 %v8689, 0.0001
    %v8706 = vadd.f32 %v8690, 0.0001
    %v8707 = vadd.f32 %v8691, 0.0001
    %v8708 = vadd.f32 %v8692, 0.0001
    %v8709 = vadd.f32 %v8693, 0.0001
    %v8710 = vadd.f32 %v8694, 0.0001
    %v8711 = vadd.f32 %v8695, 0.0001
    %v8712 = vadd.f32 %v8696, 0.0001
    %v8713 = vadd.f32 %v8697, 0.0001
    %v8714 = vadd.f32 %v8698, 0.0001
    %v8715 = vadd.f32 %v8699, 0.0001
    %v8716 = vadd.f32 %v8700, 0.0001
    %v8717 = vadd.f32 %v8701, 0.0001
    %v8718 = vadd.f32 %v8702, 0.0001
    %v8719 = vadd.f32 %v8703, 0.0001
    %v8720 = vadd.f32 %v8560, %v8576
    %v8721 = vadd.f32 %v8561, %v8577
    %v8722 = vadd.f32 %v8562, %v8578
    %v8723 = vadd.f32 %v8563, %v8579
    %v8724 = vadd.f32 %v8564, %v8580
    %v8725 = vadd.f32 %v8565, %v8581
    %v8726 = vadd.f32 %v8566, %v8582
    %v8727 = vadd.f32 %v8567, %v8583
    %v8728 = vadd.f32 %v8568, %v8584
    %v8729 = vadd.f32 %v8569, %v8585
    %v8730 = vadd.f32 %v8570, %v8586
    %v8731 = vadd.f32 %v8571, %v8587
    %v8732 = vadd.f32 %v8572, %v8588
    %v8733 = vadd.f32 %v8573, %v8589
    %v8734 = vadd.f32 %v8574, %v8590
    %v8735 = vadd.f32 %v8575, %v8591
    %v8736 = vadd.f32 %v8720, 0.0009
    %v8737 = vadd.f32 %v8721, 0.0009
    %v8738 = vadd.f32 %v8722, 0.0009
    %v8739 = vadd.f32 %v8723, 0.0009
    %v8740 = vadd.f32 %v8724, 0.0009
    %v8741 = vadd.f32 %v8725, 0.0009
    %v8742 = vadd.f32 %v8726, 0.0009
    %v8743 = vadd.f32 %v8727, 0.0009
    %v8744 = vadd.f32 %v8728, 0.0009
    %v8745 = vadd.f32 %v8729, 0.0009
    %v8746 = vadd.f32 %v8730, 0.0009
    %v8747 = vadd.f32 %v8731, 0.0009
    %v8748 = vadd.f32 %v8732, 0.0009
    %v8749 = vadd.f32 %v8733, 0.0009
    %v8750 = vadd.f32 %v8734, 0.0009
    %v8751 = vadd.f32 %v8735, 0.0009
    %v8752 = vmul.f32 %v8704, %v8736
    %v8753 = vmul.f32 %v8705, %v8737
    %v8754 = vmul.f32 %v8706, %v8738
    %v8755 = vmul.f32 %v8707, %v8739
    %v8756 = vmul.f32 %v8708, %v8740
    %v8757 = vmul.f32 %v8709, %v8741
    %v8758 = vmul.f32 %v8710, %v8742
    %v8759 = vmul.f32 %v8711, %v8743
    %v8760 = vmul.f32 %v8712, %v8744
    %v8761 = vmul.f32 %v8713, %v8745
    %v8762 = vmul.f32 %v8714, %v8746
    %v8763 = vmul.f32 %v8715, %v8747
    %v8764 = vmul.f32 %v8716, %v8748
    %v8765 = vmul.f32 %v8717, %v8749
    %v8766 = vmul.f32 %v8718, %v8750
    %v8767 = vmul.f32 %v8719, %v8751
    %v8768 = vrcp.pop %v8752
    %v8769 = vrcp.pop %v8753
    %v8770 = vrcp.pop %v8754
    %v8771 = vrcp.pop %v8755
    %v8772 = vrcp.pop %v8756
    %v8773 = vrcp.pop %v8757
    %v8774 = vrcp.pop %v8758
    %v8775 = vrcp.pop %v8759
    %v8776 = vrcp.pop %v8760
    %v8777 = vrcp.pop %v8761
    %v8778 = vrcp.pop %v8762
    %v8779 = vrcp.pop %v8763
    %v8780 = vrcp.pop %v8764
    %v8781 = vrcp.pop %v8765
    %v8782 = vrcp.pop %v8766
    %v8783 = vrcp.pop %v8767
    %v8784 = vmul.f32 %v8672, %v8768
    %v8785 = vmul.f32 %v8673, %v8769
    %v8786 = vmul.f32 %v8674, %v8770
    %v8787 = vmul.f32 %v8675, %v8771
    %v8788 = vmul.f32 %v8676, %v8772
    %v8789 = vmul.f32 %v8677, %v8773
    %v8790 = vmul.f32 %v8678, %v8774
    %v8791 = vmul.f32 %v8679, %v8775
    %v8792 = vmul.f32 %v8680, %v8776
    %v8793 = vmul.f32 %v8681, %v8777
    %v8794 = vmul.f32 %v8682, %v8778
    %v8795 = vmul.f32 %v8683, %v8779
    %v8796 = vmul.f32 %v8684, %v8780
    %v8797 = vmul.f32 %v8685, %v8781
    %v8798 = vmul.f32 %v8686, %v8782
    %v8799 = vmul.f32 %v8687, %v8783
    %v8800 = vlaneseq
    %v8801 = vand.u32 %v8800, 127
    %vm8802 = vcmp.lt.s32.totalorder %v8801, 16
    %v8803 = vsel %vm8802, %v8784, 0.0
    %v8804 = vsel %vm8802, %v8785, 0.0
    %v8805 = vsel %vm8802, %v8786, 0.0
    %v8806 = vsel %vm8802, %v8787, 0.0
    %v8807 = vsel %vm8802, %v8788, 0.0
    %v8808 = vsel %vm8802, %v8789, 0.0
    %v8809 = vsel %vm8802, %v8790, 0.0
    %v8810 = vsel %vm8802, %v8791, 0.0
    %v8811 = vsel %vm8802, %v8792, 0.0
    %v8812 = vsel %vm8802, %v8793, 0.0
    %v8813 = vsel %vm8802, %v8794, 0.0
    %v8814 = vsel %vm8802, %v8795, 0.0
    %v8815 = vsel %vm8802, %v8796, 0.0
    %v8816 = vsel %vm8802, %v8797, 0.0
    %v8817 = vsel %vm8802, %v8798, 0.0
    %v8818 = vsel %vm8802, %v8799, 0.0
    %v8819 = vadd.f32 %v8803, %v8804
    %v8820 = vadd.f32 %v8819, %v8805
    %v8821 = vadd.f32 %v8820, %v8806
    %v8822 = vadd.f32 %v8821, %v8807
    %v8823 = vadd.f32 %v8822, %v8808
    %v8824 = vadd.f32 %v8823, %v8809
    %v8825 = vadd.f32 %v8824, %v8810
    %v8826 = vrot.slane %v8825, 4
    %v8827 = vadd.f32 %v8825, %v8826
    %v8828 = vrot.slane %v8827, 2
    %v8829 = vadd.f32 %v8827, %v8828
    %v8830 = vrot.slane %v8829, 1
    %v8831 = vadd.f32 %v8829, %v8830
    %v8832 = vadd.f32 %v8811, %v8812
    %v8833 = vadd.f32 %v8832, %v8813
    %v8834 = vadd.f32 %v8833, %v8814
    %v8835 = vadd.f32 %v8834, %v8815
    %v8836 = vadd.f32 %v8835, %v8816
    %v8837 = vadd.f32 %v8836, %v8817
    %v8838 = vadd.f32 %v8837, %v8818
    %v8839 = vrot.slane %v8838, 4
    %v8840 = vadd.f32 %v8838, %v8839
    %v8841 = vrot.slane %v8840, 2
    %v8842 = vadd.f32 %v8840, %v8841
    %v8843 = vrot.slane %v8842, 1
    %v8844 = vadd.f32 %v8842, %v8843
    %vm8847 = vcmask 1041409
    %v8848 = vsel %vm8847, %v8844, %v8831
    %8850 = vst [vmem:[#allocation10] sm:$0x3] %v8848
    // Predicated region
    $region34: #{tpu_custom_call.1} parent=1 // pred_check
      _
    $region35: #{tpu_custom_call.1} parent=1 // pred_check_branch
      %8852 = sbr.rel (0) target = $region37
    $region36: #{tpu_custom_call.1} parent=1 // pred_region
      %s8854 = ssub.s32 32, 32
      %8855 = vsyncadd [#allocation4], %s8854
      %s8857 = sshll.u32 [#allocation10], 4
      %s8858 = int_to_ptr.vmem [resolvable:$true] %s8857
      %8860 = dma.vmem_to_hbm [thread:$0]  %s8858, 32, %s4, [#allocation4]
    $region37: #{tpu_custom_call.1} parent=1 // pred_fallthru
      _
    // Predicated region
    $region38: #{tpu_custom_call.1} parent=1 // pred_check
      _
    $region39: #{tpu_custom_call.1} parent=1 // pred_check_branch
      %8862 = sbr.rel (0) target = $region41
    $region40: #{tpu_custom_call.1} parent=1 // pred_region
      %8863 = dma.done [#allocation4], 32
    $region41: #{tpu_custom_call.1} parent=1 // pred_fallthru
      _
    %8864 = vsyncpa [#allocation3], 1
    %8865 = vsyncpa [#allocation6], 1
    %8866 = vsyncpa [#allocation9], 1
    %8867 = vsyncpa [#allocation4], 1

</llo_original>
